<compile_context>
chip_gen: v7x
topology: tpu7x:2x2x1
jax: 0.10.0
libtpu: 0.0.40
codegen_flags: <defaults>
</compile_context>

<pallas_src>
import math
from functools import partial

import jax
import jax.numpy as jnp
from jax.experimental import pallas as pl
from jax.experimental.pallas import tpu as pltpu

# Compatibility shim (newer jax: CompilerParams; older: TPUCompilerParams).
_CompilerParams = getattr(pltpu, "CompilerParams",
                          getattr(pltpu, "TPUCompilerParams", None))

# GEMM tile targets: multiples of the (8, 128) vreg tiling.  512x512 tiles with
# double-buffered bf16 operands + f32 accumulator + f32 residual block stay
# around 9-12 MB -> fine on every generation including v7x.
_TM, _TN, _TK = 512, 512, 1024


def _vmem_limit_bytes():
    # ~3/4 of physical VMEM, capped at 96 MiB: ~48 MiB on v7x (64 MiB phys),
    # 96 MiB on v5e/v6e (128 MiB phys).  Leaves headroom for Mosaic scratch.
    try:
        cap = pltpu.get_tpu_info().vmem_capacity_bytes
    except Exception:
        cap = 64 * 1024 * 1024
    return int(min(cap * 3 // 4, 96 * 1024 * 1024))


_VMEM_LIMIT = _vmem_limit_bytes()


def _softmax_exp_dtype():
    # bf16 exponent uses the bf16 EUP path on v6e/v7x (~2x exp throughput);
    # v5e has no bf16 EUP/VPU so keep the exponent in f32 there.
    try:
        kind = jax.devices()[0].device_kind.lower()
    except Exception:
        return jnp.bfloat16
    return jnp.float32 if ("v5 lite" in kind or "v5e" in kind) else jnp.bfloat16


_EXP_DTYPE = _softmax_exp_dtype()


def _tile(dim, target):
    """Row/col tile: full dim when it fits in one block (always layout-legal),
    else `target` (a multiple of the (8,128) tiling) with a masked edge block
    via a pl.cdiv grid."""
    return dim if dim <= target else target


def _tile_k(k_dim, target=_TK):
    """Contraction tile: must divide K exactly (no masking on the K axis)."""
    for t in (target, 512, 256, 128):
        if k_dim >= t and k_dim % t == 0:
            return t
    return k_dim


def _gelu_exact(y):
    # exact GELU (PyTorch nn.GELU default): 0.5*x*(1+erf(x/sqrt(2)))
    return 0.5 * y * (1.0 + jax.lax.erf(y * (1.0 / math.sqrt(2.0))))


# ----------------------------- Pallas kernels ------------------------------


def _matmul_bias_kernel(x_ref, w_ref, b_ref, o_ref, acc_ref, *, activation):
    k = pl.program_id(2)

    @pl.when(k == 0)
    def _():
        acc_ref[...] = jnp.zeros_like(acc_ref)

    acc_ref[...] += jnp.dot(x_ref[...].astype(jnp.bfloat16),
                            w_ref[...].astype(jnp.bfloat16),
                            preferred_element_type=jnp.float32)

    @pl.when(k == pl.num_programs(2) - 1)
    def _():
        y = acc_ref[...] + b_ref[...].astype(jnp.float32)
        if activation == "gelu":
            y = _gelu_exact(y)
        o_ref[...] = y.astype(o_ref.dtype)


def matmul_bias(x, w, b, *, activation=None, out_dtype=None,
                tm=_TM, tn=_TN, tk=_TK):
    """(M, K) @ (K, N) + (N,), bf16 MXU operands, f32 accumulation."""
    M, K = x.shape
    _, N = w.shape
    out_dtype = out_dtype or x.dtype
    tm, tn, tk = _tile(M, tm), _tile(N, tn), _tile_k(K, tk)
    return pl.pallas_call(
        partial(_matmul_bias_kernel, activation=activation),
        out_shape=jax.ShapeDtypeStruct((M, N), out_dtype),
        grid=(pl.cdiv(M, tm), pl.cdiv(N, tn), K // tk),
        in_specs=[pl.BlockSpec((tm, tk), lambda i, j, k: (i, k)),
                  pl.BlockSpec((tk, tn), lambda i, j, k: (k, j)),
                  pl.BlockSpec((1, tn), lambda i, j, k: (0, j))],
        out_specs=pl.BlockSpec((tm, tn), lambda i, j, k: (i, j)),
        scratch_shapes=[pltpu.VMEM((tm, tn), jnp.float32)],
        compiler_params=_CompilerParams(
            dimension_semantics=("parallel", "parallel", "arbitrary"),
            vmem_limit_bytes=_VMEM_LIMIT),
    )(x, w, b.reshape(1, N))


def _ln_matmul_kernel(x_ref, g_ref, be_ref, w_ref, bias_ref, o_ref, h_ref,
                      *, eps, activation):
    # Fused LayerNorm -> matmul -> bias [-> GELU].  The normalized activations
    # are computed once per row-tile (j == 0, innermost axis) and cached in a
    # bf16 VMEM scratch so the LN work is not repeated per column tile.
    @pl.when(pl.program_id(1) == 0)
    def _():
        x = x_ref[...].astype(jnp.float32)
        mean = jnp.mean(x, axis=-1, keepdims=True)
        xc = x - mean
        var = jnp.mean(xc * xc, axis=-1, keepdims=True)
        h = xc * jax.lax.rsqrt(var + eps)
        h = h * g_ref[...].astype(jnp.float32) + be_ref[...].astype(jnp.float32)
        h_ref[...] = h.astype(h_ref.dtype)

    y = jnp.dot(h_ref[...], w_ref[...].astype(jnp.bfloat16),
                preferred_element_type=jnp.float32)
    y = y + bias_ref[...].astype(jnp.float32)
    if activation == "gelu":
        y = _gelu_exact(y)
    o_ref[...] = y.astype(o_ref.dtype)


def layernorm_matmul(x, gamma, beta, w, bias, *, activation=None,
                     out_dtype=None, eps=1e-6, tm=_TM, tn=_TN):
    """LayerNorm(x) @ w + bias with the LN fused into the matmul prologue."""
    M, K = x.shape
    _, N = w.shape
    out_dtype = out_dtype or x.dtype
    tm, tn = _tile(M, tm), _tile(N, tn)
    return pl.pallas_call(
        partial(_ln_matmul_kernel, eps=eps, activation=activation),
        out_shape=jax.ShapeDtypeStruct((M, N), out_dtype),
        grid=(pl.cdiv(M, tm), pl.cdiv(N, tn)),
        in_specs=[pl.BlockSpec((tm, K), lambda i, j: (i, 0)),
                  pl.BlockSpec((1, K), lambda i, j: (0, 0)),
                  pl.BlockSpec((1, K), lambda i, j: (0, 0)),
                  pl.BlockSpec((K, tn), lambda i, j: (0, j)),
                  pl.BlockSpec((1, tn), lambda i, j: (0, j))],
        out_specs=pl.BlockSpec((tm, tn), lambda i, j: (i, j)),
        scratch_shapes=[pltpu.VMEM((tm, K), jnp.bfloat16)],
        compiler_params=_CompilerParams(
            # j carries the cached-LN scratch dependency -> keep it "arbitrary".
            dimension_semantics=("parallel", "arbitrary"),
            vmem_limit_bytes=_VMEM_LIMIT),
    )(x, gamma.reshape(1, K), beta.reshape(1, K), w, bias.reshape(1, N))


def _mm_scale_res_kernel(x_ref, w_ref, b_ref, ls_ref, res_ref, o_ref, acc_ref):
    # matmul -> +bias -> LayerScale -> +residual, fused epilogue.
    k = pl.program_id(2)

    @pl.when(k == 0)
    def _():
        acc_ref[...] = jnp.zeros_like(acc_ref)

    acc_ref[...] += jnp.dot(x_ref[...].astype(jnp.bfloat16),
                            w_ref[...].astype(jnp.bfloat16),
                            preferred_element_type=jnp.float32)

    @pl.when(k == pl.num_programs(2) - 1)
    def _():
        y = acc_ref[...] + b_ref[...].astype(jnp.float32)
        y = res_ref[...].astype(jnp.float32) + ls_ref[...].astype(jnp.float32) * y
        o_ref[...] = y.astype(o_ref.dtype)


def matmul_scale_residual(x, w, b, ls, residual, *, tm=_TM, tn=_TN, tk=_TK):
    """residual + ls * (x @ w + b); output dtype follows the residual stream."""
    M, K = x.shape
    _, N = w.shape
    tm, tn, tk = _tile(M, tm), _tile(N, tn), _tile_k(K, tk)
    return pl.pallas_call(
        _mm_scale_res_kernel,
        out_shape=jax.ShapeDtypeStruct((M, N), residual.dtype),
        grid=(pl.cdiv(M, tm), pl.cdiv(N, tn), K // tk),
        in_specs=[pl.BlockSpec((tm, tk), lambda i, j, k: (i, k)),
                  pl.BlockSpec((tk, tn), lambda i, j, k: (k, j)),
                  pl.BlockSpec((1, tn), lambda i, j, k: (0, j)),
                  pl.BlockSpec((1, tn), lambda i, j, k: (0, j)),
                  pl.BlockSpec((tm, tn), lambda i, j, k: (i, j))],
        out_specs=pl.BlockSpec((tm, tn), lambda i, j, k: (i, j)),
        scratch_shapes=[pltpu.VMEM((tm, tn), jnp.float32)],
        compiler_params=_CompilerParams(
            dimension_semantics=("parallel", "parallel", "arbitrary"),
            vmem_limit_bytes=_VMEM_LIMIT),
    )(x, w, b.reshape(1, N), ls.reshape(1, N), residual)


def _layernorm_kernel(x_ref, g_ref, b_ref, o_ref, *, eps):
    x = x_ref[...].astype(jnp.float32)
    mean = jnp.mean(x, axis=-1, keepdims=True)
    xc = x - mean
    var = jnp.mean(xc * xc, axis=-1, keepdims=True)
    y = xc * jax.lax.rsqrt(var + eps)
    y = y * g_ref[...].astype(jnp.float32) + b_ref[...].astype(jnp.float32)
    o_ref[...] = y.astype(o_ref.dtype)


def layernorm(x, gamma, beta, eps=1e-6, tm=_TM):
    """Row-gridded LayerNorm over the last axis of a 2-D array."""
    M, D = x.shape
    tm = _tile(M, tm)
    return pl.pallas_call(
        partial(_layernorm_kernel, eps=eps),
        out_shape=jax.ShapeDtypeStruct((M, D), x.dtype),
        grid=(pl.cdiv(M, tm),),
        in_specs=[pl.BlockSpec((tm, D), lambda i: (i, 0)),
                  pl.BlockSpec((1, D), lambda i: (0, 0)),
                  pl.BlockSpec((1, D), lambda i: (0, 0))],
        out_specs=pl.BlockSpec((tm, D), lambda i: (i, 0)),
        compiler_params=_CompilerParams(dimension_semantics=("parallel",),
                                        vmem_limit_bytes=_VMEM_LIMIT),
    )(x, gamma.reshape(1, D), beta.reshape(1, D))


# ------------------------------- attention ----------------------------------


def _attn_one_head(q, k, v, scale, out_dtype):
    # Softmax scale folded into q: one (S, Dh) pass instead of an (S, S) pass.
    qs = (q.astype(jnp.float32) * scale).astype(jnp.bfloat16)
    s = jax.lax.dot_general(qs, k.astype(jnp.bfloat16),
                            (((1,), (1,)), ((), ())),
                            preferred_element_type=jnp.float32)
    m = jnp.max(s, axis=-1, keepdims=True)
    p = jnp.exp((s - m).astype(_EXP_DTYPE))            # bf16 EUP on v6e/v7x
    l = jnp.sum(p, axis=-1, keepdims=True, dtype=jnp.float32)
    o = jnp.dot(p.astype(jnp.bfloat16), v.astype(jnp.bfloat16),
                preferred_element_type=jnp.float32)
    o = o * pl.reciprocal(l, approx=True)
    return o.astype(out_dtype)


def _attn_group_kernel(q_ref, k_ref, v_ref, o_ref, *, heads, dh, scale):
    # Refs are (S, heads*dh) column slices of the qkv activation.
    outs = []
    for i in range(heads):
        lo, hi = i * dh, (i + 1) * dh
        outs.append(_attn_one_head(q_ref[:, lo:hi], k_ref[:, lo:hi],
                                   v_ref[:, lo:hi], scale, o_ref.dtype))
    o_ref[...] = outs[0] if heads == 1 else jnp.concatenate(outs, axis=-1)


def _attn_full_kernel(qkv_ref, o_ref, *, num_heads, dh, d, scale):
    # Fallback for tiny/odd head widths: full (S, 3D) block, loop heads.
    for h in range(num_heads):
        lo, hi = h * dh, (h + 1) * dh
        q = qkv_ref[:, lo:hi]
        k = qkv_ref[:, d + lo:d + hi]
        v = qkv_ref[:, 2 * d + lo:2 * d + hi]
        o_ref[:, lo:hi] = _attn_one_head(q, k, v, scale, o_ref.dtype)


def attention(qkv, *, num_heads, scale, out_dtype=None):
    """qkv: (B, S, 3*D) with column layout [q heads | k heads | v heads].

    Returns (B, S, D) written directly in token-major layout (no plain-JAX
    head transposes).  Heads are grouped per grid step so the column block /
    output store width is a multiple of 128 lanes whenever possible.
    """
    # TODO(synk): KV-tiled flash variant (online softmax) for very long S.
    B, S, threeD = qkv.shape
    D = threeD // 3
    Dh = D // num_heads
    out_dtype = out_dtype or qkv.dtype

    hpb = 0
    for cand in (1, 2, 4):                       # smallest lane-aligned group
        if num_heads % cand == 0 and (cand * Dh) % 128 == 0:
            hpb = cand
            break

    if hpb:
        W = hpb * Dh
        G = num_heads // hpb                     # head groups == D // W
        kern = partial(_attn_group_kernel, heads=hpb, dh=Dh, scale=scale)
        return pl.pallas_call(
            kern,
            out_shape=jax.ShapeDtypeStruct((B, S, D), out_dtype),
            grid=(B, G),
            in_specs=[pl.BlockSpec((None, S, W), lambda b, g: (b, 0, g)),
                      pl.BlockSpec((None, S, W), lambda b, g: (b, 0, G + g)),
                      pl.BlockSpec((None, S, W), lambda b, g: (b, 0, 2 * G + g))],
            out_specs=pl.BlockSpec((None, S, W), lambda b, g: (b, 0, g)),
            compiler_params=_CompilerParams(
                dimension_semantics=("parallel", "parallel"),
                vmem_limit_bytes=_VMEM_LIMIT),
        )(qkv, qkv, qkv)

    # Tiny / non-128-aligned head widths: one batch per step, loop all heads.
    kern = partial(_attn_full_kernel, num_heads=num_heads, dh=Dh, d=D,
                   scale=scale)
    return pl.pallas_call(
        kern,
        out_shape=jax.ShapeDtypeStruct((B, S, D), out_dtype),
        grid=(B,),
        in_specs=[pl.BlockSpec((None, S, threeD), lambda b: (b, 0, 0))],
        out_specs=pl.BlockSpec((None, S, D), lambda b: (b, 0, 0)),
        compiler_params=_CompilerParams(
            dimension_semantics=("parallel",),
            vmem_limit_bytes=_VMEM_LIMIT),
    )(qkv)


# ----------------------------- parameter setup ------------------------------

def init_params(key, *, in_chans, patch, embed_dim, depth, num_heads,
                mlp_ratio, num_patches, init_values=1e-5):
    def nrm(k, shape, s=0.02):
        return (s * jax.random.normal(k, shape)).astype(jnp.float32)

    keys = iter(jax.random.split(key, 8 + depth * 8))
    hidden = int(embed_dim * mlp_ratio)
    params = {
        # Conv2d(in_chans, embed_dim, kernel=patch, stride=patch) weight,
        # stored PyTorch-style (D, C, p, p).
        "patch_w": nrm(next(keys), (embed_dim, in_chans, patch, patch)),
        "patch_b": jnp.zeros((embed_dim,), jnp.float32),
        "cls_token": nrm(next(keys), (1, 1, embed_dim)),
        "pos_embed": nrm(next(keys), (1, 1 + num_patches, embed_dim)),
        "norm_g": jnp.ones((embed_dim,), jnp.float32),
        "norm_b": jnp.zeros((embed_dim,), jnp.float32),
        "blocks": [],
    }
    for _ in range(depth):
        blk = {
            "ln1_g": jnp.ones((embed_dim,), jnp.float32),
            "ln1_b": jnp.zeros((embed_dim,), jnp.float32),
            "qkv_w": nrm(next(keys), (embed_dim, 3 * embed_dim)),
            "qkv_b": jnp.zeros((3 * embed_dim,), jnp.float32),
            "proj_w": nrm(next(keys), (embed_dim, embed_dim)),
            "proj_b": jnp.zeros((embed_dim,), jnp.float32),
            "ls1": jnp.full((embed_dim,), init_values, jnp.float32),
            "ln2_g": jnp.ones((embed_dim,), jnp.float32),
            "ln2_b": jnp.zeros((embed_dim,), jnp.float32),
            "fc1_w": nrm(next(keys), (embed_dim, hidden)),
            "fc1_b": jnp.zeros((hidden,), jnp.float32),
            "fc2_w": nrm(next(keys), (hidden, embed_dim)),
            "fc2_b": jnp.zeros((embed_dim,), jnp.float32),
            "ls2": jnp.full((embed_dim,), init_values, jnp.float32),
        }
        params["blocks"].append(blk)
    return params


# ------------------------------- forward pass -------------------------------

def dinov2_vit_forward(params, x, *, patch, num_heads):
    """x: (B, C, H, W) float32 (NCHW, like the PyTorch module). Returns (B, D)."""
    B, C, H, W = x.shape
    D = params["patch_w"].shape[0]
    nH, nW = H // patch, W // patch
    N = nH * nW
    S = N + 1
    M = B * S
    Dh = D // num_heads
    scale = 1.0 / math.sqrt(Dh)
    bf16 = jnp.bfloat16

    # --- patch embedding (conv stride=patch  ==  matmul over patch pixels) ---
    patches = x.reshape(B, C, nH, patch, nW, patch)
    patches = patches.transpose(0, 2, 4, 1, 3, 5).reshape(B * N, C * patch * patch)
    w_pe = params["patch_w"].reshape(D, C * patch * patch).T  # (C*p*p, D)
    tok = matmul_bias(patches.astype(bf16), w_pe.astype(bf16), params["patch_b"],
                      out_dtype=jnp.float32).reshape(B, N, D)

    # --- cls token + positional embedding (residual stream kept in f32) ---
    cls = jnp.broadcast_to(params["cls_token"], (B, 1, D))
    tok = (jnp.concatenate([cls, tok], axis=1) + params["pos_embed"]).reshape(M, D)

    # --- transformer blocks ---
    for blk in params["blocks"]:
        # LN1 fused into the QKV matmul; activations emitted in bf16.
        qkv = layernorm_matmul(tok, blk["ln1_g"], blk["ln1_b"],
                               blk["qkv_w"].astype(bf16), blk["qkv_b"],
                               out_dtype=bf16)
        # Attention reads q/k/v straight out of the (B, S, 3D) slab and writes
        # a (B, S, D) slab (both reshapes below are free, row-major views).
        a = attention(qkv.reshape(B, S, 3 * D), num_heads=num_heads, scale=scale)
        # proj matmul with fused LayerScale + residual add.
        tok = matmul_scale_residual(a.reshape(M, D), blk["proj_w"].astype(bf16),
                                    blk["proj_b"], blk["ls1"], tok)

        # LN2 + fc1 + GELU fused; fc2 with fused LayerScale + residual add.
        h = layernorm_matmul(tok, blk["ln2_g"], blk["ln2_b"],
                             blk["fc1_w"].astype(bf16), blk["fc1_b"],
                             activation="gelu", out_dtype=bf16)
        tok = matmul_scale_residual(h, blk["fc2_w"].astype(bf16),
                                    blk["fc2_b"], blk["ls2"], tok)

    # --- final norm + token pooling (head = Identity) ---
    # Only the cls-token rows are needed for the returned embedding, so the
    # final LayerNorm is applied to those rows only (same result as norming
    # all tokens and then selecting x[:, 0]).
    cls_rows = tok.reshape(B, S, D)[:, 0]                   # (B, D) f32
    embedding = layernorm(cls_rows, params["norm_g"], params["norm_b"])
    return embedding


# ----------------------------------- main ------------------------------------

if __name__ == "__main__":
    # Small synthetic config with real-DINOv2-like proportions (patch=14,
    # head_dim=64) so the production attention / edge-masking paths are
    # exercised, while staying tiny (10 tokens, 256-dim embed, 2 blocks).
    B, C, IMG, PATCH = 2, 3, 28, 14
    EMBED_DIM, DEPTH, HEADS, MLP_RATIO = 256, 2, 4, 4.0
    NUM_PATCHES = (IMG // PATCH) ** 2

    key = jax.random.PRNGKey(0)
    k_params, k_x = jax.random.split(key)
    params = init_params(k_params, in_chans=C, patch=PATCH, embed_dim=EMBED_DIM,
                         depth=DEPTH, num_heads=HEADS, mlp_ratio=MLP_RATIO,
                         num_patches=NUM_PATCHES)
    x = jax.random.normal(k_x, (B, C, IMG, IMG), dtype=jnp.float32)

    fwd = jax.jit(partial(dinov2_vit_forward, patch=PATCH, num_heads=HEADS))
    out = fwd(params, x)
    jax.block_until_ready(out)
    assert out.shape == (B, EMBED_DIM) and out.dtype == jnp.float32
    assert bool(jnp.all(jnp.isfinite(out)))
    print("KERNEL_OK")
</pallas_src>

<mosaic_0001>
module attributes {stable_mosaic.version = 11 : i64} {
  func.func @_matmul_bias_kernel(%arg0: i32, %arg1: i32, %arg2: i32, %arg3: memref<8x588xbf16, #tpu.memory_space<vmem>>, %arg4: memref<588x256xbf16, #tpu.memory_space<vmem>>, %arg5: memref<1x256xf32, #tpu.memory_space<vmem>>, %arg6: memref<8x256xf32, #tpu.memory_space<vmem>>, %arg7: memref<8x256xf32, #tpu.memory_space<vmem>>) attributes {dimension_semantics = [#tpu.dimension_semantics<parallel>, #tpu.dimension_semantics<parallel>, #tpu.dimension_semantics<arbitrary>], iteration_bounds = array<i64: 1, 1, 1>, scalar_prefetch = 0 : i64, scratch_operands = 1 : i64, tpu.core_type = #tpu.core_type<tc>, window_params = [{transform_indices = @transform_0, window_bounds = array<i64: 8, 588>}, {transform_indices = @transform_1, window_bounds = array<i64: 588, 256>}, {transform_indices = @transform_2, window_bounds = array<i64: 1, 256>}, {transform_indices = @transform_3, window_bounds = array<i64: 8, 256>}]} {
    %c0_i32 = arith.constant 0 : i32
    %0 = arith.cmpi eq, %arg2, %c0_i32 : i32
    %1 = arith.extui %0 : i1 to i32
    %c0_i32_0 = arith.constant 0 : i32
    %2 = arith.cmpi ne, %1, %c0_i32_0 : i32
    scf.if %2 {
      %cst_10 = arith.constant 0.000000e+00 : f32
      %12 = vector.broadcast %cst_10 : f32 to vector<8x256xf32>
      %c0_11 = arith.constant 0 : index
      %c0_12 = arith.constant 0 : index
      %13 = vector.load %arg7[%c0_11, %c0_12] : memref<8x256xf32, #tpu.memory_space<vmem>>, vector<8x256xf32>
      tpu.vector_store %arg7[%c0_11, %c0_12], %12 {strides = array<i32>} : memref<8x256xf32, #tpu.memory_space<vmem>>, vector<8x256xf32>,
    } else {
    }
    %c0 = arith.constant 0 : index
    %c0_1 = arith.constant 0 : index
    %3 = vector.load %arg7[%c0, %c0_1] : memref<8x256xf32, #tpu.memory_space<vmem>>, vector<8x256xf32>
    %c0_2 = arith.constant 0 : index
    %c0_3 = arith.constant 0 : index
    %4 = vector.load %arg3[%c0_2, %c0_3] : memref<8x588xbf16, #tpu.memory_space<vmem>>, vector<8x588xbf16>
    %c0_4 = arith.constant 0 : index
    %c0_5 = arith.constant 0 : index
    %5 = vector.load %arg4[%c0_4, %c0_5] : memref<588x256xbf16, #tpu.memory_space<vmem>>, vector<588x256xbf16>
    %cst = arith.constant dense<0.000000e+00> : vector<8x256xf32>
    %6 = tpu.matmul %4, %5, %cst {dimension_numbers = #tpu.dot_dimension_numbers<[1], [0], [0], [1], [0, 0, 1, 1], [], []>} : vector<8x588xbf16>, vector<588x256xbf16>, vector<8x256xf32> -> vector<8x256xf32>
    %7 = arith.addf %3, %6 : vector<8x256xf32>
    %c0_6 = arith.constant 0 : index
    %c0_7 = arith.constant 0 : index
    %8 = vector.load %arg7[%c0_6, %c0_7] : memref<8x256xf32, #tpu.memory_space<vmem>>, vector<8x256xf32>
    tpu.vector_store %arg7[%c0_6, %c0_7], %7 {strides = array<i32>} : memref<8x256xf32, #tpu.memory_space<vmem>>, vector<8x256xf32>,
    %c0_i32_8 = arith.constant 0 : i32
    %9 = arith.cmpi eq, %arg2, %c0_i32_8 : i32
    %10 = arith.extui %9 : i1 to i32
    %c0_i32_9 = arith.constant 0 : i32
    %11 = arith.cmpi ne, %10, %c0_i32_9 : i32
    scf.if %11 {
      %c0_10 = arith.constant 0 : index
      %c0_11 = arith.constant 0 : index
      %12 = vector.load %arg7[%c0_10, %c0_11] : memref<8x256xf32, #tpu.memory_space<vmem>>, vector<8x256xf32>
      %c0_12 = arith.constant 0 : index
      %c0_13 = arith.constant 0 : index
      %13 = vector.load %arg5[%c0_12, %c0_13] : memref<1x256xf32, #tpu.memory_space<vmem>>, vector<1x256xf32>
      %14 = vector.broadcast %13 : vector<1x256xf32> to vector<8x256xf32>
      %15 = arith.addf %12, %14 : vector<8x256xf32>
      %c0_14 = arith.constant 0 : index
      %c0_15 = arith.constant 0 : index
      %16 = vector.load %arg6[%c0_14, %c0_15] : memref<8x256xf32, #tpu.memory_space<vmem>>, vector<8x256xf32>
      tpu.vector_store %arg6[%c0_14, %c0_15], %15 {strides = array<i32>} : memref<8x256xf32, #tpu.memory_space<vmem>>, vector<8x256xf32>,
    } else {
    }
    return
  }
  func.func @transform_0(%arg0: i32, %arg1: i32, %arg2: i32) -> (i32, i32) {
    %c0_i32 = arith.constant 0 : i32
    return %arg0, %arg2 : i32, i32
  }
  func.func @transform_1(%arg0: i32, %arg1: i32, %arg2: i32) -> (i32, i32) {
    %c0_i32 = arith.constant 0 : i32
    return %arg2, %arg1 : i32, i32
  }
  func.func @transform_2(%arg0: i32, %arg1: i32, %arg2: i32) -> (i32, i32) {
    %c0_i32 = arith.constant 0 : i32
    %c0_i32_0 = arith.constant 0 : i32
    return %c0_i32, %arg1 : i32, i32
  }
  func.func @transform_3(%arg0: i32, %arg1: i32, %arg2: i32) -> (i32, i32) {
    %c0_i32 = arith.constant 0 : i32
    return %arg0, %arg1 : i32, i32
  }
}

module attributes {stable_mosaic.version = 11 : i64} {
  func.func @_ln_matmul_kernel(%arg0: i32, %arg1: i32, %arg2: memref<10x256xf32, #tpu.memory_space<vmem>>, %arg3: memref<1x256xf32, #tpu.memory_space<vmem>>, %arg4: memref<1x256xf32, #tpu.memory_space<vmem>>, %arg5: memref<256x512xbf16, #tpu.memory_space<vmem>>, %arg6: memref<1x512xf32, #tpu.memory_space<vmem>>, %arg7: memref<10x512xbf16, #tpu.memory_space<vmem>>, %arg8: memref<10x256xbf16, #tpu.memory_space<vmem>>) attributes {dimension_semantics = [#tpu.dimension_semantics<parallel>, #tpu.dimension_semantics<arbitrary>], iteration_bounds = array<i64: 1, 2>, scalar_prefetch = 0 : i64, scratch_operands = 1 : i64, tpu.core_type = #tpu.core_type<tc>, window_params = [{transform_indices = @transform_0, window_bounds = array<i64: 10, 256>}, {pipeline_mode = #tpu.pipeline_mode<synchronous>, transform_indices = @transform_1, window_bounds = array<i64: 1, 256>}, {pipeline_mode = #tpu.pipeline_mode<synchronous>, transform_indices = @transform_2, window_bounds = array<i64: 1, 256>}, {transform_indices = @transform_3, window_bounds = array<i64: 256, 512>}, {transform_indices = @transform_4, window_bounds = array<i64: 1, 512>}, {transform_indices = @transform_5, window_bounds = array<i64: 10, 512>}]} {
    %c0_i32 = arith.constant 0 : i32
    %0 = arith.cmpi eq, %arg1, %c0_i32 : i32
    %1 = arith.extui %0 : i1 to i32
    %c0_i32_0 = arith.constant 0 : i32
    %2 = arith.cmpi ne, %1, %c0_i32_0 : i32
    scf.if %2 {
      %c0_8 = arith.constant 0 : index
      %c0_9 = arith.constant 0 : index
      %11 = vector.load %arg2[%c0_8, %c0_9] : memref<10x256xf32, #tpu.memory_space<vmem>>, vector<10x256xf32>
      %cst_10 = arith.constant dense<0.000000e+00> : vector<10xf32>
      %12 = vector.multi_reduction <add>, %11, %cst_10 [1] : vector<10x256xf32> to vector<10xf32>
      %13 = vector.shape_cast %12 : vector<10xf32> to vector<10x1xf32>
      %cst_11 = arith.constant 2.560000e+02 : f32
      %14 = vector.broadcast %cst_11 : f32 to vector<10x1xf32>
      %15 = arith.divf %13, %14 : vector<10x1xf32>
      %16 = vector.broadcast %15 : vector<10x1xf32> to vector<10x256xf32>
      %17 = arith.subf %11, %16 : vector<10x256xf32>
      %18 = arith.mulf %17, %17 : vector<10x256xf32>
      %cst_12 = arith.constant dense<0.000000e+00> : vector<10xf32>
      %19 = vector.multi_reduction <add>, %18, %cst_12 [1] : vector<10x256xf32> to vector<10xf32>
      %20 = vector.shape_cast %19 : vector<10xf32> to vector<10x1xf32>
      %cst_13 = arith.constant 2.560000e+02 : f32
      %21 = vector.broadcast %cst_13 : f32 to vector<10x1xf32>
      %22 = arith.divf %20, %21 : vector<10x1xf32>
      %cst_14 = arith.constant 9.99999997E-7 : f32
      %23 = vector.broadcast %cst_14 : f32 to vector<10x1xf32>
      %24 = arith.addf %22, %23 : vector<10x1xf32>
      %25 = math.rsqrt %24 : vector<10x1xf32>
      %26 = vector.broadcast %25 : vector<10x1xf32> to vector<10x256xf32>
      %27 = arith.mulf %17, %26 : vector<10x256xf32>
      %c0_15 = arith.constant 0 : index
      %c0_16 = arith.constant 0 : index
      %28 = vector.load %arg3[%c0_15, %c0_16] : memref<1x256xf32, #tpu.memory_space<vmem>>, vector<1x256xf32>
      %29 = vector.broadcast %28 : vector<1x256xf32> to vector<10x256xf32>
      %30 = arith.mulf %27, %29 : vector<10x256xf32>
      %c0_17 = arith.constant 0 : index
      %c0_18 = arith.constant 0 : index
      %31 = vector.load %arg4[%c0_17, %c0_18] : memref<1x256xf32, #tpu.memory_space<vmem>>, vector<1x256xf32>
      %32 = vector.broadcast %31 : vector<1x256xf32> to vector<10x256xf32>
      %33 = arith.addf %30, %32 : vector<10x256xf32>
      %34 = arith.truncf %33 : vector<10x256xf32> to vector<10x256xbf16>
      %c0_19 = arith.constant 0 : index
      %c0_20 = arith.constant 0 : index
      %35 = vector.load %arg8[%c0_19, %c0_20] : memref<10x256xbf16, #tpu.memory_space<vmem>>, vector<10x256xbf16>
      tpu.vector_store %arg8[%c0_19, %c0_20], %34 {strides = array<i32>} : memref<10x256xbf16, #tpu.memory_space<vmem>>, vector<10x256xbf16>,
    } else {
    }
    %c0 = arith.constant 0 : index
    %c0_1 = arith.constant 0 : index
    %3 = vector.load %arg8[%c0, %c0_1] : memref<10x256xbf16, #tpu.memory_space<vmem>>, vector<10x256xbf16>
    %c0_2 = arith.constant 0 : index
    %c0_3 = arith.constant 0 : index
    %4 = vector.load %arg5[%c0_2, %c0_3] : memref<256x512xbf16, #tpu.memory_space<vmem>>, vector<256x512xbf16>
    %cst = arith.constant dense<0.000000e+00> : vector<10x512xf32>
    %5 = tpu.matmul %3, %4, %cst {dimension_numbers = #tpu.dot_dimension_numbers<[1], [0], [0], [1], [0, 0, 1, 1], [], []>} : vector<10x256xbf16>, vector<256x512xbf16>, vector<10x512xf32> -> vector<10x512xf32>
    %c0_4 = arith.constant 0 : index
    %c0_5 = arith.constant 0 : index
    %6 = vector.load %arg6[%c0_4, %c0_5] : memref<1x512xf32, #tpu.memory_space<vmem>>, vector<1x512xf32>
    %7 = vector.broadcast %6 : vector<1x512xf32> to vector<10x512xf32>
    %8 = arith.addf %5, %7 : vector<10x512xf32>
    %9 = arith.truncf %8 : vector<10x512xf32> to vector<10x512xbf16>
    %c0_6 = arith.constant 0 : index
    %c0_7 = arith.constant 0 : index
    %10 = vector.load %arg7[%c0_6, %c0_7] : memref<10x512xbf16, #tpu.memory_space<vmem>>, vector<10x512xbf16>
    tpu.vector_store %arg7[%c0_6, %c0_7], %9 {strides = array<i32>} : memref<10x512xbf16, #tpu.memory_space<vmem>>, vector<10x512xbf16>,
    return
  }
  func.func @transform_0(%arg0: i32, %arg1: i32) -> (i32, i32) {
    %c0_i32 = arith.constant 0 : i32
    %c0_i32_0 = arith.constant 0 : i32
    return %arg0, %c0_i32 : i32, i32
  }
  func.func @transform_1(%arg0: i32, %arg1: i32) -> (i32, i32) {
    %c0_i32 = arith.constant 0 : i32
    %c0_i32_0 = arith.constant 0 : i32
    %c0_i32_1 = arith.constant 0 : i32
    return %c0_i32, %c0_i32_0 : i32, i32
  }
  func.func @transform_2(%arg0: i32, %arg1: i32) -> (i32, i32) {
    %c0_i32 = arith.constant 0 : i32
    %c0_i32_0 = arith.constant 0 : i32
    %c0_i32_1 = arith.constant 0 : i32
    return %c0_i32, %c0_i32_0 : i32, i32
  }
  func.func @transform_3(%arg0: i32, %arg1: i32) -> (i32, i32) {
    %c0_i32 = arith.constant 0 : i32
    %c0_i32_0 = arith.constant 0 : i32
    return %c0_i32, %arg1 : i32, i32
  }
  func.func @transform_4(%arg0: i32, %arg1: i32) -> (i32, i32) {
    %c0_i32 = arith.constant 0 : i32
    %c0_i32_0 = arith.constant 0 : i32
    return %c0_i32, %arg1 : i32, i32
  }
  func.func @transform_5(%arg0: i32, %arg1: i32) -> (i32, i32) {
    %c0_i32 = arith.constant 0 : i32
    return %arg0, %arg1 : i32, i32
  }
}

module attributes {stable_mosaic.version = 11 : i64} {
  func.func @_attn_group_kernel(%arg0: i32, %arg1: i32, %arg2: memref<1x5x128xbf16, #tpu.memory_space<vmem>>, %arg3: memref<1x5x128xbf16, #tpu.memory_space<vmem>>, %arg4: memref<1x5x128xbf16, #tpu.memory_space<vmem>>, %arg5: memref<1x5x128xbf16, #tpu.memory_space<vmem>>) attributes {dimension_semantics = [#tpu.dimension_semantics<parallel>, #tpu.dimension_semantics<parallel>], iteration_bounds = array<i64: 2, 2>, scalar_prefetch = 0 : i64, scratch_operands = 0 : i64, tpu.core_type = #tpu.core_type<tc>, window_params = [{transform_indices = @transform_0, window_bounds = array<i64: 1, 5, 128>}, {transform_indices = @transform_1, window_bounds = array<i64: 1, 5, 128>}, {transform_indices = @transform_2, window_bounds = array<i64: 1, 5, 128>}, {transform_indices = @transform_3, window_bounds = array<i64: 1, 5, 128>}]} {
    %c0 = arith.constant 0 : index
    %c0_0 = arith.constant 0 : index
    %c0_1 = arith.constant 0 : index
    %0 = vector.load %arg2[%c0, %c0_0, %c0_1] : memref<1x5x128xbf16, #tpu.memory_space<vmem>>, vector<1x5x64xbf16>
    %1 = vector.shape_cast %0 : vector<1x5x64xbf16> to vector<5x64xbf16>
    %c0_2 = arith.constant 0 : index
    %c0_3 = arith.constant 0 : index
    %c0_4 = arith.constant 0 : index
    %2 = vector.load %arg3[%c0_2, %c0_3, %c0_4] : memref<1x5x128xbf16, #tpu.memory_space<vmem>>, vector<1x5x64xbf16>
    %3 = vector.shape_cast %2 : vector<1x5x64xbf16> to vector<5x64xbf16>
    %c0_5 = arith.constant 0 : index
    %c0_6 = arith.constant 0 : index
    %c0_7 = arith.constant 0 : index
    %4 = vector.load %arg4[%c0_5, %c0_6, %c0_7] : memref<1x5x128xbf16, #tpu.memory_space<vmem>>, vector<1x5x64xbf16>
    %5 = vector.shape_cast %4 : vector<1x5x64xbf16> to vector<5x64xbf16>
    %6 = arith.extf %1 : vector<5x64xbf16> to vector<5x64xf32>
    %cst = arith.constant 1.250000e-01 : f32
    %7 = vector.broadcast %cst : f32 to vector<5x64xf32>
    %8 = arith.mulf %6, %7 : vector<5x64xf32>
    %9 = arith.truncf %8 : vector<5x64xf32> to vector<5x64xbf16>
    %cst_8 = arith.constant dense<0.000000e+00> : vector<5x5xf32>
    %10 = tpu.matmul %9, %3, %cst_8 {dimension_numbers = #tpu.dot_dimension_numbers<[1], [1], [0], [0], [0, 0, 1, 0], [], []>} : vector<5x64xbf16>, vector<5x64xbf16>, vector<5x5xf32> -> vector<5x5xf32>
    %cst_9 = arith.constant dense<0xFF800000> : vector<5xf32>
    %11 = vector.multi_reduction <maximumf>, %10, %cst_9 [1] : vector<5x5xf32> to vector<5xf32>
    %12 = vector.shape_cast %11 : vector<5xf32> to vector<5x1xf32>
    %13 = vector.broadcast %12 : vector<5x1xf32> to vector<5x5xf32>
    %14 = arith.subf %10, %13 : vector<5x5xf32>
    %15 = arith.truncf %14 : vector<5x5xf32> to vector<5x5xbf16>
    %16 = math.exp %15 : vector<5x5xbf16>
    %17 = arith.extf %16 : vector<5x5xbf16> to vector<5x5xf32>
    %cst_10 = arith.constant dense<0.000000e+00> : vector<5xf32>
    %18 = vector.multi_reduction <add>, %17, %cst_10 [1] : vector<5x5xf32> to vector<5xf32>
    %19 = vector.shape_cast %18 : vector<5xf32> to vector<5x1xf32>
    %cst_11 = arith.constant dense<0.000000e+00> : vector<5x64xf32>
    %20 = tpu.matmul %16, %5, %cst_11 {dimension_numbers = #tpu.dot_dimension_numbers<[1], [0], [0], [1], [0, 0, 1, 1], [], []>} : vector<5x5xbf16>, vector<5x64xbf16>, vector<5x64xf32> -> vector<5x64xf32>
    %21 = tpu.reciprocal %19 {approx = true} : vector<5x1xf32> -> vector<5x1xf32>
    %22 = vector.broadcast %21 : vector<5x1xf32> to vector<5x64xf32>
    %23 = arith.mulf %20, %22 : vector<5x64xf32>
    %24 = arith.truncf %23 : vector<5x64xf32> to vector<5x64xbf16>
    %c0_12 = arith.constant 0 : index
    %c0_13 = arith.constant 0 : index
    %c64 = arith.constant 64 : index
    %25 = vector.load %arg2[%c0_12, %c0_13, %c64] : memref<1x5x128xbf16, #tpu.memory_space<vmem>>, vector<1x5x64xbf16>
    %26 = vector.shape_cast %25 : vector<1x5x64xbf16> to vector<5x64xbf16>
    %c0_14 = arith.constant 0 : index
    %c0_15 = arith.constant 0 : index
    %c64_16 = arith.constant 64 : index
    %27 = vector.load %arg3[%c0_14, %c0_15, %c64_16] : memref<1x5x128xbf16, #tpu.memory_space<vmem>>, vector<1x5x64xbf16>
    %28 = vector.shape_cast %27 : vector<1x5x64xbf16> to vector<5x64xbf16>
    %c0_17 = arith.constant 0 : index
    %c0_18 = arith.constant 0 : index
    %c64_19 = arith.constant 64 : index
    %29 = vector.load %arg4[%c0_17, %c0_18, %c64_19] : memref<1x5x128xbf16, #tpu.memory_space<vmem>>, vector<1x5x64xbf16>
    %30 = vector.shape_cast %29 : vector<1x5x64xbf16> to vector<5x64xbf16>
    %31 = arith.extf %26 : vector<5x64xbf16> to vector<5x64xf32>
    %cst_20 = arith.constant 1.250000e-01 : f32
    %32 = vector.broadcast %cst_20 : f32 to vector<5x64xf32>
    %33 = arith.mulf %31, %32 : vector<5x64xf32>
    %34 = arith.truncf %33 : vector<5x64xf32> to vector<5x64xbf16>
    %cst_21 = arith.constant dense<0.000000e+00> : vector<5x5xf32>
    %35 = tpu.matmul %34, %28, %cst_21 {dimension_numbers = #tpu.dot_dimension_numbers<[1], [1], [0], [0], [0, 0, 1, 0], [], []>} : vector<5x64xbf16>, vector<5x64xbf16>, vector<5x5xf32> -> vector<5x5xf32>
    %cst_22 = arith.constant dense<0xFF800000> : vector<5xf32>
    %36 = vector.multi_reduction <maximumf>, %35, %cst_22 [1] : vector<5x5xf32> to vector<5xf32>
    %37 = vector.shape_cast %36 : vector<5xf32> to vector<5x1xf32>
    %38 = vector.broadcast %37 : vector<5x1xf32> to vector<5x5xf32>
    %39 = arith.subf %35, %38 : vector<5x5xf32>
    %40 = arith.truncf %39 : vector<5x5xf32> to vector<5x5xbf16>
    %41 = math.exp %40 : vector<5x5xbf16>
    %42 = arith.extf %41 : vector<5x5xbf16> to vector<5x5xf32>
    %cst_23 = arith.constant dense<0.000000e+00> : vector<5xf32>
    %43 = vector.multi_reduction <add>, %42, %cst_23 [1] : vector<5x5xf32> to vector<5xf32>
    %44 = vector.shape_cast %43 : vector<5xf32> to vector<5x1xf32>
    %cst_24 = arith.constant dense<0.000000e+00> : vector<5x64xf32>
    %45 = tpu.matmul %41, %30, %cst_24 {dimension_numbers = #tpu.dot_dimension_numbers<[1], [0], [0], [1], [0, 0, 1, 1], [], []>} : vector<5x5xbf16>, vector<5x64xbf16>, vector<5x64xf32> -> vector<5x64xf32>
    %46 = tpu.reciprocal %44 {approx = true} : vector<5x1xf32> -> vector<5x1xf32>
    %47 = vector.broadcast %46 : vector<5x1xf32> to vector<5x64xf32>
    %48 = arith.mulf %45, %47 : vector<5x64xf32>
    %49 = arith.truncf %48 : vector<5x64xf32> to vector<5x64xbf16>
    %50 = tpu.concatenate %24, %49 in 1 : vector<5x64xbf16>, vector<5x64xbf16> -> vector<5x128xbf16>
    %c0_25 = arith.constant 0 : index
    %c0_26 = arith.constant 0 : index
    %c0_27 = arith.constant 0 : index
    %51 = vector.load %arg5[%c0_25, %c0_26, %c0_27] : memref<1x5x128xbf16, #tpu.memory_space<vmem>>, vector<1x5x128xbf16>
    %52 = vector.shape_cast %51 : vector<1x5x128xbf16> to vector<5x128xbf16>
    %53 = vector.shape_cast %50 : vector<5x128xbf16> to vector<1x5x128xbf16>
    tpu.vector_store %arg5[%c0_25, %c0_26, %c0_27], %53 {strides = array<i32>} : memref<1x5x128xbf16, #tpu.memory_space<vmem>>, vector<1x5x128xbf16>,
    return
  }
  func.func @transform_0(%arg0: i32, %arg1: i32) -> (i32, i32, i32) {
    %c0_i32 = arith.constant 0 : i32
    %c0_i32_0 = arith.constant 0 : i32
    return %arg0, %c0_i32, %arg1 : i32, i32, i32
  }
  func.func @transform_1(%arg0: i32, %arg1: i32) -> (i32, i32, i32) {
    %c2_i32 = arith.constant 2 : i32
    %0 = arith.addi %c2_i32, %arg1 : i32
    %c0_i32 = arith.constant 0 : i32
    %c0_i32_0 = arith.constant 0 : i32
    return %arg0, %c0_i32, %0 : i32, i32, i32
  }
  func.func @transform_2(%arg0: i32, %arg1: i32) -> (i32, i32, i32) {
    %c4_i32 = arith.constant 4 : i32
    %0 = arith.addi %c4_i32, %arg1 : i32
    %c0_i32 = arith.constant 0 : i32
    %c0_i32_0 = arith.constant 0 : i32
    return %arg0, %c0_i32, %0 : i32, i32, i32
  }
  func.func @transform_3(%arg0: i32, %arg1: i32) -> (i32, i32, i32) {
    %c0_i32 = arith.constant 0 : i32
    %c0_i32_0 = arith.constant 0 : i32
    return %arg0, %c0_i32, %arg1 : i32, i32, i32
  }
}

module attributes {stable_mosaic.version = 11 : i64} {
  func.func @_mm_scale_res_kernel(%arg0: i32, %arg1: i32, %arg2: i32, %arg3: memref<10x256xbf16, #tpu.memory_space<vmem>>, %arg4: memref<256x256xbf16, #tpu.memory_space<vmem>>, %arg5: memref<1x256xf32, #tpu.memory_space<vmem>>, %arg6: memref<1x256xf32, #tpu.memory_space<vmem>>, %arg7: memref<10x256xf32, #tpu.memory_space<vmem>>, %arg8: memref<10x256xf32, #tpu.memory_space<vmem>>, %arg9: memref<10x256xf32, #tpu.memory_space<vmem>>) attributes {dimension_semantics = [#tpu.dimension_semantics<parallel>, #tpu.dimension_semantics<parallel>, #tpu.dimension_semantics<arbitrary>], iteration_bounds = array<i64: 1, 1, 1>, scalar_prefetch = 0 : i64, scratch_operands = 1 : i64, tpu.core_type = #tpu.core_type<tc>, window_params = [{transform_indices = @transform_0, window_bounds = array<i64: 10, 256>}, {transform_indices = @transform_1, window_bounds = array<i64: 256, 256>}, {transform_indices = @transform_2, window_bounds = array<i64: 1, 256>}, {transform_indices = @transform_3, window_bounds = array<i64: 1, 256>}, {transform_indices = @transform_4, window_bounds = array<i64: 10, 256>}, {transform_indices = @transform_5, window_bounds = array<i64: 10, 256>}]} {
    %c0_i32 = arith.constant 0 : i32
    %0 = arith.cmpi eq, %arg2, %c0_i32 : i32
    %1 = arith.extui %0 : i1 to i32
    %c0_i32_0 = arith.constant 0 : i32
    %2 = arith.cmpi ne, %1, %c0_i32_0 : i32
    scf.if %2 {
      %cst_10 = arith.constant 0.000000e+00 : f32
      %12 = vector.broadcast %cst_10 : f32 to vector<10x256xf32>
      %c0_11 = arith.constant 0 : index
      %c0_12 = arith.constant 0 : index
      %13 = vector.load %arg9[%c0_11, %c0_12] : memref<10x256xf32, #tpu.memory_space<vmem>>, vector<10x256xf32>
      tpu.vector_store %arg9[%c0_11, %c0_12], %12 {strides = array<i32>} : memref<10x256xf32, #tpu.memory_space<vmem>>, vector<10x256xf32>,
    } else {
    }
    %c0 = arith.constant 0 : index
    %c0_1 = arith.constant 0 : index
    %3 = vector.load %arg9[%c0, %c0_1] : memref<10x256xf32, #tpu.memory_space<vmem>>, vector<10x256xf32>
    %c0_2 = arith.constant 0 : index
    %c0_3 = arith.constant 0 : index
    %4 = vector.load %arg3[%c0_2, %c0_3] : memref<10x256xbf16, #tpu.memory_space<vmem>>, vector<10x256xbf16>
    %c0_4 = arith.constant 0 : index
    %c0_5 = arith.constant 0 : index
    %5 = vector.load %arg4[%c0_4, %c0_5] : memref<256x256xbf16, #tpu.memory_space<vmem>>, vector<256x256xbf16>
    %cst = arith.constant dense<0.000000e+00> : vector<10x256xf32>
    %6 = tpu.matmul %4, %5, %cst {dimension_numbers = #tpu.dot_dimension_numbers<[1], [0], [0], [1], [0, 0, 1, 1], [], []>} : vector<10x256xbf16>, vector<256x256xbf16>, vector<10x256xf32> -> vector<10x256xf32>
    %7 = arith.addf %3, %6 : vector<10x256xf32>
    %c0_6 = arith.constant 0 : index
    %c0_7 = arith.constant 0 : index
    %8 = vector.load %arg9[%c0_6, %c0_7] : memref<10x256xf32, #tpu.memory_space<vmem>>, vector<10x256xf32>
    tpu.vector_store %arg9[%c0_6, %c0_7], %7 {strides = array<i32>} : memref<10x256xf32, #tpu.memory_space<vmem>>, vector<10x256xf32>,
    %c0_i32_8 = arith.constant 0 : i32
    %9 = arith.cmpi eq, %arg2, %c0_i32_8 : i32
    %10 = arith.extui %9 : i1 to i32
    %c0_i32_9 = arith.constant 0 : i32
    %11 = arith.cmpi ne, %10, %c0_i32_9 : i32
    scf.if %11 {
      %c0_10 = arith.constant 0 : index
      %c0_11 = arith.constant 0 : index
      %12 = vector.load %arg9[%c0_10, %c0_11] : memref<10x256xf32, #tpu.memory_space<vmem>>, vector<10x256xf32>
      %c0_12 = arith.constant 0 : index
      %c0_13 = arith.constant 0 : index
      %13 = vector.load %arg5[%c0_12, %c0_13] : memref<1x256xf32, #tpu.memory_space<vmem>>, vector<1x256xf32>
      %14 = vector.broadcast %13 : vector<1x256xf32> to vector<10x256xf32>
      %15 = arith.addf %12, %14 : vector<10x256xf32>
      %c0_14 = arith.constant 0 : index
      %c0_15 = arith.constant 0 : index
      %16 = vector.load %arg7[%c0_14, %c0_15] : memref<10x256xf32, #tpu.memory_space<vmem>>, vector<10x256xf32>
      %c0_16 = arith.constant 0 : index
      %c0_17 = arith.constant 0 : index
      %17 = vector.load %arg6[%c0_16, %c0_17] : memref<1x256xf32, #tpu.memory_space<vmem>>, vector<1x256xf32>
      %18 = vector.broadcast %17 : vector<1x256xf32> to vector<10x256xf32>
      %19 = arith.mulf %18, %15 : vector<10x256xf32>
      %20 = arith.addf %16, %19 : vector<10x256xf32>
      %c0_18 = arith.constant 0 : index
      %c0_19 = arith.constant 0 : index
      %21 = vector.load %arg8[%c0_18, %c0_19] : memref<10x256xf32, #tpu.memory_space<vmem>>, vector<10x256xf32>
      tpu.vector_store %arg8[%c0_18, %c0_19], %20 {strides = array<i32>} : memref<10x256xf32, #tpu.memory_space<vmem>>, vector<10x256xf32>,
    } else {
    }
    return
  }
  func.func @transform_0(%arg0: i32, %arg1: i32, %arg2: i32) -> (i32, i32) {
    %c0_i32 = arith.constant 0 : i32
    return %arg0, %arg2 : i32, i32
  }
  func.func @transform_1(%arg0: i32, %arg1: i32, %arg2: i32) -> (i32, i32) {
    %c0_i32 = arith.constant 0 : i32
    return %arg2, %arg1 : i32, i32
  }
  func.func @transform_2(%arg0: i32, %arg1: i32, %arg2: i32) -> (i32, i32) {
    %c0_i32 = arith.constant 0 : i32
    %c0_i32_0 = arith.constant 0 : i32
    return %c0_i32, %arg1 : i32, i32
  }
  func.func @transform_3(%arg0: i32, %arg1: i32, %arg2: i32) -> (i32, i32) {
    %c0_i32 = arith.constant 0 : i32
    %c0_i32_0 = arith.constant 0 : i32
    return %c0_i32, %arg1 : i32, i32
  }
  func.func @transform_4(%arg0: i32, %arg1: i32, %arg2: i32) -> (i32, i32) {
    %c0_i32 = arith.constant 0 : i32
    return %arg0, %arg1 : i32, i32
  }
  func.func @transform_5(%arg0: i32, %arg1: i32, %arg2: i32) -> (i32, i32) {
    %c0_i32 = arith.constant 0 : i32
    return %arg0, %arg1 : i32, i32
  }
}

module attributes {stable_mosaic.version = 11 : i64} {
  func.func @_ln_matmul_kernel(%arg0: i32, %arg1: i32, %arg2: memref<10x256xf32, #tpu.memory_space<vmem>>, %arg3: memref<1x256xf32, #tpu.memory_space<vmem>>, %arg4: memref<1x256xf32, #tpu.memory_space<vmem>>, %arg5: memref<256x512xbf16, #tpu.memory_space<vmem>>, %arg6: memref<1x512xf32, #tpu.memory_space<vmem>>, %arg7: memref<10x512xbf16, #tpu.memory_space<vmem>>, %arg8: memref<10x256xbf16, #tpu.memory_space<vmem>>) attributes {dimension_semantics = [#tpu.dimension_semantics<parallel>, #tpu.dimension_semantics<arbitrary>], iteration_bounds = array<i64: 1, 2>, scalar_prefetch = 0 : i64, scratch_operands = 1 : i64, tpu.core_type = #tpu.core_type<tc>, window_params = [{transform_indices = @transform_0, window_bounds = array<i64: 10, 256>}, {pipeline_mode = #tpu.pipeline_mode<synchronous>, transform_indices = @transform_1, window_bounds = array<i64: 1, 256>}, {pipeline_mode = #tpu.pipeline_mode<synchronous>, transform_indices = @transform_2, window_bounds = array<i64: 1, 256>}, {transform_indices = @transform_3, window_bounds = array<i64: 256, 512>}, {transform_indices = @transform_4, window_bounds = array<i64: 1, 512>}, {transform_indices = @transform_5, window_bounds = array<i64: 10, 512>}]} {
    %c0_i32 = arith.constant 0 : i32
    %0 = arith.cmpi eq, %arg1, %c0_i32 : i32
    %1 = arith.extui %0 : i1 to i32
    %c0_i32_0 = arith.constant 0 : i32
    %2 = arith.cmpi ne, %1, %c0_i32_0 : i32
    scf.if %2 {
      %c0_11 = arith.constant 0 : index
      %c0_12 = arith.constant 0 : index
      %19 = vector.load %arg2[%c0_11, %c0_12] : memref<10x256xf32, #tpu.memory_space<vmem>>, vector<10x256xf32>
      %cst_13 = arith.constant dense<0.000000e+00> : vector<10xf32>
      %20 = vector.multi_reduction <add>, %19, %cst_13 [1] : vector<10x256xf32> to vector<10xf32>
      %21 = vector.shape_cast %20 : vector<10xf32> to vector<10x1xf32>
      %cst_14 = arith.constant 2.560000e+02 : f32
      %22 = vector.broadcast %cst_14 : f32 to vector<10x1xf32>
      %23 = arith.divf %21, %22 : vector<10x1xf32>
      %24 = vector.broadcast %23 : vector<10x1xf32> to vector<10x256xf32>
      %25 = arith.subf %19, %24 : vector<10x256xf32>
      %26 = arith.mulf %25, %25 : vector<10x256xf32>
      %cst_15 = arith.constant dense<0.000000e+00> : vector<10xf32>
      %27 = vector.multi_reduction <add>, %26, %cst_15 [1] : vector<10x256xf32> to vector<10xf32>
      %28 = vector.shape_cast %27 : vector<10xf32> to vector<10x1xf32>
      %cst_16 = arith.constant 2.560000e+02 : f32
      %29 = vector.broadcast %cst_16 : f32 to vector<10x1xf32>
      %30 = arith.divf %28, %29 : vector<10x1xf32>
      %cst_17 = arith.constant 9.99999997E-7 : f32
      %31 = vector.broadcast %cst_17 : f32 to vector<10x1xf32>
      %32 = arith.addf %30, %31 : vector<10x1xf32>
      %33 = math.rsqrt %32 : vector<10x1xf32>
      %34 = vector.broadcast %33 : vector<10x1xf32> to vector<10x256xf32>
      %35 = arith.mulf %25, %34 : vector<10x256xf32>
      %c0_18 = arith.constant 0 : index
      %c0_19 = arith.constant 0 : index
      %36 = vector.load %arg3[%c0_18, %c0_19] : memref<1x256xf32, #tpu.memory_space<vmem>>, vector<1x256xf32>
      %37 = vector.broadcast %36 : vector<1x256xf32> to vector<10x256xf32>
      %38 = arith.mulf %35, %37 : vector<10x256xf32>
      %c0_20 = arith.constant 0 : index
      %c0_21 = arith.constant 0 : index
      %39 = vector.load %arg4[%c0_20, %c0_21] : memref<1x256xf32, #tpu.memory_space<vmem>>, vector<1x256xf32>
      %40 = vector.broadcast %39 : vector<1x256xf32> to vector<10x256xf32>
      %41 = arith.addf %38, %40 : vector<10x256xf32>
      %42 = arith.truncf %41 : vector<10x256xf32> to vector<10x256xbf16>
      %c0_22 = arith.constant 0 : index
      %c0_23 = arith.constant 0 : index
      %43 = vector.load %arg8[%c0_22, %c0_23] : memref<10x256xbf16, #tpu.memory_space<vmem>>, vector<10x256xbf16>
      tpu.vector_store %arg8[%c0_22, %c0_23], %42 {strides = array<i32>} : memref<10x256xbf16, #tpu.memory_space<vmem>>, vector<10x256xbf16>,
    } else {
    }
    %c0 = arith.constant 0 : index
    %c0_1 = arith.constant 0 : index
    %3 = vector.load %arg8[%c0, %c0_1] : memref<10x256xbf16, #tpu.memory_space<vmem>>, vector<10x256xbf16>
    %c0_2 = arith.constant 0 : index
    %c0_3 = arith.constant 0 : index
    %4 = vector.load %arg5[%c0_2, %c0_3] : memref<256x512xbf16, #tpu.memory_space<vmem>>, vector<256x512xbf16>
    %cst = arith.constant dense<0.000000e+00> : vector<10x512xf32>
    %5 = tpu.matmul %3, %4, %cst {dimension_numbers = #tpu.dot_dimension_numbers<[1], [0], [0], [1], [0, 0, 1, 1], [], []>} : vector<10x256xbf16>, vector<256x512xbf16>, vector<10x512xf32> -> vector<10x512xf32>
    %c0_4 = arith.constant 0 : index
    %c0_5 = arith.constant 0 : index
    %6 = vector.load %arg6[%c0_4, %c0_5] : memref<1x512xf32, #tpu.memory_space<vmem>>, vector<1x512xf32>
    %7 = vector.broadcast %6 : vector<1x512xf32> to vector<10x512xf32>
    %8 = arith.addf %5, %7 : vector<10x512xf32>
    %cst_6 = arith.constant 5.000000e-01 : f32
    %9 = vector.broadcast %cst_6 : f32 to vector<10x512xf32>
    %10 = arith.mulf %9, %8 : vector<10x512xf32>
    %cst_7 = arith.constant 0.707106769 : f32
    %11 = vector.broadcast %cst_7 : f32 to vector<10x512xf32>
    %12 = arith.mulf %8, %11 : vector<10x512xf32>
    %13 = math.erf %12 : vector<10x512xf32>
    %cst_8 = arith.constant 1.000000e+00 : f32
    %14 = vector.broadcast %cst_8 : f32 to vector<10x512xf32>
    %15 = arith.addf %14, %13 : vector<10x512xf32>
    %16 = arith.mulf %10, %15 : vector<10x512xf32>
    %17 = arith.truncf %16 : vector<10x512xf32> to vector<10x512xbf16>
    %c0_9 = arith.constant 0 : index
    %c0_10 = arith.constant 0 : index
    %18 = vector.load %arg7[%c0_9, %c0_10] : memref<10x512xbf16, #tpu.memory_space<vmem>>, vector<10x512xbf16>
    tpu.vector_store %arg7[%c0_9, %c0_10], %17 {strides = array<i32>} : memref<10x512xbf16, #tpu.memory_space<vmem>>, vector<10x512xbf16>,
    return
  }
  func.func @transform_0(%arg0: i32, %arg1: i32) -> (i32, i32) {
    %c0_i32 = arith.constant 0 : i32
    %c0_i32_0 = arith.constant 0 : i32
    return %arg0, %c0_i32 : i32, i32
  }
  func.func @transform_1(%arg0: i32, %arg1: i32) -> (i32, i32) {
    %c0_i32 = arith.constant 0 : i32
    %c0_i32_0 = arith.constant 0 : i32
    %c0_i32_1 = arith.constant 0 : i32
    return %c0_i32, %c0_i32_0 : i32, i32
  }
  func.func @transform_2(%arg0: i32, %arg1: i32) -> (i32, i32) {
    %c0_i32 = arith.constant 0 : i32
    %c0_i32_0 = arith.constant 0 : i32
    %c0_i32_1 = arith.constant 0 : i32
    return %c0_i32, %c0_i32_0 : i32, i32
  }
  func.func @transform_3(%arg0: i32, %arg1: i32) -> (i32, i32) {
    %c0_i32 = arith.constant 0 : i32
    %c0_i32_0 = arith.constant 0 : i32
    return %c0_i32, %arg1 : i32, i32
  }
  func.func @transform_4(%arg0: i32, %arg1: i32) -> (i32, i32) {
    %c0_i32 = arith.constant 0 : i32
    %c0_i32_0 = arith.constant 0 : i32
    return %c0_i32, %arg1 : i32, i32
  }
  func.func @transform_5(%arg0: i32, %arg1: i32) -> (i32, i32) {
    %c0_i32 = arith.constant 0 : i32
    return %arg0, %arg1 : i32, i32
  }
}

module attributes {stable_mosaic.version = 11 : i64} {
  func.func @_mm_scale_res_kernel(%arg0: i32, %arg1: i32, %arg2: i32, %arg3: memref<10x1024xbf16, #tpu.memory_space<vmem>>, %arg4: memref<1024x256xbf16, #tpu.memory_space<vmem>>, %arg5: memref<1x256xf32, #tpu.memory_space<vmem>>, %arg6: memref<1x256xf32, #tpu.memory_space<vmem>>, %arg7: memref<10x256xf32, #tpu.memory_space<vmem>>, %arg8: memref<10x256xf32, #tpu.memory_space<vmem>>, %arg9: memref<10x256xf32, #tpu.memory_space<vmem>>) attributes {dimension_semantics = [#tpu.dimension_semantics<parallel>, #tpu.dimension_semantics<parallel>, #tpu.dimension_semantics<arbitrary>], iteration_bounds = array<i64: 1, 1, 1>, scalar_prefetch = 0 : i64, scratch_operands = 1 : i64, tpu.core_type = #tpu.core_type<tc>, window_params = [{transform_indices = @transform_0, window_bounds = array<i64: 10, 1024>}, {transform_indices = @transform_1, window_bounds = array<i64: 1024, 256>}, {transform_indices = @transform_2, window_bounds = array<i64: 1, 256>}, {transform_indices = @transform_3, window_bounds = array<i64: 1, 256>}, {transform_indices = @transform_4, window_bounds = array<i64: 10, 256>}, {transform_indices = @transform_5, window_bounds = array<i64: 10, 256>}]} {
    %c0_i32 = arith.constant 0 : i32
    %0 = arith.cmpi eq, %arg2, %c0_i32 : i32
    %1 = arith.extui %0 : i1 to i32
    %c0_i32_0 = arith.constant 0 : i32
    %2 = arith.cmpi ne, %1, %c0_i32_0 : i32
    scf.if %2 {
      %cst_10 = arith.constant 0.000000e+00 : f32
      %12 = vector.broadcast %cst_10 : f32 to vector<10x256xf32>
      %c0_11 = arith.constant 0 : index
      %c0_12 = arith.constant 0 : index
      %13 = vector.load %arg9[%c0_11, %c0_12] : memref<10x256xf32, #tpu.memory_space<vmem>>, vector<10x256xf32>
      tpu.vector_store %arg9[%c0_11, %c0_12], %12 {strides = array<i32>} : memref<10x256xf32, #tpu.memory_space<vmem>>, vector<10x256xf32>,
    } else {
    }
    %c0 = arith.constant 0 : index
    %c0_1 = arith.constant 0 : index
    %3 = vector.load %arg9[%c0, %c0_1] : memref<10x256xf32, #tpu.memory_space<vmem>>, vector<10x256xf32>
    %c0_2 = arith.constant 0 : index
    %c0_3 = arith.constant 0 : index
    %4 = vector.load %arg3[%c0_2, %c0_3] : memref<10x1024xbf16, #tpu.memory_space<vmem>>, vector<10x1024xbf16>
    %c0_4 = arith.constant 0 : index
    %c0_5 = arith.constant 0 : index
    %5 = vector.load %arg4[%c0_4, %c0_5] : memref<1024x256xbf16, #tpu.memory_space<vmem>>, vector<1024x256xbf16>
    %cst = arith.constant dense<0.000000e+00> : vector<10x256xf32>
    %6 = tpu.matmul %4, %5, %cst {dimension_numbers = #tpu.dot_dimension_numbers<[1], [0], [0], [1], [0, 0, 1, 1], [], []>} : vector<10x1024xbf16>, vector<1024x256xbf16>, vector<10x256xf32> -> vector<10x256xf32>
    %7 = arith.addf %3, %6 : vector<10x256xf32>
    %c0_6 = arith.constant 0 : index
    %c0_7 = arith.constant 0 : index
    %8 = vector.load %arg9[%c0_6, %c0_7] : memref<10x256xf32, #tpu.memory_space<vmem>>, vector<10x256xf32>
    tpu.vector_store %arg9[%c0_6, %c0_7], %7 {strides = array<i32>} : memref<10x256xf32, #tpu.memory_space<vmem>>, vector<10x256xf32>,
    %c0_i32_8 = arith.constant 0 : i32
    %9 = arith.cmpi eq, %arg2, %c0_i32_8 : i32
    %10 = arith.extui %9 : i1 to i32
    %c0_i32_9 = arith.constant 0 : i32
    %11 = arith.cmpi ne, %10, %c0_i32_9 : i32
    scf.if %11 {
      %c0_10 = arith.constant 0 : index
      %c0_11 = arith.constant 0 : index
      %12 = vector.load %arg9[%c0_10, %c0_11] : memref<10x256xf32, #tpu.memory_space<vmem>>, vector<10x256xf32>
      %c0_12 = arith.constant 0 : index
      %c0_13 = arith.constant 0 : index
      %13 = vector.load %arg5[%c0_12, %c0_13] : memref<1x256xf32, #tpu.memory_space<vmem>>, vector<1x256xf32>
      %14 = vector.broadcast %13 : vector<1x256xf32> to vector<10x256xf32>
      %15 = arith.addf %12, %14 : vector<10x256xf32>
      %c0_14 = arith.constant 0 : index
      %c0_15 = arith.constant 0 : index
      %16 = vector.load %arg7[%c0_14, %c0_15] : memref<10x256xf32, #tpu.memory_space<vmem>>, vector<10x256xf32>
      %c0_16 = arith.constant 0 : index
      %c0_17 = arith.constant 0 : index
      %17 = vector.load %arg6[%c0_16, %c0_17] : memref<1x256xf32, #tpu.memory_space<vmem>>, vector<1x256xf32>
      %18 = vector.broadcast %17 : vector<1x256xf32> to vector<10x256xf32>
      %19 = arith.mulf %18, %15 : vector<10x256xf32>
      %20 = arith.addf %16, %19 : vector<10x256xf32>
      %c0_18 = arith.constant 0 : index
      %c0_19 = arith.constant 0 : index
      %21 = vector.load %arg8[%c0_18, %c0_19] : memref<10x256xf32, #tpu.memory_space<vmem>>, vector<10x256xf32>
      tpu.vector_store %arg8[%c0_18, %c0_19], %20 {strides = array<i32>} : memref<10x256xf32, #tpu.memory_space<vmem>>, vector<10x256xf32>,
    } else {
    }
    return
  }
  func.func @transform_0(%arg0: i32, %arg1: i32, %arg2: i32) -> (i32, i32) {
    %c0_i32 = arith.constant 0 : i32
    return %arg0, %arg2 : i32, i32
  }
  func.func @transform_1(%arg0: i32, %arg1: i32, %arg2: i32) -> (i32, i32) {
    %c0_i32 = arith.constant 0 : i32
    return %arg2, %arg1 : i32, i32
  }
  func.func @transform_2(%arg0: i32, %arg1: i32, %arg2: i32) -> (i32, i32) {
    %c0_i32 = arith.constant 0 : i32
    %c0_i32_0 = arith.constant 0 : i32
    return %c0_i32, %arg1 : i32, i32
  }
  func.func @transform_3(%arg0: i32, %arg1: i32, %arg2: i32) -> (i32, i32) {
    %c0_i32 = arith.constant 0 : i32
    %c0_i32_0 = arith.constant 0 : i32
    return %c0_i32, %arg1 : i32, i32
  }
  func.func @transform_4(%arg0: i32, %arg1: i32, %arg2: i32) -> (i32, i32) {
    %c0_i32 = arith.constant 0 : i32
    return %arg0, %arg1 : i32, i32
  }
  func.func @transform_5(%arg0: i32, %arg1: i32, %arg2: i32) -> (i32, i32) {
    %c0_i32 = arith.constant 0 : i32
    return %arg0, %arg1 : i32, i32
  }
}

module attributes {stable_mosaic.version = 11 : i64} {
  func.func @_layernorm_kernel(%arg0: i32, %arg1: memref<2x256xf32, #tpu.memory_space<vmem>>, %arg2: memref<1x256xf32, #tpu.memory_space<vmem>>, %arg3: memref<1x256xf32, #tpu.memory_space<vmem>>, %arg4: memref<2x256xf32, #tpu.memory_space<vmem>>) attributes {dimension_semantics = [#tpu.dimension_semantics<parallel>], iteration_bounds = array<i64: 1>, scalar_prefetch = 0 : i64, scratch_operands = 0 : i64, tpu.core_type = #tpu.core_type<tc>, window_params = [{transform_indices = @transform_0, window_bounds = array<i64: 2, 256>}, {pipeline_mode = #tpu.pipeline_mode<synchronous>, transform_indices = @transform_1, window_bounds = array<i64: 1, 256>}, {pipeline_mode = #tpu.pipeline_mode<synchronous>, transform_indices = @transform_2, window_bounds = array<i64: 1, 256>}, {transform_indices = @transform_3, window_bounds = array<i64: 2, 256>}]} {
    %c0 = arith.constant 0 : index
    %c0_0 = arith.constant 0 : index
    %0 = vector.load %arg1[%c0, %c0_0] : memref<2x256xf32, #tpu.memory_space<vmem>>, vector<2x256xf32>
    %cst = arith.constant dense<0.000000e+00> : vector<2xf32>
    %1 = vector.multi_reduction <add>, %0, %cst [1] : vector<2x256xf32> to vector<2xf32>
    %2 = vector.shape_cast %1 : vector<2xf32> to vector<2x1xf32>
    %cst_1 = arith.constant 2.560000e+02 : f32
    %3 = vector.broadcast %cst_1 : f32 to vector<2x1xf32>
    %4 = arith.divf %2, %3 : vector<2x1xf32>
    %5 = vector.broadcast %4 : vector<2x1xf32> to vector<2x256xf32>
    %6 = arith.subf %0, %5 : vector<2x256xf32>
    %7 = arith.mulf %6, %6 : vector<2x256xf32>
    %cst_2 = arith.constant dense<0.000000e+00> : vector<2xf32>
    %8 = vector.multi_reduction <add>, %7, %cst_2 [1] : vector<2x256xf32> to vector<2xf32>
    %9 = vector.shape_cast %8 : vector<2xf32> to vector<2x1xf32>
    %cst_3 = arith.constant 2.560000e+02 : f32
    %10 = vector.broadcast %cst_3 : f32 to vector<2x1xf32>
    %11 = arith.divf %9, %10 : vector<2x1xf32>
    %cst_4 = arith.constant 9.99999997E-7 : f32
    %12 = vector.broadcast %cst_4 : f32 to vector<2x1xf32>
    %13 = arith.addf %11, %12 : vector<2x1xf32>
    %14 = math.rsqrt %13 : vector<2x1xf32>
    %15 = vector.broadcast %14 : vector<2x1xf32> to vector<2x256xf32>
    %16 = arith.mulf %6, %15 : vector<2x256xf32>
    %c0_5 = arith.constant 0 : index
    %c0_6 = arith.constant 0 : index
    %17 = vector.load %arg2[%c0_5, %c0_6] : memref<1x256xf32, #tpu.memory_space<vmem>>, vector<1x256xf32>
    %18 = vector.broadcast %17 : vector<1x256xf32> to vector<2x256xf32>
    %19 = arith.mulf %16, %18 : vector<2x256xf32>
    %c0_7 = arith.constant 0 : index
    %c0_8 = arith.constant 0 : index
    %20 = vector.load %arg3[%c0_7, %c0_8] : memref<1x256xf32, #tpu.memory_space<vmem>>, vector<1x256xf32>
    %21 = vector.broadcast %20 : vector<1x256xf32> to vector<2x256xf32>
    %22 = arith.addf %19, %21 : vector<2x256xf32>
    %c0_9 = arith.constant 0 : index
    %c0_10 = arith.constant 0 : index
    %23 = vector.load %arg4[%c0_9, %c0_10] : memref<2x256xf32, #tpu.memory_space<vmem>>, vector<2x256xf32>
    tpu.vector_store %arg4[%c0_9, %c0_10], %22 {strides = array<i32>} : memref<2x256xf32, #tpu.memory_space<vmem>>, vector<2x256xf32>,
    return
  }
  func.func @transform_0(%arg0: i32) -> (i32, i32) {
    %c0_i32 = arith.constant 0 : i32
    %c0_i32_0 = arith.constant 0 : i32
    return %arg0, %c0_i32 : i32, i32
  }
  func.func @transform_1(%arg0: i32) -> (i32, i32) {
    %c0_i32 = arith.constant 0 : i32
    %c0_i32_0 = arith.constant 0 : i32
    %c0_i32_1 = arith.constant 0 : i32
    return %c0_i32, %c0_i32_0 : i32, i32
  }
  func.func @transform_2(%arg0: i32) -> (i32, i32) {
    %c0_i32 = arith.constant 0 : i32
    %c0_i32_0 = arith.constant 0 : i32
    %c0_i32_1 = arith.constant 0 : i32
    return %c0_i32, %c0_i32_0 : i32, i32
  }
  func.func @transform_3(%arg0: i32) -> (i32, i32) {
    %c0_i32 = arith.constant 0 : i32
    %c0_i32_0 = arith.constant 0 : i32
    return %arg0, %c0_i32 : i32, i32
  }
}

</mosaic_0001>

<llo_original>
// kernel: dinov2_vit_forward.14
$region0: #{dinov2_vit_forward.14}
  #allocation0 [shape = 'u32[]', space=smem, size = 0x4, offset = 0x4, fixed_abs, tag = 'smem constant byte address 0x4 - core index']
  #allocation1 [shape = 'u32[144,128]{1,0:T(1,128)}', space=vmem, size = 0x12000, scoped, tag = 'internal scratch']
  %s0 = inlined_call_operand.vmem [shape: bf16[2,5,768], index: 0, kind: input, shape index: {}, may-alias: {0,1,2}]
  %s1 = inlined_call_operand.vmem [shape: bf16[2,5,768], index: 1, kind: input, shape index: {}, may-alias: {0,1,2}]
  %s2 = inlined_call_operand.vmem [shape: bf16[2,5,768], index: 2, kind: input, shape index: {}, may-alias: {0,1,2}]
  %s3 = inlined_call_operand.vmem [shape: bf16[2,5,256], index: 3, kind: output, shape index: {}]
  %s4 = sld [smem:[#allocation0]]
  $region45: #{dinov2_vit_forward.14} parent=0
    _
  %s6 = ssub.s32 1, %s4
  %s7 = scalar_select 0, %s6, %s4
  loop: start=0, step=1, limit=6
  $region2: #{dinov2_vit_forward.14} parent=0 // loop_pre_header
    _
  $region3: #{dinov2_vit_forward.14} parent=0 // loop_header
    %s9 = sphi 0, %s13
    %p10 = scmp.ge.s32.totalorder %s9, 6
    %s16 = sphi 0, %s28
    %s17 = sphi 0, %s24
    %s18 = sphi 0, %s16
    %s19 = sphi 0, %s17
    %s20 = sphi 0, %s18
    %s21 = sphi 0, %s19
    %s33 = sphi 0, %s35
    %s36 = sphi 0, %s33
    %s37 = sphi 0, %s36
    %s53 = sphi 0, %s37
    %s63 = sphi 0, %s65
    %s66 = sphi 0, %s63
    %s67 = sphi 0, %s66
    %s83 = sphi 0, %s67
    %s93 = sphi 0, %s95
    %s96 = sphi 0, %s93
    %s97 = sphi 0, %s96
    %s113 = sphi 0, %s97
    %s121 = sphi 0, %s123
    %s124 = sphi 0, %s121
    %s125 = sphi 0, %s124
    %s141 = sphi 0, %s125
  $region4: #{dinov2_vit_forward.14} parent=0 // loop_header_branch
    %12 = sbr.rel (%p10) target = $region8
  $region5: #{dinov2_vit_forward.14} parent=0 // loop_body
    %s14 = ssub.s32 %s9, 1
    %s15 = ssub.s32 %s9, 2
    %s22 = sadd.s32 1, %s17
    %p23 = scmp.ge.s32.totalorder %s22, 2
    %s24 = scalar_select %p23, 0, %s22
    %s25 = sadd.s32 1, %s16
    %s26 = scalar_select %p23, %s25, %s16
    %p27 = scmp.ge.s32.totalorder %s26, 2
    %s28 = scalar_select %p27, 0, %s26
    %s29 = ssub.s32 %s16, %s28
    %s30 = ssub.s32 %s17, %s24
    %s31 = sor.u32 %s29, %s30
    %p32 = scmp.eq.s32.totalorder %s31, 0
    %s34 = sadd.s32 %s33, 1
    %s35 = scalar_select %p32, %s33, %s34
    %p38 = pneg %p32
    %p39 = scmp.eq.s32.totalorder %s9, 3
    %p40 = por %p38, %p39
    %p41 = scmp.ne.s32.totalorder %s33, %s36
    %p42 = scmp.eq.s32.totalorder %s9, 0
    %p43 = por %p41, %p42
    %p44 = scmp.ne.s32.totalorder %s33, %s36
    %p45 = scmp.eq.s32.totalorder %s14, 3
    %p46 = por %p44, %p45
    %p47 = scmp.ne.s32.totalorder %s36, %s37
    %p48 = scmp.eq.s32.totalorder %s14, 0
    %p49 = por %p47, %p48
    %p50 = scmp.ne.s32.totalorder %s36, %s37
    %p51 = scmp.eq.s32.totalorder %s15, 3
    %p52 = por %p50, %p51
    %p54 = scmp.ne.s32.totalorder %s37, %s53
    %p55 = scmp.eq.s32.totalorder %s15, 0
    %p56 = por %p54, %p55
    %s57 = sadd.s32 %s17, 2
    %s58 = sadd.s32 %s24, 2
    %s59 = ssub.s32 %s16, %s28
    %s60 = ssub.s32 %s57, %s58
    %s61 = sor.u32 %s59, %s60
    %p62 = scmp.eq.s32.totalorder %s61, 0
    %s64 = sadd.s32 %s63, 1
    %s65 = scalar_select %p62, %s63, %s64
    %p68 = pneg %p62
    %p69 = scmp.eq.s32.totalorder %s9, 3
    %p70 = por %p68, %p69
    %p71 = scmp.ne.s32.totalorder %s63, %s66
    %p72 = scmp.eq.s32.totalorder %s9, 0
    %p73 = por %p71, %p72
    %p74 = scmp.ne.s32.totalorder %s63, %s66
    %p75 = scmp.eq.s32.totalorder %s14, 3
    %p76 = por %p74, %p75
    %p77 = scmp.ne.s32.totalorder %s66, %s67
    %p78 = scmp.eq.s32.totalorder %s14, 0
    %p79 = por %p77, %p78
    %p80 = scmp.ne.s32.totalorder %s66, %s67
    %p81 = scmp.eq.s32.totalorder %s15, 3
    %p82 = por %p80, %p81
    %p84 = scmp.ne.s32.totalorder %s67, %s83
    %p85 = scmp.eq.s32.totalorder %s15, 0
    %p86 = por %p84, %p85
    %s87 = sadd.s32 %s17, 4
    %s88 = sadd.s32 %s24, 4
    %s89 = ssub.s32 %s16, %s28
    %s90 = ssub.s32 %s87, %s88
    %s91 = sor.u32 %s89, %s90
    %p92 = scmp.eq.s32.totalorder %s91, 0
    %s94 = sadd.s32 %s93, 1
    %s95 = scalar_select %p92, %s93, %s94
    %p98 = pneg %p92
    %p99 = scmp.eq.s32.totalorder %s9, 3
    %p100 = por %p98, %p99
    %p101 = scmp.ne.s32.totalorder %s93, %s96
    %p102 = scmp.eq.s32.totalorder %s9, 0
    %p103 = por %p101, %p102
    %p104 = scmp.ne.s32.totalorder %s93, %s96
    %p105 = scmp.eq.s32.totalorder %s14, 3
    %p106 = por %p104, %p105
    %p107 = scmp.ne.s32.totalorder %s96, %s97
    %p108 = scmp.eq.s32.totalorder %s14, 0
    %p109 = por %p107, %p108
    %p110 = scmp.ne.s32.totalorder %s96, %s97
    %p111 = scmp.eq.s32.totalorder %s15, 3
    %p112 = por %p110, %p111
    %p114 = scmp.ne.s32.totalorder %s97, %s113
    %p115 = scmp.eq.s32.totalorder %s15, 0
    %p116 = por %p114, %p115
    %s117 = ssub.s32 %s16, %s28
    %s118 = ssub.s32 %s17, %s24
    %s119 = sor.u32 %s117, %s118
    %p120 = scmp.eq.s32.totalorder %s119, 0
    %s122 = sadd.s32 %s121, 1
    %s123 = scalar_select %p120, %s121, %s122
    %p126 = pneg %p120
    %p127 = scmp.eq.s32.totalorder %s9, 3
    %p128 = por %p126, %p127
    %p129 = scmp.ne.s32.totalorder %s121, %s124
    %p130 = scmp.eq.s32.totalorder %s9, 0
    %p131 = por %p129, %p130
    %p132 = scmp.ne.s32.totalorder %s121, %s124
    %p133 = scmp.eq.s32.totalorder %s14, 3
    %p134 = por %p132, %p133
    %p135 = scmp.ne.s32.totalorder %s124, %s125
    %p136 = scmp.eq.s32.totalorder %s14, 0
    %p137 = por %p135, %p136
    %p138 = scmp.ne.s32.totalorder %s124, %s125
    %p139 = scmp.eq.s32.totalorder %s15, 3
    %p140 = por %p138, %p139
    %p142 = scmp.ne.s32.totalorder %s125, %s141
    %p143 = scmp.eq.s32.totalorder %s15, 0
    %p144 = por %p142, %p143
    %p145 = scmp.le.s32.totalorder 1, %s9
    %p146 = scmp.lt.s32.totalorder %s9, 5
    %p147 = pnand %p145, %p146
    %p148 = pneg %p147
    // Predicated region
    $region9: #{dinov2_vit_forward.14} parent=5 // pred_check
      _
    $region10: #{dinov2_vit_forward.14} parent=5 // pred_check_branch
      %150 = sbr.rel (%p147) target = $region12
    $region11: #{dinov2_vit_forward.14} parent=5 // pred_region
      %s151 = ssub.s32 %s9, 1
    $region12: #{dinov2_vit_forward.14} parent=5 // pred_fallthru
      _
    %p152 = scmp.lt.s32.totalorder %s9, 4
    // Predicated region
    $region13: #{dinov2_vit_forward.14} parent=5 // pred_check
      %p153 = pneg %p152
    $region14: #{dinov2_vit_forward.14} parent=5 // pred_check_branch
      %155 = sbr.rel (%p153) target = $region16
    $region15: #{dinov2_vit_forward.14} parent=5 // pred_region
      // Predicated region
      $region17: #{dinov2_vit_forward.14} parent=15 // pred_check
        %p156 = pneg %p43
      $region18: #{dinov2_vit_forward.14} parent=15 // pred_check_branch
        %158 = sbr.rel (%p156) target = $region20
      $region19: #{dinov2_vit_forward.14} parent=15 // pred_region
        %p159 = scmp.lt.s32.totalorder %s16, 1
        %s160 = scalar_select %p159, %s16, 1
        %p161 = scmp.lt.s32.totalorder %s17, 5
        %s162 = scalar_select %p161, %s17, 5
        %s163 = smul.addr %s160, 6
        %s164 = sadd.s32 %s162, %s163
        %s165 = smul.addr %s164, 4
        %s166 = scalar_lea.vmem %s0, %s165
      $region20: #{dinov2_vit_forward.14} parent=15 // pred_fallthru
        _
      // Predicated region
      $region21: #{dinov2_vit_forward.14} parent=15 // pred_check
        %p167 = pneg %p73
      $region22: #{dinov2_vit_forward.14} parent=15 // pred_check_branch
        %169 = sbr.rel (%p167) target = $region24
      $region23: #{dinov2_vit_forward.14} parent=15 // pred_region
        %s170 = sadd.s32 %s17, 2
        %p171 = scmp.lt.s32.totalorder %s16, 1
        %s172 = scalar_select %p171, %s16, 1
        %p173 = scmp.lt.s32.totalorder %s170, 5
        %s174 = scalar_select %p173, %s170, 5
        %s175 = smul.addr %s172, 6
        %s176 = sadd.s32 %s174, %s175
        %s177 = smul.addr %s176, 4
        %s178 = scalar_lea.vmem %s1, %s177
        %s179 = sadd.s32 %s17, 2
      $region24: #{dinov2_vit_forward.14} parent=15 // pred_fallthru
        _
      // Predicated region
      $region25: #{dinov2_vit_forward.14} parent=15 // pred_check
        %p180 = pneg %p103
      $region26: #{dinov2_vit_forward.14} parent=15 // pred_check_branch
        %182 = sbr.rel (%p180) target = $region28
      $region27: #{dinov2_vit_forward.14} parent=15 // pred_region
        %s183 = sadd.s32 %s17, 4
        %p184 = scmp.lt.s32.totalorder %s16, 1
        %s185 = scalar_select %p184, %s16, 1
        %p186 = scmp.lt.s32.totalorder %s183, 5
        %s187 = scalar_select %p186, %s183, 5
        %s188 = smul.addr %s185, 6
        %s189 = sadd.s32 %s187, %s188
        %s190 = smul.addr %s189, 4
        %s191 = scalar_lea.vmem %s2, %s190
        %s192 = sadd.s32 %s17, 4
      $region28: #{dinov2_vit_forward.14} parent=15 // pred_fallthru
        _
    $region16: #{dinov2_vit_forward.14} parent=5 // pred_fallthru
      _
    %p193 = scmp.le.s32.totalorder 1, %s9
    %p194 = scmp.lt.s32.totalorder %s9, 5
    %p195 = pnand %p193, %p194
    %p196 = pneg %p195
    // Predicated region
    $region29: #{dinov2_vit_forward.14} parent=5 // pred_check
      _
    $region30: #{dinov2_vit_forward.14} parent=5 // pred_check_branch
      %198 = sbr.rel (%p195) target = $region32
    $region31: #{dinov2_vit_forward.14} parent=5 // pred_region
      %s199 = ssub.s32 %s9, 1
      %p200 = scmp.lt.s32.totalorder %s18, 1
      %s201 = scalar_select %p200, %s18, 1
      %p202 = scmp.lt.s32.totalorder %s19, 5
      %s203 = scalar_select %p202, %s19, 5
      %s204 = smul.addr %s201, 6
      %s205 = sadd.s32 %s203, %s204
      %s206 = smul.addr %s205, 4
      %s207 = scalar_lea.vmem %s0, %s206
      %p208 = pneg %p49
      %p209 = pneg %p46
      %s210 = sadd.s32 %s19, 2
      %p211 = scmp.lt.s32.totalorder %s18, 1
      %s212 = scalar_select %p211, %s18, 1
      %p213 = scmp.lt.s32.totalorder %s210, 5
      %s214 = scalar_select %p213, %s210, 5
      %s215 = smul.addr %s212, 6
      %s216 = sadd.s32 %s214, %s215
      %s217 = smul.addr %s216, 4
      %s218 = scalar_lea.vmem %s1, %s217
      %p219 = pneg %p79
      %p220 = pneg %p76
      %s221 = sadd.s32 %s19, 4
      %p222 = scmp.lt.s32.totalorder %s18, 1
      %s223 = scalar_select %p222, %s18, 1
      %p224 = scmp.lt.s32.totalorder %s221, 5
      %s225 = scalar_select %p224, %s221, 5
      %s226 = smul.addr %s223, 6
      %s227 = sadd.s32 %s225, %s226
      %s228 = smul.addr %s227, 4
      %s229 = scalar_lea.vmem %s2, %s228
      %p230 = pneg %p109
      %p231 = pneg %p106
      %p232 = pneg %p137
      %p233 = pneg %p134
      %p234 = scmp.lt.s32.totalorder %s18, 1
      %s235 = scalar_select %p234, %s18, 1
      %p236 = scmp.lt.s32.totalorder %s19, 1
      %s237 = scalar_select %p236, %s19, 1
      %s238 = smul.addr %s235, 2
      %s239 = sadd.s32 %s237, %s238
      %s240 = smul.addr %s239, 4
      %s241 = scalar_lea.vmem %s3, %s240
      %p242 = scmp.lt.s32.totalorder %s18, 1
      %s243 = scalar_select %p242, %s18, 1
      %p244 = scmp.lt.s32.totalorder %s19, 5
      %s245 = scalar_select %p244, %s19, 5
      %s246 = smul.addr %s243, 6
      %s247 = sadd.s32 %s245, %s246
      %s248 = smul.addr %s247, 4
      %s249 = scalar_lea.vmem %s0, %s248
      %s250 = sadd.s32 %s19, 2
      %p251 = scmp.lt.s32.totalorder %s18, 1
      %s252 = scalar_select %p251, %s18, 1
      %p253 = scmp.lt.s32.totalorder %s250, 5
      %s254 = scalar_select %p253, %s250, 5
      %s255 = smul.addr %s252, 6
      %s256 = sadd.s32 %s254, %s255
      %s257 = smul.addr %s256, 4
      %s258 = scalar_lea.vmem %s1, %s257
      %s259 = sadd.s32 %s19, 2
      %s260 = sadd.s32 %s19, 4
      %p261 = scmp.lt.s32.totalorder %s18, 1
      %s262 = scalar_select %p261, %s18, 1
      %p263 = scmp.lt.s32.totalorder %s260, 5
      %s264 = scalar_select %p263, %s260, 5
      %s265 = smul.addr %s262, 6
      %s266 = sadd.s32 %s264, %s265
      %s267 = smul.addr %s266, 4
      %s268 = scalar_lea.vmem %s2, %s267
      %s269 = sadd.s32 %s19, 4
      %p270 = scmp.lt.s32.totalorder %s18, 1
      %s271 = scalar_select %p270, %s18, 1
      %p272 = scmp.lt.s32.totalorder %s19, 1
      %s273 = scalar_select %p272, %s19, 1
      %s274 = smul.addr %s271, 2
      %s275 = sadd.s32 %s273, %s274
      %s276 = smul.addr %s275, 4
      %s277 = scalar_lea.vmem %s3, %s276
      %v279 = vld [vmem:[%s249] sm:$0x7]
      %v280 = vld [vmem:[%s258] sm:$0x7]
      %v281 = vld [vmem:[%s268] sm:$0x7]
      %v282 = vunpack.c.l.bf16 %v279
      %v283 = vmul.f32 %v282, 0.125
      %v284 = vpack.c.bf16 %v283, %v283
      %vm285 = vcmask 523264
      %v287 = vsel %vm285, %v284, 0
      %v290 = vsel %vm285, %v280, 0
      %292 = vmatprep.subr.bf16.mxu0 0
      %293 = vmatpush1.bf16.xpose.msra.mxu0 %v290
      %294 = vmatprep.subr.bf16.mxu0 0
      %295 = vmatpush1.bf16.xpose.msra.mxu0 0
      %296 = vmatprep.subr.bf16.mxu0 0
      %297 = vmatpush1.bf16.xpose.msra.mxu0 0
      %298 = vmatprep.subr.bf16.mxu0 0
      %299 = vmatpush1.bf16.xpose.msra.mxu0 0
      %300 = vmatprep.subr.bf16.mxu0 0
      %301 = vmatpush1.bf16.xpose.msra.mxu0 0
      %302 = vmatprep.subr.bf16.mxu0 0
      %303 = vmatpush1.bf16.xpose.msra.mxu0 0
      %304 = vmatprep.subr.bf16.mxu0 0
      %305 = vmatpush1.bf16.xpose.msra.mxu0 0
      %306 = vmatprep.subr.bf16.mxu0 0
      %307 = vmatpush1.bf16.xpose.msra.mxu0 0
      %308 = vmatprep.subr.bf16.mxu0 0
      %309 = vmatpush1.bf16.xpose.msra.mxu0 0
      %310 = vmatprep.subr.bf16.mxu0 0
      %311 = vmatpush1.bf16.xpose.msra.mxu0 0
      %312 = vmatprep.subr.bf16.mxu0 0
      %313 = vmatpush1.bf16.xpose.msra.mxu0 0
      %314 = vmatprep.subr.bf16.mxu0 0
      %315 = vmatpush1.bf16.xpose.msra.mxu0 0
      %316 = vmatprep.subr.bf16.mxu0 0
      %317 = vmatpush1.bf16.xpose.msra.mxu0 0
      %318 = vmatprep.subr.bf16.mxu0 0
      %319 = vmatpush1.bf16.xpose.msra.mxu0 0
      %320 = vmatprep.subr.bf16.mxu0 0
      %321 = vmatpush1.bf16.xpose.msra.mxu0 0
      %322 = vmatprep.subr.bf16.mxu0 0
      %323 = vmatpush1.bf16.xpose.msra.mxu0 0
      %324 = vmatprep.mubr.bf16.mxu0 0
      %325 = vmatmul.mubr.bf16.gmra.mrb[0].mxu0 %v287
      %v326 = vpop.f32.mrb[0].mxu0
      %v327 = vadd.f32 0.0, %v326
      %v328 = vpop.f32.mrb[0].mxu0
      %v329 = vpop.f32.mrb[0].mxu0
      %v330 = vpop.f32.mrb[0].mxu0
      %331 = vdwg.mxu0
      %vm332 = vcmask 36864
      %v333 = vsel %vm332, %v327, -inf
      %334 = vmax.xlane.f32.xlu0 %v333
      %v335 = vpop.xlane.xlu0 %334
      %v336 = vsub.f32 %v327, %v335
      %v337 = vpack.c.bf16 %v336, %v336
      %v339 = vmul.bf16 %v337, 1069105081
      %v340 = vpow.bf16.pop %v339
      %v341 = vunpack.c.l.bf16 %v340
      %v342 = vsel %vm332, %v341, 0.0
      %343 = vadd.xlane.f32.xlu0 %v342
      %v344 = vpop.xlane.xlu0 %343
      %vm345 = vcmask 39936
      %v347 = vsel %vm345, %v340, 0
      %vm349 = vcmask 1041408
      %vm350 = vcmask 1042432
      %v351 = vsel %vm349, 4294967295, 65535
      %v352 = vsel %vm350, %v351, 0
      %v354 = vand.u32 %v281, %v352
      %356 = vmatprep.subr.bf16.mxu0 0
      %357 = vmatpush1.bf16.msra.mxu0 %v354
      %358 = vmatprep.subr.bf16.mxu0 0
      %359 = vmatpush1.bf16.msra.mxu0 0
      %360 = vmatprep.subr.bf16.mxu0 0
      %361 = vmatpush1.bf16.msra.mxu0 0
      %362 = vmatprep.subr.bf16.mxu0 0
      %363 = vmatpush1.bf16.msra.mxu0 0
      %364 = vmatprep.subr.bf16.mxu0 0
      %365 = vmatpush1.bf16.msra.mxu0 0
      %366 = vmatprep.subr.bf16.mxu0 0
      %367 = vmatpush1.bf16.msra.mxu0 0
      %368 = vmatprep.subr.bf16.mxu0 0
      %369 = vmatpush1.bf16.msra.mxu0 0
      %370 = vmatprep.subr.bf16.mxu0 0
      %371 = vmatpush1.bf16.msra.mxu0 0
      %372 = vmatprep.subr.bf16.mxu0 0
      %373 = vmatpush1.bf16.msra.mxu0 0
      %374 = vmatprep.subr.bf16.mxu0 0
      %375 = vmatpush1.bf16.msra.mxu0 0
      %376 = vmatprep.subr.bf16.mxu0 0
      %377 = vmatpush1.bf16.msra.mxu0 0
      %378 = vmatprep.subr.bf16.mxu0 0
      %379 = vmatpush1.bf16.msra.mxu0 0
      %380 = vmatprep.subr.bf16.mxu0 0
      %381 = vmatpush1.bf16.msra.mxu0 0
      %382 = vmatprep.subr.bf16.mxu0 0
      %383 = vmatpush1.bf16.msra.mxu0 0
      %384 = vmatprep.subr.bf16.mxu0 0
      %385 = vmatpush1.bf16.msra.mxu0 0
      %386 = vmatprep.subr.bf16.mxu0 0
      %387 = vmatpush1.bf16.msra.mxu0 0
      %388 = vmatprep.mubr.bf16.mxu0 0
      %389 = vmatmul.mubr.bf16.gmra.mrb[0].mxu0 %v347
      %v390 = vpop.f32.mrb[0].mxu0
      %v391 = vadd.f32 0.0, %v390
      %v392 = vpop.f32.mrb[0].mxu0
      %v393 = vpop.f32.mrb[0].mxu0
      %v394 = vpop.f32.mrb[0].mxu0
      %395 = vdwg.mxu0
      %v396 = vrcp.pop %v344
      %v397 = vmul.f32 %v391, %v396
      %v398 = vpack.c.bf16 %v397, %v397
      %400 = vrot.lane.b32.xlu0 %v284, 64
      %v401 = vpop.permute.xlu0 %400
      %v403 = vunpack.c.l.b16 %v280
      %v404 = vpack.c.b16 %v403, %v403
      %405 = vrot.lane.b32.xlu0 %v404, 64
      %v406 = vpop.permute.xlu0 %405
      %v408 = vsel %vm285, %v401, 0
      %v411 = vsel %vm285, %v406, 0
      %413 = vmatprep.subr.bf16.mxu0 0
      %414 = vmatpush1.bf16.xpose.msra.mxu0 %v411
      %415 = vmatprep.subr.bf16.mxu0 0
      %416 = vmatpush1.bf16.xpose.msra.mxu0 0
      %417 = vmatprep.subr.bf16.mxu0 0
      %418 = vmatpush1.bf16.xpose.msra.mxu0 0
      %419 = vmatprep.subr.bf16.mxu0 0
      %420 = vmatpush1.bf16.xpose.msra.mxu0 0
      %421 = vmatprep.subr.bf16.mxu0 0
      %422 = vmatpush1.bf16.xpose.msra.mxu0 0
      %423 = vmatprep.subr.bf16.mxu0 0
      %424 = vmatpush1.bf16.xpose.msra.mxu0 0
      %425 = vmatprep.subr.bf16.mxu0 0
      %426 = vmatpush1.bf16.xpose.msra.mxu0 0
      %427 = vmatprep.subr.bf16.mxu0 0
      %428 = vmatpush1.bf16.xpose.msra.mxu0 0
      %429 = vmatprep.subr.bf16.mxu0 0
      %430 = vmatpush1.bf16.xpose.msra.mxu0 0
      %431 = vmatprep.subr.bf16.mxu0 0
      %432 = vmatpush1.bf16.xpose.msra.mxu0 0
      %433 = vmatprep.subr.bf16.mxu0 0
      %434 = vmatpush1.bf16.xpose.msra.mxu0 0
      %435 = vmatprep.subr.bf16.mxu0 0
      %436 = vmatpush1.bf16.xpose.msra.mxu0 0
      %437 = vmatprep.subr.bf16.mxu0 0
      %438 = vmatpush1.bf16.xpose.msra.mxu0 0
      %439 = vmatprep.subr.bf16.mxu0 0
      %440 = vmatpush1.bf16.xpose.msra.mxu0 0
      %441 = vmatprep.subr.bf16.mxu0 0
      %442 = vmatpush1.bf16.xpose.msra.mxu0 0
      %443 = vmatprep.subr.bf16.mxu0 0
      %444 = vmatpush1.bf16.xpose.msra.mxu0 0
      %445 = vmatprep.mubr.bf16.mxu0 0
      %446 = vmatmul.mubr.bf16.gmra.mrb[0].mxu0 %v408
      %v447 = vpop.f32.mrb[0].mxu0
      %v448 = vadd.f32 0.0, %v447
      %v449 = vpop.f32.mrb[0].mxu0
      %v450 = vpop.f32.mrb[0].mxu0
      %v451 = vpop.f32.mrb[0].mxu0
      %452 = vdwg.mxu0
      %v453 = vsel %vm332, %v448, -inf
      %454 = vmax.xlane.f32.xlu0 %v453
      %v455 = vpop.xlane.xlu0 %454
      %v456 = vsub.f32 %v448, %v455
      %v457 = vpack.c.bf16 %v456, %v456
      %v459 = vmul.bf16 %v457, 1069105081
      %v460 = vpow.bf16.pop %v459
      %v461 = vunpack.c.l.bf16 %v460
      %v462 = vsel %vm332, %v461, 0.0
      %463 = vadd.xlane.f32.xlu0 %v462
      %v464 = vpop.xlane.xlu0 %463
      %v466 = vunpack.c.l.b16 %v281
      %v467 = vpack.c.b16 %v466, %v466
      %468 = vrot.lane.b32.xlu0 %v467, 64
      %v469 = vpop.permute.xlu0 %468
      %v471 = vsel %vm345, %v460, 0
      %v474 = vand.u32 %v469, %v352
      %476 = vmatprep.subr.bf16.mxu0 0
      %477 = vmatpush1.bf16.msra.mxu0 %v474
      %478 = vmatprep.subr.bf16.mxu0 0
      %479 = vmatpush1.bf16.msra.mxu0 0
      %480 = vmatprep.subr.bf16.mxu0 0
      %481 = vmatpush1.bf16.msra.mxu0 0
      %482 = vmatprep.subr.bf16.mxu0 0
      %483 = vmatpush1.bf16.msra.mxu0 0
      %484 = vmatprep.subr.bf16.mxu0 0
      %485 = vmatpush1.bf16.msra.mxu0 0
      %486 = vmatprep.subr.bf16.mxu0 0
      %487 = vmatpush1.bf16.msra.mxu0 0
      %488 = vmatprep.subr.bf16.mxu0 0
      %489 = vmatpush1.bf16.msra.mxu0 0
      %490 = vmatprep.subr.bf16.mxu0 0
      %491 = vmatpush1.bf16.msra.mxu0 0
      %492 = vmatprep.subr.bf16.mxu0 0
      %493 = vmatpush1.bf16.msra.mxu0 0
      %494 = vmatprep.subr.bf16.mxu0 0
      %495 = vmatpush1.bf16.msra.mxu0 0
      %496 = vmatprep.subr.bf16.mxu0 0
      %497 = vmatpush1.bf16.msra.mxu0 0
      %498 = vmatprep.subr.bf16.mxu0 0
      %499 = vmatpush1.bf16.msra.mxu0 0
      %500 = vmatprep.subr.bf16.mxu0 0
      %501 = vmatpush1.bf16.msra.mxu0 0
      %502 = vmatprep.subr.bf16.mxu0 0
      %503 = vmatpush1.bf16.msra.mxu0 0
      %504 = vmatprep.subr.bf16.mxu0 0
      %505 = vmatpush1.bf16.msra.mxu0 0
      %506 = vmatprep.subr.bf16.mxu0 0
      %507 = vmatpush1.bf16.msra.mxu0 0
      %508 = vmatprep.mubr.bf16.mxu0 0
      %509 = vmatmul.mubr.bf16.gmra.mrb[0].mxu0 %v471
      %v510 = vpop.f32.mrb[0].mxu0
      %v511 = vadd.f32 0.0, %v510
      %v512 = vpop.f32.mrb[0].mxu0
      %v513 = vpop.f32.mrb[0].mxu0
      %v514 = vpop.f32.mrb[0].mxu0
      %515 = vdwg.mxu0
      %v516 = vrcp.pop %v464
      %v517 = vmul.f32 %v511, %v516
      %v518 = vpack.c.bf16 %v517, %v517
      %520 = vrot.lane.b32.xlu0 %v518, 64
      %v521 = vpop.permute.xlu0 %520
      %v524 = vsel %vm285, %v398, %v521
      %vm526 = vcmask 1042432
      %vm527 = vsmask.f32 2304
      %vm528 = vmand %vm526, %vm527
      %v529 = vld [vmem:[%s277] sm:$0x7]
      %v530 = vsel %vm528, %v524, %v529
      %531 = vst [vmem:[%s277] sm:$0x7] %v530
      %p532 = scmp.lt.s32.totalorder %s18, 1
      %s533 = scalar_select %p532, %s18, 1
      %p534 = scmp.lt.s32.totalorder %s19, 1
      %s535 = scalar_select %p534, %s19, 1
      %s536 = smul.addr %s533, 2
      %s537 = sadd.s32 %s535, %s536
      %s538 = smul.addr %s537, 4
      %s539 = scalar_lea.vmem %s3, %s538
      // Predicated region
      $region33: #{dinov2_vit_forward.14} parent=31 // pred_check
        %p540 = pneg %p134
      $region34: #{dinov2_vit_forward.14} parent=31 // pred_check_branch
        %542 = sbr.rel (%p540) target = $region36
      $region35: #{dinov2_vit_forward.14} parent=31 // pred_region
        _
      $region36: #{dinov2_vit_forward.14} parent=31 // pred_fallthru
        _
    $region32: #{dinov2_vit_forward.14} parent=5 // pred_fallthru
      _
    %p543 = scmp.le.s32.totalorder 2, %s9
    // Predicated region
    $region37: #{dinov2_vit_forward.14} parent=5 // pred_check
      %p544 = pneg %p543
    $region38: #{dinov2_vit_forward.14} parent=5 // pred_check_branch
      %546 = sbr.rel (%p544) target = $region40
    $region39: #{dinov2_vit_forward.14} parent=5 // pred_region
      %s547 = ssub.s32 %s9, 2
      // Predicated region
      $region41: #{dinov2_vit_forward.14} parent=39 // pred_check
        %p548 = pneg %p140
      $region42: #{dinov2_vit_forward.14} parent=39 // pred_check_branch
        %550 = sbr.rel (%p548) target = $region44
      $region43: #{dinov2_vit_forward.14} parent=39 // pred_region
        %p551 = scmp.lt.s32.totalorder %s20, 1
        %s552 = scalar_select %p551, %s20, 1
        %p553 = scmp.lt.s32.totalorder %s21, 1
        %s554 = scalar_select %p553, %s21, 1
        %s555 = smul.addr %s552, 2
        %s556 = sadd.s32 %s554, %s555
        %s557 = smul.addr %s556, 4
        %s558 = scalar_lea.vmem %s3, %s557
      $region44: #{dinov2_vit_forward.14} parent=39 // pred_fallthru
        _
    $region40: #{dinov2_vit_forward.14} parent=5 // pred_fallthru
      _
  $region6: #{dinov2_vit_forward.14} parent=0 // loop_footer
    %s13 = sadd.s32 1, %s9
  $region7: #{dinov2_vit_forward.14} parent=0 // loop_footer_branch
    %8 = sbr.rel target = $region3
  $region8: #{dinov2_vit_forward.14} parent=0 // loop_exit
    _

// kernel: dinov2_vit_forward.12
$region0: #{dinov2_vit_forward.12}
  #allocation0 [shape = 'u32[]', space=smem, size = 0x4, offset = 0x4, fixed_abs, tag = 'smem constant byte address 0x4 - core index']
  #allocation1 [shape = 'u32[144,128]{1,0:T(1,128)}', space=vmem, size = 0x12000, scoped, tag = 'internal scratch']
  #allocation2 [shape = 'f32[8,256]{1,0:T(8,128)}', space=vmem, size = 0x2000, scoped, tag = 'scratch operand']
  %s0 = inlined_call_operand.vmem [shape: bf16[8,588], index: 0, kind: input, shape index: {}]
  %s1 = inlined_call_operand.vmem [shape: bf16[588,256], index: 1, kind: input, shape index: {}]
  %s2 = inlined_call_operand.vmem [shape: f32[1,256], index: 2, kind: input, shape index: {}]
  %s3 = inlined_call_operand.vmem [shape: f32[8,256], index: 3, kind: output, shape index: {}]
  %s4 = sld [smem:[#allocation0]]
  $region30: #{dinov2_vit_forward.12} parent=0
    _
  %s6 = ssub.s32 1, %s4
  %s7 = scalar_select 0, %s6, %s4
  // Predicated region
  $region2: #{dinov2_vit_forward.12} parent=0 // pred_check
    _
  $region3: #{dinov2_vit_forward.12} parent=0 // pred_check_branch
    %9 = sbr.rel (0) target = $region5
  $region4: #{dinov2_vit_forward.12} parent=0 // pred_region
    _
  $region5: #{dinov2_vit_forward.12} parent=0 // pred_fallthru
    _
  // Predicated region
  $region6: #{dinov2_vit_forward.12} parent=0 // pred_check
    _
  $region7: #{dinov2_vit_forward.12} parent=0 // pred_check_branch
    %11 = sbr.rel (0) target = $region9
  $region8: #{dinov2_vit_forward.12} parent=0 // pred_region
    _
  $region9: #{dinov2_vit_forward.12} parent=0 // pred_fallthru
    _
  // Predicated region
  $region10: #{dinov2_vit_forward.12} parent=0 // pred_check
    _
  $region11: #{dinov2_vit_forward.12} parent=0 // pred_check_branch
    %13 = sbr.rel (0) target = $region13
  $region12: #{dinov2_vit_forward.12} parent=0 // pred_region
    _
  $region13: #{dinov2_vit_forward.12} parent=0 // pred_fallthru
    _
  %p15 = scmp.eq.s32.totalorder 0, 0
  // Predicated region
  $region14: #{dinov2_vit_forward.12} parent=0 // pred_check
    %p16 = pneg %p15
  $region15: #{dinov2_vit_forward.12} parent=0 // pred_check_branch
    %18 = sbr.rel (%p16) target = $region17
  $region16: #{dinov2_vit_forward.12} parent=0 // pred_region
    %19 = vst [vmem:[#allocation2] sm:$0xff] 0.0
    %20 = vst [vmem:[#allocation2 + $0x8] sm:$0xff] 0.0
  $region17: #{dinov2_vit_forward.12} parent=0 // pred_fallthru
    _
  %v21 = vld [vmem:[#allocation2] sm:$0xff]
  %v22 = vld [vmem:[#allocation2 + $0x8] sm:$0xff]
  %v23 = vld [vmem:[%s0] sm:$0xff]
  %v24 = vld [vmem:[%s0 + $0x8] sm:$0xff]
  %v25 = vld [vmem:[%s0 + $0x10] sm:$0xf]
  %v26 = vld [vmem:[%s1] sm:$0xff]
  %v27 = vld [vmem:[%s1 + $0x8] sm:$0xff]
  %v28 = vld [vmem:[%s1 + $0x10] sm:$0xff]
  %v29 = vld [vmem:[%s1 + $0x18] sm:$0xff]
  %v30 = vld [vmem:[%s1 + $0x20] sm:$0xff]
  %v31 = vld [vmem:[%s1 + $0x28] sm:$0xff]
  %v32 = vld [vmem:[%s1 + $0x30] sm:$0xff]
  %v33 = vld [vmem:[%s1 + $0x38] sm:$0xff]
  %v34 = vld [vmem:[%s1 + $0x40] sm:$0xff]
  %v35 = vld [vmem:[%s1 + $0x48] sm:$0xff]
  %v36 = vld [vmem:[%s1 + $0x50] sm:$0xff]
  %v37 = vld [vmem:[%s1 + $0x58] sm:$0xff]
  %v38 = vld [vmem:[%s1 + $0x60] sm:$0xff]
  %v39 = vld [vmem:[%s1 + $0x68] sm:$0xff]
  %v40 = vld [vmem:[%s1 + $0x70] sm:$0xff]
  %v41 = vld [vmem:[%s1 + $0x78] sm:$0xff]
  %v42 = vld [vmem:[%s1 + $0x80] sm:$0xff]
  %v43 = vld [vmem:[%s1 + $0x88] sm:$0xff]
  %v44 = vld [vmem:[%s1 + $0x90] sm:$0xff]
  %v45 = vld [vmem:[%s1 + $0x98] sm:$0xff]
  %v46 = vld [vmem:[%s1 + $0xa0] sm:$0xff]
  %v47 = vld [vmem:[%s1 + $0xa8] sm:$0xff]
  %v48 = vld [vmem:[%s1 + $0xb0] sm:$0xff]
  %v49 = vld [vmem:[%s1 + $0xb8] sm:$0xff]
  %v50 = vld [vmem:[%s1 + $0xc0] sm:$0xff]
  %v51 = vld [vmem:[%s1 + $0xc8] sm:$0xff]
  %v52 = vld [vmem:[%s1 + $0xd0] sm:$0xff]
  %v53 = vld [vmem:[%s1 + $0xd8] sm:$0xff]
  %v54 = vld [vmem:[%s1 + $0xe0] sm:$0xff]
  %v55 = vld [vmem:[%s1 + $0xe8] sm:$0xff]
  %v56 = vld [vmem:[%s1 + $0xf0] sm:$0xff]
  %v57 = vld [vmem:[%s1 + $0xf8] sm:$0xff]
  %v58 = vld [vmem:[%s1 + $0x100] sm:$0xff]
  %v59 = vld [vmem:[%s1 + $0x108] sm:$0xff]
  %v60 = vld [vmem:[%s1 + $0x110] sm:$0xff]
  %v61 = vld [vmem:[%s1 + $0x118] sm:$0xff]
  %v62 = vld [vmem:[%s1 + $0x120] sm:$0xff]
  %v63 = vld [vmem:[%s1 + $0x128] sm:$0xff]
  %v64 = vld [vmem:[%s1 + $0x130] sm:$0xff]
  %v65 = vld [vmem:[%s1 + $0x138] sm:$0xff]
  %v66 = vld [vmem:[%s1 + $0x140] sm:$0xff]
  %v67 = vld [vmem:[%s1 + $0x148] sm:$0xff]
  %v68 = vld [vmem:[%s1 + $0x150] sm:$0xff]
  %v69 = vld [vmem:[%s1 + $0x158] sm:$0xff]
  %v70 = vld [vmem:[%s1 + $0x160] sm:$0xff]
  %v71 = vld [vmem:[%s1 + $0x168] sm:$0xff]
  %v72 = vld [vmem:[%s1 + $0x170] sm:$0xff]
  %v73 = vld [vmem:[%s1 + $0x178] sm:$0xff]
  %v74 = vld [vmem:[%s1 + $0x180] sm:$0xff]
  %v75 = vld [vmem:[%s1 + $0x188] sm:$0xff]
  %v76 = vld [vmem:[%s1 + $0x190] sm:$0xff]
  %v77 = vld [vmem:[%s1 + $0x198] sm:$0xff]
  %v78 = vld [vmem:[%s1 + $0x1a0] sm:$0xff]
  %v79 = vld [vmem:[%s1 + $0x1a8] sm:$0xff]
  %v80 = vld [vmem:[%s1 + $0x1b0] sm:$0xff]
  %v81 = vld [vmem:[%s1 + $0x1b8] sm:$0xff]
  %v82 = vld [vmem:[%s1 + $0x1c0] sm:$0xff]
  %v83 = vld [vmem:[%s1 + $0x1c8] sm:$0xff]
  %v84 = vld [vmem:[%s1 + $0x1d0] sm:$0xff]
  %v85 = vld [vmem:[%s1 + $0x1d8] sm:$0xff]
  %v86 = vld [vmem:[%s1 + $0x1e0] sm:$0xff]
  %v87 = vld [vmem:[%s1 + $0x1e8] sm:$0xff]
  %v88 = vld [vmem:[%s1 + $0x1f0] sm:$0xff]
  %v89 = vld [vmem:[%s1 + $0x1f8] sm:$0xff]
  %v90 = vld [vmem:[%s1 + $0x200] sm:$0xff]
  %v91 = vld [vmem:[%s1 + $0x208] sm:$0xff]
  %v92 = vld [vmem:[%s1 + $0x210] sm:$0xff]
  %v93 = vld [vmem:[%s1 + $0x218] sm:$0xff]
  %v94 = vld [vmem:[%s1 + $0x220] sm:$0xff]
  %v95 = vld [vmem:[%s1 + $0x228] sm:$0xff]
  %v96 = vld [vmem:[%s1 + $0x230] sm:$0xff]
  %v97 = vld [vmem:[%s1 + $0x238] sm:$0xff]
  %v98 = vld [vmem:[%s1 + $0x240] sm:$0xff]
  %v99 = vld [vmem:[%s1 + $0x248] sm:$0x33]
  %v103 = vunpack.c.l.b16 %v23
  %v104 = vunpack.c.h.b16 %v23
  %v105 = vunpack.c.l.b16 %v24
  %v106 = vunpack.c.h.b16 %v24
  %v107 = vunpack.c.l.b16 %v25
  %v108 = vpack.c.b16 %v103, %v103
  %v109 = vpack.c.b16 %v104, %v104
  %v110 = vpack.c.b16 %v105, %v105
  %v111 = vpack.c.b16 %v106, %v106
  %v112 = vpack.c.b16 %v107, %v107
  %v191 = vunpack.c.l.b16 %v26
  %v192 = vunpack.c.h.b16 %v26
  %v193 = vunpack.c.l.b16 %v27
  %v194 = vunpack.c.h.b16 %v27
  %v195 = vunpack.c.l.b16 %v28
  %v196 = vunpack.c.h.b16 %v28
  %v197 = vunpack.c.l.b16 %v29
  %v198 = vunpack.c.h.b16 %v29
  %v199 = vunpack.c.l.b16 %v30
  %v200 = vunpack.c.h.b16 %v30
  %v201 = vunpack.c.l.b16 %v31
  %v202 = vunpack.c.h.b16 %v31
  %v203 = vunpack.c.l.b16 %v32
  %v204 = vunpack.c.h.b16 %v32
  %v205 = vunpack.c.l.b16 %v33
  %v206 = vunpack.c.h.b16 %v33
  %v207 = vunpack.c.l.b16 %v34
  %v208 = vunpack.c.h.b16 %v34
  %v209 = vunpack.c.l.b16 %v35
  %v210 = vunpack.c.h.b16 %v35
  %v211 = vunpack.c.l.b16 %v36
  %v212 = vunpack.c.h.b16 %v36
  %v213 = vunpack.c.l.b16 %v37
  %v214 = vunpack.c.h.b16 %v37
  %v215 = vunpack.c.l.b16 %v38
  %v216 = vunpack.c.h.b16 %v38
  %v217 = vunpack.c.l.b16 %v39
  %v218 = vunpack.c.h.b16 %v39
  %v219 = vunpack.c.l.b16 %v40
  %v220 = vunpack.c.h.b16 %v40
  %v221 = vunpack.c.l.b16 %v41
  %v222 = vunpack.c.h.b16 %v41
  %v223 = vunpack.c.l.b16 %v42
  %v224 = vunpack.c.h.b16 %v42
  %v225 = vunpack.c.l.b16 %v43
  %v226 = vunpack.c.h.b16 %v43
  %v227 = vunpack.c.l.b16 %v44
  %v228 = vunpack.c.h.b16 %v44
  %v229 = vunpack.c.l.b16 %v45
  %v230 = vunpack.c.h.b16 %v45
  %v231 = vunpack.c.l.b16 %v46
  %v232 = vunpack.c.h.b16 %v46
  %v233 = vunpack.c.l.b16 %v47
  %v234 = vunpack.c.h.b16 %v47
  %v235 = vunpack.c.l.b16 %v48
  %v236 = vunpack.c.h.b16 %v48
  %v237 = vunpack.c.l.b16 %v49
  %v238 = vunpack.c.h.b16 %v49
  %v239 = vunpack.c.l.b16 %v50
  %v240 = vunpack.c.h.b16 %v50
  %v241 = vunpack.c.l.b16 %v51
  %v242 = vunpack.c.h.b16 %v51
  %v243 = vunpack.c.l.b16 %v52
  %v244 = vunpack.c.h.b16 %v52
  %v245 = vunpack.c.l.b16 %v53
  %v246 = vunpack.c.h.b16 %v53
  %v247 = vunpack.c.l.b16 %v54
  %v248 = vunpack.c.h.b16 %v54
  %v249 = vunpack.c.l.b16 %v55
  %v250 = vunpack.c.h.b16 %v55
  %v251 = vunpack.c.l.b16 %v56
  %v252 = vunpack.c.h.b16 %v56
  %v253 = vunpack.c.l.b16 %v57
  %v254 = vunpack.c.h.b16 %v57
  %v255 = vunpack.c.l.b16 %v58
  %v256 = vunpack.c.h.b16 %v58
  %v257 = vunpack.c.l.b16 %v59
  %v258 = vunpack.c.h.b16 %v59
  %v259 = vunpack.c.l.b16 %v60
  %v260 = vunpack.c.h.b16 %v60
  %v261 = vunpack.c.l.b16 %v61
  %v262 = vunpack.c.h.b16 %v61
  %v263 = vunpack.c.l.b16 %v62
  %v264 = vunpack.c.h.b16 %v62
  %v265 = vunpack.c.l.b16 %v63
  %v266 = vunpack.c.h.b16 %v63
  %v267 = vunpack.c.l.b16 %v64
  %v268 = vunpack.c.h.b16 %v64
  %v269 = vunpack.c.l.b16 %v65
  %v270 = vunpack.c.h.b16 %v65
  %v271 = vunpack.c.l.b16 %v66
  %v272 = vunpack.c.h.b16 %v66
  %v273 = vunpack.c.l.b16 %v67
  %v274 = vunpack.c.h.b16 %v67
  %v275 = vunpack.c.l.b16 %v68
  %v276 = vunpack.c.h.b16 %v68
  %v277 = vunpack.c.l.b16 %v69
  %v278 = vunpack.c.h.b16 %v69
  %v279 = vunpack.c.l.b16 %v70
  %v280 = vunpack.c.h.b16 %v70
  %v281 = vunpack.c.l.b16 %v71
  %v282 = vunpack.c.h.b16 %v71
  %v283 = vunpack.c.l.b16 %v72
  %v284 = vunpack.c.h.b16 %v72
  %v285 = vunpack.c.l.b16 %v73
  %v286 = vunpack.c.h.b16 %v73
  %v287 = vunpack.c.l.b16 %v74
  %v288 = vunpack.c.h.b16 %v74
  %v289 = vunpack.c.l.b16 %v75
  %v290 = vunpack.c.h.b16 %v75
  %v291 = vunpack.c.l.b16 %v76
  %v292 = vunpack.c.h.b16 %v76
  %v293 = vunpack.c.l.b16 %v77
  %v294 = vunpack.c.h.b16 %v77
  %v295 = vunpack.c.l.b16 %v78
  %v296 = vunpack.c.h.b16 %v78
  %v297 = vunpack.c.l.b16 %v79
  %v298 = vunpack.c.h.b16 %v79
  %v299 = vunpack.c.l.b16 %v80
  %v300 = vunpack.c.h.b16 %v80
  %v301 = vunpack.c.l.b16 %v81
  %v302 = vunpack.c.h.b16 %v81
  %v303 = vunpack.c.l.b16 %v82
  %v304 = vunpack.c.h.b16 %v82
  %v305 = vunpack.c.l.b16 %v83
  %v306 = vunpack.c.h.b16 %v83
  %v307 = vunpack.c.l.b16 %v84
  %v308 = vunpack.c.h.b16 %v84
  %v309 = vunpack.c.l.b16 %v85
  %v310 = vunpack.c.h.b16 %v85
  %v311 = vunpack.c.l.b16 %v86
  %v312 = vunpack.c.h.b16 %v86
  %v313 = vunpack.c.l.b16 %v87
  %v314 = vunpack.c.h.b16 %v87
  %v315 = vunpack.c.l.b16 %v88
  %v316 = vunpack.c.h.b16 %v88
  %v317 = vunpack.c.l.b16 %v89
  %v318 = vunpack.c.h.b16 %v89
  %v319 = vunpack.c.l.b16 %v90
  %v320 = vunpack.c.h.b16 %v90
  %v321 = vunpack.c.l.b16 %v91
  %v322 = vunpack.c.h.b16 %v91
  %v323 = vunpack.c.l.b16 %v92
  %v324 = vunpack.c.h.b16 %v92
  %v325 = vunpack.c.l.b16 %v93
  %v326 = vunpack.c.h.b16 %v93
  %v327 = vunpack.c.l.b16 %v94
  %v328 = vunpack.c.h.b16 %v94
  %v329 = vunpack.c.l.b16 %v95
  %v330 = vunpack.c.h.b16 %v95
  %v331 = vunpack.c.l.b16 %v96
  %v332 = vunpack.c.h.b16 %v96
  %v333 = vunpack.c.l.b16 %v97
  %v334 = vunpack.c.h.b16 %v97
  %v335 = vunpack.c.l.b16 %v98
  %v336 = vunpack.c.h.b16 %v98
  %v337 = vunpack.c.l.b16 %v99
  %v338 = vunpack.c.h.b16 %v99
  %v339 = vpack.c.b16 %v193, %v191
  %v340 = vpack.c.b16 %v194, %v192
  %v341 = vpack.c.b16 %v197, %v195
  %v342 = vpack.c.b16 %v198, %v196
  %v343 = vpack.c.b16 %v201, %v199
  %v344 = vpack.c.b16 %v202, %v200
  %v345 = vpack.c.b16 %v205, %v203
  %v346 = vpack.c.b16 %v206, %v204
  %v347 = vpack.c.b16 %v209, %v207
  %v348 = vpack.c.b16 %v210, %v208
  %v349 = vpack.c.b16 %v213, %v211
  %v350 = vpack.c.b16 %v214, %v212
  %v351 = vpack.c.b16 %v217, %v215
  %v352 = vpack.c.b16 %v218, %v216
  %v353 = vpack.c.b16 %v221, %v219
  %v354 = vpack.c.b16 %v222, %v220
  %v355 = vpack.c.b16 %v225, %v223
  %v356 = vpack.c.b16 %v226, %v224
  %v357 = vpack.c.b16 %v229, %v227
  %v358 = vpack.c.b16 %v230, %v228
  %v359 = vpack.c.b16 %v233, %v231
  %v360 = vpack.c.b16 %v234, %v232
  %v361 = vpack.c.b16 %v237, %v235
  %v362 = vpack.c.b16 %v238, %v236
  %v363 = vpack.c.b16 %v241, %v239
  %v364 = vpack.c.b16 %v242, %v240
  %v365 = vpack.c.b16 %v245, %v243
  %v366 = vpack.c.b16 %v246, %v244
  %v367 = vpack.c.b16 %v249, %v247
  %v368 = vpack.c.b16 %v250, %v248
  %v369 = vpack.c.b16 %v253, %v251
  %v370 = vpack.c.b16 %v254, %v252
  %v371 = vpack.c.b16 %v257, %v255
  %v372 = vpack.c.b16 %v258, %v256
  %v373 = vpack.c.b16 %v261, %v259
  %v374 = vpack.c.b16 %v262, %v260
  %v375 = vpack.c.b16 %v265, %v263
  %v376 = vpack.c.b16 %v266, %v264
  %v377 = vpack.c.b16 %v269, %v267
  %v378 = vpack.c.b16 %v270, %v268
  %v379 = vpack.c.b16 %v273, %v271
  %v380 = vpack.c.b16 %v274, %v272
  %v381 = vpack.c.b16 %v277, %v275
  %v382 = vpack.c.b16 %v278, %v276
  %v383 = vpack.c.b16 %v281, %v279
  %v384 = vpack.c.b16 %v282, %v280
  %v385 = vpack.c.b16 %v285, %v283
  %v386 = vpack.c.b16 %v286, %v284
  %v387 = vpack.c.b16 %v289, %v287
  %v388 = vpack.c.b16 %v290, %v288
  %v389 = vpack.c.b16 %v293, %v291
  %v390 = vpack.c.b16 %v294, %v292
  %v391 = vpack.c.b16 %v297, %v295
  %v392 = vpack.c.b16 %v298, %v296
  %v393 = vpack.c.b16 %v301, %v299
  %v394 = vpack.c.b16 %v302, %v300
  %v395 = vpack.c.b16 %v305, %v303
  %v396 = vpack.c.b16 %v306, %v304
  %v397 = vpack.c.b16 %v309, %v307
  %v398 = vpack.c.b16 %v310, %v308
  %v399 = vpack.c.b16 %v313, %v311
  %v400 = vpack.c.b16 %v314, %v312
  %v401 = vpack.c.b16 %v317, %v315
  %v402 = vpack.c.b16 %v318, %v316
  %v403 = vpack.c.b16 %v321, %v319
  %v404 = vpack.c.b16 %v322, %v320
  %v405 = vpack.c.b16 %v325, %v323
  %v406 = vpack.c.b16 %v326, %v324
  %v407 = vpack.c.b16 %v329, %v327
  %v408 = vpack.c.b16 %v330, %v328
  %v409 = vpack.c.b16 %v333, %v331
  %v410 = vpack.c.b16 %v334, %v332
  %v411 = vpack.c.b16 %v337, %v335
  %v412 = vpack.c.b16 %v338, %v336
  %vm485 = vcmask 621568
  %v487 = vsel %vm485, %v112, 0
  %vm489 = vcmask 1045504
  %v491 = vsel %vm489, %v411, 0
  %v494 = vsel %vm489, %v412, 0
  %496 = vmatprep.subr.bf16.mxu0 %v340
  %497 = vmatpush1.bf16.msra.mxu0 %v339
  %498 = vmatprep.subr.bf16.mxu0 %v342
  %499 = vmatpush1.bf16.msra.mxu0 %v341
  %500 = vmatprep.subr.bf16.mxu0 %v344
  %501 = vmatpush1.bf16.msra.mxu0 %v343
  %502 = vmatprep.subr.bf16.mxu0 %v346
  %503 = vmatpush1.bf16.msra.mxu0 %v345
  %504 = vmatprep.subr.bf16.mxu0 %v348
  %505 = vmatpush1.bf16.msra.mxu0 %v347
  %506 = vmatprep.subr.bf16.mxu0 %v350
  %507 = vmatpush1.bf16.msra.mxu0 %v349
  %508 = vmatprep.subr.bf16.mxu0 %v352
  %509 = vmatpush1.bf16.msra.mxu0 %v351
  %510 = vmatprep.subr.bf16.mxu0 %v354
  %511 = vmatpush1.bf16.msra.mxu0 %v353
  %512 = vmatprep.subr.bf16.mxu0 %v356
  %513 = vmatpush1.bf16.msra.mxu0 %v355
  %514 = vmatprep.subr.bf16.mxu0 %v358
  %515 = vmatpush1.bf16.msra.mxu0 %v357
  %516 = vmatprep.subr.bf16.mxu0 %v360
  %517 = vmatpush1.bf16.msra.mxu0 %v359
  %518 = vmatprep.subr.bf16.mxu0 %v362
  %519 = vmatpush1.bf16.msra.mxu0 %v361
  %520 = vmatprep.subr.bf16.mxu0 %v364
  %521 = vmatpush1.bf16.msra.mxu0 %v363
  %522 = vmatprep.subr.bf16.mxu0 %v366
  %523 = vmatpush1.bf16.msra.mxu0 %v365
  %524 = vmatprep.subr.bf16.mxu0 %v368
  %525 = vmatpush1.bf16.msra.mxu0 %v367
  %526 = vmatprep.subr.bf16.mxu0 %v370
  %527 = vmatpush1.bf16.msra.mxu0 %v369
  %528 = vmatprep.mubr.bf16.mxu0 %v109
  %529 = vmatmul.mubr.bf16.gmra.mrb[0].mxu0 %v108
  %v530 = vpop.f32.mrb[0].mxu0
  %v531 = vadd.f32 0.0, %v530
  %v532 = vpop.f32.mrb[0].mxu0
  %v533 = vadd.f32 0.0, %v532
  %v534 = vpop.f32.mrb[0].mxu0
  %v535 = vpop.f32.mrb[0].mxu0
  %536 = vdwg.mxu0
  %537 = vmatprep.subr.bf16.mxu0 %v372
  %538 = vmatpush1.bf16.msra.mxu0 %v371
  %539 = vmatprep.subr.bf16.mxu0 %v374
  %540 = vmatpush1.bf16.msra.mxu0 %v373
  %541 = vmatprep.subr.bf16.mxu0 %v376
  %542 = vmatpush1.bf16.msra.mxu0 %v375
  %543 = vmatprep.subr.bf16.mxu0 %v378
  %544 = vmatpush1.bf16.msra.mxu0 %v377
  %545 = vmatprep.subr.bf16.mxu0 %v380
  %546 = vmatpush1.bf16.msra.mxu0 %v379
  %547 = vmatprep.subr.bf16.mxu0 %v382
  %548 = vmatpush1.bf16.msra.mxu0 %v381
  %549 = vmatprep.subr.bf16.mxu0 %v384
  %550 = vmatpush1.bf16.msra.mxu0 %v383
  %551 = vmatprep.subr.bf16.mxu0 %v386
  %552 = vmatpush1.bf16.msra.mxu0 %v385
  %553 = vmatprep.subr.bf16.mxu0 %v388
  %554 = vmatpush1.bf16.msra.mxu0 %v387
  %555 = vmatprep.subr.bf16.mxu0 %v390
  %556 = vmatpush1.bf16.msra.mxu0 %v389
  %557 = vmatprep.subr.bf16.mxu0 %v392
  %558 = vmatpush1.bf16.msra.mxu0 %v391
  %559 = vmatprep.subr.bf16.mxu0 %v394
  %560 = vmatpush1.bf16.msra.mxu0 %v393
  %561 = vmatprep.subr.bf16.mxu0 %v396
  %562 = vmatpush1.bf16.msra.mxu0 %v395
  %563 = vmatprep.subr.bf16.mxu0 %v398
  %564 = vmatpush1.bf16.msra.mxu0 %v397
  %565 = vmatprep.subr.bf16.mxu0 %v400
  %566 = vmatpush1.bf16.msra.mxu0 %v399
  %567 = vmatprep.subr.bf16.mxu0 %v402
  %568 = vmatpush1.bf16.msra.mxu0 %v401
  %569 = vmatprep.mubr.bf16.mxu0 %v111
  %570 = vmatmul.mubr.bf16.gmra.mrb[0].mxu0 %v110
  %v571 = vpop.f32.mrb[0].mxu0
  %v572 = vadd.f32 %v531, %v571
  %v573 = vpop.f32.mrb[0].mxu0
  %v574 = vadd.f32 %v533, %v573
  %v575 = vpop.f32.mrb[0].mxu0
  %v576 = vpop.f32.mrb[0].mxu0
  %577 = vdwg.mxu0
  %578 = vmatprep.subr.bf16.mxu0 %v404
  %579 = vmatpush1.bf16.msra.mxu0 %v403
  %580 = vmatprep.subr.bf16.mxu0 %v406
  %581 = vmatpush1.bf16.msra.mxu0 %v405
  %582 = vmatprep.subr.bf16.mxu0 %v408
  %583 = vmatpush1.bf16.msra.mxu0 %v407
  %584 = vmatprep.subr.bf16.mxu0 %v410
  %585 = vmatpush1.bf16.msra.mxu0 %v409
  %586 = vmatprep.subr.bf16.mxu0 %v494
  %587 = vmatpush1.bf16.msra.mxu0 %v491
  %588 = vmatprep.subr.bf16.mxu0 0
  %589 = vmatpush1.bf16.msra.mxu0 0
  %590 = vmatprep.subr.bf16.mxu0 0
  %591 = vmatpush1.bf16.msra.mxu0 0
  %592 = vmatprep.subr.bf16.mxu0 0
  %593 = vmatpush1.bf16.msra.mxu0 0
  %594 = vmatprep.subr.bf16.mxu0 0
  %595 = vmatpush1.bf16.msra.mxu0 0
  %596 = vmatprep.subr.bf16.mxu0 0
  %597 = vmatpush1.bf16.msra.mxu0 0
  %598 = vmatprep.subr.bf16.mxu0 0
  %599 = vmatpush1.bf16.msra.mxu0 0
  %600 = vmatprep.subr.bf16.mxu0 0
  %601 = vmatpush1.bf16.msra.mxu0 0
  %602 = vmatprep.subr.bf16.mxu0 0
  %603 = vmatpush1.bf16.msra.mxu0 0
  %604 = vmatprep.subr.bf16.mxu0 0
  %605 = vmatpush1.bf16.msra.mxu0 0
  %606 = vmatprep.subr.bf16.mxu0 0
  %607 = vmatpush1.bf16.msra.mxu0 0
  %608 = vmatprep.subr.bf16.mxu0 0
  %609 = vmatpush1.bf16.msra.mxu0 0
  %610 = vmatprep.mubr.bf16.mxu0 0
  %611 = vmatmul.mubr.bf16.gmra.mrb[0].mxu0 %v487
  %v612 = vpop.f32.mrb[0].mxu0
  %v613 = vadd.f32 %v572, %v612
  %v614 = vpop.f32.mrb[0].mxu0
  %v615 = vadd.f32 %v574, %v614
  %v616 = vpop.f32.mrb[0].mxu0
  %v617 = vpop.f32.mrb[0].mxu0
  %618 = vdwg.mxu0
  %v619 = vadd.f32 %v21, %v613
  %v620 = vadd.f32 %v22, %v615
  %621 = vst [vmem:[#allocation2] sm:$0xff] %v619
  %622 = vst [vmem:[#allocation2 + $0x8] sm:$0xff] %v620
  // Predicated region
  $region18: #{dinov2_vit_forward.12} parent=0 // pred_check
    %p623 = pneg %p15
  $region19: #{dinov2_vit_forward.12} parent=0 // pred_check_branch
    %625 = sbr.rel (%p623) target = $region21
  $region20: #{dinov2_vit_forward.12} parent=0 // pred_region
    %v626 = vld [vmem:[#allocation2] sm:$0xff]
    %v627 = vld [vmem:[#allocation2 + $0x8] sm:$0xff]
    %v628 = vld [vmem:[%s2] sm:$0x3]
    %v630 = vlaneseq
    %v631 = vshrl.u32 %v630, 7
    %v632 = vsub.s32 0, %v631
    %v633 = vrot.slane %v628, %v632
    %v634 = vlaneseq
    %v635 = vshrl.u32 %v634, 7
    %v636 = vsub.s32 1, %v635
    %v637 = vrot.slane %v628, %v636
    %v640 = vadd.f32 %v626, %v633
    %v641 = vadd.f32 %v627, %v637
    %642 = vst [vmem:[%s3] sm:$0xff] %v640
    %643 = vst [vmem:[%s3 + $0x8] sm:$0xff] %v641
  $region21: #{dinov2_vit_forward.12} parent=0 // pred_fallthru
    _
  // Predicated region
  $region22: #{dinov2_vit_forward.12} parent=0 // pred_check
    _
  $region23: #{dinov2_vit_forward.12} parent=0 // pred_check_branch
    %645 = sbr.rel (0) target = $region25
  $region24: #{dinov2_vit_forward.12} parent=0 // pred_region
    _
  $region25: #{dinov2_vit_forward.12} parent=0 // pred_fallthru
    _
  // Predicated region
  $region26: #{dinov2_vit_forward.12} parent=0 // pred_check
    _
  $region27: #{dinov2_vit_forward.12} parent=0 // pred_check_branch
    %647 = sbr.rel (0) target = $region29
  $region28: #{dinov2_vit_forward.12} parent=0 // pred_region
    _
  $region29: #{dinov2_vit_forward.12} parent=0 // pred_fallthru
    _

// kernel: dinov2_vit_forward.13
$region0: #{dinov2_vit_forward.13}
  #allocation0 [shape = 'u32[]', space=smem, size = 0x4, offset = 0x4, fixed_abs, tag = 'smem constant byte address 0x4 - core index']
  #allocation1 [shape = 'u32[144,128]{1,0:T(1,128)}', space=vmem, size = 0x12000, scoped, tag = 'internal scratch']
  #allocation2 [shape = 'bf16[10,256]{1,0:T(8,128)(2,1)}', space=vmem, size = 0x2000, scoped, tag = 'scratch operand']
  %s0 = inlined_call_operand.vmem [shape: f32[10,256], index: 0, kind: input, shape index: {}]
  %s1 = inlined_call_operand.vmem [shape: f32[1,256], index: 1, kind: input, shape index: {}]
  %s2 = inlined_call_operand.vmem [shape: f32[1,256], index: 2, kind: input, shape index: {}]
  %s3 = inlined_call_operand.vmem [shape: bf16[256,768], index: 3, kind: input, shape index: {}]
  %s4 = inlined_call_operand.vmem [shape: f32[1,768], index: 4, kind: input, shape index: {}]
  %s5 = inlined_call_operand.vmem [shape: bf16[10,768], index: 5, kind: output, shape index: {}]
  %s6 = sld [smem:[#allocation0]]
  $region185: #{dinov2_vit_forward.13} parent=0
    _
  %s8 = ssub.s32 1, %s6
  %s9 = scalar_select 0, %s8, %s6
  $region1: #{dinov2_vit_forward.13} parent=0
    #allocation3 [shape = 'u8[524288]{0}', space=vmem, size = 0x80000, scoped, tag = 'input window, operand 3']
    #allocation4 [shape = 'u8[32768]{0}', space=vmem, size = 0x8000, scoped, tag = 'output window, operand 0']
    loop: start=0, step=1, limit=4
    $region2: #{dinov2_vit_forward.13} parent=1 // loop_pre_header
      _
    $region3: #{dinov2_vit_forward.13} parent=1 // loop_header
      %s11 = sphi 0, %s15
      %p12 = scmp.ge.s32.totalorder %s11, 4
      %s18 = sphi 0, %s30
      %s19 = sphi 0, %s26
      %s20 = sphi 0, %s18
      %s21 = sphi 0, %s19
      %s22 = sphi 0, %s20
      %s23 = sphi 0, %s21
      %s33 = sphi 0, %s35
      %s36 = sphi 0, %s33
      %s37 = sphi 0, %s36
      %s53 = sphi 0, %s37
      %s57 = sphi 0, %s57
      %s59 = sphi 0, %s57
      %s60 = sphi 0, %s59
      %s74 = sphi 0, %s60
      %s78 = sphi 0, %s78
      %s80 = sphi 0, %s78
      %s81 = sphi 0, %s80
      %s95 = sphi 0, %s81
      %s101 = sphi 0, %s103
      %s104 = sphi 0, %s101
      %s105 = sphi 0, %s104
      %s121 = sphi 0, %s105
      %s127 = sphi 0, %s129
      %s130 = sphi 0, %s127
      %s131 = sphi 0, %s130
      %s147 = sphi 0, %s131
      %s155 = sphi 0, %s157
      %s158 = sphi 0, %s155
      %s159 = sphi 0, %s158
      %s175 = sphi 0, %s159
    $region4: #{dinov2_vit_forward.13} parent=1 // loop_header_branch
      %14 = sbr.rel (%p12) target = $region8
    $region5: #{dinov2_vit_forward.13} parent=1 // loop_body
      %s16 = ssub.s32 %s11, 1
      %s17 = ssub.s32 %s11, 2
      %s24 = sadd.s32 1, %s19
      %p25 = scmp.ge.s32.totalorder %s24, 2
      %s26 = scalar_select %p25, 0, %s24
      %s27 = sadd.s32 1, %s18
      %s28 = scalar_select %p25, %s27, %s18
      %p29 = scmp.ge.s32.totalorder %s28, 1
      %s30 = scalar_select %p29, 0, %s28
      %s31 = ssub.s32 %s18, %s30
      %p32 = scmp.eq.s32.totalorder %s31, 0
      %s34 = sadd.s32 %s33, 1
      %s35 = scalar_select %p32, %s33, %s34
      %p38 = pneg %p32
      %p39 = scmp.eq.s32.totalorder %s11, 1
      %p40 = por %p38, %p39
      %p41 = scmp.ne.s32.totalorder %s33, %s36
      %p42 = scmp.eq.s32.totalorder %s11, 0
      %p43 = por %p41, %p42
      %p44 = scmp.ne.s32.totalorder %s33, %s36
      %p45 = scmp.eq.s32.totalorder %s16, 1
      %p46 = por %p44, %p45
      %p47 = scmp.ne.s32.totalorder %s36, %s37
      %p48 = scmp.eq.s32.totalorder %s16, 0
      %p49 = por %p47, %p48
      %p50 = scmp.ne.s32.totalorder %s36, %s37
      %p51 = scmp.eq.s32.totalorder %s17, 1
      %p52 = por %p50, %p51
      %p54 = scmp.ne.s32.totalorder %s37, %s53
      %p55 = scmp.eq.s32.totalorder %s17, 0
      %p56 = por %p54, %p55
      %s58 = sadd.s32 %s57, 1
      %p61 = scmp.eq.s32.totalorder %s11, 1
      %p62 = scmp.ne.s32.totalorder %s57, %s59
      %p63 = scmp.eq.s32.totalorder %s11, 0
      %p64 = por %p62, %p63
      %p65 = scmp.ne.s32.totalorder %s57, %s59
      %p66 = scmp.eq.s32.totalorder %s16, 1
      %p67 = por %p65, %p66
      %p68 = scmp.ne.s32.totalorder %s59, %s60
      %p69 = scmp.eq.s32.totalorder %s16, 0
      %p70 = por %p68, %p69
      %p71 = scmp.ne.s32.totalorder %s59, %s60
      %p72 = scmp.eq.s32.totalorder %s17, 1
      %p73 = por %p71, %p72
      %p75 = scmp.ne.s32.totalorder %s60, %s74
      %p76 = scmp.eq.s32.totalorder %s17, 0
      %p77 = por %p75, %p76
      %s79 = sadd.s32 %s78, 1
      %p82 = scmp.eq.s32.totalorder %s11, 1
      %p83 = scmp.ne.s32.totalorder %s78, %s80
      %p84 = scmp.eq.s32.totalorder %s11, 0
      %p85 = por %p83, %p84
      %p86 = scmp.ne.s32.totalorder %s78, %s80
      %p87 = scmp.eq.s32.totalorder %s16, 1
      %p88 = por %p86, %p87
      %p89 = scmp.ne.s32.totalorder %s80, %s81
      %p90 = scmp.eq.s32.totalorder %s16, 0
      %p91 = por %p89, %p90
      %p92 = scmp.ne.s32.totalorder %s80, %s81
      %p93 = scmp.eq.s32.totalorder %s17, 1
      %p94 = por %p92, %p93
      %p96 = scmp.ne.s32.totalorder %s81, %s95
      %p97 = scmp.eq.s32.totalorder %s17, 0
      %p98 = por %p96, %p97
      %s99 = ssub.s32 %s19, %s26
      %p100 = scmp.eq.s32.totalorder %s99, 0
      %s102 = sadd.s32 %s101, 1
      %s103 = scalar_select %p100, %s101, %s102
      %p106 = pneg %p100
      %p107 = scmp.eq.s32.totalorder %s11, 1
      %p108 = por %p106, %p107
      %p109 = scmp.ne.s32.totalorder %s101, %s104
      %p110 = scmp.eq.s32.totalorder %s11, 0
      %p111 = por %p109, %p110
      %p112 = scmp.ne.s32.totalorder %s101, %s104
      %p113 = scmp.eq.s32.totalorder %s16, 1
      %p114 = por %p112, %p113
      %p115 = scmp.ne.s32.totalorder %s104, %s105
      %p116 = scmp.eq.s32.totalorder %s16, 0
      %p117 = por %p115, %p116
      %p118 = scmp.ne.s32.totalorder %s104, %s105
      %p119 = scmp.eq.s32.totalorder %s17, 1
      %p120 = por %p118, %p119
      %p122 = scmp.ne.s32.totalorder %s105, %s121
      %p123 = scmp.eq.s32.totalorder %s17, 0
      %p124 = por %p122, %p123
      %s125 = ssub.s32 %s19, %s26
      %p126 = scmp.eq.s32.totalorder %s125, 0
      %s128 = sadd.s32 %s127, 1
      %s129 = scalar_select %p126, %s127, %s128
      %p132 = pneg %p126
      %p133 = scmp.eq.s32.totalorder %s11, 1
      %p134 = por %p132, %p133
      %p135 = scmp.ne.s32.totalorder %s127, %s130
      %p136 = scmp.eq.s32.totalorder %s11, 0
      %p137 = por %p135, %p136
      %p138 = scmp.ne.s32.totalorder %s127, %s130
      %p139 = scmp.eq.s32.totalorder %s16, 1
      %p140 = por %p138, %p139
      %p141 = scmp.ne.s32.totalorder %s130, %s131
      %p142 = scmp.eq.s32.totalorder %s16, 0
      %p143 = por %p141, %p142
      %p144 = scmp.ne.s32.totalorder %s130, %s131
      %p145 = scmp.eq.s32.totalorder %s17, 1
      %p146 = por %p144, %p145
      %p148 = scmp.ne.s32.totalorder %s131, %s147
      %p149 = scmp.eq.s32.totalorder %s17, 0
      %p150 = por %p148, %p149
      %s151 = ssub.s32 %s18, %s30
      %s152 = ssub.s32 %s19, %s26
      %s153 = sor.u32 %s151, %s152
      %p154 = scmp.eq.s32.totalorder %s153, 0
      %s156 = sadd.s32 %s155, 1
      %s157 = scalar_select %p154, %s155, %s156
      %p160 = pneg %p154
      %p161 = scmp.eq.s32.totalorder %s11, 1
      %p162 = por %p160, %p161
      %p163 = scmp.ne.s32.totalorder %s155, %s158
      %p164 = scmp.eq.s32.totalorder %s11, 0
      %p165 = por %p163, %p164
      %p166 = scmp.ne.s32.totalorder %s155, %s158
      %p167 = scmp.eq.s32.totalorder %s16, 1
      %p168 = por %p166, %p167
      %p169 = scmp.ne.s32.totalorder %s158, %s159
      %p170 = scmp.eq.s32.totalorder %s16, 0
      %p171 = por %p169, %p170
      %p172 = scmp.ne.s32.totalorder %s158, %s159
      %p173 = scmp.eq.s32.totalorder %s17, 1
      %p174 = por %p172, %p173
      %p176 = scmp.ne.s32.totalorder %s159, %s175
      %p177 = scmp.eq.s32.totalorder %s17, 0
      %p178 = por %p176, %p177
      %p179 = scmp.le.s32.totalorder 1, %s11
      %p180 = scmp.lt.s32.totalorder %s11, 3
      %p181 = pnand %p179, %p180
      %p182 = pneg %p181
      // Predicated region
      $region9: #{dinov2_vit_forward.13} parent=5 // pred_check
        _
      $region10: #{dinov2_vit_forward.13} parent=5 // pred_check_branch
        %184 = sbr.rel (%p181) target = $region12
      $region11: #{dinov2_vit_forward.13} parent=5 // pred_region
        %s185 = ssub.s32 %s11, 1
        // Predicated region
        $region13: #{dinov2_vit_forward.13} parent=11 // pred_check
          %p186 = pneg %p49
        $region14: #{dinov2_vit_forward.13} parent=11 // pred_check_branch
          %188 = sbr.rel (%p186) target = $region16
        $region15: #{dinov2_vit_forward.13} parent=11 // pred_region
          %s189 = smul.u32 2, %s20
          %p190 = scmp.lt.s32.totalorder %s189, 1
          %s191 = scalar_select %p190, %s189, 1
          %s192 = smul.addr %s191, 2
          %s193 = smul.addr %s192, 8
          %s194 = scalar_lea.vmem %s0, %s193
          %s195 = smul.u32 2, %s20
        $region16: #{dinov2_vit_forward.13} parent=11 // pred_fallthru
          _
        // Predicated region
        $region17: #{dinov2_vit_forward.13} parent=11 // pred_check
          %p196 = pneg %p70
        $region18: #{dinov2_vit_forward.13} parent=11 // pred_check_branch
          %198 = sbr.rel (%p196) target = $region20
        $region19: #{dinov2_vit_forward.13} parent=11 // pred_region
          _
        $region20: #{dinov2_vit_forward.13} parent=11 // pred_fallthru
          _
        // Predicated region
        $region21: #{dinov2_vit_forward.13} parent=11 // pred_check
          %p199 = pneg %p91
        $region22: #{dinov2_vit_forward.13} parent=11 // pred_check_branch
          %201 = sbr.rel (%p199) target = $region24
        $region23: #{dinov2_vit_forward.13} parent=11 // pred_region
          _
        $region24: #{dinov2_vit_forward.13} parent=11 // pred_fallthru
          _
      $region12: #{dinov2_vit_forward.13} parent=5 // pred_fallthru
        _
      %p202 = scmp.lt.s32.totalorder %s11, 2
      // Predicated region
      $region25: #{dinov2_vit_forward.13} parent=5 // pred_check
        %p203 = pneg %p202
      $region26: #{dinov2_vit_forward.13} parent=5 // pred_check_branch
        %205 = sbr.rel (%p203) target = $region28
      $region27: #{dinov2_vit_forward.13} parent=5 // pred_region
        // Predicated region
        $region29: #{dinov2_vit_forward.13} parent=27 // pred_check
          %p206 = pneg %p111
        $region30: #{dinov2_vit_forward.13} parent=27 // pred_check_branch
          %208 = sbr.rel (%p206) target = $region32
        $region31: #{dinov2_vit_forward.13} parent=27 // pred_region
          %s209 = sand.u32 %s101, 1
          %s210 = sand.u32 %s101, 1
          %s211 = smul.addr %s210, 512
          %s212 = scalar_lea.vmem [#allocation3], %s211
          %s213 = smul.u32 4, %s19
          %s214 = ssub.s32 6, %s213
          %p215 = scmp.lt.s32.totalorder %s214, 4
          %s216 = scalar_select %p215, %s214, 4
          %s217 = smul.u32 2048, %s216
          %p218 = scmp.ne.s32.totalorder 0, %s217
          %s219 = smul.addr %s213, 4
          %s220 = scalar_lea.vmem %s3, %s219
          %s221 = smul.u32 %s216, 4
          // Predicated region
          $region33: #{dinov2_vit_forward.13} parent=31 // pred_check
            %p222 = pneg %p218
          $region34: #{dinov2_vit_forward.13} parent=31 // pred_check_branch
            %224 = sbr.rel (%p222) target = $region36
          $region35: #{dinov2_vit_forward.13} parent=31 // pred_region
            %p225 = scmp.lt.u32.totalorder %s221, 8
            %p226 = pneg %p225
            // Predicated region
            $region37: #{dinov2_vit_forward.13} parent=35 // pred_check
              _
            $region38: #{dinov2_vit_forward.13} parent=35 // pred_check_branch
              %228 = sbr.rel (%p225) target = $region40
            $region39: #{dinov2_vit_forward.13} parent=35 // pred_region
              %s305 = sand.u32 %s221, 7
              %p306 = scmp.eq.s32.totalorder %s305, 0
              // Predicated region
              $region52: #{dinov2_vit_forward.13} parent=39 // pred_check
                %p307 = pneg %p306
              $region53: #{dinov2_vit_forward.13} parent=39 // pred_check_branch
                %309 = sbr.rel (%p307) target = $region55
              $region54: #{dinov2_vit_forward.13} parent=39 // pred_region
                %s310 = sshrl.u32 %s221, 3
                %s311 = sshrl.u32 %s310, 1
                // While loop
                $region56: #{dinov2_vit_forward.13} parent=54 // loop_pre_header
                  _
                $region57: #{dinov2_vit_forward.13} parent=54 // loop_header
                  %s315 = sphi 0, %s317
                  %p316 = scmp.ge.s32.totalorder %s315, %s311
                  %s320 = sphi 0, %s453
                  %s321 = sphi %s220, %s456
                  %s322 = sphi %s212, %s457
                $region58: #{dinov2_vit_forward.13} parent=54 // loop_header_branch
                  %319 = sbr.rel (%p316) target = $region62
                $region59: #{dinov2_vit_forward.13} parent=54 // loop_body
                  %v323 = vld [vmem:[%s321] sm:$0xff]
                  %324 = vst [vmem:[%s322] sm:$0xff] %v323
                  %v325 = vld [vmem:[%s321 + $0x8] sm:$0xff]
                  %326 = vst [vmem:[%s322 + $0x8] sm:$0xff] %v325
                  %v327 = vld [vmem:[%s321 + $0x18] sm:$0xff]
                  %328 = vst [vmem:[%s322 + $0x10] sm:$0xff] %v327
                  %v329 = vld [vmem:[%s321 + $0x20] sm:$0xff]
                  %330 = vst [vmem:[%s322 + $0x18] sm:$0xff] %v329
                  %v331 = vld [vmem:[%s321 + $0x30] sm:$0xff]
                  %332 = vst [vmem:[%s322 + $0x20] sm:$0xff] %v331
                  %v333 = vld [vmem:[%s321 + $0x38] sm:$0xff]
                  %334 = vst [vmem:[%s322 + $0x28] sm:$0xff] %v333
                  %v335 = vld [vmem:[%s321 + $0x48] sm:$0xff]
                  %336 = vst [vmem:[%s322 + $0x30] sm:$0xff] %v335
                  %v337 = vld [vmem:[%s321 + $0x50] sm:$0xff]
                  %338 = vst [vmem:[%s322 + $0x38] sm:$0xff] %v337
                  %v339 = vld [vmem:[%s321 + $0x60] sm:$0xff]
                  %340 = vst [vmem:[%s322 + $0x40] sm:$0xff] %v339
                  %v341 = vld [vmem:[%s321 + $0x68] sm:$0xff]
                  %342 = vst [vmem:[%s322 + $0x48] sm:$0xff] %v341
                  %v343 = vld [vmem:[%s321 + $0x78] sm:$0xff]
                  %344 = vst [vmem:[%s322 + $0x50] sm:$0xff] %v343
                  %v345 = vld [vmem:[%s321 + $0x80] sm:$0xff]
                  %346 = vst [vmem:[%s322 + $0x58] sm:$0xff] %v345
                  %v347 = vld [vmem:[%s321 + $0x90] sm:$0xff]
                  %348 = vst [vmem:[%s322 + $0x60] sm:$0xff] %v347
                  %v349 = vld [vmem:[%s321 + $0x98] sm:$0xff]
                  %350 = vst [vmem:[%s322 + $0x68] sm:$0xff] %v349
                  %v351 = vld [vmem:[%s321 + $0xa8] sm:$0xff]
                  %352 = vst [vmem:[%s322 + $0x70] sm:$0xff] %v351
                  %v353 = vld [vmem:[%s321 + $0xb0] sm:$0xff]
                  %354 = vst [vmem:[%s322 + $0x78] sm:$0xff] %v353
                  %v355 = vld [vmem:[%s321 + $0xc0] sm:$0xff]
                  %356 = vst [vmem:[%s322 + $0x80] sm:$0xff] %v355
                  %v357 = vld [vmem:[%s321 + $0xc8] sm:$0xff]
                  %358 = vst [vmem:[%s322 + $0x88] sm:$0xff] %v357
                  %v359 = vld [vmem:[%s321 + $0xd8] sm:$0xff]
                  %360 = vst [vmem:[%s322 + $0x90] sm:$0xff] %v359
                  %v361 = vld [vmem:[%s321 + $0xe0] sm:$0xff]
                  %362 = vst [vmem:[%s322 + $0x98] sm:$0xff] %v361
                  %v363 = vld [vmem:[%s321 + $0xf0] sm:$0xff]
                  %364 = vst [vmem:[%s322 + $0xa0] sm:$0xff] %v363
                  %v365 = vld [vmem:[%s321 + $0xf8] sm:$0xff]
                  %366 = vst [vmem:[%s322 + $0xa8] sm:$0xff] %v365
                  %v367 = vld [vmem:[%s321 + $0x108] sm:$0xff]
                  %368 = vst [vmem:[%s322 + $0xb0] sm:$0xff] %v367
                  %v369 = vld [vmem:[%s321 + $0x110] sm:$0xff]
                  %370 = vst [vmem:[%s322 + $0xb8] sm:$0xff] %v369
                  %v371 = vld [vmem:[%s321 + $0x120] sm:$0xff]
                  %372 = vst [vmem:[%s322 + $0xc0] sm:$0xff] %v371
                  %v373 = vld [vmem:[%s321 + $0x128] sm:$0xff]
                  %374 = vst [vmem:[%s322 + $0xc8] sm:$0xff] %v373
                  %v375 = vld [vmem:[%s321 + $0x138] sm:$0xff]
                  %376 = vst [vmem:[%s322 + $0xd0] sm:$0xff] %v375
                  %v377 = vld [vmem:[%s321 + $0x140] sm:$0xff]
                  %378 = vst [vmem:[%s322 + $0xd8] sm:$0xff] %v377
                  %v379 = vld [vmem:[%s321 + $0x150] sm:$0xff]
                  %380 = vst [vmem:[%s322 + $0xe0] sm:$0xff] %v379
                  %v381 = vld [vmem:[%s321 + $0x158] sm:$0xff]
                  %382 = vst [vmem:[%s322 + $0xe8] sm:$0xff] %v381
                  %v383 = vld [vmem:[%s321 + $0x168] sm:$0xff]
                  %384 = vst [vmem:[%s322 + $0xf0] sm:$0xff] %v383
                  %v385 = vld [vmem:[%s321 + $0x170] sm:$0xff]
                  %386 = vst [vmem:[%s322 + $0xf8] sm:$0xff] %v385
                  %v387 = vld [vmem:[%s321 + $0x180] sm:$0xff]
                  %388 = vst [vmem:[%s322 + $0x100] sm:$0xff] %v387
                  %v389 = vld [vmem:[%s321 + $0x188] sm:$0xff]
                  %390 = vst [vmem:[%s322 + $0x108] sm:$0xff] %v389
                  %v391 = vld [vmem:[%s321 + $0x198] sm:$0xff]
                  %392 = vst [vmem:[%s322 + $0x110] sm:$0xff] %v391
                  %v393 = vld [vmem:[%s321 + $0x1a0] sm:$0xff]
                  %394 = vst [vmem:[%s322 + $0x118] sm:$0xff] %v393
                  %v395 = vld [vmem:[%s321 + $0x1b0] sm:$0xff]
                  %396 = vst [vmem:[%s322 + $0x120] sm:$0xff] %v395
                  %v397 = vld [vmem:[%s321 + $0x1b8] sm:$0xff]
                  %398 = vst [vmem:[%s322 + $0x128] sm:$0xff] %v397
                  %v399 = vld [vmem:[%s321 + $0x1c8] sm:$0xff]
                  %400 = vst [vmem:[%s322 + $0x130] sm:$0xff] %v399
                  %v401 = vld [vmem:[%s321 + $0x1d0] sm:$0xff]
                  %402 = vst [vmem:[%s322 + $0x138] sm:$0xff] %v401
                  %v403 = vld [vmem:[%s321 + $0x1e0] sm:$0xff]
                  %404 = vst [vmem:[%s322 + $0x140] sm:$0xff] %v403
                  %v405 = vld [vmem:[%s321 + $0x1e8] sm:$0xff]
                  %406 = vst [vmem:[%s322 + $0x148] sm:$0xff] %v405
                  %v407 = vld [vmem:[%s321 + $0x1f8] sm:$0xff]
                  %408 = vst [vmem:[%s322 + $0x150] sm:$0xff] %v407
                  %v409 = vld [vmem:[%s321 + $0x200] sm:$0xff]
                  %410 = vst [vmem:[%s322 + $0x158] sm:$0xff] %v409
                  %v411 = vld [vmem:[%s321 + $0x210] sm:$0xff]
                  %412 = vst [vmem:[%s322 + $0x160] sm:$0xff] %v411
                  %v413 = vld [vmem:[%s321 + $0x218] sm:$0xff]
                  %414 = vst [vmem:[%s322 + $0x168] sm:$0xff] %v413
                  %v415 = vld [vmem:[%s321 + $0x228] sm:$0xff]
                  %416 = vst [vmem:[%s322 + $0x170] sm:$0xff] %v415
                  %v417 = vld [vmem:[%s321 + $0x230] sm:$0xff]
                  %418 = vst [vmem:[%s322 + $0x178] sm:$0xff] %v417
                  %v419 = vld [vmem:[%s321 + $0x240] sm:$0xff]
                  %420 = vst [vmem:[%s322 + $0x180] sm:$0xff] %v419
                  %v421 = vld [vmem:[%s321 + $0x248] sm:$0xff]
                  %422 = vst [vmem:[%s322 + $0x188] sm:$0xff] %v421
                  %v423 = vld [vmem:[%s321 + $0x258] sm:$0xff]
                  %424 = vst [vmem:[%s322 + $0x190] sm:$0xff] %v423
                  %v425 = vld [vmem:[%s321 + $0x260] sm:$0xff]
                  %426 = vst [vmem:[%s322 + $0x198] sm:$0xff] %v425
                  %v427 = vld [vmem:[%s321 + $0x270] sm:$0xff]
                  %428 = vst [vmem:[%s322 + $0x1a0] sm:$0xff] %v427
                  %v429 = vld [vmem:[%s321 + $0x278] sm:$0xff]
                  %430 = vst [vmem:[%s322 + $0x1a8] sm:$0xff] %v429
                  %v431 = vld [vmem:[%s321 + $0x288] sm:$0xff]
                  %432 = vst [vmem:[%s322 + $0x1b0] sm:$0xff] %v431
                  %v433 = vld [vmem:[%s321 + $0x290] sm:$0xff]
                  %434 = vst [vmem:[%s322 + $0x1b8] sm:$0xff] %v433
                  %v435 = vld [vmem:[%s321 + $0x2a0] sm:$0xff]
                  %436 = vst [vmem:[%s322 + $0x1c0] sm:$0xff] %v435
                  %v437 = vld [vmem:[%s321 + $0x2a8] sm:$0xff]
                  %438 = vst [vmem:[%s322 + $0x1c8] sm:$0xff] %v437
                  %v439 = vld [vmem:[%s321 + $0x2b8] sm:$0xff]
                  %440 = vst [vmem:[%s322 + $0x1d0] sm:$0xff] %v439
                  %v441 = vld [vmem:[%s321 + $0x2c0] sm:$0xff]
                  %442 = vst [vmem:[%s322 + $0x1d8] sm:$0xff] %v441
                  %v443 = vld [vmem:[%s321 + $0x2d0] sm:$0xff]
                  %444 = vst [vmem:[%s322 + $0x1e0] sm:$0xff] %v443
                  %v445 = vld [vmem:[%s321 + $0x2d8] sm:$0xff]
                  %446 = vst [vmem:[%s322 + $0x1e8] sm:$0xff] %v445
                  %v447 = vld [vmem:[%s321 + $0x2e8] sm:$0xff]
                  %448 = vst [vmem:[%s322 + $0x1f0] sm:$0xff] %v447
                  %v449 = vld [vmem:[%s321 + $0x2f0] sm:$0xff]
                  %450 = vst [vmem:[%s322 + $0x1f8] sm:$0xff] %v449
                  %s451 = sadd.s32 1, %s320
                  %p452 = scmp.ge.s32.totalorder %s451, %s311
                  %s453 = scalar_select %p452, 0, %s451
                  %s454 = smul.u32 %s453, 16
                  %s455 = smul.u32 %s453, 16
                  %s456 = scalar_lea.vmem %s220, %s454
                  %s457 = scalar_lea.vmem %s212, %s455 [#allocation3]
                $region60: #{dinov2_vit_forward.13} parent=54 // loop_footer
                  %s317 = sadd.s32 %s315, 1
                $region61: #{dinov2_vit_forward.13} parent=54 // loop_footer_branch
                  %314 = sbr.rel target = $region57
                $region62: #{dinov2_vit_forward.13} parent=54 // loop_exit
                  _
                %s458 = sshrl.u32 %s310, 1
                %s459 = sand.u32 %s310, 1
                %s460 = smul.u32 %s458, 2
                %s461 = smul.u32 128, %s460
                %s462 = sshra.s32 %s461, 4
                %s463 = scalar_lea.vmem %s220, %s462
                %s464 = smul.u32 128, %s460
                %s465 = sshra.s32 %s464, 4
                %s466 = scalar_lea.vmem %s212, %s465 [#allocation3]
                // While loop
                $region63: #{dinov2_vit_forward.13} parent=54 // loop_pre_header
                  _
                $region64: #{dinov2_vit_forward.13} parent=54 // loop_header
                  %s470 = sphi 0, %s472
                  %p471 = scmp.ge.s32.totalorder %s470, %s459
                  %s475 = sphi 0, %s544
                  %s476 = sphi %s463, %s547
                  %s477 = sphi %s466, %s548
                $region65: #{dinov2_vit_forward.13} parent=54 // loop_header_branch
                  %474 = sbr.rel (%p471) target = $region69
                $region66: #{dinov2_vit_forward.13} parent=54 // loop_body
                  %v478 = vld [vmem:[%s476] sm:$0xff]
                  %479 = vst [vmem:[%s477] sm:$0xff] %v478
                  %v480 = vld [vmem:[%s476 + $0x18] sm:$0xff]
                  %481 = vst [vmem:[%s477 + $0x10] sm:$0xff] %v480
                  %v482 = vld [vmem:[%s476 + $0x30] sm:$0xff]
                  %483 = vst [vmem:[%s477 + $0x20] sm:$0xff] %v482
                  %v484 = vld [vmem:[%s476 + $0x48] sm:$0xff]
                  %485 = vst [vmem:[%s477 + $0x30] sm:$0xff] %v484
                  %v486 = vld [vmem:[%s476 + $0x60] sm:$0xff]
                  %487 = vst [vmem:[%s477 + $0x40] sm:$0xff] %v486
                  %v488 = vld [vmem:[%s476 + $0x78] sm:$0xff]
                  %489 = vst [vmem:[%s477 + $0x50] sm:$0xff] %v488
                  %v490 = vld [vmem:[%s476 + $0x90] sm:$0xff]
                  %491 = vst [vmem:[%s477 + $0x60] sm:$0xff] %v490
                  %v492 = vld [vmem:[%s476 + $0xa8] sm:$0xff]
                  %493 = vst [vmem:[%s477 + $0x70] sm:$0xff] %v492
                  %v494 = vld [vmem:[%s476 + $0xc0] sm:$0xff]
                  %495 = vst [vmem:[%s477 + $0x80] sm:$0xff] %v494
                  %v496 = vld [vmem:[%s476 + $0xd8] sm:$0xff]
                  %497 = vst [vmem:[%s477 + $0x90] sm:$0xff] %v496
                  %v498 = vld [vmem:[%s476 + $0xf0] sm:$0xff]
                  %499 = vst [vmem:[%s477 + $0xa0] sm:$0xff] %v498
                  %v500 = vld [vmem:[%s476 + $0x108] sm:$0xff]
                  %501 = vst [vmem:[%s477 + $0xb0] sm:$0xff] %v500
                  %v502 = vld [vmem:[%s476 + $0x120] sm:$0xff]
                  %503 = vst [vmem:[%s477 + $0xc0] sm:$0xff] %v502
                  %v504 = vld [vmem:[%s476 + $0x138] sm:$0xff]
                  %505 = vst [vmem:[%s477 + $0xd0] sm:$0xff] %v504
                  %v506 = vld [vmem:[%s476 + $0x150] sm:$0xff]
                  %507 = vst [vmem:[%s477 + $0xe0] sm:$0xff] %v506
                  %v508 = vld [vmem:[%s476 + $0x168] sm:$0xff]
                  %509 = vst [vmem:[%s477 + $0xf0] sm:$0xff] %v508
                  %v510 = vld [vmem:[%s476 + $0x180] sm:$0xff]
                  %511 = vst [vmem:[%s477 + $0x100] sm:$0xff] %v510
                  %v512 = vld [vmem:[%s476 + $0x198] sm:$0xff]
                  %513 = vst [vmem:[%s477 + $0x110] sm:$0xff] %v512
                  %v514 = vld [vmem:[%s476 + $0x1b0] sm:$0xff]
                  %515 = vst [vmem:[%s477 + $0x120] sm:$0xff] %v514
                  %v516 = vld [vmem:[%s476 + $0x1c8] sm:$0xff]
                  %517 = vst [vmem:[%s477 + $0x130] sm:$0xff] %v516
                  %v518 = vld [vmem:[%s476 + $0x1e0] sm:$0xff]
                  %519 = vst [vmem:[%s477 + $0x140] sm:$0xff] %v518
                  %v520 = vld [vmem:[%s476 + $0x1f8] sm:$0xff]
                  %521 = vst [vmem:[%s477 + $0x150] sm:$0xff] %v520
                  %v522 = vld [vmem:[%s476 + $0x210] sm:$0xff]
                  %523 = vst [vmem:[%s477 + $0x160] sm:$0xff] %v522
                  %v524 = vld [vmem:[%s476 + $0x228] sm:$0xff]
                  %525 = vst [vmem:[%s477 + $0x170] sm:$0xff] %v524
                  %v526 = vld [vmem:[%s476 + $0x240] sm:$0xff]
                  %527 = vst [vmem:[%s477 + $0x180] sm:$0xff] %v526
                  %v528 = vld [vmem:[%s476 + $0x258] sm:$0xff]
                  %529 = vst [vmem:[%s477 + $0x190] sm:$0xff] %v528
                  %v530 = vld [vmem:[%s476 + $0x270] sm:$0xff]
                  %531 = vst [vmem:[%s477 + $0x1a0] sm:$0xff] %v530
                  %v532 = vld [vmem:[%s476 + $0x288] sm:$0xff]
                  %533 = vst [vmem:[%s477 + $0x1b0] sm:$0xff] %v532
                  %v534 = vld [vmem:[%s476 + $0x2a0] sm:$0xff]
                  %535 = vst [vmem:[%s477 + $0x1c0] sm:$0xff] %v534
                  %v536 = vld [vmem:[%s476 + $0x2b8] sm:$0xff]
                  %537 = vst [vmem:[%s477 + $0x1d0] sm:$0xff] %v536
                  %v538 = vld [vmem:[%s476 + $0x2d0] sm:$0xff]
                  %539 = vst [vmem:[%s477 + $0x1e0] sm:$0xff] %v538
                  %v540 = vld [vmem:[%s476 + $0x2e8] sm:$0xff]
                  %541 = vst [vmem:[%s477 + $0x1f0] sm:$0xff] %v540
                  %s542 = sadd.s32 1, %s475
                  %p543 = scmp.ge.s32.totalorder %s542, %s459
                  %s544 = scalar_select %p543, 0, %s542
                  %s545 = smul.u32 %s544, 8
                  %s546 = smul.u32 %s544, 8
                  %s547 = scalar_lea.vmem %s463, %s545
                  %s548 = scalar_lea.vmem %s466, %s546 [#allocation3]
                $region67: #{dinov2_vit_forward.13} parent=54 // loop_footer
                  %s472 = sadd.s32 %s470, 1
                $region68: #{dinov2_vit_forward.13} parent=54 // loop_footer_branch
                  %469 = sbr.rel target = $region64
                $region69: #{dinov2_vit_forward.13} parent=54 // loop_exit
                  _
              $region55: #{dinov2_vit_forward.13} parent=39 // pred_fallthru
                _
              %p549 = pneg %p306
              // Predicated region
              $region70: #{dinov2_vit_forward.13} parent=39 // pred_check
                _
              $region71: #{dinov2_vit_forward.13} parent=39 // pred_check_branch
                %551 = sbr.rel (%p306) target = $region73
              $region72: #{dinov2_vit_forward.13} parent=39 // pred_region
                %s552 = sand.u32 %s221, 7
                %s553 = ssub.s32 %s221, %s552
                %s554 = scalar_lea.vmem %s220, %s553
                %s555 = ssub.s32 %s221, %s552
                %s556 = scalar_lea.vmem %s212, %s555 [#allocation3]
                %s557 = sshrl.u32 %s221, 3
                %s558 = sshrl.u32 %s557, 1
                // While loop
                $region74: #{dinov2_vit_forward.13} parent=72 // loop_pre_header
                  _
                $region75: #{dinov2_vit_forward.13} parent=72 // loop_header
                  %s562 = sphi 0, %s564
                  %p563 = scmp.ge.s32.totalorder %s562, %s558
                  %s567 = sphi 0, %s700
                  %s568 = sphi %s220, %s703
                  %s569 = sphi %s212, %s704
                $region76: #{dinov2_vit_forward.13} parent=72 // loop_header_branch
                  %566 = sbr.rel (%p563) target = $region80
                $region77: #{dinov2_vit_forward.13} parent=72 // loop_body
                  %v570 = vld [vmem:[%s568] sm:$0xff]
                  %571 = vst [vmem:[%s569] sm:$0xff] %v570
                  %v572 = vld [vmem:[%s568 + $0x8] sm:$0xff]
                  %573 = vst [vmem:[%s569 + $0x8] sm:$0xff] %v572
                  %v574 = vld [vmem:[%s568 + $0x18] sm:$0xff]
                  %575 = vst [vmem:[%s569 + $0x10] sm:$0xff] %v574
                  %v576 = vld [vmem:[%s568 + $0x20] sm:$0xff]
                  %577 = vst [vmem:[%s569 + $0x18] sm:$0xff] %v576
                  %v578 = vld [vmem:[%s568 + $0x30] sm:$0xff]
                  %579 = vst [vmem:[%s569 + $0x20] sm:$0xff] %v578
                  %v580 = vld [vmem:[%s568 + $0x38] sm:$0xff]
                  %581 = vst [vmem:[%s569 + $0x28] sm:$0xff] %v580
                  %v582 = vld [vmem:[%s568 + $0x48] sm:$0xff]
                  %583 = vst [vmem:[%s569 + $0x30] sm:$0xff] %v582
                  %v584 = vld [vmem:[%s568 + $0x50] sm:$0xff]
                  %585 = vst [vmem:[%s569 + $0x38] sm:$0xff] %v584
                  %v586 = vld [vmem:[%s568 + $0x60] sm:$0xff]
                  %587 = vst [vmem:[%s569 + $0x40] sm:$0xff] %v586
                  %v588 = vld [vmem:[%s568 + $0x68] sm:$0xff]
                  %589 = vst [vmem:[%s569 + $0x48] sm:$0xff] %v588
                  %v590 = vld [vmem:[%s568 + $0x78] sm:$0xff]
                  %591 = vst [vmem:[%s569 + $0x50] sm:$0xff] %v590
                  %v592 = vld [vmem:[%s568 + $0x80] sm:$0xff]
                  %593 = vst [vmem:[%s569 + $0x58] sm:$0xff] %v592
                  %v594 = vld [vmem:[%s568 + $0x90] sm:$0xff]
                  %595 = vst [vmem:[%s569 + $0x60] sm:$0xff] %v594
                  %v596 = vld [vmem:[%s568 + $0x98] sm:$0xff]
                  %597 = vst [vmem:[%s569 + $0x68] sm:$0xff] %v596
                  %v598 = vld [vmem:[%s568 + $0xa8] sm:$0xff]
                  %599 = vst [vmem:[%s569 + $0x70] sm:$0xff] %v598
                  %v600 = vld [vmem:[%s568 + $0xb0] sm:$0xff]
                  %601 = vst [vmem:[%s569 + $0x78] sm:$0xff] %v600
                  %v602 = vld [vmem:[%s568 + $0xc0] sm:$0xff]
                  %603 = vst [vmem:[%s569 + $0x80] sm:$0xff] %v602
                  %v604 = vld [vmem:[%s568 + $0xc8] sm:$0xff]
                  %605 = vst [vmem:[%s569 + $0x88] sm:$0xff] %v604
                  %v606 = vld [vmem:[%s568 + $0xd8] sm:$0xff]
                  %607 = vst [vmem:[%s569 + $0x90] sm:$0xff] %v606
                  %v608 = vld [vmem:[%s568 + $0xe0] sm:$0xff]
                  %609 = vst [vmem:[%s569 + $0x98] sm:$0xff] %v608
                  %v610 = vld [vmem:[%s568 + $0xf0] sm:$0xff]
                  %611 = vst [vmem:[%s569 + $0xa0] sm:$0xff] %v610
                  %v612 = vld [vmem:[%s568 + $0xf8] sm:$0xff]
                  %613 = vst [vmem:[%s569 + $0xa8] sm:$0xff] %v612
                  %v614 = vld [vmem:[%s568 + $0x108] sm:$0xff]
                  %615 = vst [vmem:[%s569 + $0xb0] sm:$0xff] %v614
                  %v616 = vld [vmem:[%s568 + $0x110] sm:$0xff]
                  %617 = vst [vmem:[%s569 + $0xb8] sm:$0xff] %v616
                  %v618 = vld [vmem:[%s568 + $0x120] sm:$0xff]
                  %619 = vst [vmem:[%s569 + $0xc0] sm:$0xff] %v618
                  %v620 = vld [vmem:[%s568 + $0x128] sm:$0xff]
                  %621 = vst [vmem:[%s569 + $0xc8] sm:$0xff] %v620
                  %v622 = vld [vmem:[%s568 + $0x138] sm:$0xff]
                  %623 = vst [vmem:[%s569 + $0xd0] sm:$0xff] %v622
                  %v624 = vld [vmem:[%s568 + $0x140] sm:$0xff]
                  %625 = vst [vmem:[%s569 + $0xd8] sm:$0xff] %v624
                  %v626 = vld [vmem:[%s568 + $0x150] sm:$0xff]
                  %627 = vst [vmem:[%s569 + $0xe0] sm:$0xff] %v626
                  %v628 = vld [vmem:[%s568 + $0x158] sm:$0xff]
                  %629 = vst [vmem:[%s569 + $0xe8] sm:$0xff] %v628
                  %v630 = vld [vmem:[%s568 + $0x168] sm:$0xff]
                  %631 = vst [vmem:[%s569 + $0xf0] sm:$0xff] %v630
                  %v632 = vld [vmem:[%s568 + $0x170] sm:$0xff]
                  %633 = vst [vmem:[%s569 + $0xf8] sm:$0xff] %v632
                  %v634 = vld [vmem:[%s568 + $0x180] sm:$0xff]
                  %635 = vst [vmem:[%s569 + $0x100] sm:$0xff] %v634
                  %v636 = vld [vmem:[%s568 + $0x188] sm:$0xff]
                  %637 = vst [vmem:[%s569 + $0x108] sm:$0xff] %v636
                  %v638 = vld [vmem:[%s568 + $0x198] sm:$0xff]
                  %639 = vst [vmem:[%s569 + $0x110] sm:$0xff] %v638
                  %v640 = vld [vmem:[%s568 + $0x1a0] sm:$0xff]
                  %641 = vst [vmem:[%s569 + $0x118] sm:$0xff] %v640
                  %v642 = vld [vmem:[%s568 + $0x1b0] sm:$0xff]
                  %643 = vst [vmem:[%s569 + $0x120] sm:$0xff] %v642
                  %v644 = vld [vmem:[%s568 + $0x1b8] sm:$0xff]
                  %645 = vst [vmem:[%s569 + $0x128] sm:$0xff] %v644
                  %v646 = vld [vmem:[%s568 + $0x1c8] sm:$0xff]
                  %647 = vst [vmem:[%s569 + $0x130] sm:$0xff] %v646
                  %v648 = vld [vmem:[%s568 + $0x1d0] sm:$0xff]
                  %649 = vst [vmem:[%s569 + $0x138] sm:$0xff] %v648
                  %v650 = vld [vmem:[%s568 + $0x1e0] sm:$0xff]
                  %651 = vst [vmem:[%s569 + $0x140] sm:$0xff] %v650
                  %v652 = vld [vmem:[%s568 + $0x1e8] sm:$0xff]
                  %653 = vst [vmem:[%s569 + $0x148] sm:$0xff] %v652
                  %v654 = vld [vmem:[%s568 + $0x1f8] sm:$0xff]
                  %655 = vst [vmem:[%s569 + $0x150] sm:$0xff] %v654
                  %v656 = vld [vmem:[%s568 + $0x200] sm:$0xff]
                  %657 = vst [vmem:[%s569 + $0x158] sm:$0xff] %v656
                  %v658 = vld [vmem:[%s568 + $0x210] sm:$0xff]
                  %659 = vst [vmem:[%s569 + $0x160] sm:$0xff] %v658
                  %v660 = vld [vmem:[%s568 + $0x218] sm:$0xff]
                  %661 = vst [vmem:[%s569 + $0x168] sm:$0xff] %v660
                  %v662 = vld [vmem:[%s568 + $0x228] sm:$0xff]
                  %663 = vst [vmem:[%s569 + $0x170] sm:$0xff] %v662
                  %v664 = vld [vmem:[%s568 + $0x230] sm:$0xff]
                  %665 = vst [vmem:[%s569 + $0x178] sm:$0xff] %v664
                  %v666 = vld [vmem:[%s568 + $0x240] sm:$0xff]
                  %667 = vst [vmem:[%s569 + $0x180] sm:$0xff] %v666
                  %v668 = vld [vmem:[%s568 + $0x248] sm:$0xff]
                  %669 = vst [vmem:[%s569 + $0x188] sm:$0xff] %v668
                  %v670 = vld [vmem:[%s568 + $0x258] sm:$0xff]
                  %671 = vst [vmem:[%s569 + $0x190] sm:$0xff] %v670
                  %v672 = vld [vmem:[%s568 + $0x260] sm:$0xff]
                  %673 = vst [vmem:[%s569 + $0x198] sm:$0xff] %v672
                  %v674 = vld [vmem:[%s568 + $0x270] sm:$0xff]
                  %675 = vst [vmem:[%s569 + $0x1a0] sm:$0xff] %v674
                  %v676 = vld [vmem:[%s568 + $0x278] sm:$0xff]
                  %677 = vst [vmem:[%s569 + $0x1a8] sm:$0xff] %v676
                  %v678 = vld [vmem:[%s568 + $0x288] sm:$0xff]
                  %679 = vst [vmem:[%s569 + $0x1b0] sm:$0xff] %v678
                  %v680 = vld [vmem:[%s568 + $0x290] sm:$0xff]
                  %681 = vst [vmem:[%s569 + $0x1b8] sm:$0xff] %v680
                  %v682 = vld [vmem:[%s568 + $0x2a0] sm:$0xff]
                  %683 = vst [vmem:[%s569 + $0x1c0] sm:$0xff] %v682
                  %v684 = vld [vmem:[%s568 + $0x2a8] sm:$0xff]
                  %685 = vst [vmem:[%s569 + $0x1c8] sm:$0xff] %v684
                  %v686 = vld [vmem:[%s568 + $0x2b8] sm:$0xff]
                  %687 = vst [vmem:[%s569 + $0x1d0] sm:$0xff] %v686
                  %v688 = vld [vmem:[%s568 + $0x2c0] sm:$0xff]
                  %689 = vst [vmem:[%s569 + $0x1d8] sm:$0xff] %v688
                  %v690 = vld [vmem:[%s568 + $0x2d0] sm:$0xff]
                  %691 = vst [vmem:[%s569 + $0x1e0] sm:$0xff] %v690
                  %v692 = vld [vmem:[%s568 + $0x2d8] sm:$0xff]
                  %693 = vst [vmem:[%s569 + $0x1e8] sm:$0xff] %v692
                  %v694 = vld [vmem:[%s568 + $0x2e8] sm:$0xff]
                  %695 = vst [vmem:[%s569 + $0x1f0] sm:$0xff] %v694
                  %v696 = vld [vmem:[%s568 + $0x2f0] sm:$0xff]
                  %697 = vst [vmem:[%s569 + $0x1f8] sm:$0xff] %v696
                  %s698 = sadd.s32 1, %s567
                  %p699 = scmp.ge.s32.totalorder %s698, %s558
                  %s700 = scalar_select %p699, 0, %s698
                  %s701 = smul.u32 %s700, 16
                  %s702 = smul.u32 %s700, 16
                  %s703 = scalar_lea.vmem %s220, %s701
                  %s704 = scalar_lea.vmem %s212, %s702 [#allocation3]
                $region78: #{dinov2_vit_forward.13} parent=72 // loop_footer
                  %s564 = sadd.s32 %s562, 1
                $region79: #{dinov2_vit_forward.13} parent=72 // loop_footer_branch
                  %561 = sbr.rel target = $region75
                $region80: #{dinov2_vit_forward.13} parent=72 // loop_exit
                  _
                %s705 = sshrl.u32 %s557, 1
                %s706 = sand.u32 %s557, 1
                %s707 = smul.u32 %s705, 2
                %s708 = smul.u32 128, %s707
                %s709 = sshra.s32 %s708, 4
                %s710 = scalar_lea.vmem %s220, %s709
                %s711 = smul.u32 128, %s707
                %s712 = sshra.s32 %s711, 4
                %s713 = scalar_lea.vmem %s212, %s712 [#allocation3]
                // While loop
                $region81: #{dinov2_vit_forward.13} parent=72 // loop_pre_header
                  _
                $region82: #{dinov2_vit_forward.13} parent=72 // loop_header
                  %s717 = sphi 0, %s719
                  %p718 = scmp.ge.s32.totalorder %s717, %s706
                  %s722 = sphi 0, %s791
                  %s723 = sphi %s710, %s794
                  %s724 = sphi %s713, %s795
                $region83: #{dinov2_vit_forward.13} parent=72 // loop_header_branch
                  %721 = sbr.rel (%p718) target = $region87
                $region84: #{dinov2_vit_forward.13} parent=72 // loop_body
                  %v725 = vld [vmem:[%s723] sm:$0xff]
                  %726 = vst [vmem:[%s724] sm:$0xff] %v725
                  %v727 = vld [vmem:[%s723 + $0x18] sm:$0xff]
                  %728 = vst [vmem:[%s724 + $0x10] sm:$0xff] %v727
                  %v729 = vld [vmem:[%s723 + $0x30] sm:$0xff]
                  %730 = vst [vmem:[%s724 + $0x20] sm:$0xff] %v729
                  %v731 = vld [vmem:[%s723 + $0x48] sm:$0xff]
                  %732 = vst [vmem:[%s724 + $0x30] sm:$0xff] %v731
                  %v733 = vld [vmem:[%s723 + $0x60] sm:$0xff]
                  %734 = vst [vmem:[%s724 + $0x40] sm:$0xff] %v733
                  %v735 = vld [vmem:[%s723 + $0x78] sm:$0xff]
                  %736 = vst [vmem:[%s724 + $0x50] sm:$0xff] %v735
                  %v737 = vld [vmem:[%s723 + $0x90] sm:$0xff]
                  %738 = vst [vmem:[%s724 + $0x60] sm:$0xff] %v737
                  %v739 = vld [vmem:[%s723 + $0xa8] sm:$0xff]
                  %740 = vst [vmem:[%s724 + $0x70] sm:$0xff] %v739
                  %v741 = vld [vmem:[%s723 + $0xc0] sm:$0xff]
                  %742 = vst [vmem:[%s724 + $0x80] sm:$0xff] %v741
                  %v743 = vld [vmem:[%s723 + $0xd8] sm:$0xff]
                  %744 = vst [vmem:[%s724 + $0x90] sm:$0xff] %v743
                  %v745 = vld [vmem:[%s723 + $0xf0] sm:$0xff]
                  %746 = vst [vmem:[%s724 + $0xa0] sm:$0xff] %v745
                  %v747 = vld [vmem:[%s723 + $0x108] sm:$0xff]
                  %748 = vst [vmem:[%s724 + $0xb0] sm:$0xff] %v747
                  %v749 = vld [vmem:[%s723 + $0x120] sm:$0xff]
                  %750 = vst [vmem:[%s724 + $0xc0] sm:$0xff] %v749
                  %v751 = vld [vmem:[%s723 + $0x138] sm:$0xff]
                  %752 = vst [vmem:[%s724 + $0xd0] sm:$0xff] %v751
                  %v753 = vld [vmem:[%s723 + $0x150] sm:$0xff]
                  %754 = vst [vmem:[%s724 + $0xe0] sm:$0xff] %v753
                  %v755 = vld [vmem:[%s723 + $0x168] sm:$0xff]
                  %756 = vst [vmem:[%s724 + $0xf0] sm:$0xff] %v755
                  %v757 = vld [vmem:[%s723 + $0x180] sm:$0xff]
                  %758 = vst [vmem:[%s724 + $0x100] sm:$0xff] %v757
                  %v759 = vld [vmem:[%s723 + $0x198] sm:$0xff]
                  %760 = vst [vmem:[%s724 + $0x110] sm:$0xff] %v759
                  %v761 = vld [vmem:[%s723 + $0x1b0] sm:$0xff]
                  %762 = vst [vmem:[%s724 + $0x120] sm:$0xff] %v761
                  %v763 = vld [vmem:[%s723 + $0x1c8] sm:$0xff]
                  %764 = vst [vmem:[%s724 + $0x130] sm:$0xff] %v763
                  %v765 = vld [vmem:[%s723 + $0x1e0] sm:$0xff]
                  %766 = vst [vmem:[%s724 + $0x140] sm:$0xff] %v765
                  %v767 = vld [vmem:[%s723 + $0x1f8] sm:$0xff]
                  %768 = vst [vmem:[%s724 + $0x150] sm:$0xff] %v767
                  %v769 = vld [vmem:[%s723 + $0x210] sm:$0xff]
                  %770 = vst [vmem:[%s724 + $0x160] sm:$0xff] %v769
                  %v771 = vld [vmem:[%s723 + $0x228] sm:$0xff]
                  %772 = vst [vmem:[%s724 + $0x170] sm:$0xff] %v771
                  %v773 = vld [vmem:[%s723 + $0x240] sm:$0xff]
                  %774 = vst [vmem:[%s724 + $0x180] sm:$0xff] %v773
                  %v775 = vld [vmem:[%s723 + $0x258] sm:$0xff]
                  %776 = vst [vmem:[%s724 + $0x190] sm:$0xff] %v775
                  %v777 = vld [vmem:[%s723 + $0x270] sm:$0xff]
                  %778 = vst [vmem:[%s724 + $0x1a0] sm:$0xff] %v777
                  %v779 = vld [vmem:[%s723 + $0x288] sm:$0xff]
                  %780 = vst [vmem:[%s724 + $0x1b0] sm:$0xff] %v779
                  %v781 = vld [vmem:[%s723 + $0x2a0] sm:$0xff]
                  %782 = vst [vmem:[%s724 + $0x1c0] sm:$0xff] %v781
                  %v783 = vld [vmem:[%s723 + $0x2b8] sm:$0xff]
                  %784 = vst [vmem:[%s724 + $0x1d0] sm:$0xff] %v783
                  %v785 = vld [vmem:[%s723 + $0x2d0] sm:$0xff]
                  %786 = vst [vmem:[%s724 + $0x1e0] sm:$0xff] %v785
                  %v787 = vld [vmem:[%s723 + $0x2e8] sm:$0xff]
                  %788 = vst [vmem:[%s724 + $0x1f0] sm:$0xff] %v787
                  %s789 = sadd.s32 1, %s722
                  %p790 = scmp.ge.s32.totalorder %s789, %s706
                  %s791 = scalar_select %p790, 0, %s789
                  %s792 = smul.u32 %s791, 8
                  %s793 = smul.u32 %s791, 8
                  %s794 = scalar_lea.vmem %s710, %s792
                  %s795 = scalar_lea.vmem %s713, %s793 [#allocation3]
                $region85: #{dinov2_vit_forward.13} parent=72 // loop_footer
                  %s719 = sadd.s32 %s717, 1
                $region86: #{dinov2_vit_forward.13} parent=72 // loop_footer_branch
                  %716 = sbr.rel target = $region82
                $region87: #{dinov2_vit_forward.13} parent=72 // loop_exit
                  _
                %s796 = sshllo.u32 0, %s552
                loop: start=0, step=1, limit=1
                $region88: #{dinov2_vit_forward.13} parent=72 // loop_pre_header
                  _
                $region89: #{dinov2_vit_forward.13} parent=72 // loop_header
                  %s798 = sphi 0, %s802
                  %p799 = scmp.ge.s32.totalorder %s798, 1
                  %s803 = sphi %s554, %s554
                  %s804 = sphi %s556, %s556
                $region90: #{dinov2_vit_forward.13} parent=72 // loop_header_branch
                  %801 = sbr.rel (%p799) target = $region94
                $region91: #{dinov2_vit_forward.13} parent=72 // loop_body
                  %v805 = vld [vmem:[%s803] sm:%s796]
                  %806 = vst [vmem:[%s804] sm:%s796] %v805
                  %v807 = vld [vmem:[%s803 + $0x18] sm:%s796]
                  %808 = vst [vmem:[%s804 + $0x10] sm:%s796] %v807
                  %v809 = vld [vmem:[%s803 + $0x30] sm:%s796]
                  %810 = vst [vmem:[%s804 + $0x20] sm:%s796] %v809
                  %v811 = vld [vmem:[%s803 + $0x48] sm:%s796]
                  %812 = vst [vmem:[%s804 + $0x30] sm:%s796] %v811
                  %v813 = vld [vmem:[%s803 + $0x60] sm:%s796]
                  %814 = vst [vmem:[%s804 + $0x40] sm:%s796] %v813
                  %v815 = vld [vmem:[%s803 + $0x78] sm:%s796]
                  %816 = vst [vmem:[%s804 + $0x50] sm:%s796] %v815
                  %v817 = vld [vmem:[%s803 + $0x90] sm:%s796]
                  %818 = vst [vmem:[%s804 + $0x60] sm:%s796] %v817
                  %v819 = vld [vmem:[%s803 + $0xa8] sm:%s796]
                  %820 = vst [vmem:[%s804 + $0x70] sm:%s796] %v819
                  %v821 = vld [vmem:[%s803 + $0xc0] sm:%s796]
                  %822 = vst [vmem:[%s804 + $0x80] sm:%s796] %v821
                  %v823 = vld [vmem:[%s803 + $0xd8] sm:%s796]
                  %824 = vst [vmem:[%s804 + $0x90] sm:%s796] %v823
                  %v825 = vld [vmem:[%s803 + $0xf0] sm:%s796]
                  %826 = vst [vmem:[%s804 + $0xa0] sm:%s796] %v825
                  %v827 = vld [vmem:[%s803 + $0x108] sm:%s796]
                  %828 = vst [vmem:[%s804 + $0xb0] sm:%s796] %v827
                  %v829 = vld [vmem:[%s803 + $0x120] sm:%s796]
                  %830 = vst [vmem:[%s804 + $0xc0] sm:%s796] %v829
                  %v831 = vld [vmem:[%s803 + $0x138] sm:%s796]
                  %832 = vst [vmem:[%s804 + $0xd0] sm:%s796] %v831
                  %v833 = vld [vmem:[%s803 + $0x150] sm:%s796]
                  %834 = vst [vmem:[%s804 + $0xe0] sm:%s796] %v833
                  %v835 = vld [vmem:[%s803 + $0x168] sm:%s796]
                  %836 = vst [vmem:[%s804 + $0xf0] sm:%s796] %v835
                  %v837 = vld [vmem:[%s803 + $0x180] sm:%s796]
                  %838 = vst [vmem:[%s804 + $0x100] sm:%s796] %v837
                  %v839 = vld [vmem:[%s803 + $0x198] sm:%s796]
                  %840 = vst [vmem:[%s804 + $0x110] sm:%s796] %v839
                  %v841 = vld [vmem:[%s803 + $0x1b0] sm:%s796]
                  %842 = vst [vmem:[%s804 + $0x120] sm:%s796] %v841
                  %v843 = vld [vmem:[%s803 + $0x1c8] sm:%s796]
                  %844 = vst [vmem:[%s804 + $0x130] sm:%s796] %v843
                  %v845 = vld [vmem:[%s803 + $0x1e0] sm:%s796]
                  %846 = vst [vmem:[%s804 + $0x140] sm:%s796] %v845
                  %v847 = vld [vmem:[%s803 + $0x1f8] sm:%s796]
                  %848 = vst [vmem:[%s804 + $0x150] sm:%s796] %v847
                  %v849 = vld [vmem:[%s803 + $0x210] sm:%s796]
                  %850 = vst [vmem:[%s804 + $0x160] sm:%s796] %v849
                  %v851 = vld [vmem:[%s803 + $0x228] sm:%s796]
                  %852 = vst [vmem:[%s804 + $0x170] sm:%s796] %v851
                  %v853 = vld [vmem:[%s803 + $0x240] sm:%s796]
                  %854 = vst [vmem:[%s804 + $0x180] sm:%s796] %v853
                  %v855 = vld [vmem:[%s803 + $0x258] sm:%s796]
                  %856 = vst [vmem:[%s804 + $0x190] sm:%s796] %v855
                  %v857 = vld [vmem:[%s803 + $0x270] sm:%s796]
                  %858 = vst [vmem:[%s804 + $0x1a0] sm:%s796] %v857
                  %v859 = vld [vmem:[%s803 + $0x288] sm:%s796]
                  %860 = vst [vmem:[%s804 + $0x1b0] sm:%s796] %v859
                  %v861 = vld [vmem:[%s803 + $0x2a0] sm:%s796]
                  %862 = vst [vmem:[%s804 + $0x1c0] sm:%s796] %v861
                  %v863 = vld [vmem:[%s803 + $0x2b8] sm:%s796]
                  %864 = vst [vmem:[%s804 + $0x1d0] sm:%s796] %v863
                  %v865 = vld [vmem:[%s803 + $0x2d0] sm:%s796]
                  %866 = vst [vmem:[%s804 + $0x1e0] sm:%s796] %v865
                  %v867 = vld [vmem:[%s803 + $0x2e8] sm:%s796]
                  %868 = vst [vmem:[%s804 + $0x1f0] sm:%s796] %v867
                $region92: #{dinov2_vit_forward.13} parent=72 // loop_footer
                  %s802 = sadd.s32 1, %s798
                $region93: #{dinov2_vit_forward.13} parent=72 // loop_footer_branch
                  %797 = sbr.rel target = $region89
                $region94: #{dinov2_vit_forward.13} parent=72 // loop_exit
                  _
              $region73: #{dinov2_vit_forward.13} parent=39 // pred_fallthru
                _
            $region40: #{dinov2_vit_forward.13} parent=35 // pred_fallthru
              _
            // Predicated region
            $region41: #{dinov2_vit_forward.13} parent=35 // pred_check
              %p229 = pneg %p225
            $region42: #{dinov2_vit_forward.13} parent=35 // pred_check_branch
              %231 = sbr.rel (%p229) target = $region44
            $region43: #{dinov2_vit_forward.13} parent=35 // pred_region
              %s232 = sshllo.u32 0, %s221
              loop: start=0, step=1, limit=1
              $region45: #{dinov2_vit_forward.13} parent=43 // loop_pre_header
                _
              $region46: #{dinov2_vit_forward.13} parent=43 // loop_header
                %s234 = sphi 0, %s238
                %p235 = scmp.ge.s32.totalorder %s234, 1
                %s239 = sphi %s220, %s220
                %s240 = sphi %s212, %s212
              $region47: #{dinov2_vit_forward.13} parent=43 // loop_header_branch
                %237 = sbr.rel (%p235) target = $region51
              $region48: #{dinov2_vit_forward.13} parent=43 // loop_body
                %v241 = vld [vmem:[%s239] sm:%s232]
                %242 = vst [vmem:[%s240] sm:%s232] %v241
                %v243 = vld [vmem:[%s239 + $0x18] sm:%s232]
                %244 = vst [vmem:[%s240 + $0x10] sm:%s232] %v243
                %v245 = vld [vmem:[%s239 + $0x30] sm:%s232]
                %246 = vst [vmem:[%s240 + $0x20] sm:%s232] %v245
                %v247 = vld [vmem:[%s239 + $0x48] sm:%s232]
                %248 = vst [vmem:[%s240 + $0x30] sm:%s232] %v247
                %v249 = vld [vmem:[%s239 + $0x60] sm:%s232]
                %250 = vst [vmem:[%s240 + $0x40] sm:%s232] %v249
                %v251 = vld [vmem:[%s239 + $0x78] sm:%s232]
                %252 = vst [vmem:[%s240 + $0x50] sm:%s232] %v251
                %v253 = vld [vmem:[%s239 + $0x90] sm:%s232]
                %254 = vst [vmem:[%s240 + $0x60] sm:%s232] %v253
                %v255 = vld [vmem:[%s239 + $0xa8] sm:%s232]
                %256 = vst [vmem:[%s240 + $0x70] sm:%s232] %v255
                %v257 = vld [vmem:[%s239 + $0xc0] sm:%s232]
                %258 = vst [vmem:[%s240 + $0x80] sm:%s232] %v257
                %v259 = vld [vmem:[%s239 + $0xd8] sm:%s232]
                %260 = vst [vmem:[%s240 + $0x90] sm:%s232] %v259
                %v261 = vld [vmem:[%s239 + $0xf0] sm:%s232]
                %262 = vst [vmem:[%s240 + $0xa0] sm:%s232] %v261
                %v263 = vld [vmem:[%s239 + $0x108] sm:%s232]
                %264 = vst [vmem:[%s240 + $0xb0] sm:%s232] %v263
                %v265 = vld [vmem:[%s239 + $0x120] sm:%s232]
                %266 = vst [vmem:[%s240 + $0xc0] sm:%s232] %v265
                %v267 = vld [vmem:[%s239 + $0x138] sm:%s232]
                %268 = vst [vmem:[%s240 + $0xd0] sm:%s232] %v267
                %v269 = vld [vmem:[%s239 + $0x150] sm:%s232]
                %270 = vst [vmem:[%s240 + $0xe0] sm:%s232] %v269
                %v271 = vld [vmem:[%s239 + $0x168] sm:%s232]
                %272 = vst [vmem:[%s240 + $0xf0] sm:%s232] %v271
                %v273 = vld [vmem:[%s239 + $0x180] sm:%s232]
                %274 = vst [vmem:[%s240 + $0x100] sm:%s232] %v273
                %v275 = vld [vmem:[%s239 + $0x198] sm:%s232]
                %276 = vst [vmem:[%s240 + $0x110] sm:%s232] %v275
                %v277 = vld [vmem:[%s239 + $0x1b0] sm:%s232]
                %278 = vst [vmem:[%s240 + $0x120] sm:%s232] %v277
                %v279 = vld [vmem:[%s239 + $0x1c8] sm:%s232]
                %280 = vst [vmem:[%s240 + $0x130] sm:%s232] %v279
                %v281 = vld [vmem:[%s239 + $0x1e0] sm:%s232]
                %282 = vst [vmem:[%s240 + $0x140] sm:%s232] %v281
                %v283 = vld [vmem:[%s239 + $0x1f8] sm:%s232]
                %284 = vst [vmem:[%s240 + $0x150] sm:%s232] %v283
                %v285 = vld [vmem:[%s239 + $0x210] sm:%s232]
                %286 = vst [vmem:[%s240 + $0x160] sm:%s232] %v285
                %v287 = vld [vmem:[%s239 + $0x228] sm:%s232]
                %288 = vst [vmem:[%s240 + $0x170] sm:%s232] %v287
                %v289 = vld [vmem:[%s239 + $0x240] sm:%s232]
                %290 = vst [vmem:[%s240 + $0x180] sm:%s232] %v289
                %v291 = vld [vmem:[%s239 + $0x258] sm:%s232]
                %292 = vst [vmem:[%s240 + $0x190] sm:%s232] %v291
                %v293 = vld [vmem:[%s239 + $0x270] sm:%s232]
                %294 = vst [vmem:[%s240 + $0x1a0] sm:%s232] %v293
                %v295 = vld [vmem:[%s239 + $0x288] sm:%s232]
                %296 = vst [vmem:[%s240 + $0x1b0] sm:%s232] %v295
                %v297 = vld [vmem:[%s239 + $0x2a0] sm:%s232]
                %298 = vst [vmem:[%s240 + $0x1c0] sm:%s232] %v297
                %v299 = vld [vmem:[%s239 + $0x2b8] sm:%s232]
                %300 = vst [vmem:[%s240 + $0x1d0] sm:%s232] %v299
                %v301 = vld [vmem:[%s239 + $0x2d0] sm:%s232]
                %302 = vst [vmem:[%s240 + $0x1e0] sm:%s232] %v301
                %v303 = vld [vmem:[%s239 + $0x2e8] sm:%s232]
                %304 = vst [vmem:[%s240 + $0x1f0] sm:%s232] %v303
              $region49: #{dinov2_vit_forward.13} parent=43 // loop_footer
                %s238 = sadd.s32 1, %s234
              $region50: #{dinov2_vit_forward.13} parent=43 // loop_footer_branch
                %233 = sbr.rel target = $region46
              $region51: #{dinov2_vit_forward.13} parent=43 // loop_exit
                _
            $region44: #{dinov2_vit_forward.13} parent=35 // pred_fallthru
              _
          $region36: #{dinov2_vit_forward.13} parent=31 // pred_fallthru
            _
          %869 = vnop
        $region32: #{dinov2_vit_forward.13} parent=27 // pred_fallthru
          _
        // Predicated region
        $region95: #{dinov2_vit_forward.13} parent=27 // pred_check
          %p870 = pneg %p137
        $region96: #{dinov2_vit_forward.13} parent=27 // pred_check_branch
          %872 = sbr.rel (%p870) target = $region98
        $region97: #{dinov2_vit_forward.13} parent=27 // pred_region
          %s873 = smul.u32 4, %s19
          %s874 = ssub.s32 6, %s873
          %p875 = scmp.lt.s32.totalorder %s874, 4
          %s876 = scalar_select %p875, %s874, 4
          %s877 = smul.u32 16, %s876
          %p878 = scmp.lt.s32.totalorder %s873, 5
          %s879 = scalar_select %p878, %s873, 5
          %s880 = scalar_lea.vmem %s4, %s879
          %s881 = smul.u32 4, %s19
          %s882 = ssub.s32 6, %s881
          %p883 = scmp.lt.s32.totalorder %s882, 4
          %s884 = scalar_select %p883, %s882, 4
          %s885 = smul.u32 16, %s884
        $region98: #{dinov2_vit_forward.13} parent=27 // pred_fallthru
          _
      $region28: #{dinov2_vit_forward.13} parent=5 // pred_fallthru
        _
      %p886 = scmp.le.s32.totalorder 1, %s11
      %p887 = scmp.lt.s32.totalorder %s11, 3
      %p888 = pnand %p886, %p887
      %p889 = pneg %p888
      // Predicated region
      $region99: #{dinov2_vit_forward.13} parent=5 // pred_check
        _
      $region100: #{dinov2_vit_forward.13} parent=5 // pred_check_branch
        %891 = sbr.rel (%p888) target = $region102
      $region101: #{dinov2_vit_forward.13} parent=5 // pred_region
        %s892 = ssub.s32 %s11, 1
        %s893 = sand.u32 %s104, 1
        %s894 = sand.u32 %s104, 1
        %s895 = smul.addr %s894, 512
        %s896 = scalar_lea.vmem [#allocation3], %s895
        // Predicated region
        $region103: #{dinov2_vit_forward.13} parent=101 // pred_check
          %p897 = pneg %p117
        $region104: #{dinov2_vit_forward.13} parent=101 // pred_check_branch
          %899 = sbr.rel (%p897) target = $region106
        $region105: #{dinov2_vit_forward.13} parent=101 // pred_region
          _
        $region106: #{dinov2_vit_forward.13} parent=101 // pred_fallthru
          _
        %s900 = smul.u32 2, %s20
        %p901 = scmp.lt.s32.totalorder %s900, 1
        %s902 = scalar_select %p901, %s900, 1
        %s903 = smul.addr %s902, 2
        %s904 = smul.addr %s903, 8
        %s905 = scalar_lea.vmem %s0, %s904
        %p906 = pneg %p49
        %p907 = pneg %p46
        %p908 = pneg %p70
        %p909 = pneg %p67
        %p910 = pneg %p91
        %p911 = pneg %p88
        %s912 = sand.u32 %s104, 1
        %s913 = sand.u32 %s104, 1
        %s914 = smul.addr %s913, 512
        %s915 = scalar_lea.vmem [#allocation3], %s914
        %p916 = pneg %p117
        %p917 = pneg %p114
        %s918 = smul.u32 4, %s21
        %s919 = ssub.s32 6, %s918
        %p920 = scmp.lt.s32.totalorder %s919, 4
        %s921 = scalar_select %p920, %s919, 4
        %s922 = smul.u32 16, %s921
        %p923 = scmp.lt.s32.totalorder %s918, 5
        %s924 = scalar_select %p923, %s918, 5
        %s925 = scalar_lea.vmem %s4, %s924
        %p926 = pneg %p143
        %p927 = pneg %p140
        %p928 = pneg %p171
        %p929 = pneg %p168
        %s930 = sand.u32 %s158, 1
        %s931 = sand.u32 %s158, 1
        %s932 = smul.addr %s931, 32
        %s933 = scalar_lea.vmem [#allocation4], %s932
        %s934 = smul.u32 2, %s20
        %p935 = scmp.lt.s32.totalorder %s934, 1
        %s936 = scalar_select %p935, %s934, 1
        %s937 = smul.addr %s936, 2
        %s938 = smul.addr %s937, 8
        %s939 = scalar_lea.vmem %s0, %s938
        %s940 = smul.u32 2, %s20
        %s941 = smul.u32 4, %s21
        %s942 = ssub.s32 6, %s941
        %p943 = scmp.lt.s32.totalorder %s942, 4
        %s944 = scalar_select %p943, %s942, 4
        %s945 = smul.u32 2048, %s944
        %s946 = smul.u32 4, %s21
        %s947 = ssub.s32 6, %s946
        %p948 = scmp.lt.s32.totalorder %s947, 4
        %s949 = scalar_select %p948, %s947, 4
        %s950 = smul.u32 16, %s949
        %p951 = scmp.lt.s32.totalorder %s946, 5
        %s952 = scalar_select %p951, %s946, 5
        %s953 = scalar_lea.vmem %s4, %s952
        %s954 = smul.u32 4, %s21
        %s955 = ssub.s32 6, %s954
        %p956 = scmp.lt.s32.totalorder %s955, 4
        %s957 = scalar_select %p956, %s955, 4
        %s958 = smul.u32 16, %s957
        %s959 = smul.u32 2, %s20
        %s960 = smul.u32 4, %s21
        %s961 = ssub.s32 6, %s960
        %p962 = scmp.lt.s32.totalorder %s961, 4
        %s963 = scalar_select %p962, %s961, 4
        %s964 = smul.u32 128, %s963
        %p965 = scmp.eq.s32.totalorder %s21, 0
        // Predicated region
        $region107: #{dinov2_vit_forward.13} parent=101 // pred_check
          %p966 = pneg %p965
        $region108: #{dinov2_vit_forward.13} parent=101 // pred_check_branch
          %968 = sbr.rel (%p966) target = $region110
        $region109: #{dinov2_vit_forward.13} parent=101 // pred_region
          %v969 = vld [vmem:[%s939] sm:$0xff]
          %v970 = vld [vmem:[%s939 + $0x8] sm:$0xff]
          %v971 = vld [vmem:[%s939 + $0x10] sm:$0x3]
          %v972 = vld [vmem:[%s939 + $0x18] sm:$0x3]
          %v973 = vadd.f32 %v969, %v970
          %974 = vadd.xlane.f32.xlu0 %v973
          %v975 = vpop.xlane.xlu0 %974
          %vm976 = vcmask 1041408
          %v977 = vsel %vm976, %v971, 0.0
          %v978 = vsel %vm976, %v972, 0.0
          %v979 = vadd.f32 %v977, %v978
          %980 = vadd.xlane.f32.xlu0 %v979
          %v981 = vpop.xlane.xlu0 %980
          %v982 = vrcp.pop 256.0
          %v983 = vmul.f32 %v975, %v982
          %v984 = vmul.f32 %v981, %v982
          %v985 = vsub.f32 %v969, %v983
          %v986 = vsub.f32 %v970, %v983
          %v987 = vsub.f32 %v971, %v984
          %v988 = vsub.f32 %v972, %v984
          %v989 = vmul.f32 %v985, %v985
          %v990 = vmul.f32 %v986, %v986
          %v991 = vmul.f32 %v987, %v987
          %v992 = vmul.f32 %v988, %v988
          %v993 = vadd.f32 %v989, %v990
          %994 = vadd.xlane.f32.xlu0 %v993
          %v995 = vpop.xlane.xlu0 %994
          %v996 = vsel %vm976, %v991, 0.0
          %v997 = vsel %vm976, %v992, 0.0
          %v998 = vadd.f32 %v996, %v997
          %999 = vadd.xlane.f32.xlu0 %v998
          %v1000 = vpop.xlane.xlu0 %999
          %v1001 = vmul.f32 %v995, %v982
          %v1002 = vmul.f32 %v1000, %v982
          %v1003 = vadd.f32 %v1001, 1e-06
          %v1004 = vadd.f32 %v1002, 1e-06
          %v1005 = vrsqrt.pop %v1003
          %v1006 = vrsqrt.pop %v1004
          %v1007 = vmul.f32 %v985, %v1005
          %v1008 = vmul.f32 %v986, %v1005
          %v1009 = vmul.f32 %v987, %v1006
          %v1010 = vmul.f32 %v988, %v1006
          %v1011 = vld [vmem:[%s1] sm:$0x3]
          %v1013 = vlaneseq
          %v1014 = vshrl.u32 %v1013, 7
          %v1015 = vsub.s32 0, %v1014
          %v1016 = vrot.slane %v1011, %v1015
          %v1017 = vlaneseq
          %v1018 = vshrl.u32 %v1017, 7
          %v1019 = vsub.s32 1, %v1018
          %v1020 = vrot.slane %v1011, %v1019
          %v1023 = vmul.f32 %v1007, %v1016
          %v1024 = vmul.f32 %v1008, %v1020
          %v1025 = vmul.f32 %v1009, %v1016
          %v1026 = vmul.f32 %v1010, %v1020
          %v1027 = vld [vmem:[%s2] sm:$0x3]
          %v1029 = vlaneseq
          %v1030 = vshrl.u32 %v1029, 7
          %v1031 = vsub.s32 0, %v1030
          %v1032 = vrot.slane %v1027, %v1031
          %v1033 = vlaneseq
          %v1034 = vshrl.u32 %v1033, 7
          %v1035 = vsub.s32 1, %v1034
          %v1036 = vrot.slane %v1027, %v1035
          %v1039 = vadd.f32 %v1023, %v1032
          %v1040 = vadd.f32 %v1024, %v1036
          %v1041 = vadd.f32 %v1025, %v1032
          %v1042 = vadd.f32 %v1026, %v1036
          %v1043 = vpack.c.bf16 %v1041, %v1039
          %v1044 = vpack.c.bf16 %v1042, %v1040
          %v1047 = vunpack.c.l.b16 %v1043
          %v1048 = vunpack.c.l.b16 %v1044
          %v1049 = vunpack.c.h.b16 %v1043
          %v1050 = vunpack.c.h.b16 %v1044
          %v1051 = vpack.c.b16 %v1048, %v1047
          %v1052 = vpack.c.b16 %v1050, %v1049
          %1055 = vst [vmem:[#allocation2] sm:$0xff] %v1051
          %1056 = vst [vmem:[#allocation2 + $0x8] sm:$0x11] %v1052
        $region110: #{dinov2_vit_forward.13} parent=101 // pred_fallthru
          _
        %v1057 = vld [vmem:[#allocation2] sm:$0xff]
        %v1058 = vld [vmem:[#allocation2 + $0x8] sm:$0x11]
        %v1059 = vld [vmem:[%s896] sm:$0xff]
        %v1060 = vld [vmem:[%s896 + $0x8] sm:$0xff]
        %v1061 = vld [vmem:[%s896 + $0x10] sm:$0xff]
        %v1062 = vld [vmem:[%s896 + $0x18] sm:$0xff]
        %v1063 = vld [vmem:[%s896 + $0x20] sm:$0xff]
        %v1064 = vld [vmem:[%s896 + $0x28] sm:$0xff]
        %v1065 = vld [vmem:[%s896 + $0x30] sm:$0xff]
        %v1066 = vld [vmem:[%s896 + $0x38] sm:$0xff]
        %v1067 = vld [vmem:[%s896 + $0x40] sm:$0xff]
        %v1068 = vld [vmem:[%s896 + $0x48] sm:$0xff]
        %v1069 = vld [vmem:[%s896 + $0x50] sm:$0xff]
        %v1070 = vld [vmem:[%s896 + $0x58] sm:$0xff]
        %v1071 = vld [vmem:[%s896 + $0x60] sm:$0xff]
        %v1072 = vld [vmem:[%s896 + $0x68] sm:$0xff]
        %v1073 = vld [vmem:[%s896 + $0x70] sm:$0xff]
        %v1074 = vld [vmem:[%s896 + $0x78] sm:$0xff]
        %v1075 = vld [vmem:[%s896 + $0x80] sm:$0xff]
        %v1076 = vld [vmem:[%s896 + $0x88] sm:$0xff]
        %v1077 = vld [vmem:[%s896 + $0x90] sm:$0xff]
        %v1078 = vld [vmem:[%s896 + $0x98] sm:$0xff]
        %v1079 = vld [vmem:[%s896 + $0xa0] sm:$0xff]
        %v1080 = vld [vmem:[%s896 + $0xa8] sm:$0xff]
        %v1081 = vld [vmem:[%s896 + $0xb0] sm:$0xff]
        %v1082 = vld [vmem:[%s896 + $0xb8] sm:$0xff]
        %v1083 = vld [vmem:[%s896 + $0xc0] sm:$0xff]
        %v1084 = vld [vmem:[%s896 + $0xc8] sm:$0xff]
        %v1085 = vld [vmem:[%s896 + $0xd0] sm:$0xff]
        %v1086 = vld [vmem:[%s896 + $0xd8] sm:$0xff]
        %v1087 = vld [vmem:[%s896 + $0xe0] sm:$0xff]
        %v1088 = vld [vmem:[%s896 + $0xe8] sm:$0xff]
        %v1089 = vld [vmem:[%s896 + $0xf0] sm:$0xff]
        %v1090 = vld [vmem:[%s896 + $0xf8] sm:$0xff]
        %v1091 = vld [vmem:[%s896 + $0x100] sm:$0xff]
        %v1092 = vld [vmem:[%s896 + $0x108] sm:$0xff]
        %v1093 = vld [vmem:[%s896 + $0x110] sm:$0xff]
        %v1094 = vld [vmem:[%s896 + $0x118] sm:$0xff]
        %v1095 = vld [vmem:[%s896 + $0x120] sm:$0xff]
        %v1096 = vld [vmem:[%s896 + $0x128] sm:$0xff]
        %v1097 = vld [vmem:[%s896 + $0x130] sm:$0xff]
        %v1098 = vld [vmem:[%s896 + $0x138] sm:$0xff]
        %v1099 = vld [vmem:[%s896 + $0x140] sm:$0xff]
        %v1100 = vld [vmem:[%s896 + $0x148] sm:$0xff]
        %v1101 = vld [vmem:[%s896 + $0x150] sm:$0xff]
        %v1102 = vld [vmem:[%s896 + $0x158] sm:$0xff]
        %v1103 = vld [vmem:[%s896 + $0x160] sm:$0xff]
        %v1104 = vld [vmem:[%s896 + $0x168] sm:$0xff]
        %v1105 = vld [vmem:[%s896 + $0x170] sm:$0xff]
        %v1106 = vld [vmem:[%s896 + $0x178] sm:$0xff]
        %v1107 = vld [vmem:[%s896 + $0x180] sm:$0xff]
        %v1108 = vld [vmem:[%s896 + $0x188] sm:$0xff]
        %v1109 = vld [vmem:[%s896 + $0x190] sm:$0xff]
        %v1110 = vld [vmem:[%s896 + $0x198] sm:$0xff]
        %v1111 = vld [vmem:[%s896 + $0x1a0] sm:$0xff]
        %v1112 = vld [vmem:[%s896 + $0x1a8] sm:$0xff]
        %v1113 = vld [vmem:[%s896 + $0x1b0] sm:$0xff]
        %v1114 = vld [vmem:[%s896 + $0x1b8] sm:$0xff]
        %v1115 = vld [vmem:[%s896 + $0x1c0] sm:$0xff]
        %v1116 = vld [vmem:[%s896 + $0x1c8] sm:$0xff]
        %v1117 = vld [vmem:[%s896 + $0x1d0] sm:$0xff]
        %v1118 = vld [vmem:[%s896 + $0x1d8] sm:$0xff]
        %v1119 = vld [vmem:[%s896 + $0x1e0] sm:$0xff]
        %v1120 = vld [vmem:[%s896 + $0x1e8] sm:$0xff]
        %v1121 = vld [vmem:[%s896 + $0x1f0] sm:$0xff]
        %v1122 = vld [vmem:[%s896 + $0x1f8] sm:$0xff]
        %v1123 = vld [vmem:[%s953] sm:$0xf]
        %v1125 = vlaneseq
        %v1126 = vshrl.u32 %v1125, 7
        %v1127 = vsub.s32 0, %v1126
        %v1128 = vrot.slane %v1123, %v1127
        %v1129 = vlaneseq
        %v1130 = vshrl.u32 %v1129, 7
        %v1131 = vsub.s32 1, %v1130
        %v1132 = vrot.slane %v1123, %v1131
        %v1133 = vlaneseq
        %v1134 = vshrl.u32 %v1133, 7
        %v1135 = vsub.s32 2, %v1134
        %v1136 = vrot.slane %v1123, %v1135
        %v1137 = vlaneseq
        %v1138 = vshrl.u32 %v1137, 7
        %v1139 = vsub.s32 3, %v1138
        %v1140 = vrot.slane %v1123, %v1139
        %v1147 = vunpack.c.l.b16 %v1057
        %v1148 = vunpack.c.h.b16 %v1057
        %v1149 = vunpack.c.l.b16 %v1058
        %v1150 = vunpack.c.h.b16 %v1058
        %v1151 = vpack.c.b16 %v1149, %v1147
        %v1152 = vpack.c.b16 %v1150, %v1148
        %v1219 = vunpack.c.l.b16 %v1059
        %v1220 = vunpack.c.h.b16 %v1059
        %v1221 = vunpack.c.l.b16 %v1060
        %v1222 = vunpack.c.h.b16 %v1060
        %v1223 = vunpack.c.l.b16 %v1061
        %v1224 = vunpack.c.h.b16 %v1061
        %v1225 = vunpack.c.l.b16 %v1062
        %v1226 = vunpack.c.h.b16 %v1062
        %v1227 = vunpack.c.l.b16 %v1063
        %v1228 = vunpack.c.h.b16 %v1063
        %v1229 = vunpack.c.l.b16 %v1064
        %v1230 = vunpack.c.h.b16 %v1064
        %v1231 = vunpack.c.l.b16 %v1065
        %v1232 = vunpack.c.h.b16 %v1065
        %v1233 = vunpack.c.l.b16 %v1066
        %v1234 = vunpack.c.h.b16 %v1066
        %v1235 = vunpack.c.l.b16 %v1067
        %v1236 = vunpack.c.h.b16 %v1067
        %v1237 = vunpack.c.l.b16 %v1068
        %v1238 = vunpack.c.h.b16 %v1068
        %v1239 = vunpack.c.l.b16 %v1069
        %v1240 = vunpack.c.h.b16 %v1069
        %v1241 = vunpack.c.l.b16 %v1070
        %v1242 = vunpack.c.h.b16 %v1070
        %v1243 = vunpack.c.l.b16 %v1071
        %v1244 = vunpack.c.h.b16 %v1071
        %v1245 = vunpack.c.l.b16 %v1072
        %v1246 = vunpack.c.h.b16 %v1072
        %v1247 = vunpack.c.l.b16 %v1073
        %v1248 = vunpack.c.h.b16 %v1073
        %v1249 = vunpack.c.l.b16 %v1074
        %v1250 = vunpack.c.h.b16 %v1074
        %v1251 = vunpack.c.l.b16 %v1075
        %v1252 = vunpack.c.h.b16 %v1075
        %v1253 = vunpack.c.l.b16 %v1076
        %v1254 = vunpack.c.h.b16 %v1076
        %v1255 = vunpack.c.l.b16 %v1077
        %v1256 = vunpack.c.h.b16 %v1077
        %v1257 = vunpack.c.l.b16 %v1078
        %v1258 = vunpack.c.h.b16 %v1078
        %v1259 = vunpack.c.l.b16 %v1079
        %v1260 = vunpack.c.h.b16 %v1079
        %v1261 = vunpack.c.l.b16 %v1080
        %v1262 = vunpack.c.h.b16 %v1080
        %v1263 = vunpack.c.l.b16 %v1081
        %v1264 = vunpack.c.h.b16 %v1081
        %v1265 = vunpack.c.l.b16 %v1082
        %v1266 = vunpack.c.h.b16 %v1082
        %v1267 = vunpack.c.l.b16 %v1083
        %v1268 = vunpack.c.h.b16 %v1083
        %v1269 = vunpack.c.l.b16 %v1084
        %v1270 = vunpack.c.h.b16 %v1084
        %v1271 = vunpack.c.l.b16 %v1085
        %v1272 = vunpack.c.h.b16 %v1085
        %v1273 = vunpack.c.l.b16 %v1086
        %v1274 = vunpack.c.h.b16 %v1086
        %v1275 = vunpack.c.l.b16 %v1087
        %v1276 = vunpack.c.h.b16 %v1087
        %v1277 = vunpack.c.l.b16 %v1088
        %v1278 = vunpack.c.h.b16 %v1088
        %v1279 = vunpack.c.l.b16 %v1089
        %v1280 = vunpack.c.h.b16 %v1089
        %v1281 = vunpack.c.l.b16 %v1090
        %v1282 = vunpack.c.h.b16 %v1090
        %v1283 = vunpack.c.l.b16 %v1091
        %v1284 = vunpack.c.h.b16 %v1091
        %v1285 = vunpack.c.l.b16 %v1092
        %v1286 = vunpack.c.h.b16 %v1092
        %v1287 = vunpack.c.l.b16 %v1093
        %v1288 = vunpack.c.h.b16 %v1093
        %v1289 = vunpack.c.l.b16 %v1094
        %v1290 = vunpack.c.h.b16 %v1094
        %v1291 = vunpack.c.l.b16 %v1095
        %v1292 = vunpack.c.h.b16 %v1095
        %v1293 = vunpack.c.l.b16 %v1096
        %v1294 = vunpack.c.h.b16 %v1096
        %v1295 = vunpack.c.l.b16 %v1097
        %v1296 = vunpack.c.h.b16 %v1097
        %v1297 = vunpack.c.l.b16 %v1098
        %v1298 = vunpack.c.h.b16 %v1098
        %v1299 = vunpack.c.l.b16 %v1099
        %v1300 = vunpack.c.h.b16 %v1099
        %v1301 = vunpack.c.l.b16 %v1100
        %v1302 = vunpack.c.h.b16 %v1100
        %v1303 = vunpack.c.l.b16 %v1101
        %v1304 = vunpack.c.h.b16 %v1101
        %v1305 = vunpack.c.l.b16 %v1102
        %v1306 = vunpack.c.h.b16 %v1102
        %v1307 = vunpack.c.l.b16 %v1103
        %v1308 = vunpack.c.h.b16 %v1103
        %v1309 = vunpack.c.l.b16 %v1104
        %v1310 = vunpack.c.h.b16 %v1104
        %v1311 = vunpack.c.l.b16 %v1105
        %v1312 = vunpack.c.h.b16 %v1105
        %v1313 = vunpack.c.l.b16 %v1106
        %v1314 = vunpack.c.h.b16 %v1106
        %v1315 = vunpack.c.l.b16 %v1107
        %v1316 = vunpack.c.h.b16 %v1107
        %v1317 = vunpack.c.l.b16 %v1108
        %v1318 = vunpack.c.h.b16 %v1108
        %v1319 = vunpack.c.l.b16 %v1109
        %v1320 = vunpack.c.h.b16 %v1109
        %v1321 = vunpack.c.l.b16 %v1110
        %v1322 = vunpack.c.h.b16 %v1110
        %v1323 = vunpack.c.l.b16 %v1111
        %v1324 = vunpack.c.h.b16 %v1111
        %v1325 = vunpack.c.l.b16 %v1112
        %v1326 = vunpack.c.h.b16 %v1112
        %v1327 = vunpack.c.l.b16 %v1113
        %v1328 = vunpack.c.h.b16 %v1113
        %v1329 = vunpack.c.l.b16 %v1114
        %v1330 = vunpack.c.h.b16 %v1114
        %v1331 = vunpack.c.l.b16 %v1115
        %v1332 = vunpack.c.h.b16 %v1115
        %v1333 = vunpack.c.l.b16 %v1116
        %v1334 = vunpack.c.h.b16 %v1116
        %v1335 = vunpack.c.l.b16 %v1117
        %v1336 = vunpack.c.h.b16 %v1117
        %v1337 = vunpack.c.l.b16 %v1118
        %v1338 = vunpack.c.h.b16 %v1118
        %v1339 = vunpack.c.l.b16 %v1119
        %v1340 = vunpack.c.h.b16 %v1119
        %v1341 = vunpack.c.l.b16 %v1120
        %v1342 = vunpack.c.h.b16 %v1120
        %v1343 = vunpack.c.l.b16 %v1121
        %v1344 = vunpack.c.h.b16 %v1121
        %v1345 = vunpack.c.l.b16 %v1122
        %v1346 = vunpack.c.h.b16 %v1122
        %v1347 = vpack.c.b16 %v1223, %v1219
        %v1348 = vpack.c.b16 %v1224, %v1220
        %v1349 = vpack.c.b16 %v1225, %v1221
        %v1350 = vpack.c.b16 %v1226, %v1222
        %v1351 = vpack.c.b16 %v1231, %v1227
        %v1352 = vpack.c.b16 %v1232, %v1228
        %v1353 = vpack.c.b16 %v1233, %v1229
        %v1354 = vpack.c.b16 %v1234, %v1230
        %v1355 = vpack.c.b16 %v1239, %v1235
        %v1356 = vpack.c.b16 %v1240, %v1236
        %v1357 = vpack.c.b16 %v1241, %v1237
        %v1358 = vpack.c.b16 %v1242, %v1238
        %v1359 = vpack.c.b16 %v1247, %v1243
        %v1360 = vpack.c.b16 %v1248, %v1244
        %v1361 = vpack.c.b16 %v1249, %v1245
        %v1362 = vpack.c.b16 %v1250, %v1246
        %v1363 = vpack.c.b16 %v1255, %v1251
        %v1364 = vpack.c.b16 %v1256, %v1252
        %v1365 = vpack.c.b16 %v1257, %v1253
        %v1366 = vpack.c.b16 %v1258, %v1254
        %v1367 = vpack.c.b16 %v1263, %v1259
        %v1368 = vpack.c.b16 %v1264, %v1260
        %v1369 = vpack.c.b16 %v1265, %v1261
        %v1370 = vpack.c.b16 %v1266, %v1262
        %v1371 = vpack.c.b16 %v1271, %v1267
        %v1372 = vpack.c.b16 %v1272, %v1268
        %v1373 = vpack.c.b16 %v1273, %v1269
        %v1374 = vpack.c.b16 %v1274, %v1270
        %v1375 = vpack.c.b16 %v1279, %v1275
        %v1376 = vpack.c.b16 %v1280, %v1276
        %v1377 = vpack.c.b16 %v1281, %v1277
        %v1378 = vpack.c.b16 %v1282, %v1278
        %v1379 = vpack.c.b16 %v1287, %v1283
        %v1380 = vpack.c.b16 %v1288, %v1284
        %v1381 = vpack.c.b16 %v1289, %v1285
        %v1382 = vpack.c.b16 %v1290, %v1286
        %v1383 = vpack.c.b16 %v1295, %v1291
        %v1384 = vpack.c.b16 %v1296, %v1292
        %v1385 = vpack.c.b16 %v1297, %v1293
        %v1386 = vpack.c.b16 %v1298, %v1294
        %v1387 = vpack.c.b16 %v1303, %v1299
        %v1388 = vpack.c.b16 %v1304, %v1300
        %v1389 = vpack.c.b16 %v1305, %v1301
        %v1390 = vpack.c.b16 %v1306, %v1302
        %v1391 = vpack.c.b16 %v1311, %v1307
        %v1392 = vpack.c.b16 %v1312, %v1308
        %v1393 = vpack.c.b16 %v1313, %v1309
        %v1394 = vpack.c.b16 %v1314, %v1310
        %v1395 = vpack.c.b16 %v1319, %v1315
        %v1396 = vpack.c.b16 %v1320, %v1316
        %v1397 = vpack.c.b16 %v1321, %v1317
        %v1398 = vpack.c.b16 %v1322, %v1318
        %v1399 = vpack.c.b16 %v1327, %v1323
        %v1400 = vpack.c.b16 %v1328, %v1324
        %v1401 = vpack.c.b16 %v1329, %v1325
        %v1402 = vpack.c.b16 %v1330, %v1326
        %v1403 = vpack.c.b16 %v1335, %v1331
        %v1404 = vpack.c.b16 %v1336, %v1332
        %v1405 = vpack.c.b16 %v1337, %v1333
        %v1406 = vpack.c.b16 %v1338, %v1334
        %v1407 = vpack.c.b16 %v1343, %v1339
        %v1408 = vpack.c.b16 %v1344, %v1340
        %v1409 = vpack.c.b16 %v1345, %v1341
        %v1410 = vpack.c.b16 %v1346, %v1342
        %1475 = vmatprep.subr.bf16.mxu0 %v1348
        %1476 = vmatpush1.bf16.msra.mxu0 %v1347
        %1477 = vmatprep.subr.bf16.mxu0 %v1352
        %1478 = vmatpush1.bf16.msra.mxu0 %v1351
        %1479 = vmatprep.subr.bf16.mxu0 %v1356
        %1480 = vmatpush1.bf16.msra.mxu0 %v1355
        %1481 = vmatprep.subr.bf16.mxu0 %v1360
        %1482 = vmatpush1.bf16.msra.mxu0 %v1359
        %1483 = vmatprep.subr.bf16.mxu0 %v1364
        %1484 = vmatpush1.bf16.msra.mxu0 %v1363
        %1485 = vmatprep.subr.bf16.mxu0 %v1368
        %1486 = vmatpush1.bf16.msra.mxu0 %v1367
        %1487 = vmatprep.subr.bf16.mxu0 %v1372
        %1488 = vmatpush1.bf16.msra.mxu0 %v1371
        %1489 = vmatprep.subr.bf16.mxu0 %v1376
        %1490 = vmatpush1.bf16.msra.mxu0 %v1375
        %1491 = vmatprep.subr.bf16.mxu0 %v1380
        %1492 = vmatpush1.bf16.msra.mxu0 %v1379
        %1493 = vmatprep.subr.bf16.mxu0 %v1384
        %1494 = vmatpush1.bf16.msra.mxu0 %v1383
        %1495 = vmatprep.subr.bf16.mxu0 %v1388
        %1496 = vmatpush1.bf16.msra.mxu0 %v1387
        %1497 = vmatprep.subr.bf16.mxu0 %v1392
        %1498 = vmatpush1.bf16.msra.mxu0 %v1391
        %1499 = vmatprep.subr.bf16.mxu0 %v1396
        %1500 = vmatpush1.bf16.msra.mxu0 %v1395
        %1501 = vmatprep.subr.bf16.mxu0 %v1400
        %1502 = vmatpush1.bf16.msra.mxu0 %v1399
        %1503 = vmatprep.subr.bf16.mxu0 %v1404
        %1504 = vmatpush1.bf16.msra.mxu0 %v1403
        %1505 = vmatprep.subr.bf16.mxu0 %v1408
        %1506 = vmatpush1.bf16.msra.mxu0 %v1407
        %1507 = vmatprep.mubr.bf16.mxu0 %v1152
        %1508 = vmatmul.mubr.bf16.gmra.mrb[0].mxu0 %v1151
        %v1509 = vpop.f32.mrb[0].mxu0
        %v1510 = vadd.f32 %v1128, %v1509
        %v1511 = vpop.f32.mrb[0].mxu0
        %v1512 = vadd.f32 %v1132, %v1511
        %v1513 = vpop.f32.mrb[0].mxu0
        %v1514 = vadd.f32 %v1128, %v1513
        %v1515 = vpop.f32.mrb[0].mxu0
        %v1516 = vadd.f32 %v1132, %v1515
        %1517 = vdwg.mxu0
        %1518 = vmatprep.subr.bf16.mxu0 %v1350
        %1519 = vmatpush1.bf16.msra.mxu0 %v1349
        %1520 = vmatprep.subr.bf16.mxu0 %v1354
        %1521 = vmatpush1.bf16.msra.mxu0 %v1353
        %1522 = vmatprep.subr.bf16.mxu0 %v1358
        %1523 = vmatpush1.bf16.msra.mxu0 %v1357
        %1524 = vmatprep.subr.bf16.mxu0 %v1362
        %1525 = vmatpush1.bf16.msra.mxu0 %v1361
        %1526 = vmatprep.subr.bf16.mxu0 %v1366
        %1527 = vmatpush1.bf16.msra.mxu0 %v1365
        %1528 = vmatprep.subr.bf16.mxu0 %v1370
        %1529 = vmatpush1.bf16.msra.mxu0 %v1369
        %1530 = vmatprep.subr.bf16.mxu0 %v1374
        %1531 = vmatpush1.bf16.msra.mxu0 %v1373
        %1532 = vmatprep.subr.bf16.mxu0 %v1378
        %1533 = vmatpush1.bf16.msra.mxu0 %v1377
        %1534 = vmatprep.subr.bf16.mxu0 %v1382
        %1535 = vmatpush1.bf16.msra.mxu0 %v1381
        %1536 = vmatprep.subr.bf16.mxu0 %v1386
        %1537 = vmatpush1.bf16.msra.mxu0 %v1385
        %1538 = vmatprep.subr.bf16.mxu0 %v1390
        %1539 = vmatpush1.bf16.msra.mxu0 %v1389
        %1540 = vmatprep.subr.bf16.mxu0 %v1394
        %1541 = vmatpush1.bf16.msra.mxu0 %v1393
        %1542 = vmatprep.subr.bf16.mxu0 %v1398
        %1543 = vmatpush1.bf16.msra.mxu0 %v1397
        %1544 = vmatprep.subr.bf16.mxu0 %v1402
        %1545 = vmatpush1.bf16.msra.mxu0 %v1401
        %1546 = vmatprep.subr.bf16.mxu0 %v1406
        %1547 = vmatpush1.bf16.msra.mxu0 %v1405
        %1548 = vmatprep.subr.bf16.mxu0 %v1410
        %1549 = vmatpush1.bf16.msra.mxu0 %v1409
        %1550 = vmatprep.mubr.bf16.mxu0 %v1152
        %1551 = vmatmul.mubr.bf16.gmra.mrb[0].mxu0 %v1151
        %v1552 = vpop.f32.mrb[0].mxu0
        %v1553 = vadd.f32 %v1136, %v1552
        %v1554 = vpop.f32.mrb[0].mxu0
        %v1555 = vadd.f32 %v1140, %v1554
        %v1556 = vpop.f32.mrb[0].mxu0
        %v1557 = vadd.f32 %v1136, %v1556
        %v1558 = vpop.f32.mrb[0].mxu0
        %v1559 = vadd.f32 %v1140, %v1558
        %1560 = vdwg.mxu0
        %v1561 = vpack.c.bf16 %v1514, %v1510
        %v1562 = vpack.c.bf16 %v1516, %v1512
        %v1563 = vpack.c.bf16 %v1557, %v1553
        %v1564 = vpack.c.bf16 %v1559, %v1555
        %v1569 = vunpack.c.l.b16 %v1561
        %v1570 = vunpack.c.l.b16 %v1562
        %v1571 = vunpack.c.l.b16 %v1563
        %v1572 = vunpack.c.l.b16 %v1564
        %v1573 = vunpack.c.h.b16 %v1561
        %v1574 = vunpack.c.h.b16 %v1562
        %v1575 = vunpack.c.h.b16 %v1563
        %v1576 = vunpack.c.h.b16 %v1564
        %v1577 = vpack.c.b16 %v1570, %v1569
        %v1578 = vpack.c.b16 %v1572, %v1571
        %v1579 = vpack.c.b16 %v1574, %v1573
        %v1580 = vpack.c.b16 %v1576, %v1575
        %1585 = vst [vmem:[%s933] sm:$0xff] %v1577
        %1586 = vst [vmem:[%s933 + $0x8] sm:$0xff] %v1578
        %1587 = vst [vmem:[%s933 + $0x10] sm:$0x11] %v1579
        %1588 = vst [vmem:[%s933 + $0x18] sm:$0x11] %v1580
        %s1589 = sand.u32 %s158, 1
        %s1590 = sand.u32 %s158, 1
        %s1591 = smul.addr %s1590, 32
        %s1592 = scalar_lea.vmem [#allocation4], %s1591
        // Predicated region
        $region111: #{dinov2_vit_forward.13} parent=101 // pred_check
          %p1593 = pneg %p168
        $region112: #{dinov2_vit_forward.13} parent=101 // pred_check_branch
          %1595 = sbr.rel (%p1593) target = $region114
        $region113: #{dinov2_vit_forward.13} parent=101 // pred_region
          %s1596 = smul.u32 2, %s20
          %s1597 = smul.u32 4, %s21
          %s1598 = ssub.s32 6, %s1597
          %p1599 = scmp.lt.s32.totalorder %s1598, 4
          %s1600 = scalar_select %p1599, %s1598, 4
          %s1601 = smul.u32 128, %s1600
          %p1602 = scmp.ne.s32.totalorder 0, %s1601
          %s1603 = smul.addr %s1596, 6
          %s1604 = sadd.s32 %s1597, %s1603
          %s1605 = smul.addr %s1604, 4
          %s1606 = scalar_lea.vmem %s5, %s1605
          %s1607 = smul.u32 %s1600, 4
          // Predicated region
          $region115: #{dinov2_vit_forward.13} parent=113 // pred_check
            %p1608 = pneg %p1602
          $region116: #{dinov2_vit_forward.13} parent=113 // pred_check_branch
            %1610 = sbr.rel (%p1608) target = $region118
          $region117: #{dinov2_vit_forward.13} parent=113 // pred_region
            %p1611 = scmp.lt.u32.totalorder %s1607, 8
            %p1612 = pneg %p1611
            // Predicated region
            $region119: #{dinov2_vit_forward.13} parent=117 // pred_check
              _
            $region120: #{dinov2_vit_forward.13} parent=117 // pred_check_branch
              %1614 = sbr.rel (%p1611) target = $region122
            $region121: #{dinov2_vit_forward.13} parent=117 // pred_region
              %s1631 = sand.u32 %s1607, 7
              %p1632 = scmp.eq.s32.totalorder %s1631, 0
              // Predicated region
              $region134: #{dinov2_vit_forward.13} parent=121 // pred_check
                %p1633 = pneg %p1632
              $region135: #{dinov2_vit_forward.13} parent=121 // pred_check_branch
                %1635 = sbr.rel (%p1633) target = $region137
              $region136: #{dinov2_vit_forward.13} parent=121 // pred_region
                %s1636 = sshrl.u32 %s1607, 3
                %s1637 = sshrl.u32 %s1636, 5
                // While loop
                $region138: #{dinov2_vit_forward.13} parent=136 // loop_pre_header
                  _
                $region139: #{dinov2_vit_forward.13} parent=136 // loop_header
                  %s1641 = sphi 0, %s1643
                  %p1642 = scmp.ge.s32.totalorder %s1641, %s1637
                  %s1646 = sphi 0, %s1779
                  %s1647 = sphi %s1592, %s1782
                  %s1648 = sphi %s1606, %s1783
                $region140: #{dinov2_vit_forward.13} parent=136 // loop_header_branch
                  %1645 = sbr.rel (%p1642) target = $region144
                $region141: #{dinov2_vit_forward.13} parent=136 // loop_body
                  %v1649 = vld [vmem:[%s1647] sm:$0xff]
                  %1650 = vst [vmem:[%s1648] sm:$0xff] %v1649
                  %v1651 = vld [vmem:[%s1647 + $0x8] sm:$0xff]
                  %1652 = vst [vmem:[%s1648 + $0x8] sm:$0xff] %v1651
                  %v1653 = vld [vmem:[%s1647 + $0x10] sm:$0xff]
                  %1654 = vst [vmem:[%s1648 + $0x10] sm:$0xff] %v1653
                  %v1655 = vld [vmem:[%s1647 + $0x18] sm:$0xff]
                  %1656 = vst [vmem:[%s1648 + $0x18] sm:$0xff] %v1655
                  %v1657 = vld [vmem:[%s1647 + $0x20] sm:$0xff]
                  %1658 = vst [vmem:[%s1648 + $0x20] sm:$0xff] %v1657
                  %v1659 = vld [vmem:[%s1647 + $0x28] sm:$0xff]
                  %1660 = vst [vmem:[%s1648 + $0x28] sm:$0xff] %v1659
                  %v1661 = vld [vmem:[%s1647 + $0x30] sm:$0xff]
                  %1662 = vst [vmem:[%s1648 + $0x30] sm:$0xff] %v1661
                  %v1663 = vld [vmem:[%s1647 + $0x38] sm:$0xff]
                  %1664 = vst [vmem:[%s1648 + $0x38] sm:$0xff] %v1663
                  %v1665 = vld [vmem:[%s1647 + $0x40] sm:$0xff]
                  %1666 = vst [vmem:[%s1648 + $0x40] sm:$0xff] %v1665
                  %v1667 = vld [vmem:[%s1647 + $0x48] sm:$0xff]
                  %1668 = vst [vmem:[%s1648 + $0x48] sm:$0xff] %v1667
                  %v1669 = vld [vmem:[%s1647 + $0x50] sm:$0xff]
                  %1670 = vst [vmem:[%s1648 + $0x50] sm:$0xff] %v1669
                  %v1671 = vld [vmem:[%s1647 + $0x58] sm:$0xff]
                  %1672 = vst [vmem:[%s1648 + $0x58] sm:$0xff] %v1671
                  %v1673 = vld [vmem:[%s1647 + $0x60] sm:$0xff]
                  %1674 = vst [vmem:[%s1648 + $0x60] sm:$0xff] %v1673
                  %v1675 = vld [vmem:[%s1647 + $0x68] sm:$0xff]
                  %1676 = vst [vmem:[%s1648 + $0x68] sm:$0xff] %v1675
                  %v1677 = vld [vmem:[%s1647 + $0x70] sm:$0xff]
                  %1678 = vst [vmem:[%s1648 + $0x70] sm:$0xff] %v1677
                  %v1679 = vld [vmem:[%s1647 + $0x78] sm:$0xff]
                  %1680 = vst [vmem:[%s1648 + $0x78] sm:$0xff] %v1679
                  %v1681 = vld [vmem:[%s1647 + $0x80] sm:$0xff]
                  %1682 = vst [vmem:[%s1648 + $0x80] sm:$0xff] %v1681
                  %v1683 = vld [vmem:[%s1647 + $0x88] sm:$0xff]
                  %1684 = vst [vmem:[%s1648 + $0x88] sm:$0xff] %v1683
                  %v1685 = vld [vmem:[%s1647 + $0x90] sm:$0xff]
                  %1686 = vst [vmem:[%s1648 + $0x90] sm:$0xff] %v1685
                  %v1687 = vld [vmem:[%s1647 + $0x98] sm:$0xff]
                  %1688 = vst [vmem:[%s1648 + $0x98] sm:$0xff] %v1687
                  %v1689 = vld [vmem:[%s1647 + $0xa0] sm:$0xff]
                  %1690 = vst [vmem:[%s1648 + $0xa0] sm:$0xff] %v1689
                  %v1691 = vld [vmem:[%s1647 + $0xa8] sm:$0xff]
                  %1692 = vst [vmem:[%s1648 + $0xa8] sm:$0xff] %v1691
                  %v1693 = vld [vmem:[%s1647 + $0xb0] sm:$0xff]
                  %1694 = vst [vmem:[%s1648 + $0xb0] sm:$0xff] %v1693
                  %v1695 = vld [vmem:[%s1647 + $0xb8] sm:$0xff]
                  %1696 = vst [vmem:[%s1648 + $0xb8] sm:$0xff] %v1695
                  %v1697 = vld [vmem:[%s1647 + $0xc0] sm:$0xff]
                  %1698 = vst [vmem:[%s1648 + $0xc0] sm:$0xff] %v1697
                  %v1699 = vld [vmem:[%s1647 + $0xc8] sm:$0xff]
                  %1700 = vst [vmem:[%s1648 + $0xc8] sm:$0xff] %v1699
                  %v1701 = vld [vmem:[%s1647 + $0xd0] sm:$0xff]
                  %1702 = vst [vmem:[%s1648 + $0xd0] sm:$0xff] %v1701
                  %v1703 = vld [vmem:[%s1647 + $0xd8] sm:$0xff]
                  %1704 = vst [vmem:[%s1648 + $0xd8] sm:$0xff] %v1703
                  %v1705 = vld [vmem:[%s1647 + $0xe0] sm:$0xff]
                  %1706 = vst [vmem:[%s1648 + $0xe0] sm:$0xff] %v1705
                  %v1707 = vld [vmem:[%s1647 + $0xe8] sm:$0xff]
                  %1708 = vst [vmem:[%s1648 + $0xe8] sm:$0xff] %v1707
                  %v1709 = vld [vmem:[%s1647 + $0xf0] sm:$0xff]
                  %1710 = vst [vmem:[%s1648 + $0xf0] sm:$0xff] %v1709
                  %v1711 = vld [vmem:[%s1647 + $0xf8] sm:$0xff]
                  %1712 = vst [vmem:[%s1648 + $0xf8] sm:$0xff] %v1711
                  %v1713 = vld [vmem:[%s1647 + $0x10] sm:$0xff]
                  %1714 = vst [vmem:[%s1648 + $0x18] sm:$0xff] %v1713
                  %v1715 = vld [vmem:[%s1647 + $0x18] sm:$0xff]
                  %1716 = vst [vmem:[%s1648 + $0x20] sm:$0xff] %v1715
                  %v1717 = vld [vmem:[%s1647 + $0x20] sm:$0xff]
                  %1718 = vst [vmem:[%s1648 + $0x28] sm:$0xff] %v1717
                  %v1719 = vld [vmem:[%s1647 + $0x28] sm:$0xff]
                  %1720 = vst [vmem:[%s1648 + $0x30] sm:$0xff] %v1719
                  %v1721 = vld [vmem:[%s1647 + $0x30] sm:$0xff]
                  %1722 = vst [vmem:[%s1648 + $0x38] sm:$0xff] %v1721
                  %v1723 = vld [vmem:[%s1647 + $0x38] sm:$0xff]
                  %1724 = vst [vmem:[%s1648 + $0x40] sm:$0xff] %v1723
                  %v1725 = vld [vmem:[%s1647 + $0x40] sm:$0xff]
                  %1726 = vst [vmem:[%s1648 + $0x48] sm:$0xff] %v1725
                  %v1727 = vld [vmem:[%s1647 + $0x48] sm:$0xff]
                  %1728 = vst [vmem:[%s1648 + $0x50] sm:$0xff] %v1727
                  %v1729 = vld [vmem:[%s1647 + $0x50] sm:$0xff]
                  %1730 = vst [vmem:[%s1648 + $0x58] sm:$0xff] %v1729
                  %v1731 = vld [vmem:[%s1647 + $0x58] sm:$0xff]
                  %1732 = vst [vmem:[%s1648 + $0x60] sm:$0xff] %v1731
                  %v1733 = vld [vmem:[%s1647 + $0x60] sm:$0xff]
                  %1734 = vst [vmem:[%s1648 + $0x68] sm:$0xff] %v1733
                  %v1735 = vld [vmem:[%s1647 + $0x68] sm:$0xff]
                  %1736 = vst [vmem:[%s1648 + $0x70] sm:$0xff] %v1735
                  %v1737 = vld [vmem:[%s1647 + $0x70] sm:$0xff]
                  %1738 = vst [vmem:[%s1648 + $0x78] sm:$0xff] %v1737
                  %v1739 = vld [vmem:[%s1647 + $0x78] sm:$0xff]
                  %1740 = vst [vmem:[%s1648 + $0x80] sm:$0xff] %v1739
                  %v1741 = vld [vmem:[%s1647 + $0x80] sm:$0xff]
                  %1742 = vst [vmem:[%s1648 + $0x88] sm:$0xff] %v1741
                  %v1743 = vld [vmem:[%s1647 + $0x88] sm:$0xff]
                  %1744 = vst [vmem:[%s1648 + $0x90] sm:$0xff] %v1743
                  %v1745 = vld [vmem:[%s1647 + $0x90] sm:$0xff]
                  %1746 = vst [vmem:[%s1648 + $0x98] sm:$0xff] %v1745
                  %v1747 = vld [vmem:[%s1647 + $0x98] sm:$0xff]
                  %1748 = vst [vmem:[%s1648 + $0xa0] sm:$0xff] %v1747
                  %v1749 = vld [vmem:[%s1647 + $0xa0] sm:$0xff]
                  %1750 = vst [vmem:[%s1648 + $0xa8] sm:$0xff] %v1749
                  %v1751 = vld [vmem:[%s1647 + $0xa8] sm:$0xff]
                  %1752 = vst [vmem:[%s1648 + $0xb0] sm:$0xff] %v1751
                  %v1753 = vld [vmem:[%s1647 + $0xb0] sm:$0xff]
                  %1754 = vst [vmem:[%s1648 + $0xb8] sm:$0xff] %v1753
                  %v1755 = vld [vmem:[%s1647 + $0xb8] sm:$0xff]
                  %1756 = vst [vmem:[%s1648 + $0xc0] sm:$0xff] %v1755
                  %v1757 = vld [vmem:[%s1647 + $0xc0] sm:$0xff]
                  %1758 = vst [vmem:[%s1648 + $0xc8] sm:$0xff] %v1757
                  %v1759 = vld [vmem:[%s1647 + $0xc8] sm:$0xff]
                  %1760 = vst [vmem:[%s1648 + $0xd0] sm:$0xff] %v1759
                  %v1761 = vld [vmem:[%s1647 + $0xd0] sm:$0xff]
                  %1762 = vst [vmem:[%s1648 + $0xd8] sm:$0xff] %v1761
                  %v1763 = vld [vmem:[%s1647 + $0xd8] sm:$0xff]
                  %1764 = vst [vmem:[%s1648 + $0xe0] sm:$0xff] %v1763
                  %v1765 = vld [vmem:[%s1647 + $0xe0] sm:$0xff]
                  %1766 = vst [vmem:[%s1648 + $0xe8] sm:$0xff] %v1765
                  %v1767 = vld [vmem:[%s1647 + $0xe8] sm:$0xff]
                  %1768 = vst [vmem:[%s1648 + $0xf0] sm:$0xff] %v1767
                  %v1769 = vld [vmem:[%s1647 + $0xf0] sm:$0xff]
                  %1770 = vst [vmem:[%s1648 + $0xf8] sm:$0xff] %v1769
                  %v1771 = vld [vmem:[%s1647 + $0xf8] sm:$0xff]
                  %1772 = vst [vmem:[%s1648 + $0x100] sm:$0xff] %v1771
                  %v1773 = vld [vmem:[%s1647 + $0x100] sm:$0xff]
                  %1774 = vst [vmem:[%s1648 + $0x108] sm:$0xff] %v1773
                  %v1775 = vld [vmem:[%s1647 + $0x108] sm:$0xff]
                  %1776 = vst [vmem:[%s1648 + $0x110] sm:$0xff] %v1775
                  %s1777 = sadd.s32 1, %s1646
                  %p1778 = scmp.ge.s32.totalorder %s1777, %s1637
                  %s1779 = scalar_select %p1778, 0, %s1777
                  %s1780 = smul.u32 %s1779, 256
                  %s1781 = smul.u32 %s1779, 256
                  %s1782 = scalar_lea.vmem %s1592, %s1780 [#allocation4]
                  %s1783 = scalar_lea.vmem %s1606, %s1781
                $region142: #{dinov2_vit_forward.13} parent=136 // loop_footer
                  %s1643 = sadd.s32 %s1641, 1
                $region143: #{dinov2_vit_forward.13} parent=136 // loop_footer_branch
                  %1640 = sbr.rel target = $region139
                $region144: #{dinov2_vit_forward.13} parent=136 // loop_exit
                  _
                %s1784 = sshrl.u32 %s1636, 5
                %s1785 = sand.u32 %s1636, 31
                %s1786 = smul.u32 %s1784, 32
                %s1787 = smul.u32 128, %s1786
                %s1788 = sshra.s32 %s1787, 4
                %s1789 = scalar_lea.vmem %s1592, %s1788 [#allocation4]
                %s1790 = smul.u32 128, %s1786
                %s1791 = sshra.s32 %s1790, 4
                %s1792 = scalar_lea.vmem %s1606, %s1791
                // While loop
                $region145: #{dinov2_vit_forward.13} parent=136 // loop_pre_header
                  _
                $region146: #{dinov2_vit_forward.13} parent=136 // loop_header
                  %s1796 = sphi 0, %s1798
                  %p1797 = scmp.ge.s32.totalorder %s1796, %s1785
                  %s1801 = sphi 0, %s1810
                  %s1802 = sphi %s1789, %s1813
                  %s1803 = sphi %s1792, %s1814
                $region147: #{dinov2_vit_forward.13} parent=136 // loop_header_branch
                  %1800 = sbr.rel (%p1797) target = $region151
                $region148: #{dinov2_vit_forward.13} parent=136 // loop_body
                  %v1804 = vld [vmem:[%s1802] sm:$0xff]
                  %1805 = vst [vmem:[%s1803] sm:$0xff] %v1804
                  %v1806 = vld [vmem:[%s1802 + $0x10] sm:$0xff]
                  %1807 = vst [vmem:[%s1803 + $0x18] sm:$0xff] %v1806
                  %s1808 = sadd.s32 1, %s1801
                  %p1809 = scmp.ge.s32.totalorder %s1808, %s1785
                  %s1810 = scalar_select %p1809, 0, %s1808
                  %s1811 = smul.u32 %s1810, 8
                  %s1812 = smul.u32 %s1810, 8
                  %s1813 = scalar_lea.vmem %s1789, %s1811 [#allocation4]
                  %s1814 = scalar_lea.vmem %s1792, %s1812
                $region149: #{dinov2_vit_forward.13} parent=136 // loop_footer
                  %s1798 = sadd.s32 %s1796, 1
                $region150: #{dinov2_vit_forward.13} parent=136 // loop_footer_branch
                  %1795 = sbr.rel target = $region146
                $region151: #{dinov2_vit_forward.13} parent=136 // loop_exit
                  _
              $region137: #{dinov2_vit_forward.13} parent=121 // pred_fallthru
                _
              %p1815 = pneg %p1632
              // Predicated region
              $region152: #{dinov2_vit_forward.13} parent=121 // pred_check
                _
              $region153: #{dinov2_vit_forward.13} parent=121 // pred_check_branch
                %1817 = sbr.rel (%p1632) target = $region155
              $region154: #{dinov2_vit_forward.13} parent=121 // pred_region
                %s1818 = sand.u32 %s1607, 7
                %s1819 = ssub.s32 %s1607, %s1818
                %s1820 = scalar_lea.vmem %s1592, %s1819 [#allocation4]
                %s1821 = ssub.s32 %s1607, %s1818
                %s1822 = scalar_lea.vmem %s1606, %s1821
                %s1823 = sshrl.u32 %s1607, 3
                %s1824 = sshrl.u32 %s1823, 5
                // While loop
                $region156: #{dinov2_vit_forward.13} parent=154 // loop_pre_header
                  _
                $region157: #{dinov2_vit_forward.13} parent=154 // loop_header
                  %s1828 = sphi 0, %s1830
                  %p1829 = scmp.ge.s32.totalorder %s1828, %s1824
                  %s1833 = sphi 0, %s1966
                  %s1834 = sphi %s1592, %s1969
                  %s1835 = sphi %s1606, %s1970
                $region158: #{dinov2_vit_forward.13} parent=154 // loop_header_branch
                  %1832 = sbr.rel (%p1829) target = $region162
                $region159: #{dinov2_vit_forward.13} parent=154 // loop_body
                  %v1836 = vld [vmem:[%s1834] sm:$0xff]
                  %1837 = vst [vmem:[%s1835] sm:$0xff] %v1836
                  %v1838 = vld [vmem:[%s1834 + $0x8] sm:$0xff]
                  %1839 = vst [vmem:[%s1835 + $0x8] sm:$0xff] %v1838
                  %v1840 = vld [vmem:[%s1834 + $0x10] sm:$0xff]
                  %1841 = vst [vmem:[%s1835 + $0x10] sm:$0xff] %v1840
                  %v1842 = vld [vmem:[%s1834 + $0x18] sm:$0xff]
                  %1843 = vst [vmem:[%s1835 + $0x18] sm:$0xff] %v1842
                  %v1844 = vld [vmem:[%s1834 + $0x20] sm:$0xff]
                  %1845 = vst [vmem:[%s1835 + $0x20] sm:$0xff] %v1844
                  %v1846 = vld [vmem:[%s1834 + $0x28] sm:$0xff]
                  %1847 = vst [vmem:[%s1835 + $0x28] sm:$0xff] %v1846
                  %v1848 = vld [vmem:[%s1834 + $0x30] sm:$0xff]
                  %1849 = vst [vmem:[%s1835 + $0x30] sm:$0xff] %v1848
                  %v1850 = vld [vmem:[%s1834 + $0x38] sm:$0xff]
                  %1851 = vst [vmem:[%s1835 + $0x38] sm:$0xff] %v1850
                  %v1852 = vld [vmem:[%s1834 + $0x40] sm:$0xff]
                  %1853 = vst [vmem:[%s1835 + $0x40] sm:$0xff] %v1852
                  %v1854 = vld [vmem:[%s1834 + $0x48] sm:$0xff]
                  %1855 = vst [vmem:[%s1835 + $0x48] sm:$0xff] %v1854
                  %v1856 = vld [vmem:[%s1834 + $0x50] sm:$0xff]
                  %1857 = vst [vmem:[%s1835 + $0x50] sm:$0xff] %v1856
                  %v1858 = vld [vmem:[%s1834 + $0x58] sm:$0xff]
                  %1859 = vst [vmem:[%s1835 + $0x58] sm:$0xff] %v1858
                  %v1860 = vld [vmem:[%s1834 + $0x60] sm:$0xff]
                  %1861 = vst [vmem:[%s1835 + $0x60] sm:$0xff] %v1860
                  %v1862 = vld [vmem:[%s1834 + $0x68] sm:$0xff]
                  %1863 = vst [vmem:[%s1835 + $0x68] sm:$0xff] %v1862
                  %v1864 = vld [vmem:[%s1834 + $0x70] sm:$0xff]
                  %1865 = vst [vmem:[%s1835 + $0x70] sm:$0xff] %v1864
                  %v1866 = vld [vmem:[%s1834 + $0x78] sm:$0xff]
                  %1867 = vst [vmem:[%s1835 + $0x78] sm:$0xff] %v1866
                  %v1868 = vld [vmem:[%s1834 + $0x80] sm:$0xff]
                  %1869 = vst [vmem:[%s1835 + $0x80] sm:$0xff] %v1868
                  %v1870 = vld [vmem:[%s1834 + $0x88] sm:$0xff]
                  %1871 = vst [vmem:[%s1835 + $0x88] sm:$0xff] %v1870
                  %v1872 = vld [vmem:[%s1834 + $0x90] sm:$0xff]
                  %1873 = vst [vmem:[%s1835 + $0x90] sm:$0xff] %v1872
                  %v1874 = vld [vmem:[%s1834 + $0x98] sm:$0xff]
                  %1875 = vst [vmem:[%s1835 + $0x98] sm:$0xff] %v1874
                  %v1876 = vld [vmem:[%s1834 + $0xa0] sm:$0xff]
                  %1877 = vst [vmem:[%s1835 + $0xa0] sm:$0xff] %v1876
                  %v1878 = vld [vmem:[%s1834 + $0xa8] sm:$0xff]
                  %1879 = vst [vmem:[%s1835 + $0xa8] sm:$0xff] %v1878
                  %v1880 = vld [vmem:[%s1834 + $0xb0] sm:$0xff]
                  %1881 = vst [vmem:[%s1835 + $0xb0] sm:$0xff] %v1880
                  %v1882 = vld [vmem:[%s1834 + $0xb8] sm:$0xff]
                  %1883 = vst [vmem:[%s1835 + $0xb8] sm:$0xff] %v1882
                  %v1884 = vld [vmem:[%s1834 + $0xc0] sm:$0xff]
                  %1885 = vst [vmem:[%s1835 + $0xc0] sm:$0xff] %v1884
                  %v1886 = vld [vmem:[%s1834 + $0xc8] sm:$0xff]
                  %1887 = vst [vmem:[%s1835 + $0xc8] sm:$0xff] %v1886
                  %v1888 = vld [vmem:[%s1834 + $0xd0] sm:$0xff]
                  %1889 = vst [vmem:[%s1835 + $0xd0] sm:$0xff] %v1888
                  %v1890 = vld [vmem:[%s1834 + $0xd8] sm:$0xff]
                  %1891 = vst [vmem:[%s1835 + $0xd8] sm:$0xff] %v1890
                  %v1892 = vld [vmem:[%s1834 + $0xe0] sm:$0xff]
                  %1893 = vst [vmem:[%s1835 + $0xe0] sm:$0xff] %v1892
                  %v1894 = vld [vmem:[%s1834 + $0xe8] sm:$0xff]
                  %1895 = vst [vmem:[%s1835 + $0xe8] sm:$0xff] %v1894
                  %v1896 = vld [vmem:[%s1834 + $0xf0] sm:$0xff]
                  %1897 = vst [vmem:[%s1835 + $0xf0] sm:$0xff] %v1896
                  %v1898 = vld [vmem:[%s1834 + $0xf8] sm:$0xff]
                  %1899 = vst [vmem:[%s1835 + $0xf8] sm:$0xff] %v1898
                  %v1900 = vld [vmem:[%s1834 + $0x10] sm:$0xff]
                  %1901 = vst [vmem:[%s1835 + $0x18] sm:$0xff] %v1900
                  %v1902 = vld [vmem:[%s1834 + $0x18] sm:$0xff]
                  %1903 = vst [vmem:[%s1835 + $0x20] sm:$0xff] %v1902
                  %v1904 = vld [vmem:[%s1834 + $0x20] sm:$0xff]
                  %1905 = vst [vmem:[%s1835 + $0x28] sm:$0xff] %v1904
                  %v1906 = vld [vmem:[%s1834 + $0x28] sm:$0xff]
                  %1907 = vst [vmem:[%s1835 + $0x30] sm:$0xff] %v1906
                  %v1908 = vld [vmem:[%s1834 + $0x30] sm:$0xff]
                  %1909 = vst [vmem:[%s1835 + $0x38] sm:$0xff] %v1908
                  %v1910 = vld [vmem:[%s1834 + $0x38] sm:$0xff]
                  %1911 = vst [vmem:[%s1835 + $0x40] sm:$0xff] %v1910
                  %v1912 = vld [vmem:[%s1834 + $0x40] sm:$0xff]
                  %1913 = vst [vmem:[%s1835 + $0x48] sm:$0xff] %v1912
                  %v1914 = vld [vmem:[%s1834 + $0x48] sm:$0xff]
                  %1915 = vst [vmem:[%s1835 + $0x50] sm:$0xff] %v1914
                  %v1916 = vld [vmem:[%s1834 + $0x50] sm:$0xff]
                  %1917 = vst [vmem:[%s1835 + $0x58] sm:$0xff] %v1916
                  %v1918 = vld [vmem:[%s1834 + $0x58] sm:$0xff]
                  %1919 = vst [vmem:[%s1835 + $0x60] sm:$0xff] %v1918
                  %v1920 = vld [vmem:[%s1834 + $0x60] sm:$0xff]
                  %1921 = vst [vmem:[%s1835 + $0x68] sm:$0xff] %v1920
                  %v1922 = vld [vmem:[%s1834 + $0x68] sm:$0xff]
                  %1923 = vst [vmem:[%s1835 + $0x70] sm:$0xff] %v1922
                  %v1924 = vld [vmem:[%s1834 + $0x70] sm:$0xff]
                  %1925 = vst [vmem:[%s1835 + $0x78] sm:$0xff] %v1924
                  %v1926 = vld [vmem:[%s1834 + $0x78] sm:$0xff]
                  %1927 = vst [vmem:[%s1835 + $0x80] sm:$0xff] %v1926
                  %v1928 = vld [vmem:[%s1834 + $0x80] sm:$0xff]
                  %1929 = vst [vmem:[%s1835 + $0x88] sm:$0xff] %v1928
                  %v1930 = vld [vmem:[%s1834 + $0x88] sm:$0xff]
                  %1931 = vst [vmem:[%s1835 + $0x90] sm:$0xff] %v1930
                  %v1932 = vld [vmem:[%s1834 + $0x90] sm:$0xff]
                  %1933 = vst [vmem:[%s1835 + $0x98] sm:$0xff] %v1932
                  %v1934 = vld [vmem:[%s1834 + $0x98] sm:$0xff]
                  %1935 = vst [vmem:[%s1835 + $0xa0] sm:$0xff] %v1934
                  %v1936 = vld [vmem:[%s1834 + $0xa0] sm:$0xff]
                  %1937 = vst [vmem:[%s1835 + $0xa8] sm:$0xff] %v1936
                  %v1938 = vld [vmem:[%s1834 + $0xa8] sm:$0xff]
                  %1939 = vst [vmem:[%s1835 + $0xb0] sm:$0xff] %v1938
                  %v1940 = vld [vmem:[%s1834 + $0xb0] sm:$0xff]
                  %1941 = vst [vmem:[%s1835 + $0xb8] sm:$0xff] %v1940
                  %v1942 = vld [vmem:[%s1834 + $0xb8] sm:$0xff]
                  %1943 = vst [vmem:[%s1835 + $0xc0] sm:$0xff] %v1942
                  %v1944 = vld [vmem:[%s1834 + $0xc0] sm:$0xff]
                  %1945 = vst [vmem:[%s1835 + $0xc8] sm:$0xff] %v1944
                  %v1946 = vld [vmem:[%s1834 + $0xc8] sm:$0xff]
                  %1947 = vst [vmem:[%s1835 + $0xd0] sm:$0xff] %v1946
                  %v1948 = vld [vmem:[%s1834 + $0xd0] sm:$0xff]
                  %1949 = vst [vmem:[%s1835 + $0xd8] sm:$0xff] %v1948
                  %v1950 = vld [vmem:[%s1834 + $0xd8] sm:$0xff]
                  %1951 = vst [vmem:[%s1835 + $0xe0] sm:$0xff] %v1950
                  %v1952 = vld [vmem:[%s1834 + $0xe0] sm:$0xff]
                  %1953 = vst [vmem:[%s1835 + $0xe8] sm:$0xff] %v1952
                  %v1954 = vld [vmem:[%s1834 + $0xe8] sm:$0xff]
                  %1955 = vst [vmem:[%s1835 + $0xf0] sm:$0xff] %v1954
                  %v1956 = vld [vmem:[%s1834 + $0xf0] sm:$0xff]
                  %1957 = vst [vmem:[%s1835 + $0xf8] sm:$0xff] %v1956
                  %v1958 = vld [vmem:[%s1834 + $0xf8] sm:$0xff]
                  %1959 = vst [vmem:[%s1835 + $0x100] sm:$0xff] %v1958
                  %v1960 = vld [vmem:[%s1834 + $0x100] sm:$0xff]
                  %1961 = vst [vmem:[%s1835 + $0x108] sm:$0xff] %v1960
                  %v1962 = vld [vmem:[%s1834 + $0x108] sm:$0xff]
                  %1963 = vst [vmem:[%s1835 + $0x110] sm:$0xff] %v1962
                  %s1964 = sadd.s32 1, %s1833
                  %p1965 = scmp.ge.s32.totalorder %s1964, %s1824
                  %s1966 = scalar_select %p1965, 0, %s1964
                  %s1967 = smul.u32 %s1966, 256
                  %s1968 = smul.u32 %s1966, 256
                  %s1969 = scalar_lea.vmem %s1592, %s1967 [#allocation4]
                  %s1970 = scalar_lea.vmem %s1606, %s1968
                $region160: #{dinov2_vit_forward.13} parent=154 // loop_footer
                  %s1830 = sadd.s32 %s1828, 1
                $region161: #{dinov2_vit_forward.13} parent=154 // loop_footer_branch
                  %1827 = sbr.rel target = $region157
                $region162: #{dinov2_vit_forward.13} parent=154 // loop_exit
                  _
                %s1971 = sshrl.u32 %s1823, 5
                %s1972 = sand.u32 %s1823, 31
                %s1973 = smul.u32 %s1971, 32
                %s1974 = smul.u32 128, %s1973
                %s1975 = sshra.s32 %s1974, 4
                %s1976 = scalar_lea.vmem %s1592, %s1975 [#allocation4]
                %s1977 = smul.u32 128, %s1973
                %s1978 = sshra.s32 %s1977, 4
                %s1979 = scalar_lea.vmem %s1606, %s1978
                // While loop
                $region163: #{dinov2_vit_forward.13} parent=154 // loop_pre_header
                  _
                $region164: #{dinov2_vit_forward.13} parent=154 // loop_header
                  %s1983 = sphi 0, %s1985
                  %p1984 = scmp.ge.s32.totalorder %s1983, %s1972
                  %s1988 = sphi 0, %s1997
                  %s1989 = sphi %s1976, %s2000
                  %s1990 = sphi %s1979, %s2001
                $region165: #{dinov2_vit_forward.13} parent=154 // loop_header_branch
                  %1987 = sbr.rel (%p1984) target = $region169
                $region166: #{dinov2_vit_forward.13} parent=154 // loop_body
                  %v1991 = vld [vmem:[%s1989] sm:$0xff]
                  %1992 = vst [vmem:[%s1990] sm:$0xff] %v1991
                  %v1993 = vld [vmem:[%s1989 + $0x10] sm:$0xff]
                  %1994 = vst [vmem:[%s1990 + $0x18] sm:$0xff] %v1993
                  %s1995 = sadd.s32 1, %s1988
                  %p1996 = scmp.ge.s32.totalorder %s1995, %s1972
                  %s1997 = scalar_select %p1996, 0, %s1995
                  %s1998 = smul.u32 %s1997, 8
                  %s1999 = smul.u32 %s1997, 8
                  %s2000 = scalar_lea.vmem %s1976, %s1998 [#allocation4]
                  %s2001 = scalar_lea.vmem %s1979, %s1999
                $region167: #{dinov2_vit_forward.13} parent=154 // loop_footer
                  %s1985 = sadd.s32 %s1983, 1
                $region168: #{dinov2_vit_forward.13} parent=154 // loop_footer_branch
                  %1982 = sbr.rel target = $region164
                $region169: #{dinov2_vit_forward.13} parent=154 // loop_exit
                  _
                %s2002 = sshllo.u32 0, %s1818
                loop: start=0, step=1, limit=1
                $region170: #{dinov2_vit_forward.13} parent=154 // loop_pre_header
                  _
                $region171: #{dinov2_vit_forward.13} parent=154 // loop_header
                  %s2004 = sphi 0, %s2008
                  %p2005 = scmp.ge.s32.totalorder %s2004, 1
                  %s2009 = sphi %s1820, %s1820
                  %s2010 = sphi %s1822, %s1822
                $region172: #{dinov2_vit_forward.13} parent=154 // loop_header_branch
                  %2007 = sbr.rel (%p2005) target = $region176
                $region173: #{dinov2_vit_forward.13} parent=154 // loop_body
                  %v2011 = vld [vmem:[%s2009] sm:%s2002]
                  %2012 = vst [vmem:[%s2010] sm:%s2002] %v2011
                  %v2013 = vld [vmem:[%s2009 + $0x10] sm:%s2002]
                  %2014 = vst [vmem:[%s2010 + $0x18] sm:%s2002] %v2013
                $region174: #{dinov2_vit_forward.13} parent=154 // loop_footer
                  %s2008 = sadd.s32 1, %s2004
                $region175: #{dinov2_vit_forward.13} parent=154 // loop_footer_branch
                  %2003 = sbr.rel target = $region171
                $region176: #{dinov2_vit_forward.13} parent=154 // loop_exit
                  _
              $region155: #{dinov2_vit_forward.13} parent=121 // pred_fallthru
                _
            $region122: #{dinov2_vit_forward.13} parent=117 // pred_fallthru
              _
            // Predicated region
            $region123: #{dinov2_vit_forward.13} parent=117 // pred_check
              %p1615 = pneg %p1611
            $region124: #{dinov2_vit_forward.13} parent=117 // pred_check_branch
              %1617 = sbr.rel (%p1615) target = $region126
            $region125: #{dinov2_vit_forward.13} parent=117 // pred_region
              %s1618 = sshllo.u32 0, %s1607
              loop: start=0, step=1, limit=1
              $region127: #{dinov2_vit_forward.13} parent=125 // loop_pre_header
                _
              $region128: #{dinov2_vit_forward.13} parent=125 // loop_header
                %s1620 = sphi 0, %s1624
                %p1621 = scmp.ge.s32.totalorder %s1620, 1
                %s1625 = sphi %s1592, %s1592
                %s1626 = sphi %s1606, %s1606
              $region129: #{dinov2_vit_forward.13} parent=125 // loop_header_branch
                %1623 = sbr.rel (%p1621) target = $region133
              $region130: #{dinov2_vit_forward.13} parent=125 // loop_body
                %v1627 = vld [vmem:[%s1625] sm:%s1618]
                %1628 = vst [vmem:[%s1626] sm:%s1618] %v1627
                %v1629 = vld [vmem:[%s1625 + $0x10] sm:%s1618]
                %1630 = vst [vmem:[%s1626 + $0x18] sm:%s1618] %v1629
              $region131: #{dinov2_vit_forward.13} parent=125 // loop_footer
                %s1624 = sadd.s32 1, %s1620
              $region132: #{dinov2_vit_forward.13} parent=125 // loop_footer_branch
                %1619 = sbr.rel target = $region128
              $region133: #{dinov2_vit_forward.13} parent=125 // loop_exit
                _
            $region126: #{dinov2_vit_forward.13} parent=117 // pred_fallthru
              _
          $region118: #{dinov2_vit_forward.13} parent=113 // pred_fallthru
            _
          %2015 = vnop
        $region114: #{dinov2_vit_forward.13} parent=101 // pred_fallthru
          _
      $region102: #{dinov2_vit_forward.13} parent=5 // pred_fallthru
        _
      %p2016 = scmp.le.s32.totalorder 2, %s11
      // Predicated region
      $region177: #{dinov2_vit_forward.13} parent=5 // pred_check
        %p2017 = pneg %p2016
      $region178: #{dinov2_vit_forward.13} parent=5 // pred_check_branch
        %2019 = sbr.rel (%p2017) target = $region180
      $region179: #{dinov2_vit_forward.13} parent=5 // pred_region
        %s2020 = ssub.s32 %s11, 2
        // Predicated region
        $region181: #{dinov2_vit_forward.13} parent=179 // pred_check
          %p2021 = pneg %p174
        $region182: #{dinov2_vit_forward.13} parent=179 // pred_check_branch
          %2023 = sbr.rel (%p2021) target = $region184
        $region183: #{dinov2_vit_forward.13} parent=179 // pred_region
          %s2024 = sand.u32 %s159, 1
          %s2025 = sand.u32 %s159, 1
          %s2026 = smul.addr %s2025, 32
          %s2027 = scalar_lea.vmem [#allocation4], %s2026
        $region184: #{dinov2_vit_forward.13} parent=179 // pred_fallthru
          _
      $region180: #{dinov2_vit_forward.13} parent=5 // pred_fallthru
        _
    $region6: #{dinov2_vit_forward.13} parent=1 // loop_footer
      %s15 = sadd.s32 1, %s11
    $region7: #{dinov2_vit_forward.13} parent=1 // loop_footer_branch
      %10 = sbr.rel target = $region3
    $region8: #{dinov2_vit_forward.13} parent=1 // loop_exit
      _

// kernel: dinov2_vit_forward.15
$region0: #{dinov2_vit_forward.15}
  #allocation0 [shape = 'u32[]', space=smem, size = 0x4, offset = 0x4, fixed_abs, tag = 'smem constant byte address 0x4 - core index']
  #allocation1 [shape = 'u32[144,128]{1,0:T(1,128)}', space=vmem, size = 0x12000, scoped, tag = 'internal scratch']
  #allocation2 [shape = 'f32[10,256]{1,0:T(8,128)}', space=vmem, size = 0x4000, scoped, tag = 'scratch operand']
  %s0 = inlined_call_operand.vmem [shape: bf16[10,256], index: 0, kind: input, shape index: {}]
  %s1 = inlined_call_operand.vmem [shape: bf16[256,256], index: 1, kind: input, shape index: {}]
  %s2 = inlined_call_operand.vmem [shape: f32[1,256], index: 2, kind: input, shape index: {}]
  %s3 = inlined_call_operand.vmem [shape: f32[1,256], index: 3, kind: input, shape index: {}]
  %s4 = inlined_call_operand.vmem [shape: f32[10,256], index: 4, kind: input, shape index: {}]
  %s5 = inlined_call_operand.vmem [shape: f32[10,256], index: 5, kind: output, shape index: {}]
  %s6 = sld [smem:[#allocation0]]
  $region38: #{dinov2_vit_forward.15} parent=0
    _
  %s8 = ssub.s32 1, %s6
  %s9 = scalar_select 0, %s8, %s6
  // Predicated region
  $region2: #{dinov2_vit_forward.15} parent=0 // pred_check
    _
  $region3: #{dinov2_vit_forward.15} parent=0 // pred_check_branch
    %11 = sbr.rel (0) target = $region5
  $region4: #{dinov2_vit_forward.15} parent=0 // pred_region
    _
  $region5: #{dinov2_vit_forward.15} parent=0 // pred_fallthru
    _
  // Predicated region
  $region6: #{dinov2_vit_forward.15} parent=0 // pred_check
    _
  $region7: #{dinov2_vit_forward.15} parent=0 // pred_check_branch
    %13 = sbr.rel (0) target = $region9
  $region8: #{dinov2_vit_forward.15} parent=0 // pred_region
    _
  $region9: #{dinov2_vit_forward.15} parent=0 // pred_fallthru
    _
  // Predicated region
  $region10: #{dinov2_vit_forward.15} parent=0 // pred_check
    _
  $region11: #{dinov2_vit_forward.15} parent=0 // pred_check_branch
    %15 = sbr.rel (0) target = $region13
  $region12: #{dinov2_vit_forward.15} parent=0 // pred_region
    _
  $region13: #{dinov2_vit_forward.15} parent=0 // pred_fallthru
    _
  // Predicated region
  $region14: #{dinov2_vit_forward.15} parent=0 // pred_check
    _
  $region15: #{dinov2_vit_forward.15} parent=0 // pred_check_branch
    %17 = sbr.rel (0) target = $region17
  $region16: #{dinov2_vit_forward.15} parent=0 // pred_region
    _
  $region17: #{dinov2_vit_forward.15} parent=0 // pred_fallthru
    _
  // Predicated region
  $region18: #{dinov2_vit_forward.15} parent=0 // pred_check
    _
  $region19: #{dinov2_vit_forward.15} parent=0 // pred_check_branch
    %19 = sbr.rel (0) target = $region21
  $region20: #{dinov2_vit_forward.15} parent=0 // pred_region
    _
  $region21: #{dinov2_vit_forward.15} parent=0 // pred_fallthru
    _
  %p20 = scmp.eq.s32.totalorder 0, 0
  // Predicated region
  $region22: #{dinov2_vit_forward.15} parent=0 // pred_check
    %p21 = pneg %p20
  $region23: #{dinov2_vit_forward.15} parent=0 // pred_check_branch
    %23 = sbr.rel (%p21) target = $region25
  $region24: #{dinov2_vit_forward.15} parent=0 // pred_region
    %24 = vst [vmem:[#allocation2] sm:$0xff] 0.0
    %25 = vst [vmem:[#allocation2 + $0x8] sm:$0xff] 0.0
    %26 = vst [vmem:[#allocation2 + $0x10] sm:$0x3] 0.0
    %27 = vst [vmem:[#allocation2 + $0x18] sm:$0x3] 0.0
  $region25: #{dinov2_vit_forward.15} parent=0 // pred_fallthru
    _
  %v28 = vld [vmem:[#allocation2] sm:$0xff]
  %v29 = vld [vmem:[#allocation2 + $0x8] sm:$0xff]
  %v30 = vld [vmem:[#allocation2 + $0x10] sm:$0x3]
  %v31 = vld [vmem:[#allocation2 + $0x18] sm:$0x3]
  %v32 = vld [vmem:[%s0] sm:$0xff]
  %v33 = vld [vmem:[%s0 + $0x8] sm:$0x11]
  %v34 = vld [vmem:[%s1] sm:$0xff]
  %v35 = vld [vmem:[%s1 + $0x8] sm:$0xff]
  %v36 = vld [vmem:[%s1 + $0x10] sm:$0xff]
  %v37 = vld [vmem:[%s1 + $0x18] sm:$0xff]
  %v38 = vld [vmem:[%s1 + $0x20] sm:$0xff]
  %v39 = vld [vmem:[%s1 + $0x28] sm:$0xff]
  %v40 = vld [vmem:[%s1 + $0x30] sm:$0xff]
  %v41 = vld [vmem:[%s1 + $0x38] sm:$0xff]
  %v42 = vld [vmem:[%s1 + $0x40] sm:$0xff]
  %v43 = vld [vmem:[%s1 + $0x48] sm:$0xff]
  %v44 = vld [vmem:[%s1 + $0x50] sm:$0xff]
  %v45 = vld [vmem:[%s1 + $0x58] sm:$0xff]
  %v46 = vld [vmem:[%s1 + $0x60] sm:$0xff]
  %v47 = vld [vmem:[%s1 + $0x68] sm:$0xff]
  %v48 = vld [vmem:[%s1 + $0x70] sm:$0xff]
  %v49 = vld [vmem:[%s1 + $0x78] sm:$0xff]
  %v50 = vld [vmem:[%s1 + $0x80] sm:$0xff]
  %v51 = vld [vmem:[%s1 + $0x88] sm:$0xff]
  %v52 = vld [vmem:[%s1 + $0x90] sm:$0xff]
  %v53 = vld [vmem:[%s1 + $0x98] sm:$0xff]
  %v54 = vld [vmem:[%s1 + $0xa0] sm:$0xff]
  %v55 = vld [vmem:[%s1 + $0xa8] sm:$0xff]
  %v56 = vld [vmem:[%s1 + $0xb0] sm:$0xff]
  %v57 = vld [vmem:[%s1 + $0xb8] sm:$0xff]
  %v58 = vld [vmem:[%s1 + $0xc0] sm:$0xff]
  %v59 = vld [vmem:[%s1 + $0xc8] sm:$0xff]
  %v60 = vld [vmem:[%s1 + $0xd0] sm:$0xff]
  %v61 = vld [vmem:[%s1 + $0xd8] sm:$0xff]
  %v62 = vld [vmem:[%s1 + $0xe0] sm:$0xff]
  %v63 = vld [vmem:[%s1 + $0xe8] sm:$0xff]
  %v64 = vld [vmem:[%s1 + $0xf0] sm:$0xff]
  %v65 = vld [vmem:[%s1 + $0xf8] sm:$0xff]
  %v68 = vunpack.c.l.b16 %v32
  %v69 = vunpack.c.h.b16 %v32
  %v70 = vunpack.c.l.b16 %v33
  %v71 = vunpack.c.h.b16 %v33
  %v72 = vpack.c.b16 %v70, %v68
  %v73 = vpack.c.b16 %v71, %v69
  %v108 = vunpack.c.l.b16 %v34
  %v109 = vunpack.c.h.b16 %v34
  %v110 = vunpack.c.l.b16 %v35
  %v111 = vunpack.c.h.b16 %v35
  %v112 = vunpack.c.l.b16 %v36
  %v113 = vunpack.c.h.b16 %v36
  %v114 = vunpack.c.l.b16 %v37
  %v115 = vunpack.c.h.b16 %v37
  %v116 = vunpack.c.l.b16 %v38
  %v117 = vunpack.c.h.b16 %v38
  %v118 = vunpack.c.l.b16 %v39
  %v119 = vunpack.c.h.b16 %v39
  %v120 = vunpack.c.l.b16 %v40
  %v121 = vunpack.c.h.b16 %v40
  %v122 = vunpack.c.l.b16 %v41
  %v123 = vunpack.c.h.b16 %v41
  %v124 = vunpack.c.l.b16 %v42
  %v125 = vunpack.c.h.b16 %v42
  %v126 = vunpack.c.l.b16 %v43
  %v127 = vunpack.c.h.b16 %v43
  %v128 = vunpack.c.l.b16 %v44
  %v129 = vunpack.c.h.b16 %v44
  %v130 = vunpack.c.l.b16 %v45
  %v131 = vunpack.c.h.b16 %v45
  %v132 = vunpack.c.l.b16 %v46
  %v133 = vunpack.c.h.b16 %v46
  %v134 = vunpack.c.l.b16 %v47
  %v135 = vunpack.c.h.b16 %v47
  %v136 = vunpack.c.l.b16 %v48
  %v137 = vunpack.c.h.b16 %v48
  %v138 = vunpack.c.l.b16 %v49
  %v139 = vunpack.c.h.b16 %v49
  %v140 = vunpack.c.l.b16 %v50
  %v141 = vunpack.c.h.b16 %v50
  %v142 = vunpack.c.l.b16 %v51
  %v143 = vunpack.c.h.b16 %v51
  %v144 = vunpack.c.l.b16 %v52
  %v145 = vunpack.c.h.b16 %v52
  %v146 = vunpack.c.l.b16 %v53
  %v147 = vunpack.c.h.b16 %v53
  %v148 = vunpack.c.l.b16 %v54
  %v149 = vunpack.c.h.b16 %v54
  %v150 = vunpack.c.l.b16 %v55
  %v151 = vunpack.c.h.b16 %v55
  %v152 = vunpack.c.l.b16 %v56
  %v153 = vunpack.c.h.b16 %v56
  %v154 = vunpack.c.l.b16 %v57
  %v155 = vunpack.c.h.b16 %v57
  %v156 = vunpack.c.l.b16 %v58
  %v157 = vunpack.c.h.b16 %v58
  %v158 = vunpack.c.l.b16 %v59
  %v159 = vunpack.c.h.b16 %v59
  %v160 = vunpack.c.l.b16 %v60
  %v161 = vunpack.c.h.b16 %v60
  %v162 = vunpack.c.l.b16 %v61
  %v163 = vunpack.c.h.b16 %v61
  %v164 = vunpack.c.l.b16 %v62
  %v165 = vunpack.c.h.b16 %v62
  %v166 = vunpack.c.l.b16 %v63
  %v167 = vunpack.c.h.b16 %v63
  %v168 = vunpack.c.l.b16 %v64
  %v169 = vunpack.c.h.b16 %v64
  %v170 = vunpack.c.l.b16 %v65
  %v171 = vunpack.c.h.b16 %v65
  %v172 = vpack.c.b16 %v110, %v108
  %v173 = vpack.c.b16 %v111, %v109
  %v174 = vpack.c.b16 %v114, %v112
  %v175 = vpack.c.b16 %v115, %v113
  %v176 = vpack.c.b16 %v118, %v116
  %v177 = vpack.c.b16 %v119, %v117
  %v178 = vpack.c.b16 %v122, %v120
  %v179 = vpack.c.b16 %v123, %v121
  %v180 = vpack.c.b16 %v126, %v124
  %v181 = vpack.c.b16 %v127, %v125
  %v182 = vpack.c.b16 %v130, %v128
  %v183 = vpack.c.b16 %v131, %v129
  %v184 = vpack.c.b16 %v134, %v132
  %v185 = vpack.c.b16 %v135, %v133
  %v186 = vpack.c.b16 %v138, %v136
  %v187 = vpack.c.b16 %v139, %v137
  %v188 = vpack.c.b16 %v142, %v140
  %v189 = vpack.c.b16 %v143, %v141
  %v190 = vpack.c.b16 %v146, %v144
  %v191 = vpack.c.b16 %v147, %v145
  %v192 = vpack.c.b16 %v150, %v148
  %v193 = vpack.c.b16 %v151, %v149
  %v194 = vpack.c.b16 %v154, %v152
  %v195 = vpack.c.b16 %v155, %v153
  %v196 = vpack.c.b16 %v158, %v156
  %v197 = vpack.c.b16 %v159, %v157
  %v198 = vpack.c.b16 %v162, %v160
  %v199 = vpack.c.b16 %v163, %v161
  %v200 = vpack.c.b16 %v166, %v164
  %v201 = vpack.c.b16 %v167, %v165
  %v202 = vpack.c.b16 %v170, %v168
  %v203 = vpack.c.b16 %v171, %v169
  %236 = vmatprep.subr.bf16.mxu0 %v173
  %237 = vmatpush1.bf16.msra.mxu0 %v172
  %238 = vmatprep.subr.bf16.mxu0 %v175
  %239 = vmatpush1.bf16.msra.mxu0 %v174
  %240 = vmatprep.subr.bf16.mxu0 %v177
  %241 = vmatpush1.bf16.msra.mxu0 %v176
  %242 = vmatprep.subr.bf16.mxu0 %v179
  %243 = vmatpush1.bf16.msra.mxu0 %v178
  %244 = vmatprep.subr.bf16.mxu0 %v181
  %245 = vmatpush1.bf16.msra.mxu0 %v180
  %246 = vmatprep.subr.bf16.mxu0 %v183
  %247 = vmatpush1.bf16.msra.mxu0 %v182
  %248 = vmatprep.subr.bf16.mxu0 %v185
  %249 = vmatpush1.bf16.msra.mxu0 %v184
  %250 = vmatprep.subr.bf16.mxu0 %v187
  %251 = vmatpush1.bf16.msra.mxu0 %v186
  %252 = vmatprep.subr.bf16.mxu0 %v189
  %253 = vmatpush1.bf16.msra.mxu0 %v188
  %254 = vmatprep.subr.bf16.mxu0 %v191
  %255 = vmatpush1.bf16.msra.mxu0 %v190
  %256 = vmatprep.subr.bf16.mxu0 %v193
  %257 = vmatpush1.bf16.msra.mxu0 %v192
  %258 = vmatprep.subr.bf16.mxu0 %v195
  %259 = vmatpush1.bf16.msra.mxu0 %v194
  %260 = vmatprep.subr.bf16.mxu0 %v197
  %261 = vmatpush1.bf16.msra.mxu0 %v196
  %262 = vmatprep.subr.bf16.mxu0 %v199
  %263 = vmatpush1.bf16.msra.mxu0 %v198
  %264 = vmatprep.subr.bf16.mxu0 %v201
  %265 = vmatpush1.bf16.msra.mxu0 %v200
  %266 = vmatprep.subr.bf16.mxu0 %v203
  %267 = vmatpush1.bf16.msra.mxu0 %v202
  %268 = vmatprep.mubr.bf16.mxu0 %v73
  %269 = vmatmul.mubr.bf16.gmra.mrb[0].mxu0 %v72
  %v270 = vpop.f32.mrb[0].mxu0
  %v271 = vadd.f32 0.0, %v270
  %v272 = vpop.f32.mrb[0].mxu0
  %v273 = vadd.f32 0.0, %v272
  %v274 = vpop.f32.mrb[0].mxu0
  %v275 = vadd.f32 0.0, %v274
  %v276 = vpop.f32.mrb[0].mxu0
  %v277 = vadd.f32 0.0, %v276
  %278 = vdwg.mxu0
  %v279 = vadd.f32 %v28, %v271
  %v280 = vadd.f32 %v29, %v273
  %v281 = vadd.f32 %v30, %v275
  %v282 = vadd.f32 %v31, %v277
  %283 = vst [vmem:[#allocation2] sm:$0xff] %v279
  %284 = vst [vmem:[#allocation2 + $0x8] sm:$0xff] %v280
  %285 = vst [vmem:[#allocation2 + $0x10] sm:$0x3] %v281
  %286 = vst [vmem:[#allocation2 + $0x18] sm:$0x3] %v282
  // Predicated region
  $region26: #{dinov2_vit_forward.15} parent=0 // pred_check
    %p287 = pneg %p20
  $region27: #{dinov2_vit_forward.15} parent=0 // pred_check_branch
    %289 = sbr.rel (%p287) target = $region29
  $region28: #{dinov2_vit_forward.15} parent=0 // pred_region
    %v290 = vld [vmem:[#allocation2] sm:$0xff]
    %v291 = vld [vmem:[#allocation2 + $0x8] sm:$0xff]
    %v292 = vld [vmem:[#allocation2 + $0x10] sm:$0x3]
    %v293 = vld [vmem:[#allocation2 + $0x18] sm:$0x3]
    %v294 = vld [vmem:[%s2] sm:$0x3]
    %v296 = vlaneseq
    %v297 = vshrl.u32 %v296, 7
    %v298 = vsub.s32 0, %v297
    %v299 = vrot.slane %v294, %v298
    %v300 = vlaneseq
    %v301 = vshrl.u32 %v300, 7
    %v302 = vsub.s32 1, %v301
    %v303 = vrot.slane %v294, %v302
    %v306 = vadd.f32 %v290, %v299
    %v307 = vadd.f32 %v291, %v303
    %v308 = vadd.f32 %v292, %v299
    %v309 = vadd.f32 %v293, %v303
    %v310 = vld [vmem:[%s4] sm:$0xff]
    %v311 = vld [vmem:[%s4 + $0x8] sm:$0xff]
    %v312 = vld [vmem:[%s4 + $0x10] sm:$0x3]
    %v313 = vld [vmem:[%s4 + $0x18] sm:$0x3]
    %v314 = vld [vmem:[%s3] sm:$0x3]
    %v316 = vlaneseq
    %v317 = vshrl.u32 %v316, 7
    %v318 = vsub.s32 0, %v317
    %v319 = vrot.slane %v314, %v318
    %v320 = vlaneseq
    %v321 = vshrl.u32 %v320, 7
    %v322 = vsub.s32 1, %v321
    %v323 = vrot.slane %v314, %v322
    %v326 = vmul.f32 %v319, %v306
    %v327 = vmul.f32 %v323, %v307
    %v328 = vmul.f32 %v319, %v308
    %v329 = vmul.f32 %v323, %v309
    %v330 = vadd.f32 %v310, %v326
    %v331 = vadd.f32 %v311, %v327
    %v332 = vadd.f32 %v312, %v328
    %v333 = vadd.f32 %v313, %v329
    %334 = vst [vmem:[%s5] sm:$0xff] %v330
    %335 = vst [vmem:[%s5 + $0x8] sm:$0xff] %v331
    %336 = vst [vmem:[%s5 + $0x10] sm:$0x3] %v332
    %337 = vst [vmem:[%s5 + $0x18] sm:$0x3] %v333
  $region29: #{dinov2_vit_forward.15} parent=0 // pred_fallthru
    _
  // Predicated region
  $region30: #{dinov2_vit_forward.15} parent=0 // pred_check
    _
  $region31: #{dinov2_vit_forward.15} parent=0 // pred_check_branch
    %339 = sbr.rel (0) target = $region33
  $region32: #{dinov2_vit_forward.15} parent=0 // pred_region
    _
  $region33: #{dinov2_vit_forward.15} parent=0 // pred_fallthru
    _
  // Predicated region
  $region34: #{dinov2_vit_forward.15} parent=0 // pred_check
    _
  $region35: #{dinov2_vit_forward.15} parent=0 // pred_check_branch
    %341 = sbr.rel (0) target = $region37
  $region36: #{dinov2_vit_forward.15} parent=0 // pred_region
    _
  $region37: #{dinov2_vit_forward.15} parent=0 // pred_fallthru
    _

// kernel: dinov2_vit_forward.16
$region0: #{dinov2_vit_forward.16}
  #allocation0 [shape = 'u32[]', space=smem, size = 0x4, offset = 0x4, fixed_abs, tag = 'smem constant byte address 0x4 - core index']
  #allocation1 [shape = 'u32[144,128]{1,0:T(1,128)}', space=vmem, size = 0x12000, scoped, tag = 'internal scratch']
  #allocation2 [shape = 'bf16[10,256]{1,0:T(8,128)(2,1)}', space=vmem, size = 0x2000, scoped, tag = 'scratch operand']
  %s0 = inlined_call_operand.vmem [shape: f32[10,256], index: 0, kind: input, shape index: {}]
  %s1 = inlined_call_operand.vmem [shape: f32[1,256], index: 1, kind: input, shape index: {}]
  %s2 = inlined_call_operand.vmem [shape: f32[1,256], index: 2, kind: input, shape index: {}]
  %s3 = inlined_call_operand.vmem [shape: bf16[256,1024], index: 3, kind: input, shape index: {}]
  %s4 = inlined_call_operand.vmem [shape: f32[1,1024], index: 4, kind: input, shape index: {}]
  %s5 = inlined_call_operand.vmem [shape: bf16[10,1024], index: 5, kind: output, shape index: {}]
  %s6 = sld [smem:[#allocation0]]
  $region99: #{dinov2_vit_forward.16} parent=0
    _
  %s8 = ssub.s32 1, %s6
  %s9 = scalar_select 0, %s8, %s6
  $region1: #{dinov2_vit_forward.16} parent=0
    #allocation3 [shape = 'u8[524288]{0}', space=vmem, size = 0x80000, scoped, tag = 'input window, operand 3']
    #allocation4 [shape = 'u8[32768]{0}', space=vmem, size = 0x8000, scoped, tag = 'output window, operand 0']
    loop: start=0, step=1, limit=4
    $region2: #{dinov2_vit_forward.16} parent=1 // loop_pre_header
      _
    $region3: #{dinov2_vit_forward.16} parent=1 // loop_header
      %s11 = sphi 0, %s15
      %p12 = scmp.ge.s32.totalorder %s11, 4
      %s18 = sphi 0, %s30
      %s19 = sphi 0, %s26
      %s20 = sphi 0, %s18
      %s21 = sphi 0, %s19
      %s22 = sphi 0, %s20
      %s23 = sphi 0, %s21
      %s33 = sphi 0, %s35
      %s36 = sphi 0, %s33
      %s37 = sphi 0, %s36
      %s53 = sphi 0, %s37
      %s57 = sphi 0, %s57
      %s59 = sphi 0, %s57
      %s60 = sphi 0, %s59
      %s74 = sphi 0, %s60
      %s78 = sphi 0, %s78
      %s80 = sphi 0, %s78
      %s81 = sphi 0, %s80
      %s95 = sphi 0, %s81
      %s101 = sphi 0, %s103
      %s104 = sphi 0, %s101
      %s105 = sphi 0, %s104
      %s121 = sphi 0, %s105
      %s127 = sphi 0, %s129
      %s130 = sphi 0, %s127
      %s131 = sphi 0, %s130
      %s147 = sphi 0, %s131
      %s155 = sphi 0, %s157
      %s158 = sphi 0, %s155
      %s159 = sphi 0, %s158
      %s175 = sphi 0, %s159
    $region4: #{dinov2_vit_forward.16} parent=1 // loop_header_branch
      %14 = sbr.rel (%p12) target = $region8
    $region5: #{dinov2_vit_forward.16} parent=1 // loop_body
      %s16 = ssub.s32 %s11, 1
      %s17 = ssub.s32 %s11, 2
      %s24 = sadd.s32 1, %s19
      %p25 = scmp.ge.s32.totalorder %s24, 2
      %s26 = scalar_select %p25, 0, %s24
      %s27 = sadd.s32 1, %s18
      %s28 = scalar_select %p25, %s27, %s18
      %p29 = scmp.ge.s32.totalorder %s28, 1
      %s30 = scalar_select %p29, 0, %s28
      %s31 = ssub.s32 %s18, %s30
      %p32 = scmp.eq.s32.totalorder %s31, 0
      %s34 = sadd.s32 %s33, 1
      %s35 = scalar_select %p32, %s33, %s34
      %p38 = pneg %p32
      %p39 = scmp.eq.s32.totalorder %s11, 1
      %p40 = por %p38, %p39
      %p41 = scmp.ne.s32.totalorder %s33, %s36
      %p42 = scmp.eq.s32.totalorder %s11, 0
      %p43 = por %p41, %p42
      %p44 = scmp.ne.s32.totalorder %s33, %s36
      %p45 = scmp.eq.s32.totalorder %s16, 1
      %p46 = por %p44, %p45
      %p47 = scmp.ne.s32.totalorder %s36, %s37
      %p48 = scmp.eq.s32.totalorder %s16, 0
      %p49 = por %p47, %p48
      %p50 = scmp.ne.s32.totalorder %s36, %s37
      %p51 = scmp.eq.s32.totalorder %s17, 1
      %p52 = por %p50, %p51
      %p54 = scmp.ne.s32.totalorder %s37, %s53
      %p55 = scmp.eq.s32.totalorder %s17, 0
      %p56 = por %p54, %p55
      %s58 = sadd.s32 %s57, 1
      %p61 = scmp.eq.s32.totalorder %s11, 1
      %p62 = scmp.ne.s32.totalorder %s57, %s59
      %p63 = scmp.eq.s32.totalorder %s11, 0
      %p64 = por %p62, %p63
      %p65 = scmp.ne.s32.totalorder %s57, %s59
      %p66 = scmp.eq.s32.totalorder %s16, 1
      %p67 = por %p65, %p66
      %p68 = scmp.ne.s32.totalorder %s59, %s60
      %p69 = scmp.eq.s32.totalorder %s16, 0
      %p70 = por %p68, %p69
      %p71 = scmp.ne.s32.totalorder %s59, %s60
      %p72 = scmp.eq.s32.totalorder %s17, 1
      %p73 = por %p71, %p72
      %p75 = scmp.ne.s32.totalorder %s60, %s74
      %p76 = scmp.eq.s32.totalorder %s17, 0
      %p77 = por %p75, %p76
      %s79 = sadd.s32 %s78, 1
      %p82 = scmp.eq.s32.totalorder %s11, 1
      %p83 = scmp.ne.s32.totalorder %s78, %s80
      %p84 = scmp.eq.s32.totalorder %s11, 0
      %p85 = por %p83, %p84
      %p86 = scmp.ne.s32.totalorder %s78, %s80
      %p87 = scmp.eq.s32.totalorder %s16, 1
      %p88 = por %p86, %p87
      %p89 = scmp.ne.s32.totalorder %s80, %s81
      %p90 = scmp.eq.s32.totalorder %s16, 0
      %p91 = por %p89, %p90
      %p92 = scmp.ne.s32.totalorder %s80, %s81
      %p93 = scmp.eq.s32.totalorder %s17, 1
      %p94 = por %p92, %p93
      %p96 = scmp.ne.s32.totalorder %s81, %s95
      %p97 = scmp.eq.s32.totalorder %s17, 0
      %p98 = por %p96, %p97
      %s99 = ssub.s32 %s19, %s26
      %p100 = scmp.eq.s32.totalorder %s99, 0
      %s102 = sadd.s32 %s101, 1
      %s103 = scalar_select %p100, %s101, %s102
      %p106 = pneg %p100
      %p107 = scmp.eq.s32.totalorder %s11, 1
      %p108 = por %p106, %p107
      %p109 = scmp.ne.s32.totalorder %s101, %s104
      %p110 = scmp.eq.s32.totalorder %s11, 0
      %p111 = por %p109, %p110
      %p112 = scmp.ne.s32.totalorder %s101, %s104
      %p113 = scmp.eq.s32.totalorder %s16, 1
      %p114 = por %p112, %p113
      %p115 = scmp.ne.s32.totalorder %s104, %s105
      %p116 = scmp.eq.s32.totalorder %s16, 0
      %p117 = por %p115, %p116
      %p118 = scmp.ne.s32.totalorder %s104, %s105
      %p119 = scmp.eq.s32.totalorder %s17, 1
      %p120 = por %p118, %p119
      %p122 = scmp.ne.s32.totalorder %s105, %s121
      %p123 = scmp.eq.s32.totalorder %s17, 0
      %p124 = por %p122, %p123
      %s125 = ssub.s32 %s19, %s26
      %p126 = scmp.eq.s32.totalorder %s125, 0
      %s128 = sadd.s32 %s127, 1
      %s129 = scalar_select %p126, %s127, %s128
      %p132 = pneg %p126
      %p133 = scmp.eq.s32.totalorder %s11, 1
      %p134 = por %p132, %p133
      %p135 = scmp.ne.s32.totalorder %s127, %s130
      %p136 = scmp.eq.s32.totalorder %s11, 0
      %p137 = por %p135, %p136
      %p138 = scmp.ne.s32.totalorder %s127, %s130
      %p139 = scmp.eq.s32.totalorder %s16, 1
      %p140 = por %p138, %p139
      %p141 = scmp.ne.s32.totalorder %s130, %s131
      %p142 = scmp.eq.s32.totalorder %s16, 0
      %p143 = por %p141, %p142
      %p144 = scmp.ne.s32.totalorder %s130, %s131
      %p145 = scmp.eq.s32.totalorder %s17, 1
      %p146 = por %p144, %p145
      %p148 = scmp.ne.s32.totalorder %s131, %s147
      %p149 = scmp.eq.s32.totalorder %s17, 0
      %p150 = por %p148, %p149
      %s151 = ssub.s32 %s18, %s30
      %s152 = ssub.s32 %s19, %s26
      %s153 = sor.u32 %s151, %s152
      %p154 = scmp.eq.s32.totalorder %s153, 0
      %s156 = sadd.s32 %s155, 1
      %s157 = scalar_select %p154, %s155, %s156
      %p160 = pneg %p154
      %p161 = scmp.eq.s32.totalorder %s11, 1
      %p162 = por %p160, %p161
      %p163 = scmp.ne.s32.totalorder %s155, %s158
      %p164 = scmp.eq.s32.totalorder %s11, 0
      %p165 = por %p163, %p164
      %p166 = scmp.ne.s32.totalorder %s155, %s158
      %p167 = scmp.eq.s32.totalorder %s16, 1
      %p168 = por %p166, %p167
      %p169 = scmp.ne.s32.totalorder %s158, %s159
      %p170 = scmp.eq.s32.totalorder %s16, 0
      %p171 = por %p169, %p170
      %p172 = scmp.ne.s32.totalorder %s158, %s159
      %p173 = scmp.eq.s32.totalorder %s17, 1
      %p174 = por %p172, %p173
      %p176 = scmp.ne.s32.totalorder %s159, %s175
      %p177 = scmp.eq.s32.totalorder %s17, 0
      %p178 = por %p176, %p177
      %p179 = scmp.le.s32.totalorder 1, %s11
      %p180 = scmp.lt.s32.totalorder %s11, 3
      %p181 = pnand %p179, %p180
      %p182 = pneg %p181
      // Predicated region
      $region9: #{dinov2_vit_forward.16} parent=5 // pred_check
        _
      $region10: #{dinov2_vit_forward.16} parent=5 // pred_check_branch
        %184 = sbr.rel (%p181) target = $region12
      $region11: #{dinov2_vit_forward.16} parent=5 // pred_region
        %s185 = ssub.s32 %s11, 1
        // Predicated region
        $region13: #{dinov2_vit_forward.16} parent=11 // pred_check
          %p186 = pneg %p49
        $region14: #{dinov2_vit_forward.16} parent=11 // pred_check_branch
          %188 = sbr.rel (%p186) target = $region16
        $region15: #{dinov2_vit_forward.16} parent=11 // pred_region
          %s189 = smul.u32 2, %s20
          %p190 = scmp.lt.s32.totalorder %s189, 1
          %s191 = scalar_select %p190, %s189, 1
          %s192 = smul.addr %s191, 2
          %s193 = smul.addr %s192, 8
          %s194 = scalar_lea.vmem %s0, %s193
          %s195 = smul.u32 2, %s20
        $region16: #{dinov2_vit_forward.16} parent=11 // pred_fallthru
          _
        // Predicated region
        $region17: #{dinov2_vit_forward.16} parent=11 // pred_check
          %p196 = pneg %p70
        $region18: #{dinov2_vit_forward.16} parent=11 // pred_check_branch
          %198 = sbr.rel (%p196) target = $region20
        $region19: #{dinov2_vit_forward.16} parent=11 // pred_region
          _
        $region20: #{dinov2_vit_forward.16} parent=11 // pred_fallthru
          _
        // Predicated region
        $region21: #{dinov2_vit_forward.16} parent=11 // pred_check
          %p199 = pneg %p91
        $region22: #{dinov2_vit_forward.16} parent=11 // pred_check_branch
          %201 = sbr.rel (%p199) target = $region24
        $region23: #{dinov2_vit_forward.16} parent=11 // pred_region
          _
        $region24: #{dinov2_vit_forward.16} parent=11 // pred_fallthru
          _
      $region12: #{dinov2_vit_forward.16} parent=5 // pred_fallthru
        _
      %p202 = scmp.lt.s32.totalorder %s11, 2
      // Predicated region
      $region25: #{dinov2_vit_forward.16} parent=5 // pred_check
        %p203 = pneg %p202
      $region26: #{dinov2_vit_forward.16} parent=5 // pred_check_branch
        %205 = sbr.rel (%p203) target = $region28
      $region27: #{dinov2_vit_forward.16} parent=5 // pred_region
        // Predicated region
        $region29: #{dinov2_vit_forward.16} parent=27 // pred_check
          %p206 = pneg %p111
        $region30: #{dinov2_vit_forward.16} parent=27 // pred_check_branch
          %208 = sbr.rel (%p206) target = $region32
        $region31: #{dinov2_vit_forward.16} parent=27 // pred_region
          %s209 = sand.u32 %s101, 1
          %s210 = sand.u32 %s101, 1
          %s211 = smul.addr %s210, 512
          %s212 = scalar_lea.vmem [#allocation3], %s211
          %s213 = smul.u32 4, %s19
          %s214 = smul.addr %s213, 4
          %s215 = scalar_lea.vmem %s3, %s214
          // Predicated region
          $region33: #{dinov2_vit_forward.16} parent=31 // pred_check
            _
          $region34: #{dinov2_vit_forward.16} parent=31 // pred_check_branch
            %217 = sbr.rel (0) target = $region36
          $region35: #{dinov2_vit_forward.16} parent=31 // pred_region
            // Predicated region
            $region37: #{dinov2_vit_forward.16} parent=35 // pred_check
              _
            $region38: #{dinov2_vit_forward.16} parent=35 // pred_check_branch
              %219 = sbr.rel (0) target = $region40
            $region39: #{dinov2_vit_forward.16} parent=35 // pred_region
              loop: start=0, step=1, limit=1
              $region41: #{dinov2_vit_forward.16} parent=39 // loop_pre_header
                _
              $region42: #{dinov2_vit_forward.16} parent=39 // loop_header
                %s221 = sphi 0, %s225
                %p222 = scmp.ge.s32.totalorder %s221, 1
                %s226 = sphi %s215, %s215
                %s227 = sphi %s212, %s212
              $region43: #{dinov2_vit_forward.16} parent=39 // loop_header_branch
                %224 = sbr.rel (%p222) target = $region47
              $region44: #{dinov2_vit_forward.16} parent=39 // loop_body
                %v228 = vld [vmem:[%s226] sm:$0xff]
                %229 = vst [vmem:[%s227] sm:$0xff] %v228
                %v230 = vld [vmem:[%s226 + $0x8] sm:$0xff]
                %231 = vst [vmem:[%s227 + $0x8] sm:$0xff] %v230
                %v232 = vld [vmem:[%s226 + $0x20] sm:$0xff]
                %233 = vst [vmem:[%s227 + $0x10] sm:$0xff] %v232
                %v234 = vld [vmem:[%s226 + $0x28] sm:$0xff]
                %235 = vst [vmem:[%s227 + $0x18] sm:$0xff] %v234
                %v236 = vld [vmem:[%s226 + $0x40] sm:$0xff]
                %237 = vst [vmem:[%s227 + $0x20] sm:$0xff] %v236
                %v238 = vld [vmem:[%s226 + $0x48] sm:$0xff]
                %239 = vst [vmem:[%s227 + $0x28] sm:$0xff] %v238
                %v240 = vld [vmem:[%s226 + $0x60] sm:$0xff]
                %241 = vst [vmem:[%s227 + $0x30] sm:$0xff] %v240
                %v242 = vld [vmem:[%s226 + $0x68] sm:$0xff]
                %243 = vst [vmem:[%s227 + $0x38] sm:$0xff] %v242
                %v244 = vld [vmem:[%s226 + $0x80] sm:$0xff]
                %245 = vst [vmem:[%s227 + $0x40] sm:$0xff] %v244
                %v246 = vld [vmem:[%s226 + $0x88] sm:$0xff]
                %247 = vst [vmem:[%s227 + $0x48] sm:$0xff] %v246
                %v248 = vld [vmem:[%s226 + $0xa0] sm:$0xff]
                %249 = vst [vmem:[%s227 + $0x50] sm:$0xff] %v248
                %v250 = vld [vmem:[%s226 + $0xa8] sm:$0xff]
                %251 = vst [vmem:[%s227 + $0x58] sm:$0xff] %v250
                %v252 = vld [vmem:[%s226 + $0xc0] sm:$0xff]
                %253 = vst [vmem:[%s227 + $0x60] sm:$0xff] %v252
                %v254 = vld [vmem:[%s226 + $0xc8] sm:$0xff]
                %255 = vst [vmem:[%s227 + $0x68] sm:$0xff] %v254
                %v256 = vld [vmem:[%s226 + $0xe0] sm:$0xff]
                %257 = vst [vmem:[%s227 + $0x70] sm:$0xff] %v256
                %v258 = vld [vmem:[%s226 + $0xe8] sm:$0xff]
                %259 = vst [vmem:[%s227 + $0x78] sm:$0xff] %v258
                %v260 = vld [vmem:[%s226 + $0x100] sm:$0xff]
                %261 = vst [vmem:[%s227 + $0x80] sm:$0xff] %v260
                %v262 = vld [vmem:[%s226 + $0x108] sm:$0xff]
                %263 = vst [vmem:[%s227 + $0x88] sm:$0xff] %v262
                %v264 = vld [vmem:[%s226 + $0x120] sm:$0xff]
                %265 = vst [vmem:[%s227 + $0x90] sm:$0xff] %v264
                %v266 = vld [vmem:[%s226 + $0x128] sm:$0xff]
                %267 = vst [vmem:[%s227 + $0x98] sm:$0xff] %v266
                %v268 = vld [vmem:[%s226 + $0x140] sm:$0xff]
                %269 = vst [vmem:[%s227 + $0xa0] sm:$0xff] %v268
                %v270 = vld [vmem:[%s226 + $0x148] sm:$0xff]
                %271 = vst [vmem:[%s227 + $0xa8] sm:$0xff] %v270
                %v272 = vld [vmem:[%s226 + $0x160] sm:$0xff]
                %273 = vst [vmem:[%s227 + $0xb0] sm:$0xff] %v272
                %v274 = vld [vmem:[%s226 + $0x168] sm:$0xff]
                %275 = vst [vmem:[%s227 + $0xb8] sm:$0xff] %v274
                %v276 = vld [vmem:[%s226 + $0x180] sm:$0xff]
                %277 = vst [vmem:[%s227 + $0xc0] sm:$0xff] %v276
                %v278 = vld [vmem:[%s226 + $0x188] sm:$0xff]
                %279 = vst [vmem:[%s227 + $0xc8] sm:$0xff] %v278
                %v280 = vld [vmem:[%s226 + $0x1a0] sm:$0xff]
                %281 = vst [vmem:[%s227 + $0xd0] sm:$0xff] %v280
                %v282 = vld [vmem:[%s226 + $0x1a8] sm:$0xff]
                %283 = vst [vmem:[%s227 + $0xd8] sm:$0xff] %v282
                %v284 = vld [vmem:[%s226 + $0x1c0] sm:$0xff]
                %285 = vst [vmem:[%s227 + $0xe0] sm:$0xff] %v284
                %v286 = vld [vmem:[%s226 + $0x1c8] sm:$0xff]
                %287 = vst [vmem:[%s227 + $0xe8] sm:$0xff] %v286
                %v288 = vld [vmem:[%s226 + $0x1e0] sm:$0xff]
                %289 = vst [vmem:[%s227 + $0xf0] sm:$0xff] %v288
                %v290 = vld [vmem:[%s226 + $0x1e8] sm:$0xff]
                %291 = vst [vmem:[%s227 + $0xf8] sm:$0xff] %v290
                %v292 = vld [vmem:[%s226 + $0x200] sm:$0xff]
                %293 = vst [vmem:[%s227 + $0x100] sm:$0xff] %v292
                %v294 = vld [vmem:[%s226 + $0x208] sm:$0xff]
                %295 = vst [vmem:[%s227 + $0x108] sm:$0xff] %v294
                %v296 = vld [vmem:[%s226 + $0x220] sm:$0xff]
                %297 = vst [vmem:[%s227 + $0x110] sm:$0xff] %v296
                %v298 = vld [vmem:[%s226 + $0x228] sm:$0xff]
                %299 = vst [vmem:[%s227 + $0x118] sm:$0xff] %v298
                %v300 = vld [vmem:[%s226 + $0x240] sm:$0xff]
                %301 = vst [vmem:[%s227 + $0x120] sm:$0xff] %v300
                %v302 = vld [vmem:[%s226 + $0x248] sm:$0xff]
                %303 = vst [vmem:[%s227 + $0x128] sm:$0xff] %v302
                %v304 = vld [vmem:[%s226 + $0x260] sm:$0xff]
                %305 = vst [vmem:[%s227 + $0x130] sm:$0xff] %v304
                %v306 = vld [vmem:[%s226 + $0x268] sm:$0xff]
                %307 = vst [vmem:[%s227 + $0x138] sm:$0xff] %v306
                %v308 = vld [vmem:[%s226 + $0x280] sm:$0xff]
                %309 = vst [vmem:[%s227 + $0x140] sm:$0xff] %v308
                %v310 = vld [vmem:[%s226 + $0x288] sm:$0xff]
                %311 = vst [vmem:[%s227 + $0x148] sm:$0xff] %v310
                %v312 = vld [vmem:[%s226 + $0x2a0] sm:$0xff]
                %313 = vst [vmem:[%s227 + $0x150] sm:$0xff] %v312
                %v314 = vld [vmem:[%s226 + $0x2a8] sm:$0xff]
                %315 = vst [vmem:[%s227 + $0x158] sm:$0xff] %v314
                %v316 = vld [vmem:[%s226 + $0x2c0] sm:$0xff]
                %317 = vst [vmem:[%s227 + $0x160] sm:$0xff] %v316
                %v318 = vld [vmem:[%s226 + $0x2c8] sm:$0xff]
                %319 = vst [vmem:[%s227 + $0x168] sm:$0xff] %v318
                %v320 = vld [vmem:[%s226 + $0x2e0] sm:$0xff]
                %321 = vst [vmem:[%s227 + $0x170] sm:$0xff] %v320
                %v322 = vld [vmem:[%s226 + $0x2e8] sm:$0xff]
                %323 = vst [vmem:[%s227 + $0x178] sm:$0xff] %v322
                %v324 = vld [vmem:[%s226 + $0x300] sm:$0xff]
                %325 = vst [vmem:[%s227 + $0x180] sm:$0xff] %v324
                %v326 = vld [vmem:[%s226 + $0x308] sm:$0xff]
                %327 = vst [vmem:[%s227 + $0x188] sm:$0xff] %v326
                %v328 = vld [vmem:[%s226 + $0x320] sm:$0xff]
                %329 = vst [vmem:[%s227 + $0x190] sm:$0xff] %v328
                %v330 = vld [vmem:[%s226 + $0x328] sm:$0xff]
                %331 = vst [vmem:[%s227 + $0x198] sm:$0xff] %v330
                %v332 = vld [vmem:[%s226 + $0x340] sm:$0xff]
                %333 = vst [vmem:[%s227 + $0x1a0] sm:$0xff] %v332
                %v334 = vld [vmem:[%s226 + $0x348] sm:$0xff]
                %335 = vst [vmem:[%s227 + $0x1a8] sm:$0xff] %v334
                %v336 = vld [vmem:[%s226 + $0x360] sm:$0xff]
                %337 = vst [vmem:[%s227 + $0x1b0] sm:$0xff] %v336
                %v338 = vld [vmem:[%s226 + $0x368] sm:$0xff]
                %339 = vst [vmem:[%s227 + $0x1b8] sm:$0xff] %v338
                %v340 = vld [vmem:[%s226 + $0x380] sm:$0xff]
                %341 = vst [vmem:[%s227 + $0x1c0] sm:$0xff] %v340
                %v342 = vld [vmem:[%s226 + $0x388] sm:$0xff]
                %343 = vst [vmem:[%s227 + $0x1c8] sm:$0xff] %v342
                %v344 = vld [vmem:[%s226 + $0x3a0] sm:$0xff]
                %345 = vst [vmem:[%s227 + $0x1d0] sm:$0xff] %v344
                %v346 = vld [vmem:[%s226 + $0x3a8] sm:$0xff]
                %347 = vst [vmem:[%s227 + $0x1d8] sm:$0xff] %v346
                %v348 = vld [vmem:[%s226 + $0x3c0] sm:$0xff]
                %349 = vst [vmem:[%s227 + $0x1e0] sm:$0xff] %v348
                %v350 = vld [vmem:[%s226 + $0x3c8] sm:$0xff]
                %351 = vst [vmem:[%s227 + $0x1e8] sm:$0xff] %v350
                %v352 = vld [vmem:[%s226 + $0x3e0] sm:$0xff]
                %353 = vst [vmem:[%s227 + $0x1f0] sm:$0xff] %v352
                %v354 = vld [vmem:[%s226 + $0x3e8] sm:$0xff]
                %355 = vst [vmem:[%s227 + $0x1f8] sm:$0xff] %v354
              $region45: #{dinov2_vit_forward.16} parent=39 // loop_footer
                %s225 = sadd.s32 1, %s221
              $region46: #{dinov2_vit_forward.16} parent=39 // loop_footer_branch
                %220 = sbr.rel target = $region42
              $region47: #{dinov2_vit_forward.16} parent=39 // loop_exit
                _
            $region40: #{dinov2_vit_forward.16} parent=35 // pred_fallthru
              _
            // Predicated region
            $region48: #{dinov2_vit_forward.16} parent=35 // pred_check
              _
            $region49: #{dinov2_vit_forward.16} parent=35 // pred_check_branch
              %357 = sbr.rel target = $region51
            $region50: #{dinov2_vit_forward.16} parent=35 // pred_region
              _
            $region51: #{dinov2_vit_forward.16} parent=35 // pred_fallthru
              _
          $region36: #{dinov2_vit_forward.16} parent=31 // pred_fallthru
            _
          %358 = vnop
        $region32: #{dinov2_vit_forward.16} parent=27 // pred_fallthru
          _
        // Predicated region
        $region52: #{dinov2_vit_forward.16} parent=27 // pred_check
          %p359 = pneg %p137
        $region53: #{dinov2_vit_forward.16} parent=27 // pred_check_branch
          %361 = sbr.rel (%p359) target = $region55
        $region54: #{dinov2_vit_forward.16} parent=27 // pred_region
          %s362 = smul.u32 4, %s19
          %p363 = scmp.lt.s32.totalorder %s362, 7
          %s364 = scalar_select %p363, %s362, 7
          %s365 = scalar_lea.vmem %s4, %s364
          %s366 = smul.u32 4, %s19
        $region55: #{dinov2_vit_forward.16} parent=27 // pred_fallthru
          _
      $region28: #{dinov2_vit_forward.16} parent=5 // pred_fallthru
        _
      %p367 = scmp.le.s32.totalorder 1, %s11
      %p368 = scmp.lt.s32.totalorder %s11, 3
      %p369 = pnand %p367, %p368
      %p370 = pneg %p369
      // Predicated region
      $region56: #{dinov2_vit_forward.16} parent=5 // pred_check
        _
      $region57: #{dinov2_vit_forward.16} parent=5 // pred_check_branch
        %372 = sbr.rel (%p369) target = $region59
      $region58: #{dinov2_vit_forward.16} parent=5 // pred_region
        %s373 = ssub.s32 %s11, 1
        %s374 = sand.u32 %s104, 1
        %s375 = sand.u32 %s104, 1
        %s376 = smul.addr %s375, 512
        %s377 = scalar_lea.vmem [#allocation3], %s376
        // Predicated region
        $region60: #{dinov2_vit_forward.16} parent=58 // pred_check
          %p378 = pneg %p117
        $region61: #{dinov2_vit_forward.16} parent=58 // pred_check_branch
          %380 = sbr.rel (%p378) target = $region63
        $region62: #{dinov2_vit_forward.16} parent=58 // pred_region
          _
        $region63: #{dinov2_vit_forward.16} parent=58 // pred_fallthru
          _
        %s381 = smul.u32 2, %s20
        %p382 = scmp.lt.s32.totalorder %s381, 1
        %s383 = scalar_select %p382, %s381, 1
        %s384 = smul.addr %s383, 2
        %s385 = smul.addr %s384, 8
        %s386 = scalar_lea.vmem %s0, %s385
        %p387 = pneg %p49
        %p388 = pneg %p46
        %p389 = pneg %p70
        %p390 = pneg %p67
        %p391 = pneg %p91
        %p392 = pneg %p88
        %s393 = sand.u32 %s104, 1
        %s394 = sand.u32 %s104, 1
        %s395 = smul.addr %s394, 512
        %s396 = scalar_lea.vmem [#allocation3], %s395
        %p397 = pneg %p117
        %p398 = pneg %p114
        %s399 = smul.u32 4, %s21
        %p400 = scmp.lt.s32.totalorder %s399, 7
        %s401 = scalar_select %p400, %s399, 7
        %s402 = scalar_lea.vmem %s4, %s401
        %p403 = pneg %p143
        %p404 = pneg %p140
        %p405 = pneg %p171
        %p406 = pneg %p168
        %s407 = sand.u32 %s158, 1
        %s408 = sand.u32 %s158, 1
        %s409 = smul.addr %s408, 32
        %s410 = scalar_lea.vmem [#allocation4], %s409
        %s411 = smul.u32 2, %s20
        %p412 = scmp.lt.s32.totalorder %s411, 1
        %s413 = scalar_select %p412, %s411, 1
        %s414 = smul.addr %s413, 2
        %s415 = smul.addr %s414, 8
        %s416 = scalar_lea.vmem %s0, %s415
        %s417 = smul.u32 2, %s20
        %s418 = smul.u32 4, %s21
        %s419 = smul.u32 4, %s21
        %p420 = scmp.lt.s32.totalorder %s419, 7
        %s421 = scalar_select %p420, %s419, 7
        %s422 = scalar_lea.vmem %s4, %s421
        %s423 = smul.u32 4, %s21
        %s424 = smul.u32 2, %s20
        %s425 = smul.u32 4, %s21
        %p426 = scmp.eq.s32.totalorder %s21, 0
        // Predicated region
        $region64: #{dinov2_vit_forward.16} parent=58 // pred_check
          %p427 = pneg %p426
        $region65: #{dinov2_vit_forward.16} parent=58 // pred_check_branch
          %429 = sbr.rel (%p427) target = $region67
        $region66: #{dinov2_vit_forward.16} parent=58 // pred_region
          %v430 = vld [vmem:[%s416] sm:$0xff]
          %v431 = vld [vmem:[%s416 + $0x8] sm:$0xff]
          %v432 = vld [vmem:[%s416 + $0x10] sm:$0x3]
          %v433 = vld [vmem:[%s416 + $0x18] sm:$0x3]
          %v434 = vadd.f32 %v430, %v431
          %435 = vadd.xlane.f32.xlu0 %v434
          %v436 = vpop.xlane.xlu0 %435
          %vm437 = vcmask 1041408
          %v438 = vsel %vm437, %v432, 0.0
          %v439 = vsel %vm437, %v433, 0.0
          %v440 = vadd.f32 %v438, %v439
          %441 = vadd.xlane.f32.xlu0 %v440
          %v442 = vpop.xlane.xlu0 %441
          %v443 = vrcp.pop 256.0
          %v444 = vmul.f32 %v436, %v443
          %v445 = vmul.f32 %v442, %v443
          %v446 = vsub.f32 %v430, %v444
          %v447 = vsub.f32 %v431, %v444
          %v448 = vsub.f32 %v432, %v445
          %v449 = vsub.f32 %v433, %v445
          %v450 = vmul.f32 %v446, %v446
          %v451 = vmul.f32 %v447, %v447
          %v452 = vmul.f32 %v448, %v448
          %v453 = vmul.f32 %v449, %v449
          %v454 = vadd.f32 %v450, %v451
          %455 = vadd.xlane.f32.xlu0 %v454
          %v456 = vpop.xlane.xlu0 %455
          %v457 = vsel %vm437, %v452, 0.0
          %v458 = vsel %vm437, %v453, 0.0
          %v459 = vadd.f32 %v457, %v458
          %460 = vadd.xlane.f32.xlu0 %v459
          %v461 = vpop.xlane.xlu0 %460
          %v462 = vmul.f32 %v456, %v443
          %v463 = vmul.f32 %v461, %v443
          %v464 = vadd.f32 %v462, 1e-06
          %v465 = vadd.f32 %v463, 1e-06
          %v466 = vrsqrt.pop %v464
          %v467 = vrsqrt.pop %v465
          %v468 = vmul.f32 %v446, %v466
          %v469 = vmul.f32 %v447, %v466
          %v470 = vmul.f32 %v448, %v467
          %v471 = vmul.f32 %v449, %v467
          %v472 = vld [vmem:[%s1] sm:$0x3]
          %v474 = vlaneseq
          %v475 = vshrl.u32 %v474, 7
          %v476 = vsub.s32 0, %v475
          %v477 = vrot.slane %v472, %v476
          %v478 = vlaneseq
          %v479 = vshrl.u32 %v478, 7
          %v480 = vsub.s32 1, %v479
          %v481 = vrot.slane %v472, %v480
          %v484 = vmul.f32 %v468, %v477
          %v485 = vmul.f32 %v469, %v481
          %v486 = vmul.f32 %v470, %v477
          %v487 = vmul.f32 %v471, %v481
          %v488 = vld [vmem:[%s2] sm:$0x3]
          %v490 = vlaneseq
          %v491 = vshrl.u32 %v490, 7
          %v492 = vsub.s32 0, %v491
          %v493 = vrot.slane %v488, %v492
          %v494 = vlaneseq
          %v495 = vshrl.u32 %v494, 7
          %v496 = vsub.s32 1, %v495
          %v497 = vrot.slane %v488, %v496
          %v500 = vadd.f32 %v484, %v493
          %v501 = vadd.f32 %v485, %v497
          %v502 = vadd.f32 %v486, %v493
          %v503 = vadd.f32 %v487, %v497
          %v504 = vpack.c.bf16 %v502, %v500
          %v505 = vpack.c.bf16 %v503, %v501
          %v508 = vunpack.c.l.b16 %v504
          %v509 = vunpack.c.l.b16 %v505
          %v510 = vunpack.c.h.b16 %v504
          %v511 = vunpack.c.h.b16 %v505
          %v512 = vpack.c.b16 %v509, %v508
          %v513 = vpack.c.b16 %v511, %v510
          %516 = vst [vmem:[#allocation2] sm:$0xff] %v512
          %517 = vst [vmem:[#allocation2 + $0x8] sm:$0x11] %v513
        $region67: #{dinov2_vit_forward.16} parent=58 // pred_fallthru
          _
        %v518 = vld [vmem:[#allocation2] sm:$0xff]
        %v519 = vld [vmem:[#allocation2 + $0x8] sm:$0x11]
        %v520 = vld [vmem:[%s377] sm:$0xff]
        %v521 = vld [vmem:[%s377 + $0x8] sm:$0xff]
        %v522 = vld [vmem:[%s377 + $0x10] sm:$0xff]
        %v523 = vld [vmem:[%s377 + $0x18] sm:$0xff]
        %v524 = vld [vmem:[%s377 + $0x20] sm:$0xff]
        %v525 = vld [vmem:[%s377 + $0x28] sm:$0xff]
        %v526 = vld [vmem:[%s377 + $0x30] sm:$0xff]
        %v527 = vld [vmem:[%s377 + $0x38] sm:$0xff]
        %v528 = vld [vmem:[%s377 + $0x40] sm:$0xff]
        %v529 = vld [vmem:[%s377 + $0x48] sm:$0xff]
        %v530 = vld [vmem:[%s377 + $0x50] sm:$0xff]
        %v531 = vld [vmem:[%s377 + $0x58] sm:$0xff]
        %v532 = vld [vmem:[%s377 + $0x60] sm:$0xff]
        %v533 = vld [vmem:[%s377 + $0x68] sm:$0xff]
        %v534 = vld [vmem:[%s377 + $0x70] sm:$0xff]
        %v535 = vld [vmem:[%s377 + $0x78] sm:$0xff]
        %v536 = vld [vmem:[%s377 + $0x80] sm:$0xff]
        %v537 = vld [vmem:[%s377 + $0x88] sm:$0xff]
        %v538 = vld [vmem:[%s377 + $0x90] sm:$0xff]
        %v539 = vld [vmem:[%s377 + $0x98] sm:$0xff]
        %v540 = vld [vmem:[%s377 + $0xa0] sm:$0xff]
        %v541 = vld [vmem:[%s377 + $0xa8] sm:$0xff]
        %v542 = vld [vmem:[%s377 + $0xb0] sm:$0xff]
        %v543 = vld [vmem:[%s377 + $0xb8] sm:$0xff]
        %v544 = vld [vmem:[%s377 + $0xc0] sm:$0xff]
        %v545 = vld [vmem:[%s377 + $0xc8] sm:$0xff]
        %v546 = vld [vmem:[%s377 + $0xd0] sm:$0xff]
        %v547 = vld [vmem:[%s377 + $0xd8] sm:$0xff]
        %v548 = vld [vmem:[%s377 + $0xe0] sm:$0xff]
        %v549 = vld [vmem:[%s377 + $0xe8] sm:$0xff]
        %v550 = vld [vmem:[%s377 + $0xf0] sm:$0xff]
        %v551 = vld [vmem:[%s377 + $0xf8] sm:$0xff]
        %v552 = vld [vmem:[%s377 + $0x100] sm:$0xff]
        %v553 = vld [vmem:[%s377 + $0x108] sm:$0xff]
        %v554 = vld [vmem:[%s377 + $0x110] sm:$0xff]
        %v555 = vld [vmem:[%s377 + $0x118] sm:$0xff]
        %v556 = vld [vmem:[%s377 + $0x120] sm:$0xff]
        %v557 = vld [vmem:[%s377 + $0x128] sm:$0xff]
        %v558 = vld [vmem:[%s377 + $0x130] sm:$0xff]
        %v559 = vld [vmem:[%s377 + $0x138] sm:$0xff]
        %v560 = vld [vmem:[%s377 + $0x140] sm:$0xff]
        %v561 = vld [vmem:[%s377 + $0x148] sm:$0xff]
        %v562 = vld [vmem:[%s377 + $0x150] sm:$0xff]
        %v563 = vld [vmem:[%s377 + $0x158] sm:$0xff]
        %v564 = vld [vmem:[%s377 + $0x160] sm:$0xff]
        %v565 = vld [vmem:[%s377 + $0x168] sm:$0xff]
        %v566 = vld [vmem:[%s377 + $0x170] sm:$0xff]
        %v567 = vld [vmem:[%s377 + $0x178] sm:$0xff]
        %v568 = vld [vmem:[%s377 + $0x180] sm:$0xff]
        %v569 = vld [vmem:[%s377 + $0x188] sm:$0xff]
        %v570 = vld [vmem:[%s377 + $0x190] sm:$0xff]
        %v571 = vld [vmem:[%s377 + $0x198] sm:$0xff]
        %v572 = vld [vmem:[%s377 + $0x1a0] sm:$0xff]
        %v573 = vld [vmem:[%s377 + $0x1a8] sm:$0xff]
        %v574 = vld [vmem:[%s377 + $0x1b0] sm:$0xff]
        %v575 = vld [vmem:[%s377 + $0x1b8] sm:$0xff]
        %v576 = vld [vmem:[%s377 + $0x1c0] sm:$0xff]
        %v577 = vld [vmem:[%s377 + $0x1c8] sm:$0xff]
        %v578 = vld [vmem:[%s377 + $0x1d0] sm:$0xff]
        %v579 = vld [vmem:[%s377 + $0x1d8] sm:$0xff]
        %v580 = vld [vmem:[%s377 + $0x1e0] sm:$0xff]
        %v581 = vld [vmem:[%s377 + $0x1e8] sm:$0xff]
        %v582 = vld [vmem:[%s377 + $0x1f0] sm:$0xff]
        %v583 = vld [vmem:[%s377 + $0x1f8] sm:$0xff]
        %v584 = vld [vmem:[%s422] sm:$0xf]
        %v586 = vlaneseq
        %v587 = vshrl.u32 %v586, 7
        %v588 = vsub.s32 0, %v587
        %v589 = vrot.slane %v584, %v588
        %v590 = vlaneseq
        %v591 = vshrl.u32 %v590, 7
        %v592 = vsub.s32 1, %v591
        %v593 = vrot.slane %v584, %v592
        %v594 = vlaneseq
        %v595 = vshrl.u32 %v594, 7
        %v596 = vsub.s32 2, %v595
        %v597 = vrot.slane %v584, %v596
        %v598 = vlaneseq
        %v599 = vshrl.u32 %v598, 7
        %v600 = vsub.s32 3, %v599
        %v601 = vrot.slane %v584, %v600
        %v608 = vunpack.c.l.b16 %v518
        %v609 = vunpack.c.h.b16 %v518
        %v610 = vunpack.c.l.b16 %v519
        %v611 = vunpack.c.h.b16 %v519
        %v612 = vpack.c.b16 %v610, %v608
        %v613 = vpack.c.b16 %v611, %v609
        %v680 = vunpack.c.l.b16 %v520
        %v681 = vunpack.c.h.b16 %v520
        %v682 = vunpack.c.l.b16 %v521
        %v683 = vunpack.c.h.b16 %v521
        %v684 = vunpack.c.l.b16 %v522
        %v685 = vunpack.c.h.b16 %v522
        %v686 = vunpack.c.l.b16 %v523
        %v687 = vunpack.c.h.b16 %v523
        %v688 = vunpack.c.l.b16 %v524
        %v689 = vunpack.c.h.b16 %v524
        %v690 = vunpack.c.l.b16 %v525
        %v691 = vunpack.c.h.b16 %v525
        %v692 = vunpack.c.l.b16 %v526
        %v693 = vunpack.c.h.b16 %v526
        %v694 = vunpack.c.l.b16 %v527
        %v695 = vunpack.c.h.b16 %v527
        %v696 = vunpack.c.l.b16 %v528
        %v697 = vunpack.c.h.b16 %v528
        %v698 = vunpack.c.l.b16 %v529
        %v699 = vunpack.c.h.b16 %v529
        %v700 = vunpack.c.l.b16 %v530
        %v701 = vunpack.c.h.b16 %v530
        %v702 = vunpack.c.l.b16 %v531
        %v703 = vunpack.c.h.b16 %v531
        %v704 = vunpack.c.l.b16 %v532
        %v705 = vunpack.c.h.b16 %v532
        %v706 = vunpack.c.l.b16 %v533
        %v707 = vunpack.c.h.b16 %v533
        %v708 = vunpack.c.l.b16 %v534
        %v709 = vunpack.c.h.b16 %v534
        %v710 = vunpack.c.l.b16 %v535
        %v711 = vunpack.c.h.b16 %v535
        %v712 = vunpack.c.l.b16 %v536
        %v713 = vunpack.c.h.b16 %v536
        %v714 = vunpack.c.l.b16 %v537
        %v715 = vunpack.c.h.b16 %v537
        %v716 = vunpack.c.l.b16 %v538
        %v717 = vunpack.c.h.b16 %v538
        %v718 = vunpack.c.l.b16 %v539
        %v719 = vunpack.c.h.b16 %v539
        %v720 = vunpack.c.l.b16 %v540
        %v721 = vunpack.c.h.b16 %v540
        %v722 = vunpack.c.l.b16 %v541
        %v723 = vunpack.c.h.b16 %v541
        %v724 = vunpack.c.l.b16 %v542
        %v725 = vunpack.c.h.b16 %v542
        %v726 = vunpack.c.l.b16 %v543
        %v727 = vunpack.c.h.b16 %v543
        %v728 = vunpack.c.l.b16 %v544
        %v729 = vunpack.c.h.b16 %v544
        %v730 = vunpack.c.l.b16 %v545
        %v731 = vunpack.c.h.b16 %v545
        %v732 = vunpack.c.l.b16 %v546
        %v733 = vunpack.c.h.b16 %v546
        %v734 = vunpack.c.l.b16 %v547
        %v735 = vunpack.c.h.b16 %v547
        %v736 = vunpack.c.l.b16 %v548
        %v737 = vunpack.c.h.b16 %v548
        %v738 = vunpack.c.l.b16 %v549
        %v739 = vunpack.c.h.b16 %v549
        %v740 = vunpack.c.l.b16 %v550
        %v741 = vunpack.c.h.b16 %v550
        %v742 = vunpack.c.l.b16 %v551
        %v743 = vunpack.c.h.b16 %v551
        %v744 = vunpack.c.l.b16 %v552
        %v745 = vunpack.c.h.b16 %v552
        %v746 = vunpack.c.l.b16 %v553
        %v747 = vunpack.c.h.b16 %v553
        %v748 = vunpack.c.l.b16 %v554
        %v749 = vunpack.c.h.b16 %v554
        %v750 = vunpack.c.l.b16 %v555
        %v751 = vunpack.c.h.b16 %v555
        %v752 = vunpack.c.l.b16 %v556
        %v753 = vunpack.c.h.b16 %v556
        %v754 = vunpack.c.l.b16 %v557
        %v755 = vunpack.c.h.b16 %v557
        %v756 = vunpack.c.l.b16 %v558
        %v757 = vunpack.c.h.b16 %v558
        %v758 = vunpack.c.l.b16 %v559
        %v759 = vunpack.c.h.b16 %v559
        %v760 = vunpack.c.l.b16 %v560
        %v761 = vunpack.c.h.b16 %v560
        %v762 = vunpack.c.l.b16 %v561
        %v763 = vunpack.c.h.b16 %v561
        %v764 = vunpack.c.l.b16 %v562
        %v765 = vunpack.c.h.b16 %v562
        %v766 = vunpack.c.l.b16 %v563
        %v767 = vunpack.c.h.b16 %v563
        %v768 = vunpack.c.l.b16 %v564
        %v769 = vunpack.c.h.b16 %v564
        %v770 = vunpack.c.l.b16 %v565
        %v771 = vunpack.c.h.b16 %v565
        %v772 = vunpack.c.l.b16 %v566
        %v773 = vunpack.c.h.b16 %v566
        %v774 = vunpack.c.l.b16 %v567
        %v775 = vunpack.c.h.b16 %v567
        %v776 = vunpack.c.l.b16 %v568
        %v777 = vunpack.c.h.b16 %v568
        %v778 = vunpack.c.l.b16 %v569
        %v779 = vunpack.c.h.b16 %v569
        %v780 = vunpack.c.l.b16 %v570
        %v781 = vunpack.c.h.b16 %v570
        %v782 = vunpack.c.l.b16 %v571
        %v783 = vunpack.c.h.b16 %v571
        %v784 = vunpack.c.l.b16 %v572
        %v785 = vunpack.c.h.b16 %v572
        %v786 = vunpack.c.l.b16 %v573
        %v787 = vunpack.c.h.b16 %v573
        %v788 = vunpack.c.l.b16 %v574
        %v789 = vunpack.c.h.b16 %v574
        %v790 = vunpack.c.l.b16 %v575
        %v791 = vunpack.c.h.b16 %v575
        %v792 = vunpack.c.l.b16 %v576
        %v793 = vunpack.c.h.b16 %v576
        %v794 = vunpack.c.l.b16 %v577
        %v795 = vunpack.c.h.b16 %v577
        %v796 = vunpack.c.l.b16 %v578
        %v797 = vunpack.c.h.b16 %v578
        %v798 = vunpack.c.l.b16 %v579
        %v799 = vunpack.c.h.b16 %v579
        %v800 = vunpack.c.l.b16 %v580
        %v801 = vunpack.c.h.b16 %v580
        %v802 = vunpack.c.l.b16 %v581
        %v803 = vunpack.c.h.b16 %v581
        %v804 = vunpack.c.l.b16 %v582
        %v805 = vunpack.c.h.b16 %v582
        %v806 = vunpack.c.l.b16 %v583
        %v807 = vunpack.c.h.b16 %v583
        %v808 = vpack.c.b16 %v684, %v680
        %v809 = vpack.c.b16 %v685, %v681
        %v810 = vpack.c.b16 %v686, %v682
        %v811 = vpack.c.b16 %v687, %v683
        %v812 = vpack.c.b16 %v692, %v688
        %v813 = vpack.c.b16 %v693, %v689
        %v814 = vpack.c.b16 %v694, %v690
        %v815 = vpack.c.b16 %v695, %v691
        %v816 = vpack.c.b16 %v700, %v696
        %v817 = vpack.c.b16 %v701, %v697
        %v818 = vpack.c.b16 %v702, %v698
        %v819 = vpack.c.b16 %v703, %v699
        %v820 = vpack.c.b16 %v708, %v704
        %v821 = vpack.c.b16 %v709, %v705
        %v822 = vpack.c.b16 %v710, %v706
        %v823 = vpack.c.b16 %v711, %v707
        %v824 = vpack.c.b16 %v716, %v712
        %v825 = vpack.c.b16 %v717, %v713
        %v826 = vpack.c.b16 %v718, %v714
        %v827 = vpack.c.b16 %v719, %v715
        %v828 = vpack.c.b16 %v724, %v720
        %v829 = vpack.c.b16 %v725, %v721
        %v830 = vpack.c.b16 %v726, %v722
        %v831 = vpack.c.b16 %v727, %v723
        %v832 = vpack.c.b16 %v732, %v728
        %v833 = vpack.c.b16 %v733, %v729
        %v834 = vpack.c.b16 %v734, %v730
        %v835 = vpack.c.b16 %v735, %v731
        %v836 = vpack.c.b16 %v740, %v736
        %v837 = vpack.c.b16 %v741, %v737
        %v838 = vpack.c.b16 %v742, %v738
        %v839 = vpack.c.b16 %v743, %v739
        %v840 = vpack.c.b16 %v748, %v744
        %v841 = vpack.c.b16 %v749, %v745
        %v842 = vpack.c.b16 %v750, %v746
        %v843 = vpack.c.b16 %v751, %v747
        %v844 = vpack.c.b16 %v756, %v752
        %v845 = vpack.c.b16 %v757, %v753
        %v846 = vpack.c.b16 %v758, %v754
        %v847 = vpack.c.b16 %v759, %v755
        %v848 = vpack.c.b16 %v764, %v760
        %v849 = vpack.c.b16 %v765, %v761
        %v850 = vpack.c.b16 %v766, %v762
        %v851 = vpack.c.b16 %v767, %v763
        %v852 = vpack.c.b16 %v772, %v768
        %v853 = vpack.c.b16 %v773, %v769
        %v854 = vpack.c.b16 %v774, %v770
        %v855 = vpack.c.b16 %v775, %v771
        %v856 = vpack.c.b16 %v780, %v776
        %v857 = vpack.c.b16 %v781, %v777
        %v858 = vpack.c.b16 %v782, %v778
        %v859 = vpack.c.b16 %v783, %v779
        %v860 = vpack.c.b16 %v788, %v784
        %v861 = vpack.c.b16 %v789, %v785
        %v862 = vpack.c.b16 %v790, %v786
        %v863 = vpack.c.b16 %v791, %v787
        %v864 = vpack.c.b16 %v796, %v792
        %v865 = vpack.c.b16 %v797, %v793
        %v866 = vpack.c.b16 %v798, %v794
        %v867 = vpack.c.b16 %v799, %v795
        %v868 = vpack.c.b16 %v804, %v800
        %v869 = vpack.c.b16 %v805, %v801
        %v870 = vpack.c.b16 %v806, %v802
        %v871 = vpack.c.b16 %v807, %v803
        %936 = vmatprep.subr.bf16.mxu0 %v809
        %937 = vmatpush1.bf16.msra.mxu0 %v808
        %938 = vmatprep.subr.bf16.mxu0 %v813
        %939 = vmatpush1.bf16.msra.mxu0 %v812
        %940 = vmatprep.subr.bf16.mxu0 %v817
        %941 = vmatpush1.bf16.msra.mxu0 %v816
        %942 = vmatprep.subr.bf16.mxu0 %v821
        %943 = vmatpush1.bf16.msra.mxu0 %v820
        %944 = vmatprep.subr.bf16.mxu0 %v825
        %945 = vmatpush1.bf16.msra.mxu0 %v824
        %946 = vmatprep.subr.bf16.mxu0 %v829
        %947 = vmatpush1.bf16.msra.mxu0 %v828
        %948 = vmatprep.subr.bf16.mxu0 %v833
        %949 = vmatpush1.bf16.msra.mxu0 %v832
        %950 = vmatprep.subr.bf16.mxu0 %v837
        %951 = vmatpush1.bf16.msra.mxu0 %v836
        %952 = vmatprep.subr.bf16.mxu0 %v841
        %953 = vmatpush1.bf16.msra.mxu0 %v840
        %954 = vmatprep.subr.bf16.mxu0 %v845
        %955 = vmatpush1.bf16.msra.mxu0 %v844
        %956 = vmatprep.subr.bf16.mxu0 %v849
        %957 = vmatpush1.bf16.msra.mxu0 %v848
        %958 = vmatprep.subr.bf16.mxu0 %v853
        %959 = vmatpush1.bf16.msra.mxu0 %v852
        %960 = vmatprep.subr.bf16.mxu0 %v857
        %961 = vmatpush1.bf16.msra.mxu0 %v856
        %962 = vmatprep.subr.bf16.mxu0 %v861
        %963 = vmatpush1.bf16.msra.mxu0 %v860
        %964 = vmatprep.subr.bf16.mxu0 %v865
        %965 = vmatpush1.bf16.msra.mxu0 %v864
        %966 = vmatprep.subr.bf16.mxu0 %v869
        %967 = vmatpush1.bf16.msra.mxu0 %v868
        %968 = vmatprep.mubr.bf16.mxu0 %v613
        %969 = vmatmul.mubr.bf16.gmra.mrb[0].mxu0 %v612
        %v970 = vpop.f32.mrb[0].mxu0
        %v971 = vadd.f32 %v589, %v970
        %v972 = vpop.f32.mrb[0].mxu0
        %v973 = vadd.f32 %v593, %v972
        %v974 = vpop.f32.mrb[0].mxu0
        %v975 = vadd.f32 %v589, %v974
        %v976 = vpop.f32.mrb[0].mxu0
        %v977 = vadd.f32 %v593, %v976
        %978 = vdwg.mxu0
        %979 = vmatprep.subr.bf16.mxu0 %v811
        %980 = vmatpush1.bf16.msra.mxu0 %v810
        %981 = vmatprep.subr.bf16.mxu0 %v815
        %982 = vmatpush1.bf16.msra.mxu0 %v814
        %983 = vmatprep.subr.bf16.mxu0 %v819
        %984 = vmatpush1.bf16.msra.mxu0 %v818
        %985 = vmatprep.subr.bf16.mxu0 %v823
        %986 = vmatpush1.bf16.msra.mxu0 %v822
        %987 = vmatprep.subr.bf16.mxu0 %v827
        %988 = vmatpush1.bf16.msra.mxu0 %v826
        %989 = vmatprep.subr.bf16.mxu0 %v831
        %990 = vmatpush1.bf16.msra.mxu0 %v830
        %991 = vmatprep.subr.bf16.mxu0 %v835
        %992 = vmatpush1.bf16.msra.mxu0 %v834
        %993 = vmatprep.subr.bf16.mxu0 %v839
        %994 = vmatpush1.bf16.msra.mxu0 %v838
        %995 = vmatprep.subr.bf16.mxu0 %v843
        %996 = vmatpush1.bf16.msra.mxu0 %v842
        %997 = vmatprep.subr.bf16.mxu0 %v847
        %998 = vmatpush1.bf16.msra.mxu0 %v846
        %999 = vmatprep.subr.bf16.mxu0 %v851
        %1000 = vmatpush1.bf16.msra.mxu0 %v850
        %1001 = vmatprep.subr.bf16.mxu0 %v855
        %1002 = vmatpush1.bf16.msra.mxu0 %v854
        %1003 = vmatprep.subr.bf16.mxu0 %v859
        %1004 = vmatpush1.bf16.msra.mxu0 %v858
        %1005 = vmatprep.subr.bf16.mxu0 %v863
        %1006 = vmatpush1.bf16.msra.mxu0 %v862
        %1007 = vmatprep.subr.bf16.mxu0 %v867
        %1008 = vmatpush1.bf16.msra.mxu0 %v866
        %1009 = vmatprep.subr.bf16.mxu0 %v871
        %1010 = vmatpush1.bf16.msra.mxu0 %v870
        %1011 = vmatprep.mubr.bf16.mxu0 %v613
        %1012 = vmatmul.mubr.bf16.gmra.mrb[0].mxu0 %v612
        %v1013 = vpop.f32.mrb[0].mxu0
        %v1014 = vadd.f32 %v597, %v1013
        %v1015 = vpop.f32.mrb[0].mxu0
        %v1016 = vadd.f32 %v601, %v1015
        %v1017 = vpop.f32.mrb[0].mxu0
        %v1018 = vadd.f32 %v597, %v1017
        %v1019 = vpop.f32.mrb[0].mxu0
        %v1020 = vadd.f32 %v601, %v1019
        %1021 = vdwg.mxu0
        %v1022 = vmul.f32 %v971, 0.5
        %v1023 = vmul.f32 %v973, 0.5
        %v1024 = vmul.f32 %v1014, 0.5
        %v1025 = vmul.f32 %v1016, 0.5
        %v1026 = vmul.f32 %v975, 0.5
        %v1027 = vmul.f32 %v977, 0.5
        %v1028 = vmul.f32 %v1018, 0.5
        %v1029 = vmul.f32 %v1020, 0.5
        %v1030 = vmul.f32 %v971, 0.70710677
        %v1031 = vmul.f32 %v973, 0.70710677
        %v1032 = vmul.f32 %v1014, 0.70710677
        %v1033 = vmul.f32 %v1016, 0.70710677
        %v1034 = vmul.f32 %v975, 0.70710677
        %v1035 = vmul.f32 %v977, 0.70710677
        %v1036 = vmul.f32 %v1018, 0.70710677
        %v1037 = vmul.f32 %v1020, 0.70710677
        %v1038 = verf.f32.pop %v1030
        %v1039 = verf.f32.pop %v1031
        %v1040 = verf.f32.pop %v1032
        %v1041 = verf.f32.pop %v1033
        %v1042 = verf.f32.pop %v1034
        %v1043 = verf.f32.pop %v1035
        %v1044 = verf.f32.pop %v1036
        %v1045 = verf.f32.pop %v1037
        %v1046 = vadd.f32 %v1038, 1.0
        %v1047 = vadd.f32 %v1039, 1.0
        %v1048 = vadd.f32 %v1040, 1.0
        %v1049 = vadd.f32 %v1041, 1.0
        %v1050 = vadd.f32 %v1042, 1.0
        %v1051 = vadd.f32 %v1043, 1.0
        %v1052 = vadd.f32 %v1044, 1.0
        %v1053 = vadd.f32 %v1045, 1.0
        %v1054 = vmul.f32 %v1022, %v1046
        %v1055 = vmul.f32 %v1023, %v1047
        %v1056 = vmul.f32 %v1024, %v1048
        %v1057 = vmul.f32 %v1025, %v1049
        %v1058 = vmul.f32 %v1026, %v1050
        %v1059 = vmul.f32 %v1027, %v1051
        %v1060 = vmul.f32 %v1028, %v1052
        %v1061 = vmul.f32 %v1029, %v1053
        %v1062 = vpack.c.bf16 %v1058, %v1054
        %v1063 = vpack.c.bf16 %v1059, %v1055
        %v1064 = vpack.c.bf16 %v1060, %v1056
        %v1065 = vpack.c.bf16 %v1061, %v1057
        %v1070 = vunpack.c.l.b16 %v1062
        %v1071 = vunpack.c.l.b16 %v1063
        %v1072 = vunpack.c.l.b16 %v1064
        %v1073 = vunpack.c.l.b16 %v1065
        %v1074 = vunpack.c.h.b16 %v1062
        %v1075 = vunpack.c.h.b16 %v1063
        %v1076 = vunpack.c.h.b16 %v1064
        %v1077 = vunpack.c.h.b16 %v1065
        %v1078 = vpack.c.b16 %v1071, %v1070
        %v1079 = vpack.c.b16 %v1073, %v1072
        %v1080 = vpack.c.b16 %v1075, %v1074
        %v1081 = vpack.c.b16 %v1077, %v1076
        %1086 = vst [vmem:[%s410] sm:$0xff] %v1078
        %1087 = vst [vmem:[%s410 + $0x8] sm:$0xff] %v1079
        %1088 = vst [vmem:[%s410 + $0x10] sm:$0x11] %v1080
        %1089 = vst [vmem:[%s410 + $0x18] sm:$0x11] %v1081
        %s1090 = sand.u32 %s158, 1
        %s1091 = sand.u32 %s158, 1
        %s1092 = smul.addr %s1091, 32
        %s1093 = scalar_lea.vmem [#allocation4], %s1092
        // Predicated region
        $region68: #{dinov2_vit_forward.16} parent=58 // pred_check
          %p1094 = pneg %p168
        $region69: #{dinov2_vit_forward.16} parent=58 // pred_check_branch
          %1096 = sbr.rel (%p1094) target = $region71
        $region70: #{dinov2_vit_forward.16} parent=58 // pred_region
          %s1097 = smul.u32 2, %s20
          %s1098 = smul.u32 4, %s21
          %s1099 = smul.addr %s1097, 8
          %s1100 = sadd.s32 %s1098, %s1099
          %s1101 = smul.addr %s1100, 4
          %s1102 = scalar_lea.vmem %s5, %s1101
          // Predicated region
          $region72: #{dinov2_vit_forward.16} parent=70 // pred_check
            _
          $region73: #{dinov2_vit_forward.16} parent=70 // pred_check_branch
            %1104 = sbr.rel (0) target = $region75
          $region74: #{dinov2_vit_forward.16} parent=70 // pred_region
            // Predicated region
            $region76: #{dinov2_vit_forward.16} parent=74 // pred_check
              _
            $region77: #{dinov2_vit_forward.16} parent=74 // pred_check_branch
              %1106 = sbr.rel (0) target = $region79
            $region78: #{dinov2_vit_forward.16} parent=74 // pred_region
              loop: start=0, step=1, limit=1
              $region80: #{dinov2_vit_forward.16} parent=78 // loop_pre_header
                _
              $region81: #{dinov2_vit_forward.16} parent=78 // loop_header
                %s1108 = sphi 0, %s1112
                %p1109 = scmp.ge.s32.totalorder %s1108, 1
                %s1113 = sphi %s1093, %s1093
                %s1114 = sphi %s1102, %s1102
              $region82: #{dinov2_vit_forward.16} parent=78 // loop_header_branch
                %1111 = sbr.rel (%p1109) target = $region86
              $region83: #{dinov2_vit_forward.16} parent=78 // loop_body
                %v1115 = vld [vmem:[%s1113] sm:$0xff]
                %1116 = vst [vmem:[%s1114] sm:$0xff] %v1115
                %v1117 = vld [vmem:[%s1113 + $0x8] sm:$0xff]
                %1118 = vst [vmem:[%s1114 + $0x8] sm:$0xff] %v1117
                %v1119 = vld [vmem:[%s1113 + $0x10] sm:$0xff]
                %1120 = vst [vmem:[%s1114 + $0x20] sm:$0xff] %v1119
                %v1121 = vld [vmem:[%s1113 + $0x18] sm:$0xff]
                %1122 = vst [vmem:[%s1114 + $0x28] sm:$0xff] %v1121
              $region84: #{dinov2_vit_forward.16} parent=78 // loop_footer
                %s1112 = sadd.s32 1, %s1108
              $region85: #{dinov2_vit_forward.16} parent=78 // loop_footer_branch
                %1107 = sbr.rel target = $region81
              $region86: #{dinov2_vit_forward.16} parent=78 // loop_exit
                _
            $region79: #{dinov2_vit_forward.16} parent=74 // pred_fallthru
              _
            // Predicated region
            $region87: #{dinov2_vit_forward.16} parent=74 // pred_check
              _
            $region88: #{dinov2_vit_forward.16} parent=74 // pred_check_branch
              %1124 = sbr.rel target = $region90
            $region89: #{dinov2_vit_forward.16} parent=74 // pred_region
              _
            $region90: #{dinov2_vit_forward.16} parent=74 // pred_fallthru
              _
          $region75: #{dinov2_vit_forward.16} parent=70 // pred_fallthru
            _
          %1125 = vnop
        $region71: #{dinov2_vit_forward.16} parent=58 // pred_fallthru
          _
      $region59: #{dinov2_vit_forward.16} parent=5 // pred_fallthru
        _
      %p1126 = scmp.le.s32.totalorder 2, %s11
      // Predicated region
      $region91: #{dinov2_vit_forward.16} parent=5 // pred_check
        %p1127 = pneg %p1126
      $region92: #{dinov2_vit_forward.16} parent=5 // pred_check_branch
        %1129 = sbr.rel (%p1127) target = $region94
      $region93: #{dinov2_vit_forward.16} parent=5 // pred_region
        %s1130 = ssub.s32 %s11, 2
        // Predicated region
        $region95: #{dinov2_vit_forward.16} parent=93 // pred_check
          %p1131 = pneg %p174
        $region96: #{dinov2_vit_forward.16} parent=93 // pred_check_branch
          %1133 = sbr.rel (%p1131) target = $region98
        $region97: #{dinov2_vit_forward.16} parent=93 // pred_region
          %s1134 = sand.u32 %s159, 1
          %s1135 = sand.u32 %s159, 1
          %s1136 = smul.addr %s1135, 32
          %s1137 = scalar_lea.vmem [#allocation4], %s1136
        $region98: #{dinov2_vit_forward.16} parent=93 // pred_fallthru
          _
      $region94: #{dinov2_vit_forward.16} parent=5 // pred_fallthru
        _
    $region6: #{dinov2_vit_forward.16} parent=1 // loop_footer
      %s15 = sadd.s32 1, %s11
    $region7: #{dinov2_vit_forward.16} parent=1 // loop_footer_branch
      %10 = sbr.rel target = $region3
    $region8: #{dinov2_vit_forward.16} parent=1 // loop_exit
      _

// kernel: dinov2_vit_forward.23
$region0: #{dinov2_vit_forward.23}
  #allocation0 [shape = 'u32[]', space=smem, size = 0x4, offset = 0x4, fixed_abs, tag = 'smem constant byte address 0x4 - core index']
  #allocation1 [shape = 'u32[144,128]{1,0:T(1,128)}', space=vmem, size = 0x12000, scoped, tag = 'internal scratch']
  %s0 = inlined_call_operand.vmem [shape: f32[2,256], index: 0, kind: input, shape index: {}]
  %s1 = inlined_call_operand.vmem [shape: f32[1,256], index: 1, kind: input, shape index: {}]
  %s2 = inlined_call_operand.vmem [shape: f32[1,256], index: 2, kind: input, shape index: {}]
  %s3 = inlined_call_operand.hbm [shape: f32[2,256], index: 3, kind: output, shape index: {}]
  %s4 = sld [smem:[#allocation0]]
  $region22: #{dinov2_vit_forward.23} parent=0
    _
  %s6 = ssub.s32 1, %s4
  %s7 = scalar_select 0, %s6, %s4
  $region1: #{dinov2_vit_forward.23} parent=0
    #allocation2 [shape = 'u8[2048]{0}', space=vmem, size = 0x800, scoped, tag = 'output window, operand 0, single buffered']
    #allocation3 [shape = 's32[1]{0}', space=sflag, size = 0x4, scoped, tag = 'scoped memory for dinov2_vit_forward.23']
    %8 = vsyncpa [#allocation3], 0
    // Predicated region
    $region2: #{dinov2_vit_forward.23} parent=1 // pred_check
      _
    $region3: #{dinov2_vit_forward.23} parent=1 // pred_check_branch
      %10 = sbr.rel (0) target = $region5
    $region4: #{dinov2_vit_forward.23} parent=1 // pred_region
      _
    $region5: #{dinov2_vit_forward.23} parent=1 // pred_fallthru
      _
    // Predicated region
    $region6: #{dinov2_vit_forward.23} parent=1 // pred_check
      _
    $region7: #{dinov2_vit_forward.23} parent=1 // pred_check_branch
      %12 = sbr.rel (0) target = $region9
    $region8: #{dinov2_vit_forward.23} parent=1 // pred_region
      _
    $region9: #{dinov2_vit_forward.23} parent=1 // pred_fallthru
      _
    // Predicated region
    $region10: #{dinov2_vit_forward.23} parent=1 // pred_check
      _
    $region11: #{dinov2_vit_forward.23} parent=1 // pred_check_branch
      %14 = sbr.rel (0) target = $region13
    $region12: #{dinov2_vit_forward.23} parent=1 // pred_region
      _
    $region13: #{dinov2_vit_forward.23} parent=1 // pred_fallthru
      _
    %v15 = vld [vmem:[%s0] sm:$0xf]
    %v18 = vunpack.c.l.s4 1983009808
    %v19 = vunpack.c.0.s8 %v18
    %v20 = vlaneseq
    %v21 = vshrl.u32 %v20, 7
    %v22 = vsub.s32 %v19, %v21
    %v23 = vrot.slane %v15, %v22
    %v24 = vcombine.high %v23, %v23
    %vm27 = vcmask 1041408
    %v28 = vsel %vm27, %v23, 0.0
    %v29 = vsel %vm27, %v24, 0.0
    %v30 = vadd.f32 %v28, %v29
    %31 = vadd.xlane.f32.xlu0 %v30
    %v32 = vpop.xlane.xlu0 %31
    %v33 = vrcp.pop 256.0
    %v34 = vmul.f32 %v32, %v33
    %v37 = vunpack.c.l.s4 269488144
    %v38 = vunpack.c.0.s8 %v37
    %v39 = vlaneseq
    %v40 = vshrl.u32 %v39, 7
    %v41 = vsub.s32 %v38, %v40
    %v42 = vrot.slane %v34, %v41
    %v44 = vsub.f32 %v15, %v42
    %v45 = vmul.f32 %v44, %v44
    %v48 = vunpack.c.l.s4 1983009808
    %v49 = vunpack.c.0.s8 %v48
    %v50 = vlaneseq
    %v51 = vshrl.u32 %v50, 7
    %v52 = vsub.s32 %v49, %v51
    %v53 = vrot.slane %v45, %v52
    %v54 = vcombine.high %v53, %v53
    %v57 = vsel %vm27, %v53, 0.0
    %v58 = vsel %vm27, %v54, 0.0
    %v59 = vadd.f32 %v57, %v58
    %60 = vadd.xlane.f32.xlu0 %v59
    %v61 = vpop.xlane.xlu0 %60
    %v62 = vmul.f32 %v61, %v33
    %v63 = vadd.f32 %v62, 1e-06
    %v64 = vrsqrt.pop %v63
    %v67 = vunpack.c.l.s4 269488144
    %v68 = vunpack.c.0.s8 %v67
    %v69 = vlaneseq
    %v70 = vshrl.u32 %v69, 7
    %v71 = vsub.s32 %v68, %v70
    %v72 = vrot.slane %v64, %v71
    %v74 = vmul.f32 %v44, %v72
    %v75 = vld [vmem:[%s1] sm:$0x3]
    %v77 = vlaneseq
    %v78 = vshrl.u32 %v77, 7
    %v79 = vsub.s32 0, %v78
    %v80 = vrot.slane %v75, %v79
    %v81 = vlaneseq
    %v82 = vshrl.u32 %v81, 7
    %v83 = vsub.s32 1, %v82
    %v84 = vrot.slane %v75, %v83
    %v85 = vcombine.low %v80, %v84
    %v87 = vunpack.c.l.s4 1983009808
    %v88 = vunpack.c.0.s8 %v87
    %v89 = vlaneseq
    %v90 = vshrl.u32 %v89, 7
    %v91 = vsub.s32 %v88, %v90
    %v92 = vrot.slane %v85, %v91
    %v94 = vmul.f32 %v74, %v92
    %v95 = vld [vmem:[%s2] sm:$0x3]
    %v97 = vlaneseq
    %v98 = vshrl.u32 %v97, 7
    %v99 = vsub.s32 0, %v98
    %v100 = vrot.slane %v95, %v99
    %v101 = vlaneseq
    %v102 = vshrl.u32 %v101, 7
    %v103 = vsub.s32 1, %v102
    %v104 = vrot.slane %v95, %v103
    %v105 = vcombine.low %v100, %v104
    %v107 = vunpack.c.l.s4 1983009808
    %v108 = vunpack.c.0.s8 %v107
    %v109 = vlaneseq
    %v110 = vshrl.u32 %v109, 7
    %v111 = vsub.s32 %v108, %v110
    %v112 = vrot.slane %v105, %v111
    %v114 = vadd.f32 %v94, %v112
    %115 = vst [vmem:[#allocation2] sm:$0xf] %v114
    // Predicated region
    $region14: #{dinov2_vit_forward.23} parent=1 // pred_check
      _
    $region15: #{dinov2_vit_forward.23} parent=1 // pred_check_branch
      %117 = sbr.rel (0) target = $region17
    $region16: #{dinov2_vit_forward.23} parent=1 // pred_region
      %s119 = ssub.s32 64, 64
      %120 = vsyncadd [#allocation3], %s119
      %s122 = sshll.u32 [#allocation2], 4
      %s123 = int_to_ptr.vmem [resolvable:$true] %s122
      %125 = dma.vmem_to_hbm [thread:$0]  %s123, 64, %s3, [#allocation3]
    $region17: #{dinov2_vit_forward.23} parent=1 // pred_fallthru
      _
    // Predicated region
    $region18: #{dinov2_vit_forward.23} parent=1 // pred_check
      _
    $region19: #{dinov2_vit_forward.23} parent=1 // pred_check_branch
      %127 = sbr.rel (0) target = $region21
    $region20: #{dinov2_vit_forward.23} parent=1 // pred_region
      %128 = dma.done [#allocation3], 64
    $region21: #{dinov2_vit_forward.23} parent=1 // pred_fallthru
      _
    %129 = vsyncpa [#allocation3], 1

// kernel: dinov2_vit_forward.17
$region0: #{dinov2_vit_forward.17}
  #allocation0 [shape = 'u32[]', space=smem, size = 0x4, offset = 0x4, fixed_abs, tag = 'smem constant byte address 0x4 - core index']
  #allocation1 [shape = 'u32[144,128]{1,0:T(1,128)}', space=vmem, size = 0x12000, scoped, tag = 'internal scratch']
  #allocation2 [shape = 'f32[10,256]{1,0:T(8,128)}', space=vmem, size = 0x4000, scoped, tag = 'scratch operand']
  %s0 = inlined_call_operand.vmem [shape: bf16[10,1024], index: 0, kind: input, shape index: {}]
  %s1 = inlined_call_operand.vmem [shape: bf16[1024,256], index: 1, kind: input, shape index: {}]
  %s2 = inlined_call_operand.vmem [shape: f32[1,256], index: 2, kind: input, shape index: {}]
  %s3 = inlined_call_operand.vmem [shape: f32[1,256], index: 3, kind: input, shape index: {}]
  %s4 = inlined_call_operand.vmem [shape: f32[10,256], index: 4, kind: input, shape index: {}]
  %s5 = inlined_call_operand.vmem [shape: f32[10,256], index: 5, kind: output, shape index: {}]
  %s6 = sld [smem:[#allocation0]]
  $region38: #{dinov2_vit_forward.17} parent=0
    _
  %s8 = ssub.s32 1, %s6
  %s9 = scalar_select 0, %s8, %s6
  // Predicated region
  $region2: #{dinov2_vit_forward.17} parent=0 // pred_check
    _
  $region3: #{dinov2_vit_forward.17} parent=0 // pred_check_branch
    %11 = sbr.rel (0) target = $region5
  $region4: #{dinov2_vit_forward.17} parent=0 // pred_region
    _
  $region5: #{dinov2_vit_forward.17} parent=0 // pred_fallthru
    _
  // Predicated region
  $region6: #{dinov2_vit_forward.17} parent=0 // pred_check
    _
  $region7: #{dinov2_vit_forward.17} parent=0 // pred_check_branch
    %13 = sbr.rel (0) target = $region9
  $region8: #{dinov2_vit_forward.17} parent=0 // pred_region
    _
  $region9: #{dinov2_vit_forward.17} parent=0 // pred_fallthru
    _
  // Predicated region
  $region10: #{dinov2_vit_forward.17} parent=0 // pred_check
    _
  $region11: #{dinov2_vit_forward.17} parent=0 // pred_check_branch
    %15 = sbr.rel (0) target = $region13
  $region12: #{dinov2_vit_forward.17} parent=0 // pred_region
    _
  $region13: #{dinov2_vit_forward.17} parent=0 // pred_fallthru
    _
  // Predicated region
  $region14: #{dinov2_vit_forward.17} parent=0 // pred_check
    _
  $region15: #{dinov2_vit_forward.17} parent=0 // pred_check_branch
    %17 = sbr.rel (0) target = $region17
  $region16: #{dinov2_vit_forward.17} parent=0 // pred_region
    _
  $region17: #{dinov2_vit_forward.17} parent=0 // pred_fallthru
    _
  // Predicated region
  $region18: #{dinov2_vit_forward.17} parent=0 // pred_check
    _
  $region19: #{dinov2_vit_forward.17} parent=0 // pred_check_branch
    %19 = sbr.rel (0) target = $region21
  $region20: #{dinov2_vit_forward.17} parent=0 // pred_region
    _
  $region21: #{dinov2_vit_forward.17} parent=0 // pred_fallthru
    _
  %p20 = scmp.eq.s32.totalorder 0, 0
  // Predicated region
  $region22: #{dinov2_vit_forward.17} parent=0 // pred_check
    %p21 = pneg %p20
  $region23: #{dinov2_vit_forward.17} parent=0 // pred_check_branch
    %23 = sbr.rel (%p21) target = $region25
  $region24: #{dinov2_vit_forward.17} parent=0 // pred_region
    %24 = vst [vmem:[#allocation2] sm:$0xff] 0.0
    %25 = vst [vmem:[#allocation2 + $0x8] sm:$0xff] 0.0
    %26 = vst [vmem:[#allocation2 + $0x10] sm:$0x3] 0.0
    %27 = vst [vmem:[#allocation2 + $0x18] sm:$0x3] 0.0
  $region25: #{dinov2_vit_forward.17} parent=0 // pred_fallthru
    _
  %v28 = vld [vmem:[#allocation2] sm:$0xff]
  %v29 = vld [vmem:[#allocation2 + $0x8] sm:$0xff]
  %v30 = vld [vmem:[#allocation2 + $0x10] sm:$0x3]
  %v31 = vld [vmem:[#allocation2 + $0x18] sm:$0x3]
  %v32 = vld [vmem:[%s0] sm:$0xff]
  %v33 = vld [vmem:[%s0 + $0x8] sm:$0xff]
  %v34 = vld [vmem:[%s0 + $0x10] sm:$0xff]
  %v35 = vld [vmem:[%s0 + $0x18] sm:$0xff]
  %v36 = vld [vmem:[%s0 + $0x20] sm:$0x11]
  %v37 = vld [vmem:[%s0 + $0x28] sm:$0x11]
  %v38 = vld [vmem:[%s0 + $0x30] sm:$0x11]
  %v39 = vld [vmem:[%s0 + $0x38] sm:$0x11]
  %v40 = vld [vmem:[%s1] sm:$0xff]
  %v41 = vld [vmem:[%s1 + $0x8] sm:$0xff]
  %v42 = vld [vmem:[%s1 + $0x10] sm:$0xff]
  %v43 = vld [vmem:[%s1 + $0x18] sm:$0xff]
  %v44 = vld [vmem:[%s1 + $0x20] sm:$0xff]
  %v45 = vld [vmem:[%s1 + $0x28] sm:$0xff]
  %v46 = vld [vmem:[%s1 + $0x30] sm:$0xff]
  %v47 = vld [vmem:[%s1 + $0x38] sm:$0xff]
  %v48 = vld [vmem:[%s1 + $0x40] sm:$0xff]
  %v49 = vld [vmem:[%s1 + $0x48] sm:$0xff]
  %v50 = vld [vmem:[%s1 + $0x50] sm:$0xff]
  %v51 = vld [vmem:[%s1 + $0x58] sm:$0xff]
  %v52 = vld [vmem:[%s1 + $0x60] sm:$0xff]
  %v53 = vld [vmem:[%s1 + $0x68] sm:$0xff]
  %v54 = vld [vmem:[%s1 + $0x70] sm:$0xff]
  %v55 = vld [vmem:[%s1 + $0x78] sm:$0xff]
  %v56 = vld [vmem:[%s1 + $0x80] sm:$0xff]
  %v57 = vld [vmem:[%s1 + $0x88] sm:$0xff]
  %v58 = vld [vmem:[%s1 + $0x90] sm:$0xff]
  %v59 = vld [vmem:[%s1 + $0x98] sm:$0xff]
  %v60 = vld [vmem:[%s1 + $0xa0] sm:$0xff]
  %v61 = vld [vmem:[%s1 + $0xa8] sm:$0xff]
  %v62 = vld [vmem:[%s1 + $0xb0] sm:$0xff]
  %v63 = vld [vmem:[%s1 + $0xb8] sm:$0xff]
  %v64 = vld [vmem:[%s1 + $0xc0] sm:$0xff]
  %v65 = vld [vmem:[%s1 + $0xc8] sm:$0xff]
  %v66 = vld [vmem:[%s1 + $0xd0] sm:$0xff]
  %v67 = vld [vmem:[%s1 + $0xd8] sm:$0xff]
  %v68 = vld [vmem:[%s1 + $0xe0] sm:$0xff]
  %v69 = vld [vmem:[%s1 + $0xe8] sm:$0xff]
  %v70 = vld [vmem:[%s1 + $0xf0] sm:$0xff]
  %v71 = vld [vmem:[%s1 + $0xf8] sm:$0xff]
  %v72 = vld [vmem:[%s1 + $0x100] sm:$0xff]
  %v73 = vld [vmem:[%s1 + $0x108] sm:$0xff]
  %v74 = vld [vmem:[%s1 + $0x110] sm:$0xff]
  %v75 = vld [vmem:[%s1 + $0x118] sm:$0xff]
  %v76 = vld [vmem:[%s1 + $0x120] sm:$0xff]
  %v77 = vld [vmem:[%s1 + $0x128] sm:$0xff]
  %v78 = vld [vmem:[%s1 + $0x130] sm:$0xff]
  %v79 = vld [vmem:[%s1 + $0x138] sm:$0xff]
  %v80 = vld [vmem:[%s1 + $0x140] sm:$0xff]
  %v81 = vld [vmem:[%s1 + $0x148] sm:$0xff]
  %v82 = vld [vmem:[%s1 + $0x150] sm:$0xff]
  %v83 = vld [vmem:[%s1 + $0x158] sm:$0xff]
  %v84 = vld [vmem:[%s1 + $0x160] sm:$0xff]
  %v85 = vld [vmem:[%s1 + $0x168] sm:$0xff]
  %v86 = vld [vmem:[%s1 + $0x170] sm:$0xff]
  %v87 = vld [vmem:[%s1 + $0x178] sm:$0xff]
  %v88 = vld [vmem:[%s1 + $0x180] sm:$0xff]
  %v89 = vld [vmem:[%s1 + $0x188] sm:$0xff]
  %v90 = vld [vmem:[%s1 + $0x190] sm:$0xff]
  %v91 = vld [vmem:[%s1 + $0x198] sm:$0xff]
  %v92 = vld [vmem:[%s1 + $0x1a0] sm:$0xff]
  %v93 = vld [vmem:[%s1 + $0x1a8] sm:$0xff]
  %v94 = vld [vmem:[%s1 + $0x1b0] sm:$0xff]
  %v95 = vld [vmem:[%s1 + $0x1b8] sm:$0xff]
  %v96 = vld [vmem:[%s1 + $0x1c0] sm:$0xff]
  %v97 = vld [vmem:[%s1 + $0x1c8] sm:$0xff]
  %v98 = vld [vmem:[%s1 + $0x1d0] sm:$0xff]
  %v99 = vld [vmem:[%s1 + $0x1d8] sm:$0xff]
  %v100 = vld [vmem:[%s1 + $0x1e0] sm:$0xff]
  %v101 = vld [vmem:[%s1 + $0x1e8] sm:$0xff]
  %v102 = vld [vmem:[%s1 + $0x1f0] sm:$0xff]
  %v103 = vld [vmem:[%s1 + $0x1f8] sm:$0xff]
  %v104 = vld [vmem:[%s1 + $0x200] sm:$0xff]
  %v105 = vld [vmem:[%s1 + $0x208] sm:$0xff]
  %v106 = vld [vmem:[%s1 + $0x210] sm:$0xff]
  %v107 = vld [vmem:[%s1 + $0x218] sm:$0xff]
  %v108 = vld [vmem:[%s1 + $0x220] sm:$0xff]
  %v109 = vld [vmem:[%s1 + $0x228] sm:$0xff]
  %v110 = vld [vmem:[%s1 + $0x230] sm:$0xff]
  %v111 = vld [vmem:[%s1 + $0x238] sm:$0xff]
  %v112 = vld [vmem:[%s1 + $0x240] sm:$0xff]
  %v113 = vld [vmem:[%s1 + $0x248] sm:$0xff]
  %v114 = vld [vmem:[%s1 + $0x250] sm:$0xff]
  %v115 = vld [vmem:[%s1 + $0x258] sm:$0xff]
  %v116 = vld [vmem:[%s1 + $0x260] sm:$0xff]
  %v117 = vld [vmem:[%s1 + $0x268] sm:$0xff]
  %v118 = vld [vmem:[%s1 + $0x270] sm:$0xff]
  %v119 = vld [vmem:[%s1 + $0x278] sm:$0xff]
  %v120 = vld [vmem:[%s1 + $0x280] sm:$0xff]
  %v121 = vld [vmem:[%s1 + $0x288] sm:$0xff]
  %v122 = vld [vmem:[%s1 + $0x290] sm:$0xff]
  %v123 = vld [vmem:[%s1 + $0x298] sm:$0xff]
  %v124 = vld [vmem:[%s1 + $0x2a0] sm:$0xff]
  %v125 = vld [vmem:[%s1 + $0x2a8] sm:$0xff]
  %v126 = vld [vmem:[%s1 + $0x2b0] sm:$0xff]
  %v127 = vld [vmem:[%s1 + $0x2b8] sm:$0xff]
  %v128 = vld [vmem:[%s1 + $0x2c0] sm:$0xff]
  %v129 = vld [vmem:[%s1 + $0x2c8] sm:$0xff]
  %v130 = vld [vmem:[%s1 + $0x2d0] sm:$0xff]
  %v131 = vld [vmem:[%s1 + $0x2d8] sm:$0xff]
  %v132 = vld [vmem:[%s1 + $0x2e0] sm:$0xff]
  %v133 = vld [vmem:[%s1 + $0x2e8] sm:$0xff]
  %v134 = vld [vmem:[%s1 + $0x2f0] sm:$0xff]
  %v135 = vld [vmem:[%s1 + $0x2f8] sm:$0xff]
  %v136 = vld [vmem:[%s1 + $0x300] sm:$0xff]
  %v137 = vld [vmem:[%s1 + $0x308] sm:$0xff]
  %v138 = vld [vmem:[%s1 + $0x310] sm:$0xff]
  %v139 = vld [vmem:[%s1 + $0x318] sm:$0xff]
  %v140 = vld [vmem:[%s1 + $0x320] sm:$0xff]
  %v141 = vld [vmem:[%s1 + $0x328] sm:$0xff]
  %v142 = vld [vmem:[%s1 + $0x330] sm:$0xff]
  %v143 = vld [vmem:[%s1 + $0x338] sm:$0xff]
  %v144 = vld [vmem:[%s1 + $0x340] sm:$0xff]
  %v145 = vld [vmem:[%s1 + $0x348] sm:$0xff]
  %v146 = vld [vmem:[%s1 + $0x350] sm:$0xff]
  %v147 = vld [vmem:[%s1 + $0x358] sm:$0xff]
  %v148 = vld [vmem:[%s1 + $0x360] sm:$0xff]
  %v149 = vld [vmem:[%s1 + $0x368] sm:$0xff]
  %v150 = vld [vmem:[%s1 + $0x370] sm:$0xff]
  %v151 = vld [vmem:[%s1 + $0x378] sm:$0xff]
  %v152 = vld [vmem:[%s1 + $0x380] sm:$0xff]
  %v153 = vld [vmem:[%s1 + $0x388] sm:$0xff]
  %v154 = vld [vmem:[%s1 + $0x390] sm:$0xff]
  %v155 = vld [vmem:[%s1 + $0x398] sm:$0xff]
  %v156 = vld [vmem:[%s1 + $0x3a0] sm:$0xff]
  %v157 = vld [vmem:[%s1 + $0x3a8] sm:$0xff]
  %v158 = vld [vmem:[%s1 + $0x3b0] sm:$0xff]
  %v159 = vld [vmem:[%s1 + $0x3b8] sm:$0xff]
  %v160 = vld [vmem:[%s1 + $0x3c0] sm:$0xff]
  %v161 = vld [vmem:[%s1 + $0x3c8] sm:$0xff]
  %v162 = vld [vmem:[%s1 + $0x3d0] sm:$0xff]
  %v163 = vld [vmem:[%s1 + $0x3d8] sm:$0xff]
  %v164 = vld [vmem:[%s1 + $0x3e0] sm:$0xff]
  %v165 = vld [vmem:[%s1 + $0x3e8] sm:$0xff]
  %v166 = vld [vmem:[%s1 + $0x3f0] sm:$0xff]
  %v167 = vld [vmem:[%s1 + $0x3f8] sm:$0xff]
  %v176 = vunpack.c.l.b16 %v32
  %v177 = vunpack.c.h.b16 %v32
  %v178 = vunpack.c.l.b16 %v33
  %v179 = vunpack.c.h.b16 %v33
  %v180 = vunpack.c.l.b16 %v34
  %v181 = vunpack.c.h.b16 %v34
  %v182 = vunpack.c.l.b16 %v35
  %v183 = vunpack.c.h.b16 %v35
  %v184 = vunpack.c.l.b16 %v36
  %v185 = vunpack.c.h.b16 %v36
  %v186 = vunpack.c.l.b16 %v37
  %v187 = vunpack.c.h.b16 %v37
  %v188 = vunpack.c.l.b16 %v38
  %v189 = vunpack.c.h.b16 %v38
  %v190 = vunpack.c.l.b16 %v39
  %v191 = vunpack.c.h.b16 %v39
  %v192 = vpack.c.b16 %v184, %v176
  %v193 = vpack.c.b16 %v185, %v177
  %v194 = vpack.c.b16 %v186, %v178
  %v195 = vpack.c.b16 %v187, %v179
  %v196 = vpack.c.b16 %v188, %v180
  %v197 = vpack.c.b16 %v189, %v181
  %v198 = vpack.c.b16 %v190, %v182
  %v199 = vpack.c.b16 %v191, %v183
  %v336 = vunpack.c.l.b16 %v40
  %v337 = vunpack.c.h.b16 %v40
  %v338 = vunpack.c.l.b16 %v41
  %v339 = vunpack.c.h.b16 %v41
  %v340 = vunpack.c.l.b16 %v42
  %v341 = vunpack.c.h.b16 %v42
  %v342 = vunpack.c.l.b16 %v43
  %v343 = vunpack.c.h.b16 %v43
  %v344 = vunpack.c.l.b16 %v44
  %v345 = vunpack.c.h.b16 %v44
  %v346 = vunpack.c.l.b16 %v45
  %v347 = vunpack.c.h.b16 %v45
  %v348 = vunpack.c.l.b16 %v46
  %v349 = vunpack.c.h.b16 %v46
  %v350 = vunpack.c.l.b16 %v47
  %v351 = vunpack.c.h.b16 %v47
  %v352 = vunpack.c.l.b16 %v48
  %v353 = vunpack.c.h.b16 %v48
  %v354 = vunpack.c.l.b16 %v49
  %v355 = vunpack.c.h.b16 %v49
  %v356 = vunpack.c.l.b16 %v50
  %v357 = vunpack.c.h.b16 %v50
  %v358 = vunpack.c.l.b16 %v51
  %v359 = vunpack.c.h.b16 %v51
  %v360 = vunpack.c.l.b16 %v52
  %v361 = vunpack.c.h.b16 %v52
  %v362 = vunpack.c.l.b16 %v53
  %v363 = vunpack.c.h.b16 %v53
  %v364 = vunpack.c.l.b16 %v54
  %v365 = vunpack.c.h.b16 %v54
  %v366 = vunpack.c.l.b16 %v55
  %v367 = vunpack.c.h.b16 %v55
  %v368 = vunpack.c.l.b16 %v56
  %v369 = vunpack.c.h.b16 %v56
  %v370 = vunpack.c.l.b16 %v57
  %v371 = vunpack.c.h.b16 %v57
  %v372 = vunpack.c.l.b16 %v58
  %v373 = vunpack.c.h.b16 %v58
  %v374 = vunpack.c.l.b16 %v59
  %v375 = vunpack.c.h.b16 %v59
  %v376 = vunpack.c.l.b16 %v60
  %v377 = vunpack.c.h.b16 %v60
  %v378 = vunpack.c.l.b16 %v61
  %v379 = vunpack.c.h.b16 %v61
  %v380 = vunpack.c.l.b16 %v62
  %v381 = vunpack.c.h.b16 %v62
  %v382 = vunpack.c.l.b16 %v63
  %v383 = vunpack.c.h.b16 %v63
  %v384 = vunpack.c.l.b16 %v64
  %v385 = vunpack.c.h.b16 %v64
  %v386 = vunpack.c.l.b16 %v65
  %v387 = vunpack.c.h.b16 %v65
  %v388 = vunpack.c.l.b16 %v66
  %v389 = vunpack.c.h.b16 %v66
  %v390 = vunpack.c.l.b16 %v67
  %v391 = vunpack.c.h.b16 %v67
  %v392 = vunpack.c.l.b16 %v68
  %v393 = vunpack.c.h.b16 %v68
  %v394 = vunpack.c.l.b16 %v69
  %v395 = vunpack.c.h.b16 %v69
  %v396 = vunpack.c.l.b16 %v70
  %v397 = vunpack.c.h.b16 %v70
  %v398 = vunpack.c.l.b16 %v71
  %v399 = vunpack.c.h.b16 %v71
  %v400 = vunpack.c.l.b16 %v72
  %v401 = vunpack.c.h.b16 %v72
  %v402 = vunpack.c.l.b16 %v73
  %v403 = vunpack.c.h.b16 %v73
  %v404 = vunpack.c.l.b16 %v74
  %v405 = vunpack.c.h.b16 %v74
  %v406 = vunpack.c.l.b16 %v75
  %v407 = vunpack.c.h.b16 %v75
  %v408 = vunpack.c.l.b16 %v76
  %v409 = vunpack.c.h.b16 %v76
  %v410 = vunpack.c.l.b16 %v77
  %v411 = vunpack.c.h.b16 %v77
  %v412 = vunpack.c.l.b16 %v78
  %v413 = vunpack.c.h.b16 %v78
  %v414 = vunpack.c.l.b16 %v79
  %v415 = vunpack.c.h.b16 %v79
  %v416 = vunpack.c.l.b16 %v80
  %v417 = vunpack.c.h.b16 %v80
  %v418 = vunpack.c.l.b16 %v81
  %v419 = vunpack.c.h.b16 %v81
  %v420 = vunpack.c.l.b16 %v82
  %v421 = vunpack.c.h.b16 %v82
  %v422 = vunpack.c.l.b16 %v83
  %v423 = vunpack.c.h.b16 %v83
  %v424 = vunpack.c.l.b16 %v84
  %v425 = vunpack.c.h.b16 %v84
  %v426 = vunpack.c.l.b16 %v85
  %v427 = vunpack.c.h.b16 %v85
  %v428 = vunpack.c.l.b16 %v86
  %v429 = vunpack.c.h.b16 %v86
  %v430 = vunpack.c.l.b16 %v87
  %v431 = vunpack.c.h.b16 %v87
  %v432 = vunpack.c.l.b16 %v88
  %v433 = vunpack.c.h.b16 %v88
  %v434 = vunpack.c.l.b16 %v89
  %v435 = vunpack.c.h.b16 %v89
  %v436 = vunpack.c.l.b16 %v90
  %v437 = vunpack.c.h.b16 %v90
  %v438 = vunpack.c.l.b16 %v91
  %v439 = vunpack.c.h.b16 %v91
  %v440 = vunpack.c.l.b16 %v92
  %v441 = vunpack.c.h.b16 %v92
  %v442 = vunpack.c.l.b16 %v93
  %v443 = vunpack.c.h.b16 %v93
  %v444 = vunpack.c.l.b16 %v94
  %v445 = vunpack.c.h.b16 %v94
  %v446 = vunpack.c.l.b16 %v95
  %v447 = vunpack.c.h.b16 %v95
  %v448 = vunpack.c.l.b16 %v96
  %v449 = vunpack.c.h.b16 %v96
  %v450 = vunpack.c.l.b16 %v97
  %v451 = vunpack.c.h.b16 %v97
  %v452 = vunpack.c.l.b16 %v98
  %v453 = vunpack.c.h.b16 %v98
  %v454 = vunpack.c.l.b16 %v99
  %v455 = vunpack.c.h.b16 %v99
  %v456 = vunpack.c.l.b16 %v100
  %v457 = vunpack.c.h.b16 %v100
  %v458 = vunpack.c.l.b16 %v101
  %v459 = vunpack.c.h.b16 %v101
  %v460 = vunpack.c.l.b16 %v102
  %v461 = vunpack.c.h.b16 %v102
  %v462 = vunpack.c.l.b16 %v103
  %v463 = vunpack.c.h.b16 %v103
  %v464 = vunpack.c.l.b16 %v104
  %v465 = vunpack.c.h.b16 %v104
  %v466 = vunpack.c.l.b16 %v105
  %v467 = vunpack.c.h.b16 %v105
  %v468 = vunpack.c.l.b16 %v106
  %v469 = vunpack.c.h.b16 %v106
  %v470 = vunpack.c.l.b16 %v107
  %v471 = vunpack.c.h.b16 %v107
  %v472 = vunpack.c.l.b16 %v108
  %v473 = vunpack.c.h.b16 %v108
  %v474 = vunpack.c.l.b16 %v109
  %v475 = vunpack.c.h.b16 %v109
  %v476 = vunpack.c.l.b16 %v110
  %v477 = vunpack.c.h.b16 %v110
  %v478 = vunpack.c.l.b16 %v111
  %v479 = vunpack.c.h.b16 %v111
  %v480 = vunpack.c.l.b16 %v112
  %v481 = vunpack.c.h.b16 %v112
  %v482 = vunpack.c.l.b16 %v113
  %v483 = vunpack.c.h.b16 %v113
  %v484 = vunpack.c.l.b16 %v114
  %v485 = vunpack.c.h.b16 %v114
  %v486 = vunpack.c.l.b16 %v115
  %v487 = vunpack.c.h.b16 %v115
  %v488 = vunpack.c.l.b16 %v116
  %v489 = vunpack.c.h.b16 %v116
  %v490 = vunpack.c.l.b16 %v117
  %v491 = vunpack.c.h.b16 %v117
  %v492 = vunpack.c.l.b16 %v118
  %v493 = vunpack.c.h.b16 %v118
  %v494 = vunpack.c.l.b16 %v119
  %v495 = vunpack.c.h.b16 %v119
  %v496 = vunpack.c.l.b16 %v120
  %v497 = vunpack.c.h.b16 %v120
  %v498 = vunpack.c.l.b16 %v121
  %v499 = vunpack.c.h.b16 %v121
  %v500 = vunpack.c.l.b16 %v122
  %v501 = vunpack.c.h.b16 %v122
  %v502 = vunpack.c.l.b16 %v123
  %v503 = vunpack.c.h.b16 %v123
  %v504 = vunpack.c.l.b16 %v124
  %v505 = vunpack.c.h.b16 %v124
  %v506 = vunpack.c.l.b16 %v125
  %v507 = vunpack.c.h.b16 %v125
  %v508 = vunpack.c.l.b16 %v126
  %v509 = vunpack.c.h.b16 %v126
  %v510 = vunpack.c.l.b16 %v127
  %v511 = vunpack.c.h.b16 %v127
  %v512 = vunpack.c.l.b16 %v128
  %v513 = vunpack.c.h.b16 %v128
  %v514 = vunpack.c.l.b16 %v129
  %v515 = vunpack.c.h.b16 %v129
  %v516 = vunpack.c.l.b16 %v130
  %v517 = vunpack.c.h.b16 %v130
  %v518 = vunpack.c.l.b16 %v131
  %v519 = vunpack.c.h.b16 %v131
  %v520 = vunpack.c.l.b16 %v132
  %v521 = vunpack.c.h.b16 %v132
  %v522 = vunpack.c.l.b16 %v133
  %v523 = vunpack.c.h.b16 %v133
  %v524 = vunpack.c.l.b16 %v134
  %v525 = vunpack.c.h.b16 %v134
  %v526 = vunpack.c.l.b16 %v135
  %v527 = vunpack.c.h.b16 %v135
  %v528 = vunpack.c.l.b16 %v136
  %v529 = vunpack.c.h.b16 %v136
  %v530 = vunpack.c.l.b16 %v137
  %v531 = vunpack.c.h.b16 %v137
  %v532 = vunpack.c.l.b16 %v138
  %v533 = vunpack.c.h.b16 %v138
  %v534 = vunpack.c.l.b16 %v139
  %v535 = vunpack.c.h.b16 %v139
  %v536 = vunpack.c.l.b16 %v140
  %v537 = vunpack.c.h.b16 %v140
  %v538 = vunpack.c.l.b16 %v141
  %v539 = vunpack.c.h.b16 %v141
  %v540 = vunpack.c.l.b16 %v142
  %v541 = vunpack.c.h.b16 %v142
  %v542 = vunpack.c.l.b16 %v143
  %v543 = vunpack.c.h.b16 %v143
  %v544 = vunpack.c.l.b16 %v144
  %v545 = vunpack.c.h.b16 %v144
  %v546 = vunpack.c.l.b16 %v145
  %v547 = vunpack.c.h.b16 %v145
  %v548 = vunpack.c.l.b16 %v146
  %v549 = vunpack.c.h.b16 %v146
  %v550 = vunpack.c.l.b16 %v147
  %v551 = vunpack.c.h.b16 %v147
  %v552 = vunpack.c.l.b16 %v148
  %v553 = vunpack.c.h.b16 %v148
  %v554 = vunpack.c.l.b16 %v149
  %v555 = vunpack.c.h.b16 %v149
  %v556 = vunpack.c.l.b16 %v150
  %v557 = vunpack.c.h.b16 %v150
  %v558 = vunpack.c.l.b16 %v151
  %v559 = vunpack.c.h.b16 %v151
  %v560 = vunpack.c.l.b16 %v152
  %v561 = vunpack.c.h.b16 %v152
  %v562 = vunpack.c.l.b16 %v153
  %v563 = vunpack.c.h.b16 %v153
  %v564 = vunpack.c.l.b16 %v154
  %v565 = vunpack.c.h.b16 %v154
  %v566 = vunpack.c.l.b16 %v155
  %v567 = vunpack.c.h.b16 %v155
  %v568 = vunpack.c.l.b16 %v156
  %v569 = vunpack.c.h.b16 %v156
  %v570 = vunpack.c.l.b16 %v157
  %v571 = vunpack.c.h.b16 %v157
  %v572 = vunpack.c.l.b16 %v158
  %v573 = vunpack.c.h.b16 %v158
  %v574 = vunpack.c.l.b16 %v159
  %v575 = vunpack.c.h.b16 %v159
  %v576 = vunpack.c.l.b16 %v160
  %v577 = vunpack.c.h.b16 %v160
  %v578 = vunpack.c.l.b16 %v161
  %v579 = vunpack.c.h.b16 %v161
  %v580 = vunpack.c.l.b16 %v162
  %v581 = vunpack.c.h.b16 %v162
  %v582 = vunpack.c.l.b16 %v163
  %v583 = vunpack.c.h.b16 %v163
  %v584 = vunpack.c.l.b16 %v164
  %v585 = vunpack.c.h.b16 %v164
  %v586 = vunpack.c.l.b16 %v165
  %v587 = vunpack.c.h.b16 %v165
  %v588 = vunpack.c.l.b16 %v166
  %v589 = vunpack.c.h.b16 %v166
  %v590 = vunpack.c.l.b16 %v167
  %v591 = vunpack.c.h.b16 %v167
  %v592 = vpack.c.b16 %v338, %v336
  %v593 = vpack.c.b16 %v339, %v337
  %v594 = vpack.c.b16 %v342, %v340
  %v595 = vpack.c.b16 %v343, %v341
  %v596 = vpack.c.b16 %v346, %v344
  %v597 = vpack.c.b16 %v347, %v345
  %v598 = vpack.c.b16 %v350, %v348
  %v599 = vpack.c.b16 %v351, %v349
  %v600 = vpack.c.b16 %v354, %v352
  %v601 = vpack.c.b16 %v355, %v353
  %v602 = vpack.c.b16 %v358, %v356
  %v603 = vpack.c.b16 %v359, %v357
  %v604 = vpack.c.b16 %v362, %v360
  %v605 = vpack.c.b16 %v363, %v361
  %v606 = vpack.c.b16 %v366, %v364
  %v607 = vpack.c.b16 %v367, %v365
  %v608 = vpack.c.b16 %v370, %v368
  %v609 = vpack.c.b16 %v371, %v369
  %v610 = vpack.c.b16 %v374, %v372
  %v611 = vpack.c.b16 %v375, %v373
  %v612 = vpack.c.b16 %v378, %v376
  %v613 = vpack.c.b16 %v379, %v377
  %v614 = vpack.c.b16 %v382, %v380
  %v615 = vpack.c.b16 %v383, %v381
  %v616 = vpack.c.b16 %v386, %v384
  %v617 = vpack.c.b16 %v387, %v385
  %v618 = vpack.c.b16 %v390, %v388
  %v619 = vpack.c.b16 %v391, %v389
  %v620 = vpack.c.b16 %v394, %v392
  %v621 = vpack.c.b16 %v395, %v393
  %v622 = vpack.c.b16 %v398, %v396
  %v623 = vpack.c.b16 %v399, %v397
  %v624 = vpack.c.b16 %v402, %v400
  %v625 = vpack.c.b16 %v403, %v401
  %v626 = vpack.c.b16 %v406, %v404
  %v627 = vpack.c.b16 %v407, %v405
  %v628 = vpack.c.b16 %v410, %v408
  %v629 = vpack.c.b16 %v411, %v409
  %v630 = vpack.c.b16 %v414, %v412
  %v631 = vpack.c.b16 %v415, %v413
  %v632 = vpack.c.b16 %v418, %v416
  %v633 = vpack.c.b16 %v419, %v417
  %v634 = vpack.c.b16 %v422, %v420
  %v635 = vpack.c.b16 %v423, %v421
  %v636 = vpack.c.b16 %v426, %v424
  %v637 = vpack.c.b16 %v427, %v425
  %v638 = vpack.c.b16 %v430, %v428
  %v639 = vpack.c.b16 %v431, %v429
  %v640 = vpack.c.b16 %v434, %v432
  %v641 = vpack.c.b16 %v435, %v433
  %v642 = vpack.c.b16 %v438, %v436
  %v643 = vpack.c.b16 %v439, %v437
  %v644 = vpack.c.b16 %v442, %v440
  %v645 = vpack.c.b16 %v443, %v441
  %v646 = vpack.c.b16 %v446, %v444
  %v647 = vpack.c.b16 %v447, %v445
  %v648 = vpack.c.b16 %v450, %v448
  %v649 = vpack.c.b16 %v451, %v449
  %v650 = vpack.c.b16 %v454, %v452
  %v651 = vpack.c.b16 %v455, %v453
  %v652 = vpack.c.b16 %v458, %v456
  %v653 = vpack.c.b16 %v459, %v457
  %v654 = vpack.c.b16 %v462, %v460
  %v655 = vpack.c.b16 %v463, %v461
  %v656 = vpack.c.b16 %v466, %v464
  %v657 = vpack.c.b16 %v467, %v465
  %v658 = vpack.c.b16 %v470, %v468
  %v659 = vpack.c.b16 %v471, %v469
  %v660 = vpack.c.b16 %v474, %v472
  %v661 = vpack.c.b16 %v475, %v473
  %v662 = vpack.c.b16 %v478, %v476
  %v663 = vpack.c.b16 %v479, %v477
  %v664 = vpack.c.b16 %v482, %v480
  %v665 = vpack.c.b16 %v483, %v481
  %v666 = vpack.c.b16 %v486, %v484
  %v667 = vpack.c.b16 %v487, %v485
  %v668 = vpack.c.b16 %v490, %v488
  %v669 = vpack.c.b16 %v491, %v489
  %v670 = vpack.c.b16 %v494, %v492
  %v671 = vpack.c.b16 %v495, %v493
  %v672 = vpack.c.b16 %v498, %v496
  %v673 = vpack.c.b16 %v499, %v497
  %v674 = vpack.c.b16 %v502, %v500
  %v675 = vpack.c.b16 %v503, %v501
  %v676 = vpack.c.b16 %v506, %v504
  %v677 = vpack.c.b16 %v507, %v505
  %v678 = vpack.c.b16 %v510, %v508
  %v679 = vpack.c.b16 %v511, %v509
  %v680 = vpack.c.b16 %v514, %v512
  %v681 = vpack.c.b16 %v515, %v513
  %v682 = vpack.c.b16 %v518, %v516
  %v683 = vpack.c.b16 %v519, %v517
  %v684 = vpack.c.b16 %v522, %v520
  %v685 = vpack.c.b16 %v523, %v521
  %v686 = vpack.c.b16 %v526, %v524
  %v687 = vpack.c.b16 %v527, %v525
  %v688 = vpack.c.b16 %v530, %v528
  %v689 = vpack.c.b16 %v531, %v529
  %v690 = vpack.c.b16 %v534, %v532
  %v691 = vpack.c.b16 %v535, %v533
  %v692 = vpack.c.b16 %v538, %v536
  %v693 = vpack.c.b16 %v539, %v537
  %v694 = vpack.c.b16 %v542, %v540
  %v695 = vpack.c.b16 %v543, %v541
  %v696 = vpack.c.b16 %v546, %v544
  %v697 = vpack.c.b16 %v547, %v545
  %v698 = vpack.c.b16 %v550, %v548
  %v699 = vpack.c.b16 %v551, %v549
  %v700 = vpack.c.b16 %v554, %v552
  %v701 = vpack.c.b16 %v555, %v553
  %v702 = vpack.c.b16 %v558, %v556
  %v703 = vpack.c.b16 %v559, %v557
  %v704 = vpack.c.b16 %v562, %v560
  %v705 = vpack.c.b16 %v563, %v561
  %v706 = vpack.c.b16 %v566, %v564
  %v707 = vpack.c.b16 %v567, %v565
  %v708 = vpack.c.b16 %v570, %v568
  %v709 = vpack.c.b16 %v571, %v569
  %v710 = vpack.c.b16 %v574, %v572
  %v711 = vpack.c.b16 %v575, %v573
  %v712 = vpack.c.b16 %v578, %v576
  %v713 = vpack.c.b16 %v579, %v577
  %v714 = vpack.c.b16 %v582, %v580
  %v715 = vpack.c.b16 %v583, %v581
  %v716 = vpack.c.b16 %v586, %v584
  %v717 = vpack.c.b16 %v587, %v585
  %v718 = vpack.c.b16 %v590, %v588
  %v719 = vpack.c.b16 %v591, %v589
  %848 = vmatprep.subr.bf16.mxu0 %v593
  %849 = vmatpush1.bf16.msra.mxu0 %v592
  %850 = vmatprep.subr.bf16.mxu0 %v595
  %851 = vmatpush1.bf16.msra.mxu0 %v594
  %852 = vmatprep.subr.bf16.mxu0 %v597
  %853 = vmatpush1.bf16.msra.mxu0 %v596
  %854 = vmatprep.subr.bf16.mxu0 %v599
  %855 = vmatpush1.bf16.msra.mxu0 %v598
  %856 = vmatprep.subr.bf16.mxu0 %v601
  %857 = vmatpush1.bf16.msra.mxu0 %v600
  %858 = vmatprep.subr.bf16.mxu0 %v603
  %859 = vmatpush1.bf16.msra.mxu0 %v602
  %860 = vmatprep.subr.bf16.mxu0 %v605
  %861 = vmatpush1.bf16.msra.mxu0 %v604
  %862 = vmatprep.subr.bf16.mxu0 %v607
  %863 = vmatpush1.bf16.msra.mxu0 %v606
  %864 = vmatprep.subr.bf16.mxu0 %v609
  %865 = vmatpush1.bf16.msra.mxu0 %v608
  %866 = vmatprep.subr.bf16.mxu0 %v611
  %867 = vmatpush1.bf16.msra.mxu0 %v610
  %868 = vmatprep.subr.bf16.mxu0 %v613
  %869 = vmatpush1.bf16.msra.mxu0 %v612
  %870 = vmatprep.subr.bf16.mxu0 %v615
  %871 = vmatpush1.bf16.msra.mxu0 %v614
  %872 = vmatprep.subr.bf16.mxu0 %v617
  %873 = vmatpush1.bf16.msra.mxu0 %v616
  %874 = vmatprep.subr.bf16.mxu0 %v619
  %875 = vmatpush1.bf16.msra.mxu0 %v618
  %876 = vmatprep.subr.bf16.mxu0 %v621
  %877 = vmatpush1.bf16.msra.mxu0 %v620
  %878 = vmatprep.subr.bf16.mxu0 %v623
  %879 = vmatpush1.bf16.msra.mxu0 %v622
  %880 = vmatprep.mubr.bf16.mxu0 %v193
  %881 = vmatmul.mubr.bf16.gmra.mrb[0].mxu0 %v192
  %v882 = vpop.f32.mrb[0].mxu0
  %v883 = vadd.f32 0.0, %v882
  %v884 = vpop.f32.mrb[0].mxu0
  %v885 = vadd.f32 0.0, %v884
  %v886 = vpop.f32.mrb[0].mxu0
  %v887 = vadd.f32 0.0, %v886
  %v888 = vpop.f32.mrb[0].mxu0
  %v889 = vadd.f32 0.0, %v888
  %890 = vdwg.mxu0
  %891 = vmatprep.subr.bf16.mxu0 %v625
  %892 = vmatpush1.bf16.msra.mxu0 %v624
  %893 = vmatprep.subr.bf16.mxu0 %v627
  %894 = vmatpush1.bf16.msra.mxu0 %v626
  %895 = vmatprep.subr.bf16.mxu0 %v629
  %896 = vmatpush1.bf16.msra.mxu0 %v628
  %897 = vmatprep.subr.bf16.mxu0 %v631
  %898 = vmatpush1.bf16.msra.mxu0 %v630
  %899 = vmatprep.subr.bf16.mxu0 %v633
  %900 = vmatpush1.bf16.msra.mxu0 %v632
  %901 = vmatprep.subr.bf16.mxu0 %v635
  %902 = vmatpush1.bf16.msra.mxu0 %v634
  %903 = vmatprep.subr.bf16.mxu0 %v637
  %904 = vmatpush1.bf16.msra.mxu0 %v636
  %905 = vmatprep.subr.bf16.mxu0 %v639
  %906 = vmatpush1.bf16.msra.mxu0 %v638
  %907 = vmatprep.subr.bf16.mxu0 %v641
  %908 = vmatpush1.bf16.msra.mxu0 %v640
  %909 = vmatprep.subr.bf16.mxu0 %v643
  %910 = vmatpush1.bf16.msra.mxu0 %v642
  %911 = vmatprep.subr.bf16.mxu0 %v645
  %912 = vmatpush1.bf16.msra.mxu0 %v644
  %913 = vmatprep.subr.bf16.mxu0 %v647
  %914 = vmatpush1.bf16.msra.mxu0 %v646
  %915 = vmatprep.subr.bf16.mxu0 %v649
  %916 = vmatpush1.bf16.msra.mxu0 %v648
  %917 = vmatprep.subr.bf16.mxu0 %v651
  %918 = vmatpush1.bf16.msra.mxu0 %v650
  %919 = vmatprep.subr.bf16.mxu0 %v653
  %920 = vmatpush1.bf16.msra.mxu0 %v652
  %921 = vmatprep.subr.bf16.mxu0 %v655
  %922 = vmatpush1.bf16.msra.mxu0 %v654
  %923 = vmatprep.mubr.bf16.mxu0 %v195
  %924 = vmatmul.mubr.bf16.gmra.mrb[0].mxu0 %v194
  %v925 = vpop.f32.mrb[0].mxu0
  %v926 = vadd.f32 %v883, %v925
  %v927 = vpop.f32.mrb[0].mxu0
  %v928 = vadd.f32 %v885, %v927
  %v929 = vpop.f32.mrb[0].mxu0
  %v930 = vadd.f32 %v887, %v929
  %v931 = vpop.f32.mrb[0].mxu0
  %v932 = vadd.f32 %v889, %v931
  %933 = vdwg.mxu0
  %934 = vmatprep.subr.bf16.mxu0 %v657
  %935 = vmatpush1.bf16.msra.mxu0 %v656
  %936 = vmatprep.subr.bf16.mxu0 %v659
  %937 = vmatpush1.bf16.msra.mxu0 %v658
  %938 = vmatprep.subr.bf16.mxu0 %v661
  %939 = vmatpush1.bf16.msra.mxu0 %v660
  %940 = vmatprep.subr.bf16.mxu0 %v663
  %941 = vmatpush1.bf16.msra.mxu0 %v662
  %942 = vmatprep.subr.bf16.mxu0 %v665
  %943 = vmatpush1.bf16.msra.mxu0 %v664
  %944 = vmatprep.subr.bf16.mxu0 %v667
  %945 = vmatpush1.bf16.msra.mxu0 %v666
  %946 = vmatprep.subr.bf16.mxu0 %v669
  %947 = vmatpush1.bf16.msra.mxu0 %v668
  %948 = vmatprep.subr.bf16.mxu0 %v671
  %949 = vmatpush1.bf16.msra.mxu0 %v670
  %950 = vmatprep.subr.bf16.mxu0 %v673
  %951 = vmatpush1.bf16.msra.mxu0 %v672
  %952 = vmatprep.subr.bf16.mxu0 %v675
  %953 = vmatpush1.bf16.msra.mxu0 %v674
  %954 = vmatprep.subr.bf16.mxu0 %v677
  %955 = vmatpush1.bf16.msra.mxu0 %v676
  %956 = vmatprep.subr.bf16.mxu0 %v679
  %957 = vmatpush1.bf16.msra.mxu0 %v678
  %958 = vmatprep.subr.bf16.mxu0 %v681
  %959 = vmatpush1.bf16.msra.mxu0 %v680
  %960 = vmatprep.subr.bf16.mxu0 %v683
  %961 = vmatpush1.bf16.msra.mxu0 %v682
  %962 = vmatprep.subr.bf16.mxu0 %v685
  %963 = vmatpush1.bf16.msra.mxu0 %v684
  %964 = vmatprep.subr.bf16.mxu0 %v687
  %965 = vmatpush1.bf16.msra.mxu0 %v686
  %966 = vmatprep.mubr.bf16.mxu0 %v197
  %967 = vmatmul.mubr.bf16.gmra.mrb[0].mxu0 %v196
  %v968 = vpop.f32.mrb[0].mxu0
  %v969 = vadd.f32 %v926, %v968
  %v970 = vpop.f32.mrb[0].mxu0
  %v971 = vadd.f32 %v928, %v970
  %v972 = vpop.f32.mrb[0].mxu0
  %v973 = vadd.f32 %v930, %v972
  %v974 = vpop.f32.mrb[0].mxu0
  %v975 = vadd.f32 %v932, %v974
  %976 = vdwg.mxu0
  %977 = vmatprep.subr.bf16.mxu0 %v689
  %978 = vmatpush1.bf16.msra.mxu0 %v688
  %979 = vmatprep.subr.bf16.mxu0 %v691
  %980 = vmatpush1.bf16.msra.mxu0 %v690
  %981 = vmatprep.subr.bf16.mxu0 %v693
  %982 = vmatpush1.bf16.msra.mxu0 %v692
  %983 = vmatprep.subr.bf16.mxu0 %v695
  %984 = vmatpush1.bf16.msra.mxu0 %v694
  %985 = vmatprep.subr.bf16.mxu0 %v697
  %986 = vmatpush1.bf16.msra.mxu0 %v696
  %987 = vmatprep.subr.bf16.mxu0 %v699
  %988 = vmatpush1.bf16.msra.mxu0 %v698
  %989 = vmatprep.subr.bf16.mxu0 %v701
  %990 = vmatpush1.bf16.msra.mxu0 %v700
  %991 = vmatprep.subr.bf16.mxu0 %v703
  %992 = vmatpush1.bf16.msra.mxu0 %v702
  %993 = vmatprep.subr.bf16.mxu0 %v705
  %994 = vmatpush1.bf16.msra.mxu0 %v704
  %995 = vmatprep.subr.bf16.mxu0 %v707
  %996 = vmatpush1.bf16.msra.mxu0 %v706
  %997 = vmatprep.subr.bf16.mxu0 %v709
  %998 = vmatpush1.bf16.msra.mxu0 %v708
  %999 = vmatprep.subr.bf16.mxu0 %v711
  %1000 = vmatpush1.bf16.msra.mxu0 %v710
  %1001 = vmatprep.subr.bf16.mxu0 %v713
  %1002 = vmatpush1.bf16.msra.mxu0 %v712
  %1003 = vmatprep.subr.bf16.mxu0 %v715
  %1004 = vmatpush1.bf16.msra.mxu0 %v714
  %1005 = vmatprep.subr.bf16.mxu0 %v717
  %1006 = vmatpush1.bf16.msra.mxu0 %v716
  %1007 = vmatprep.subr.bf16.mxu0 %v719
  %1008 = vmatpush1.bf16.msra.mxu0 %v718
  %1009 = vmatprep.mubr.bf16.mxu0 %v199
  %1010 = vmatmul.mubr.bf16.gmra.mrb[0].mxu0 %v198
  %v1011 = vpop.f32.mrb[0].mxu0
  %v1012 = vadd.f32 %v969, %v1011
  %v1013 = vpop.f32.mrb[0].mxu0
  %v1014 = vadd.f32 %v971, %v1013
  %v1015 = vpop.f32.mrb[0].mxu0
  %v1016 = vadd.f32 %v973, %v1015
  %v1017 = vpop.f32.mrb[0].mxu0
  %v1018 = vadd.f32 %v975, %v1017
  %1019 = vdwg.mxu0
  %v1020 = vadd.f32 %v28, %v1012
  %v1021 = vadd.f32 %v29, %v1014
  %v1022 = vadd.f32 %v30, %v1016
  %v1023 = vadd.f32 %v31, %v1018
  %1024 = vst [vmem:[#allocation2] sm:$0xff] %v1020
  %1025 = vst [vmem:[#allocation2 + $0x8] sm:$0xff] %v1021
  %1026 = vst [vmem:[#allocation2 + $0x10] sm:$0x3] %v1022
  %1027 = vst [vmem:[#allocation2 + $0x18] sm:$0x3] %v1023
  // Predicated region
  $region26: #{dinov2_vit_forward.17} parent=0 // pred_check
    %p1028 = pneg %p20
  $region27: #{dinov2_vit_forward.17} parent=0 // pred_check_branch
    %1030 = sbr.rel (%p1028) target = $region29
  $region28: #{dinov2_vit_forward.17} parent=0 // pred_region
    %v1031 = vld [vmem:[#allocation2] sm:$0xff]
    %v1032 = vld [vmem:[#allocation2 + $0x8] sm:$0xff]
    %v1033 = vld [vmem:[#allocation2 + $0x10] sm:$0x3]
    %v1034 = vld [vmem:[#allocation2 + $0x18] sm:$0x3]
    %v1035 = vld [vmem:[%s2] sm:$0x3]
    %v1037 = vlaneseq
    %v1038 = vshrl.u32 %v1037, 7
    %v1039 = vsub.s32 0, %v1038
    %v1040 = vrot.slane %v1035, %v1039
    %v1041 = vlaneseq
    %v1042 = vshrl.u32 %v1041, 7
    %v1043 = vsub.s32 1, %v1042
    %v1044 = vrot.slane %v1035, %v1043
    %v1047 = vadd.f32 %v1031, %v1040
    %v1048 = vadd.f32 %v1032, %v1044
    %v1049 = vadd.f32 %v1033, %v1040
    %v1050 = vadd.f32 %v1034, %v1044
    %v1051 = vld [vmem:[%s4] sm:$0xff]
    %v1052 = vld [vmem:[%s4 + $0x8] sm:$0xff]
    %v1053 = vld [vmem:[%s4 + $0x10] sm:$0x3]
    %v1054 = vld [vmem:[%s4 + $0x18] sm:$0x3]
    %v1055 = vld [vmem:[%s3] sm:$0x3]
    %v1057 = vlaneseq
    %v1058 = vshrl.u32 %v1057, 7
    %v1059 = vsub.s32 0, %v1058
    %v1060 = vrot.slane %v1055, %v1059
    %v1061 = vlaneseq
    %v1062 = vshrl.u32 %v1061, 7
    %v1063 = vsub.s32 1, %v1062
    %v1064 = vrot.slane %v1055, %v1063
    %v1067 = vmul.f32 %v1060, %v1047
    %v1068 = vmul.f32 %v1064, %v1048
    %v1069 = vmul.f32 %v1060, %v1049
    %v1070 = vmul.f32 %v1064, %v1050
    %v1071 = vadd.f32 %v1051, %v1067
    %v1072 = vadd.f32 %v1052, %v1068
    %v1073 = vadd.f32 %v1053, %v1069
    %v1074 = vadd.f32 %v1054, %v1070
    %1075 = vst [vmem:[%s5] sm:$0xff] %v1071
    %1076 = vst [vmem:[%s5 + $0x8] sm:$0xff] %v1072
    %1077 = vst [vmem:[%s5 + $0x10] sm:$0x3] %v1073
    %1078 = vst [vmem:[%s5 + $0x18] sm:$0x3] %v1074
  $region29: #{dinov2_vit_forward.17} parent=0 // pred_fallthru
    _
  // Predicated region
  $region30: #{dinov2_vit_forward.17} parent=0 // pred_check
    _
  $region31: #{dinov2_vit_forward.17} parent=0 // pred_check_branch
    %1080 = sbr.rel (0) target = $region33
  $region32: #{dinov2_vit_forward.17} parent=0 // pred_region
    _
  $region33: #{dinov2_vit_forward.17} parent=0 // pred_fallthru
    _
  // Predicated region
  $region34: #{dinov2_vit_forward.17} parent=0 // pred_check
    _
  $region35: #{dinov2_vit_forward.17} parent=0 // pred_check_branch
    %1082 = sbr.rel (0) target = $region37
  $region36: #{dinov2_vit_forward.17} parent=0 // pred_region
    _
  $region37: #{dinov2_vit_forward.17} parent=0 // pred_fallthru
    _

</llo_original>
